<compile_context>
chip_gen: v6e
topology: v6e:2x2x1
jax: 0.10.0
libtpu: 0.0.40
codegen_flags: <defaults>
</compile_context>

<pallas_src>
import functools

import jax
import jax.numpy as jnp
import numpy as np
from jax import lax
from jax.experimental import pallas as pl
from jax.experimental.pallas import tpu as pltpu


def _round_up(a, m):
    return (a + m - 1) // m * m


def _vmem_limit_bytes(request_bytes):
    """Generation-aware VMEM limit: ~80% of physical capacity as the ceiling."""
    try:
        cap = int(pltpu.get_tpu_info().vmem_capacity_bytes)
    except Exception:
        cap = 64 << 20            # v7x per-TensorCore capacity (the smallest)
    ceiling = int(cap * 0.8)
    return int(min(max(int(request_bytes), 32 << 20), ceiling))


# ---------------------------------------------------------------------------
# Fused kernel: qkv projection + flash attention + output projection
# ---------------------------------------------------------------------------
def _msa_fused_kernel(xq_ref, xkv_ref, wq_ref, wk_ref, wv_ref, wo_ref, b_ref,
                      o_ref, qh_sc, kh_sc, vh_sc, m_sc, l_sc, acc_sc, *,
                      num_heads, seq_len, block_k, single_kv_tile):
    ki = pl.program_id(2)
    dtype = xq_ref.dtype

    # -- per-head q projection: once per q tile, persists in VMEM scratch ----
    # (softmax scale is pre-folded into Wq by the wrapper.)
    @pl.when(ki == 0)
    def _():
        xq = xq_ref[0]                                        # (blk_q, C)
        for h in range(num_heads):                            # safe 2-D dots
            qh_sc[h] = jnp.dot(xq, wq_ref[h],
                               preferred_element_type=jnp.float32).astype(dtype)
        if not single_kv_tile:
            # f32 sentinels: -1e30 (not -inf) keeps exp(m_prev - m_new) finite.
            m_sc[...] = jnp.full_like(m_sc, -1e30)
            l_sc[...] = jnp.zeros_like(l_sc)
            acc_sc[...] = jnp.zeros_like(acc_sc)

    # -- per-head k/v projection for this kv tile -----------------------------
    # NOTE: the N-dim of these dots is hd (<= 96), so the MXU is width
    # underfilled; the kernel is DMA/VPU bound here, not MXU bound.
    xkv = xkv_ref[0]                                          # (blk_k, C)
    for h in range(num_heads):
        kh_sc[h] = jnp.dot(xkv, wk_ref[h],
                           preferred_element_type=jnp.float32).astype(dtype)
        vh_sc[h] = jnp.dot(xkv, wv_ref[h],
                           preferred_element_type=jnp.float32).astype(dtype)

    q = qh_sc[...]                                            # (H, blk_q, hd)
    k = kh_sc[...]                                            # (H, blk_k, hd)
    v = vh_sc[...]                                            # (H, blk_k, hd)

    # All heads in one rhs-transposed batched matmul, f32 accumulation.
    s = jnp.einsum("hqd,hkd->hqk", q, k,
                   preferred_element_type=jnp.float32)        # (H, blk_q, blk_k)

    if seq_len % block_k != 0:
        # Only generated when zero-padding exists (trace-time gate).
        kpos = ki * block_k + lax.broadcasted_iota(jnp.int32, (1, 1, block_k), 2)
        s = jnp.where(kpos < seq_len, s, -1e30)

    def _finalize(ctx_f32):
        # Head merge folded into the output projection -> lane-dense (blk_q, C).
        ctx = ctx_f32.astype(dtype)                           # (H, blk_q, hd)
        y = jnp.einsum("hqd,hdo->hqo", ctx, wo_ref[...],
                       preferred_element_type=jnp.float32)    # (H, blk_q, Cout)
        y = jnp.sum(y, axis=0) + b_ref[...].astype(jnp.float32)
        o_ref[0] = y.astype(o_ref.dtype)

    if single_kv_tile:
        # Fast path: a single kv tile needs no online-softmax machinery.
        m = jnp.max(s, axis=-1, keepdims=True)
        p = jnp.exp(s - m)
        l = jnp.sum(p, axis=-1, keepdims=True)
        ctx = jnp.einsum("hqk,hkd->hqd", p.astype(dtype), v,
                         preferred_element_type=jnp.float32) / l
        _finalize(ctx)
    else:
        m_prev = m_sc[...]
        m_new = jnp.maximum(m_prev, jnp.max(s, axis=-1, keepdims=True))
        alpha = jnp.exp(m_prev - m_new)
        p = jnp.exp(s - m_new)
        l_sc[...] = alpha * l_sc[...] + jnp.sum(p, axis=-1, keepdims=True)
        acc_sc[...] = alpha * acc_sc[...] + jnp.einsum(
            "hqk,hkd->hqd", p.astype(dtype), v,
            preferred_element_type=jnp.float32)
        m_sc[...] = m_new

        @pl.when(ki == pl.num_programs(2) - 1)
        def _():
            # Exact divide at finalize (once per q tile).
            _finalize(acc_sc[...] / l_sc[...])


def _run_fused(x, wq, wk, wv, wo, bias, *, num_heads, seq_len, blk_q, blk_k,
               single_buffer_weights):
    B, N_pad, C = x.shape
    hd = C // num_heads
    Cout = wo.shape[-1]
    q_tiles = N_pad // blk_q
    kv_tiles = N_pad // blk_k

    def _resident(shape):
        idx = lambda *_: (0,) * len(shape)
        if single_buffer_weights:
            # Constant index_map -> double buffering is pure VMEM waste.
            return pl.BlockSpec(shape, idx, pipeline_mode=pl.Buffered(1))
        return pl.BlockSpec(shape, idx)

    kernel = functools.partial(
        _msa_fused_kernel, num_heads=num_heads, seq_len=seq_len,
        block_k=blk_k, single_kv_tile=(kv_tiles == 1))

    itemsize = x.dtype.itemsize
    block_bytes = ((blk_q + blk_k) * C + blk_q * Cout) * itemsize \
        + (3 * C * C + C * Cout + Cout) * itemsize
    scratch_bytes = (blk_q + 2 * blk_k) * C * itemsize \
        + (blk_q * C + 2 * blk_q * num_heads) * 4
    vmem = _vmem_limit_bytes(2 * block_bytes + scratch_bytes + (8 << 20))

    return pl.pallas_call(
        kernel,
        out_shape=jax.ShapeDtypeStruct((B, N_pad, Cout), x.dtype),
        grid=(B, q_tiles, kv_tiles),
        in_specs=[
            pl.BlockSpec((1, blk_q, C), lambda b, qi, ki: (b, qi, 0)),  # x: q rows
            pl.BlockSpec((1, blk_k, C), lambda b, qi, ki: (b, ki, 0)),  # x: kv rows
            _resident((num_heads, C, hd)),                              # Wq (scaled)
            _resident((num_heads, C, hd)),                              # Wk
            _resident((num_heads, C, hd)),                              # Wv
            _resident((num_heads, hd, Cout)),                           # Wproj
            _resident((1, Cout)),                                       # bias
        ],
        out_specs=pl.BlockSpec((1, blk_q, Cout), lambda b, qi, ki: (b, qi, 0)),
        scratch_shapes=[
            pltpu.VMEM((num_heads, blk_q, hd), x.dtype),      # q heads
            pltpu.VMEM((num_heads, blk_k, hd), x.dtype),      # k heads
            pltpu.VMEM((num_heads, blk_k, hd), x.dtype),      # v heads
            pltpu.VMEM((num_heads, blk_q, 1), jnp.float32),   # running max m
            pltpu.VMEM((num_heads, blk_q, 1), jnp.float32),   # running sum l
            pltpu.VMEM((num_heads, blk_q, hd), jnp.float32),  # ctx accumulator
        ],
        compiler_params=pltpu.CompilerParams(
            dimension_semantics=("parallel", "parallel", "arbitrary"),
            vmem_limit_bytes=vmem),
    )(x, x, wq, wk, wv, wo, bias)


# ---------------------------------------------------------------------------
# Wrapper: MultiScaleAttention.forward (default, pool-free config)
# ---------------------------------------------------------------------------
def multi_scale_attention(x, thw_shape, wqkv, wproj, bproj, num_heads, *,
                          max_q_block=256, max_kv_block=512):
    """x: (B, N, C) with N = 1 + T*H*W. Returns (out, q_shape)."""
    B, N, C = x.shape
    assert C % num_heads == 0
    hd = C // num_heads
    scale = float(hd) ** -0.5

    # q tile: multiple of 8; kv tile: a multiple of the q tile so one padded
    # length serves both grid axes.
    blk_q = min(max_q_block, _round_up(N, 8))
    blk_k = max(blk_q, min(max_kv_block, _round_up(N, 8)))
    blk_k = (blk_k // blk_q) * blk_q
    N_pad = _round_up(N, blk_k)
    if N_pad != N:
        # Padded rows are zeros: padded keys are masked in-kernel, padded query
        # rows produce garbage that is sliced away below.
        x = jnp.pad(x, ((0, 0), (0, N_pad - N), (0, 0)))

    # One-time weight prep (outside the O(N^2) hot path): per-head projection
    # weights with the softmax scale folded into Wq.
    wq = (wqkv[:, :C] * scale).reshape(C, num_heads, hd).transpose(1, 0, 2)
    wk = wqkv[:, C:2 * C].reshape(C, num_heads, hd).transpose(1, 0, 2)
    wv = wqkv[:, 2 * C:].reshape(C, num_heads, hd).transpose(1, 0, 2)
    wo = wproj.reshape(num_heads, hd, wproj.shape[1])
    bias = bproj.reshape(1, -1)

    run = functools.partial(_run_fused, x, wq, wk, wv, wo, bias,
                            num_heads=num_heads, seq_len=N,
                            blk_q=blk_q, blk_k=blk_k)
    try:
        y = run(single_buffer_weights=True)
    except Exception:
        # TODO(synk): drop fallback once pl.Buffered(1) pipeline_mode is
        # guaranteed by the deployed JAX version.
        y = run(single_buffer_weights=False)

    # No pooling for the default config (kernel_q == kernel_kv == (1,1,1)).
    return y[:, :N, :], list(thw_shape)


def _reference(x, wqkv, wproj, bproj, num_heads):
    """Pure-JAX reference mirroring the PyTorch forward (default config)."""
    B, N, C = x.shape
    hd = C // num_heads
    scale = hd ** -0.5
    qkv = (x @ wqkv).reshape(B, N, 3, num_heads, hd)
    qkv = jnp.transpose(qkv, (2, 0, 3, 1, 4))                 # (3, B, H, N, hd)
    q, k, v = qkv[0], qkv[1], qkv[2]
    attn = jnp.einsum("bhnd,bhmd->bhnm", q, k) * scale
    attn = jax.nn.softmax(attn, axis=-1)
    out = jnp.einsum("bhnm,bhmd->bhnd", attn, v)
    out = jnp.transpose(out, (0, 2, 1, 3)).reshape(B, N, C)
    return out @ wproj + bproj.reshape(1, -1)


if __name__ == "__main__":
    key = jax.random.PRNGKey(0)

    # ---- Test 1: module defaults, single-kv-tile fast path ------------------
    B, dim, num_heads = 2, 32, 8                 # head_dim = 4
    T, H, W = 2, 2, 2
    thw_shape = [T, H, W]
    N = 1 + T * H * W                            # cls token + spatial = 9

    kx, kqkv, kproj, kb = jax.random.split(key, 4)
    x = jax.random.normal(kx, (B, N, dim), dtype=jnp.float32)
    wqkv = 0.02 * jax.random.normal(kqkv, (dim, 3 * dim), dtype=jnp.float32)
    wproj = 0.02 * jax.random.normal(kproj, (dim, dim), dtype=jnp.float32)
    bproj = 0.02 * jax.random.normal(kb, (1, dim), dtype=jnp.float32)

    out, q_shape = multi_scale_attention(x, thw_shape, wqkv, wproj, bproj, num_heads)
    out = jax.block_until_ready(out)
    ref = _reference(x, wqkv, wproj, bproj, num_heads)
    np.testing.assert_allclose(np.asarray(out), np.asarray(ref), rtol=5e-3, atol=2e-4)
    assert q_shape == thw_shape

    # bfloat16 path: operands stay bf16 on the MXU, f32 accumulation / softmax.
    xb, wqb, wpb, bb = (a.astype(jnp.bfloat16) for a in (x, wqkv, wproj, bproj))
    outb, _ = multi_scale_attention(xb, thw_shape, wqb, wpb, bb, num_heads)
    outb = jax.block_until_ready(outb)
    refb = _reference(*(a.astype(jnp.float32) for a in (xb, wqb, wpb, bb)), num_heads)
    np.testing.assert_allclose(np.asarray(outb.astype(jnp.float32)), np.asarray(refb),
                               rtol=5e-2, atol=3e-3)

    # ---- Test 2: force the multi-kv-tile online-softmax path ----------------
    T2, H2, W2 = 3, 3, 4
    N2 = 1 + T2 * H2 * W2                        # 37 -> padded to 48, 3x3 tiles
    k2 = jax.random.PRNGKey(1)
    x2 = jax.random.normal(k2, (1, N2, dim), dtype=jnp.float32)
    out2, q_shape2 = multi_scale_attention(x2, [T2, H2, W2], wqkv, wproj, bproj,
                                           num_heads, max_q_block=16, max_kv_block=16)
    out2 = jax.block_until_ready(out2)
    ref2 = _reference(x2, wqkv, wproj, bproj, num_heads)
    np.testing.assert_allclose(np.asarray(out2), np.asarray(ref2), rtol=5e-3, atol=2e-4)
    assert q_shape2 == [T2, H2, W2]

    print("KERNEL_OK")
</pallas_src>

<mosaic_0001>
module attributes {stable_mosaic.version = 11 : i64} {
  func.func @_msa_fused_kernel(%arg0: i32, %arg1: i32, %arg2: i32, %arg3: memref<1x16x32xf32, #tpu.memory_space<vmem>>, %arg4: memref<1x16x32xf32, #tpu.memory_space<vmem>>, %arg5: memref<8x32x4xf32, #tpu.memory_space<vmem>>, %arg6: memref<8x32x4xf32, #tpu.memory_space<vmem>>, %arg7: memref<8x32x4xf32, #tpu.memory_space<vmem>>, %arg8: memref<8x4x32xf32, #tpu.memory_space<vmem>>, %arg9: memref<1x32xf32, #tpu.memory_space<vmem>>, %arg10: memref<1x16x32xf32, #tpu.memory_space<vmem>>, %arg11: memref<8x16x4xf32, #tpu.memory_space<vmem>>, %arg12: memref<8x16x4xf32, #tpu.memory_space<vmem>>, %arg13: memref<8x16x4xf32, #tpu.memory_space<vmem>>, %arg14: memref<8x16x1xf32, #tpu.memory_space<vmem>>, %arg15: memref<8x16x1xf32, #tpu.memory_space<vmem>>, %arg16: memref<8x16x4xf32, #tpu.memory_space<vmem>>) attributes {dimension_semantics = [#tpu.dimension_semantics<parallel>, #tpu.dimension_semantics<parallel>, #tpu.dimension_semantics<arbitrary>], iteration_bounds = array<i64: 2, 1, 1>, scalar_prefetch = 0 : i64, scratch_operands = 6 : i64, tpu.core_type = #tpu.core_type<tc>, window_params = [{transform_indices = @transform_0, window_bounds = array<i64: 1, 16, 32>}, {transform_indices = @transform_1, window_bounds = array<i64: 1, 16, 32>}, {pipeline_mode = #tpu.pipeline_mode<synchronous>, transform_indices = @transform_2, window_bounds = array<i64: 8, 32, 4>}, {pipeline_mode = #tpu.pipeline_mode<synchronous>, transform_indices = @transform_3, window_bounds = array<i64: 8, 32, 4>}, {pipeline_mode = #tpu.pipeline_mode<synchronous>, transform_indices = @transform_4, window_bounds = array<i64: 8, 32, 4>}, {pipeline_mode = #tpu.pipeline_mode<synchronous>, transform_indices = @transform_5, window_bounds = array<i64: 8, 4, 32>}, {pipeline_mode = #tpu.pipeline_mode<synchronous>, transform_indices = @transform_6, window_bounds = array<i64: 1, 32>}, {transform_indices = @transform_7, window_bounds = array<i64: 1, 16, 32>}]} {
    %c0_i32 = arith.constant 0 : i32
    %0 = arith.cmpi eq, %arg2, %c0_i32 : i32
    %1 = arith.extui %0 : i1 to i32
    %c0_i32_0 = arith.constant 0 : i32
    %2 = arith.cmpi ne, %1, %c0_i32_0 : i32
    scf.if %2 {
      %c0_131 = arith.constant 0 : index
      %c0_132 = arith.constant 0 : index
      %c0_133 = arith.constant 0 : index
      %134 = vector.load %arg3[%c0_131, %c0_132, %c0_133] : memref<1x16x32xf32, #tpu.memory_space<vmem>>, vector<1x16x32xf32>
      %135 = vector.shape_cast %134 : vector<1x16x32xf32> to vector<16x32xf32>
      %c0_134 = arith.constant 0 : index
      %c0_135 = arith.constant 0 : index
      %c0_136 = arith.constant 0 : index
      %136 = vector.load %arg5[%c0_134, %c0_135, %c0_136] : memref<8x32x4xf32, #tpu.memory_space<vmem>>, vector<1x32x4xf32>
      %137 = vector.shape_cast %136 : vector<1x32x4xf32> to vector<32x4xf32>
      %cst_137 = arith.constant dense<0.000000e+00> : vector<16x4xf32>
      %138 = tpu.matmul %135, %137, %cst_137 {dimension_numbers = #tpu.dot_dimension_numbers<[1], [0], [0], [1], [0, 0, 1, 1], [], []>} : vector<16x32xf32>, vector<32x4xf32>, vector<16x4xf32> -> vector<16x4xf32>
      %c0_138 = arith.constant 0 : index
      %c0_139 = arith.constant 0 : index
      %c0_140 = arith.constant 0 : index
      %139 = vector.load %arg11[%c0_138, %c0_139, %c0_140] : memref<8x16x4xf32, #tpu.memory_space<vmem>>, vector<1x16x4xf32>
      %140 = vector.shape_cast %139 : vector<1x16x4xf32> to vector<16x4xf32>
      %141 = vector.shape_cast %138 : vector<16x4xf32> to vector<1x16x4xf32>
      tpu.vector_store %arg11[%c0_138, %c0_139, %c0_140], %141 {strides = array<i32>} : memref<8x16x4xf32, #tpu.memory_space<vmem>>, vector<1x16x4xf32>,
      %c1_141 = arith.constant 1 : index
      %c0_142 = arith.constant 0 : index
      %c0_143 = arith.constant 0 : index
      %142 = vector.load %arg5[%c1_141, %c0_142, %c0_143] : memref<8x32x4xf32, #tpu.memory_space<vmem>>, vector<1x32x4xf32>
      %143 = vector.shape_cast %142 : vector<1x32x4xf32> to vector<32x4xf32>
      %cst_144 = arith.constant dense<0.000000e+00> : vector<16x4xf32>
      %144 = tpu.matmul %135, %143, %cst_144 {dimension_numbers = #tpu.dot_dimension_numbers<[1], [0], [0], [1], [0, 0, 1, 1], [], []>} : vector<16x32xf32>, vector<32x4xf32>, vector<16x4xf32> -> vector<16x4xf32>
      %c1_145 = arith.constant 1 : index
      %c0_146 = arith.constant 0 : index
      %c0_147 = arith.constant 0 : index
      %145 = vector.load %arg11[%c1_145, %c0_146, %c0_147] : memref<8x16x4xf32, #tpu.memory_space<vmem>>, vector<1x16x4xf32>
      %146 = vector.shape_cast %145 : vector<1x16x4xf32> to vector<16x4xf32>
      %147 = vector.shape_cast %144 : vector<16x4xf32> to vector<1x16x4xf32>
      tpu.vector_store %arg11[%c1_145, %c0_146, %c0_147], %147 {strides = array<i32>} : memref<8x16x4xf32, #tpu.memory_space<vmem>>, vector<1x16x4xf32>,
      %c2_148 = arith.constant 2 : index
      %c0_149 = arith.constant 0 : index
      %c0_150 = arith.constant 0 : index
      %148 = vector.load %arg5[%c2_148, %c0_149, %c0_150] : memref<8x32x4xf32, #tpu.memory_space<vmem>>, vector<1x32x4xf32>
      %149 = vector.shape_cast %148 : vector<1x32x4xf32> to vector<32x4xf32>
      %cst_151 = arith.constant dense<0.000000e+00> : vector<16x4xf32>
      %150 = tpu.matmul %135, %149, %cst_151 {dimension_numbers = #tpu.dot_dimension_numbers<[1], [0], [0], [1], [0, 0, 1, 1], [], []>} : vector<16x32xf32>, vector<32x4xf32>, vector<16x4xf32> -> vector<16x4xf32>
      %c2_152 = arith.constant 2 : index
      %c0_153 = arith.constant 0 : index
      %c0_154 = arith.constant 0 : index
      %151 = vector.load %arg11[%c2_152, %c0_153, %c0_154] : memref<8x16x4xf32, #tpu.memory_space<vmem>>, vector<1x16x4xf32>
      %152 = vector.shape_cast %151 : vector<1x16x4xf32> to vector<16x4xf32>
      %153 = vector.shape_cast %150 : vector<16x4xf32> to vector<1x16x4xf32>
      tpu.vector_store %arg11[%c2_152, %c0_153, %c0_154], %153 {strides = array<i32>} : memref<8x16x4xf32, #tpu.memory_space<vmem>>, vector<1x16x4xf32>,
      %c3_155 = arith.constant 3 : index
      %c0_156 = arith.constant 0 : index
      %c0_157 = arith.constant 0 : index
      %154 = vector.load %arg5[%c3_155, %c0_156, %c0_157] : memref<8x32x4xf32, #tpu.memory_space<vmem>>, vector<1x32x4xf32>
      %155 = vector.shape_cast %154 : vector<1x32x4xf32> to vector<32x4xf32>
      %cst_158 = arith.constant dense<0.000000e+00> : vector<16x4xf32>
      %156 = tpu.matmul %135, %155, %cst_158 {dimension_numbers = #tpu.dot_dimension_numbers<[1], [0], [0], [1], [0, 0, 1, 1], [], []>} : vector<16x32xf32>, vector<32x4xf32>, vector<16x4xf32> -> vector<16x4xf32>
      %c3_159 = arith.constant 3 : index
      %c0_160 = arith.constant 0 : index
      %c0_161 = arith.constant 0 : index
      %157 = vector.load %arg11[%c3_159, %c0_160, %c0_161] : memref<8x16x4xf32, #tpu.memory_space<vmem>>, vector<1x16x4xf32>
      %158 = vector.shape_cast %157 : vector<1x16x4xf32> to vector<16x4xf32>
      %159 = vector.shape_cast %156 : vector<16x4xf32> to vector<1x16x4xf32>
      tpu.vector_store %arg11[%c3_159, %c0_160, %c0_161], %159 {strides = array<i32>} : memref<8x16x4xf32, #tpu.memory_space<vmem>>, vector<1x16x4xf32>,
      %c4_162 = arith.constant 4 : index
      %c0_163 = arith.constant 0 : index
      %c0_164 = arith.constant 0 : index
      %160 = vector.load %arg5[%c4_162, %c0_163, %c0_164] : memref<8x32x4xf32, #tpu.memory_space<vmem>>, vector<1x32x4xf32>
      %161 = vector.shape_cast %160 : vector<1x32x4xf32> to vector<32x4xf32>
      %cst_165 = arith.constant dense<0.000000e+00> : vector<16x4xf32>
      %162 = tpu.matmul %135, %161, %cst_165 {dimension_numbers = #tpu.dot_dimension_numbers<[1], [0], [0], [1], [0, 0, 1, 1], [], []>} : vector<16x32xf32>, vector<32x4xf32>, vector<16x4xf32> -> vector<16x4xf32>
      %c4_166 = arith.constant 4 : index
      %c0_167 = arith.constant 0 : index
      %c0_168 = arith.constant 0 : index
      %163 = vector.load %arg11[%c4_166, %c0_167, %c0_168] : memref<8x16x4xf32, #tpu.memory_space<vmem>>, vector<1x16x4xf32>
      %164 = vector.shape_cast %163 : vector<1x16x4xf32> to vector<16x4xf32>
      %165 = vector.shape_cast %162 : vector<16x4xf32> to vector<1x16x4xf32>
      tpu.vector_store %arg11[%c4_166, %c0_167, %c0_168], %165 {strides = array<i32>} : memref<8x16x4xf32, #tpu.memory_space<vmem>>, vector<1x16x4xf32>,
      %c5_169 = arith.constant 5 : index
      %c0_170 = arith.constant 0 : index
      %c0_171 = arith.constant 0 : index
      %166 = vector.load %arg5[%c5_169, %c0_170, %c0_171] : memref<8x32x4xf32, #tpu.memory_space<vmem>>, vector<1x32x4xf32>
      %167 = vector.shape_cast %166 : vector<1x32x4xf32> to vector<32x4xf32>
      %cst_172 = arith.constant dense<0.000000e+00> : vector<16x4xf32>
      %168 = tpu.matmul %135, %167, %cst_172 {dimension_numbers = #tpu.dot_dimension_numbers<[1], [0], [0], [1], [0, 0, 1, 1], [], []>} : vector<16x32xf32>, vector<32x4xf32>, vector<16x4xf32> -> vector<16x4xf32>
      %c5_173 = arith.constant 5 : index
      %c0_174 = arith.constant 0 : index
      %c0_175 = arith.constant 0 : index
      %169 = vector.load %arg11[%c5_173, %c0_174, %c0_175] : memref<8x16x4xf32, #tpu.memory_space<vmem>>, vector<1x16x4xf32>
      %170 = vector.shape_cast %169 : vector<1x16x4xf32> to vector<16x4xf32>
      %171 = vector.shape_cast %168 : vector<16x4xf32> to vector<1x16x4xf32>
      tpu.vector_store %arg11[%c5_173, %c0_174, %c0_175], %171 {strides = array<i32>} : memref<8x16x4xf32, #tpu.memory_space<vmem>>, vector<1x16x4xf32>,
      %c6_176 = arith.constant 6 : index
      %c0_177 = arith.constant 0 : index
      %c0_178 = arith.constant 0 : index
      %172 = vector.load %arg5[%c6_176, %c0_177, %c0_178] : memref<8x32x4xf32, #tpu.memory_space<vmem>>, vector<1x32x4xf32>
      %173 = vector.shape_cast %172 : vector<1x32x4xf32> to vector<32x4xf32>
      %cst_179 = arith.constant dense<0.000000e+00> : vector<16x4xf32>
      %174 = tpu.matmul %135, %173, %cst_179 {dimension_numbers = #tpu.dot_dimension_numbers<[1], [0], [0], [1], [0, 0, 1, 1], [], []>} : vector<16x32xf32>, vector<32x4xf32>, vector<16x4xf32> -> vector<16x4xf32>
      %c6_180 = arith.constant 6 : index
      %c0_181 = arith.constant 0 : index
      %c0_182 = arith.constant 0 : index
      %175 = vector.load %arg11[%c6_180, %c0_181, %c0_182] : memref<8x16x4xf32, #tpu.memory_space<vmem>>, vector<1x16x4xf32>
      %176 = vector.shape_cast %175 : vector<1x16x4xf32> to vector<16x4xf32>
      %177 = vector.shape_cast %174 : vector<16x4xf32> to vector<1x16x4xf32>
      tpu.vector_store %arg11[%c6_180, %c0_181, %c0_182], %177 {strides = array<i32>} : memref<8x16x4xf32, #tpu.memory_space<vmem>>, vector<1x16x4xf32>,
      %c7_183 = arith.constant 7 : index
      %c0_184 = arith.constant 0 : index
      %c0_185 = arith.constant 0 : index
      %178 = vector.load %arg5[%c7_183, %c0_184, %c0_185] : memref<8x32x4xf32, #tpu.memory_space<vmem>>, vector<1x32x4xf32>
      %179 = vector.shape_cast %178 : vector<1x32x4xf32> to vector<32x4xf32>
      %cst_186 = arith.constant dense<0.000000e+00> : vector<16x4xf32>
      %180 = tpu.matmul %135, %179, %cst_186 {dimension_numbers = #tpu.dot_dimension_numbers<[1], [0], [0], [1], [0, 0, 1, 1], [], []>} : vector<16x32xf32>, vector<32x4xf32>, vector<16x4xf32> -> vector<16x4xf32>
      %c7_187 = arith.constant 7 : index
      %c0_188 = arith.constant 0 : index
      %c0_189 = arith.constant 0 : index
      %181 = vector.load %arg11[%c7_187, %c0_188, %c0_189] : memref<8x16x4xf32, #tpu.memory_space<vmem>>, vector<1x16x4xf32>
      %182 = vector.shape_cast %181 : vector<1x16x4xf32> to vector<16x4xf32>
      %183 = vector.shape_cast %180 : vector<16x4xf32> to vector<1x16x4xf32>
      tpu.vector_store %arg11[%c7_187, %c0_188, %c0_189], %183 {strides = array<i32>} : memref<8x16x4xf32, #tpu.memory_space<vmem>>, vector<1x16x4xf32>,
    } else {
    }
    %c0 = arith.constant 0 : index
    %c0_1 = arith.constant 0 : index
    %c0_2 = arith.constant 0 : index
    %3 = vector.load %arg4[%c0, %c0_1, %c0_2] : memref<1x16x32xf32, #tpu.memory_space<vmem>>, vector<1x16x32xf32>
    %4 = vector.shape_cast %3 : vector<1x16x32xf32> to vector<16x32xf32>
    %c0_3 = arith.constant 0 : index
    %c0_4 = arith.constant 0 : index
    %c0_5 = arith.constant 0 : index
    %5 = vector.load %arg6[%c0_3, %c0_4, %c0_5] : memref<8x32x4xf32, #tpu.memory_space<vmem>>, vector<1x32x4xf32>
    %6 = vector.shape_cast %5 : vector<1x32x4xf32> to vector<32x4xf32>
    %cst = arith.constant dense<0.000000e+00> : vector<16x4xf32>
    %7 = tpu.matmul %4, %6, %cst {dimension_numbers = #tpu.dot_dimension_numbers<[1], [0], [0], [1], [0, 0, 1, 1], [], []>} : vector<16x32xf32>, vector<32x4xf32>, vector<16x4xf32> -> vector<16x4xf32>
    %c0_6 = arith.constant 0 : index
    %c0_7 = arith.constant 0 : index
    %c0_8 = arith.constant 0 : index
    %8 = vector.load %arg12[%c0_6, %c0_7, %c0_8] : memref<8x16x4xf32, #tpu.memory_space<vmem>>, vector<1x16x4xf32>
    %9 = vector.shape_cast %8 : vector<1x16x4xf32> to vector<16x4xf32>
    %10 = vector.shape_cast %7 : vector<16x4xf32> to vector<1x16x4xf32>
    tpu.vector_store %arg12[%c0_6, %c0_7, %c0_8], %10 {strides = array<i32>} : memref<8x16x4xf32, #tpu.memory_space<vmem>>, vector<1x16x4xf32>,
    %c0_9 = arith.constant 0 : index
    %c0_10 = arith.constant 0 : index
    %c0_11 = arith.constant 0 : index
    %11 = vector.load %arg7[%c0_9, %c0_10, %c0_11] : memref<8x32x4xf32, #tpu.memory_space<vmem>>, vector<1x32x4xf32>
    %12 = vector.shape_cast %11 : vector<1x32x4xf32> to vector<32x4xf32>
    %cst_12 = arith.constant dense<0.000000e+00> : vector<16x4xf32>
    %13 = tpu.matmul %4, %12, %cst_12 {dimension_numbers = #tpu.dot_dimension_numbers<[1], [0], [0], [1], [0, 0, 1, 1], [], []>} : vector<16x32xf32>, vector<32x4xf32>, vector<16x4xf32> -> vector<16x4xf32>
    %c0_13 = arith.constant 0 : index
    %c0_14 = arith.constant 0 : index
    %c0_15 = arith.constant 0 : index
    %14 = vector.load %arg13[%c0_13, %c0_14, %c0_15] : memref<8x16x4xf32, #tpu.memory_space<vmem>>, vector<1x16x4xf32>
    %15 = vector.shape_cast %14 : vector<1x16x4xf32> to vector<16x4xf32>
    %16 = vector.shape_cast %13 : vector<16x4xf32> to vector<1x16x4xf32>
    tpu.vector_store %arg13[%c0_13, %c0_14, %c0_15], %16 {strides = array<i32>} : memref<8x16x4xf32, #tpu.memory_space<vmem>>, vector<1x16x4xf32>,
    %c1 = arith.constant 1 : index
    %c0_16 = arith.constant 0 : index
    %c0_17 = arith.constant 0 : index
    %17 = vector.load %arg6[%c1, %c0_16, %c0_17] : memref<8x32x4xf32, #tpu.memory_space<vmem>>, vector<1x32x4xf32>
    %18 = vector.shape_cast %17 : vector<1x32x4xf32> to vector<32x4xf32>
    %cst_18 = arith.constant dense<0.000000e+00> : vector<16x4xf32>
    %19 = tpu.matmul %4, %18, %cst_18 {dimension_numbers = #tpu.dot_dimension_numbers<[1], [0], [0], [1], [0, 0, 1, 1], [], []>} : vector<16x32xf32>, vector<32x4xf32>, vector<16x4xf32> -> vector<16x4xf32>
    %c1_19 = arith.constant 1 : index
    %c0_20 = arith.constant 0 : index
    %c0_21 = arith.constant 0 : index
    %20 = vector.load %arg12[%c1_19, %c0_20, %c0_21] : memref<8x16x4xf32, #tpu.memory_space<vmem>>, vector<1x16x4xf32>
    %21 = vector.shape_cast %20 : vector<1x16x4xf32> to vector<16x4xf32>
    %22 = vector.shape_cast %19 : vector<16x4xf32> to vector<1x16x4xf32>
    tpu.vector_store %arg12[%c1_19, %c0_20, %c0_21], %22 {strides = array<i32>} : memref<8x16x4xf32, #tpu.memory_space<vmem>>, vector<1x16x4xf32>,
    %c1_22 = arith.constant 1 : index
    %c0_23 = arith.constant 0 : index
    %c0_24 = arith.constant 0 : index
    %23 = vector.load %arg7[%c1_22, %c0_23, %c0_24] : memref<8x32x4xf32, #tpu.memory_space<vmem>>, vector<1x32x4xf32>
    %24 = vector.shape_cast %23 : vector<1x32x4xf32> to vector<32x4xf32>
    %cst_25 = arith.constant dense<0.000000e+00> : vector<16x4xf32>
    %25 = tpu.matmul %4, %24, %cst_25 {dimension_numbers = #tpu.dot_dimension_numbers<[1], [0], [0], [1], [0, 0, 1, 1], [], []>} : vector<16x32xf32>, vector<32x4xf32>, vector<16x4xf32> -> vector<16x4xf32>
    %c1_26 = arith.constant 1 : index
    %c0_27 = arith.constant 0 : index
    %c0_28 = arith.constant 0 : index
    %26 = vector.load %arg13[%c1_26, %c0_27, %c0_28] : memref<8x16x4xf32, #tpu.memory_space<vmem>>, vector<1x16x4xf32>
    %27 = vector.shape_cast %26 : vector<1x16x4xf32> to vector<16x4xf32>
    %28 = vector.shape_cast %25 : vector<16x4xf32> to vector<1x16x4xf32>
    tpu.vector_store %arg13[%c1_26, %c0_27, %c0_28], %28 {strides = array<i32>} : memref<8x16x4xf32, #tpu.memory_space<vmem>>, vector<1x16x4xf32>,
    %c2 = arith.constant 2 : index
    %c0_29 = arith.constant 0 : index
    %c0_30 = arith.constant 0 : index
    %29 = vector.load %arg6[%c2, %c0_29, %c0_30] : memref<8x32x4xf32, #tpu.memory_space<vmem>>, vector<1x32x4xf32>
    %30 = vector.shape_cast %29 : vector<1x32x4xf32> to vector<32x4xf32>
    %cst_31 = arith.constant dense<0.000000e+00> : vector<16x4xf32>
    %31 = tpu.matmul %4, %30, %cst_31 {dimension_numbers = #tpu.dot_dimension_numbers<[1], [0], [0], [1], [0, 0, 1, 1], [], []>} : vector<16x32xf32>, vector<32x4xf32>, vector<16x4xf32> -> vector<16x4xf32>
    %c2_32 = arith.constant 2 : index
    %c0_33 = arith.constant 0 : index
    %c0_34 = arith.constant 0 : index
    %32 = vector.load %arg12[%c2_32, %c0_33, %c0_34] : memref<8x16x4xf32, #tpu.memory_space<vmem>>, vector<1x16x4xf32>
    %33 = vector.shape_cast %32 : vector<1x16x4xf32> to vector<16x4xf32>
    %34 = vector.shape_cast %31 : vector<16x4xf32> to vector<1x16x4xf32>
    tpu.vector_store %arg12[%c2_32, %c0_33, %c0_34], %34 {strides = array<i32>} : memref<8x16x4xf32, #tpu.memory_space<vmem>>, vector<1x16x4xf32>,
    %c2_35 = arith.constant 2 : index
    %c0_36 = arith.constant 0 : index
    %c0_37 = arith.constant 0 : index
    %35 = vector.load %arg7[%c2_35, %c0_36, %c0_37] : memref<8x32x4xf32, #tpu.memory_space<vmem>>, vector<1x32x4xf32>
    %36 = vector.shape_cast %35 : vector<1x32x4xf32> to vector<32x4xf32>
    %cst_38 = arith.constant dense<0.000000e+00> : vector<16x4xf32>
    %37 = tpu.matmul %4, %36, %cst_38 {dimension_numbers = #tpu.dot_dimension_numbers<[1], [0], [0], [1], [0, 0, 1, 1], [], []>} : vector<16x32xf32>, vector<32x4xf32>, vector<16x4xf32> -> vector<16x4xf32>
    %c2_39 = arith.constant 2 : index
    %c0_40 = arith.constant 0 : index
    %c0_41 = arith.constant 0 : index
    %38 = vector.load %arg13[%c2_39, %c0_40, %c0_41] : memref<8x16x4xf32, #tpu.memory_space<vmem>>, vector<1x16x4xf32>
    %39 = vector.shape_cast %38 : vector<1x16x4xf32> to vector<16x4xf32>
    %40 = vector.shape_cast %37 : vector<16x4xf32> to vector<1x16x4xf32>
    tpu.vector_store %arg13[%c2_39, %c0_40, %c0_41], %40 {strides = array<i32>} : memref<8x16x4xf32, #tpu.memory_space<vmem>>, vector<1x16x4xf32>,
    %c3 = arith.constant 3 : index
    %c0_42 = arith.constant 0 : index
    %c0_43 = arith.constant 0 : index
    %41 = vector.load %arg6[%c3, %c0_42, %c0_43] : memref<8x32x4xf32, #tpu.memory_space<vmem>>, vector<1x32x4xf32>
    %42 = vector.shape_cast %41 : vector<1x32x4xf32> to vector<32x4xf32>
    %cst_44 = arith.constant dense<0.000000e+00> : vector<16x4xf32>
    %43 = tpu.matmul %4, %42, %cst_44 {dimension_numbers = #tpu.dot_dimension_numbers<[1], [0], [0], [1], [0, 0, 1, 1], [], []>} : vector<16x32xf32>, vector<32x4xf32>, vector<16x4xf32> -> vector<16x4xf32>
    %c3_45 = arith.constant 3 : index
    %c0_46 = arith.constant 0 : index
    %c0_47 = arith.constant 0 : index
    %44 = vector.load %arg12[%c3_45, %c0_46, %c0_47] : memref<8x16x4xf32, #tpu.memory_space<vmem>>, vector<1x16x4xf32>
    %45 = vector.shape_cast %44 : vector<1x16x4xf32> to vector<16x4xf32>
    %46 = vector.shape_cast %43 : vector<16x4xf32> to vector<1x16x4xf32>
    tpu.vector_store %arg12[%c3_45, %c0_46, %c0_47], %46 {strides = array<i32>} : memref<8x16x4xf32, #tpu.memory_space<vmem>>, vector<1x16x4xf32>,
    %c3_48 = arith.constant 3 : index
    %c0_49 = arith.constant 0 : index
    %c0_50 = arith.constant 0 : index
    %47 = vector.load %arg7[%c3_48, %c0_49, %c0_50] : memref<8x32x4xf32, #tpu.memory_space<vmem>>, vector<1x32x4xf32>
    %48 = vector.shape_cast %47 : vector<1x32x4xf32> to vector<32x4xf32>
    %cst_51 = arith.constant dense<0.000000e+00> : vector<16x4xf32>
    %49 = tpu.matmul %4, %48, %cst_51 {dimension_numbers = #tpu.dot_dimension_numbers<[1], [0], [0], [1], [0, 0, 1, 1], [], []>} : vector<16x32xf32>, vector<32x4xf32>, vector<16x4xf32> -> vector<16x4xf32>
    %c3_52 = arith.constant 3 : index
    %c0_53 = arith.constant 0 : index
    %c0_54 = arith.constant 0 : index
    %50 = vector.load %arg13[%c3_52, %c0_53, %c0_54] : memref<8x16x4xf32, #tpu.memory_space<vmem>>, vector<1x16x4xf32>
    %51 = vector.shape_cast %50 : vector<1x16x4xf32> to vector<16x4xf32>
    %52 = vector.shape_cast %49 : vector<16x4xf32> to vector<1x16x4xf32>
    tpu.vector_store %arg13[%c3_52, %c0_53, %c0_54], %52 {strides = array<i32>} : memref<8x16x4xf32, #tpu.memory_space<vmem>>, vector<1x16x4xf32>,
    %c4 = arith.constant 4 : index
    %c0_55 = arith.constant 0 : index
    %c0_56 = arith.constant 0 : index
    %53 = vector.load %arg6[%c4, %c0_55, %c0_56] : memref<8x32x4xf32, #tpu.memory_space<vmem>>, vector<1x32x4xf32>
    %54 = vector.shape_cast %53 : vector<1x32x4xf32> to vector<32x4xf32>
    %cst_57 = arith.constant dense<0.000000e+00> : vector<16x4xf32>
    %55 = tpu.matmul %4, %54, %cst_57 {dimension_numbers = #tpu.dot_dimension_numbers<[1], [0], [0], [1], [0, 0, 1, 1], [], []>} : vector<16x32xf32>, vector<32x4xf32>, vector<16x4xf32> -> vector<16x4xf32>
    %c4_58 = arith.constant 4 : index
    %c0_59 = arith.constant 0 : index
    %c0_60 = arith.constant 0 : index
    %56 = vector.load %arg12[%c4_58, %c0_59, %c0_60] : memref<8x16x4xf32, #tpu.memory_space<vmem>>, vector<1x16x4xf32>
    %57 = vector.shape_cast %56 : vector<1x16x4xf32> to vector<16x4xf32>
    %58 = vector.shape_cast %55 : vector<16x4xf32> to vector<1x16x4xf32>
    tpu.vector_store %arg12[%c4_58, %c0_59, %c0_60], %58 {strides = array<i32>} : memref<8x16x4xf32, #tpu.memory_space<vmem>>, vector<1x16x4xf32>,
    %c4_61 = arith.constant 4 : index
    %c0_62 = arith.constant 0 : index
    %c0_63 = arith.constant 0 : index
    %59 = vector.load %arg7[%c4_61, %c0_62, %c0_63] : memref<8x32x4xf32, #tpu.memory_space<vmem>>, vector<1x32x4xf32>
    %60 = vector.shape_cast %59 : vector<1x32x4xf32> to vector<32x4xf32>
    %cst_64 = arith.constant dense<0.000000e+00> : vector<16x4xf32>
    %61 = tpu.matmul %4, %60, %cst_64 {dimension_numbers = #tpu.dot_dimension_numbers<[1], [0], [0], [1], [0, 0, 1, 1], [], []>} : vector<16x32xf32>, vector<32x4xf32>, vector<16x4xf32> -> vector<16x4xf32>
    %c4_65 = arith.constant 4 : index
    %c0_66 = arith.constant 0 : index
    %c0_67 = arith.constant 0 : index
    %62 = vector.load %arg13[%c4_65, %c0_66, %c0_67] : memref<8x16x4xf32, #tpu.memory_space<vmem>>, vector<1x16x4xf32>
    %63 = vector.shape_cast %62 : vector<1x16x4xf32> to vector<16x4xf32>
    %64 = vector.shape_cast %61 : vector<16x4xf32> to vector<1x16x4xf32>
    tpu.vector_store %arg13[%c4_65, %c0_66, %c0_67], %64 {strides = array<i32>} : memref<8x16x4xf32, #tpu.memory_space<vmem>>, vector<1x16x4xf32>,
    %c5 = arith.constant 5 : index
    %c0_68 = arith.constant 0 : index
    %c0_69 = arith.constant 0 : index
    %65 = vector.load %arg6[%c5, %c0_68, %c0_69] : memref<8x32x4xf32, #tpu.memory_space<vmem>>, vector<1x32x4xf32>
    %66 = vector.shape_cast %65 : vector<1x32x4xf32> to vector<32x4xf32>
    %cst_70 = arith.constant dense<0.000000e+00> : vector<16x4xf32>
    %67 = tpu.matmul %4, %66, %cst_70 {dimension_numbers = #tpu.dot_dimension_numbers<[1], [0], [0], [1], [0, 0, 1, 1], [], []>} : vector<16x32xf32>, vector<32x4xf32>, vector<16x4xf32> -> vector<16x4xf32>
    %c5_71 = arith.constant 5 : index
    %c0_72 = arith.constant 0 : index
    %c0_73 = arith.constant 0 : index
    %68 = vector.load %arg12[%c5_71, %c0_72, %c0_73] : memref<8x16x4xf32, #tpu.memory_space<vmem>>, vector<1x16x4xf32>
    %69 = vector.shape_cast %68 : vector<1x16x4xf32> to vector<16x4xf32>
    %70 = vector.shape_cast %67 : vector<16x4xf32> to vector<1x16x4xf32>
    tpu.vector_store %arg12[%c5_71, %c0_72, %c0_73], %70 {strides = array<i32>} : memref<8x16x4xf32, #tpu.memory_space<vmem>>, vector<1x16x4xf32>,
    %c5_74 = arith.constant 5 : index
    %c0_75 = arith.constant 0 : index
    %c0_76 = arith.constant 0 : index
    %71 = vector.load %arg7[%c5_74, %c0_75, %c0_76] : memref<8x32x4xf32, #tpu.memory_space<vmem>>, vector<1x32x4xf32>
    %72 = vector.shape_cast %71 : vector<1x32x4xf32> to vector<32x4xf32>
    %cst_77 = arith.constant dense<0.000000e+00> : vector<16x4xf32>
    %73 = tpu.matmul %4, %72, %cst_77 {dimension_numbers = #tpu.dot_dimension_numbers<[1], [0], [0], [1], [0, 0, 1, 1], [], []>} : vector<16x32xf32>, vector<32x4xf32>, vector<16x4xf32> -> vector<16x4xf32>
    %c5_78 = arith.constant 5 : index
    %c0_79 = arith.constant 0 : index
    %c0_80 = arith.constant 0 : index
    %74 = vector.load %arg13[%c5_78, %c0_79, %c0_80] : memref<8x16x4xf32, #tpu.memory_space<vmem>>, vector<1x16x4xf32>
    %75 = vector.shape_cast %74 : vector<1x16x4xf32> to vector<16x4xf32>
    %76 = vector.shape_cast %73 : vector<16x4xf32> to vector<1x16x4xf32>
    tpu.vector_store %arg13[%c5_78, %c0_79, %c0_80], %76 {strides = array<i32>} : memref<8x16x4xf32, #tpu.memory_space<vmem>>, vector<1x16x4xf32>,
    %c6 = arith.constant 6 : index
    %c0_81 = arith.constant 0 : index
    %c0_82 = arith.constant 0 : index
    %77 = vector.load %arg6[%c6, %c0_81, %c0_82] : memref<8x32x4xf32, #tpu.memory_space<vmem>>, vector<1x32x4xf32>
    %78 = vector.shape_cast %77 : vector<1x32x4xf32> to vector<32x4xf32>
    %cst_83 = arith.constant dense<0.000000e+00> : vector<16x4xf32>
    %79 = tpu.matmul %4, %78, %cst_83 {dimension_numbers = #tpu.dot_dimension_numbers<[1], [0], [0], [1], [0, 0, 1, 1], [], []>} : vector<16x32xf32>, vector<32x4xf32>, vector<16x4xf32> -> vector<16x4xf32>
    %c6_84 = arith.constant 6 : index
    %c0_85 = arith.constant 0 : index
    %c0_86 = arith.constant 0 : index
    %80 = vector.load %arg12[%c6_84, %c0_85, %c0_86] : memref<8x16x4xf32, #tpu.memory_space<vmem>>, vector<1x16x4xf32>
    %81 = vector.shape_cast %80 : vector<1x16x4xf32> to vector<16x4xf32>
    %82 = vector.shape_cast %79 : vector<16x4xf32> to vector<1x16x4xf32>
    tpu.vector_store %arg12[%c6_84, %c0_85, %c0_86], %82 {strides = array<i32>} : memref<8x16x4xf32, #tpu.memory_space<vmem>>, vector<1x16x4xf32>,
    %c6_87 = arith.constant 6 : index
    %c0_88 = arith.constant 0 : index
    %c0_89 = arith.constant 0 : index
    %83 = vector.load %arg7[%c6_87, %c0_88, %c0_89] : memref<8x32x4xf32, #tpu.memory_space<vmem>>, vector<1x32x4xf32>
    %84 = vector.shape_cast %83 : vector<1x32x4xf32> to vector<32x4xf32>
    %cst_90 = arith.constant dense<0.000000e+00> : vector<16x4xf32>
    %85 = tpu.matmul %4, %84, %cst_90 {dimension_numbers = #tpu.dot_dimension_numbers<[1], [0], [0], [1], [0, 0, 1, 1], [], []>} : vector<16x32xf32>, vector<32x4xf32>, vector<16x4xf32> -> vector<16x4xf32>
    %c6_91 = arith.constant 6 : index
    %c0_92 = arith.constant 0 : index
    %c0_93 = arith.constant 0 : index
    %86 = vector.load %arg13[%c6_91, %c0_92, %c0_93] : memref<8x16x4xf32, #tpu.memory_space<vmem>>, vector<1x16x4xf32>
    %87 = vector.shape_cast %86 : vector<1x16x4xf32> to vector<16x4xf32>
    %88 = vector.shape_cast %85 : vector<16x4xf32> to vector<1x16x4xf32>
    tpu.vector_store %arg13[%c6_91, %c0_92, %c0_93], %88 {strides = array<i32>} : memref<8x16x4xf32, #tpu.memory_space<vmem>>, vector<1x16x4xf32>,
    %c7 = arith.constant 7 : index
    %c0_94 = arith.constant 0 : index
    %c0_95 = arith.constant 0 : index
    %89 = vector.load %arg6[%c7, %c0_94, %c0_95] : memref<8x32x4xf32, #tpu.memory_space<vmem>>, vector<1x32x4xf32>
    %90 = vector.shape_cast %89 : vector<1x32x4xf32> to vector<32x4xf32>
    %cst_96 = arith.constant dense<0.000000e+00> : vector<16x4xf32>
    %91 = tpu.matmul %4, %90, %cst_96 {dimension_numbers = #tpu.dot_dimension_numbers<[1], [0], [0], [1], [0, 0, 1, 1], [], []>} : vector<16x32xf32>, vector<32x4xf32>, vector<16x4xf32> -> vector<16x4xf32>
    %c7_97 = arith.constant 7 : index
    %c0_98 = arith.constant 0 : index
    %c0_99 = arith.constant 0 : index
    %92 = vector.load %arg12[%c7_97, %c0_98, %c0_99] : memref<8x16x4xf32, #tpu.memory_space<vmem>>, vector<1x16x4xf32>
    %93 = vector.shape_cast %92 : vector<1x16x4xf32> to vector<16x4xf32>
    %94 = vector.shape_cast %91 : vector<16x4xf32> to vector<1x16x4xf32>
    tpu.vector_store %arg12[%c7_97, %c0_98, %c0_99], %94 {strides = array<i32>} : memref<8x16x4xf32, #tpu.memory_space<vmem>>, vector<1x16x4xf32>,
    %c7_100 = arith.constant 7 : index
    %c0_101 = arith.constant 0 : index
    %c0_102 = arith.constant 0 : index
    %95 = vector.load %arg7[%c7_100, %c0_101, %c0_102] : memref<8x32x4xf32, #tpu.memory_space<vmem>>, vector<1x32x4xf32>
    %96 = vector.shape_cast %95 : vector<1x32x4xf32> to vector<32x4xf32>
    %cst_103 = arith.constant dense<0.000000e+00> : vector<16x4xf32>
    %97 = tpu.matmul %4, %96, %cst_103 {dimension_numbers = #tpu.dot_dimension_numbers<[1], [0], [0], [1], [0, 0, 1, 1], [], []>} : vector<16x32xf32>, vector<32x4xf32>, vector<16x4xf32> -> vector<16x4xf32>
    %c7_104 = arith.constant 7 : index
    %c0_105 = arith.constant 0 : index
    %c0_106 = arith.constant 0 : index
    %98 = vector.load %arg13[%c7_104, %c0_105, %c0_106] : memref<8x16x4xf32, #tpu.memory_space<vmem>>, vector<1x16x4xf32>
    %99 = vector.shape_cast %98 : vector<1x16x4xf32> to vector<16x4xf32>
    %100 = vector.shape_cast %97 : vector<16x4xf32> to vector<1x16x4xf32>
    tpu.vector_store %arg13[%c7_104, %c0_105, %c0_106], %100 {strides = array<i32>} : memref<8x16x4xf32, #tpu.memory_space<vmem>>, vector<1x16x4xf32>,
    %c0_107 = arith.constant 0 : index
    %c0_108 = arith.constant 0 : index
    %c0_109 = arith.constant 0 : index
    %101 = vector.load %arg11[%c0_107, %c0_108, %c0_109] : memref<8x16x4xf32, #tpu.memory_space<vmem>>, vector<8x16x4xf32>
    %c0_110 = arith.constant 0 : index
    %c0_111 = arith.constant 0 : index
    %c0_112 = arith.constant 0 : index
    %102 = vector.load %arg12[%c0_110, %c0_111, %c0_112] : memref<8x16x4xf32, #tpu.memory_space<vmem>>, vector<8x16x4xf32>
    %c0_113 = arith.constant 0 : index
    %c0_114 = arith.constant 0 : index
    %c0_115 = arith.constant 0 : index
    %103 = vector.load %arg13[%c0_113, %c0_114, %c0_115] : memref<8x16x4xf32, #tpu.memory_space<vmem>>, vector<8x16x4xf32>
    "tpu.trace_start"() <{level = 10 : i32, message = "hqd,hkd->hqk"}> : () -> ()
    %cst_116 = arith.constant dense<0.000000e+00> : vector<8x16x16xf32>
    %104 = tpu.matmul %101, %102, %cst_116 {dimension_numbers = #tpu.dot_dimension_numbers<[2], [2], [1], [1], [0, 0, 0, 1, 1, 1], [0], [0]>} : vector<8x16x4xf32>, vector<8x16x4xf32>, vector<8x16x16xf32> -> vector<8x16x16xf32>
    "tpu.trace_stop"() : () -> ()
    %c16_i32 = arith.constant 16 : i32
    %105 = arith.muli %arg2, %c16_i32 : i32
    %106 = tpu.iota {dimensions = array<i32: 2>} : vector<1x1x16xi32>
    %107 = vector.broadcast %105 : i32 to vector<1x1x16xi32>
    %108 = arith.addi %107, %106 : vector<1x1x16xi32>
    %c9_i32 = arith.constant 9 : i32
    %109 = vector.broadcast %c9_i32 : i32 to vector<1x1x16xi32>
    %110 = arith.cmpi slt, %108, %109 : vector<1x1x16xi32>
    %cst_117 = arith.constant -1.000000e+30 : f32
    %111 = vector.shape_cast %110 : vector<1x1x16xi1> to vector<1x1x16xi1>
    %112 = vector.broadcast %111 : vector<1x1x16xi1> to vector<8x16x16xi1>
    %113 = vector.broadcast %cst_117 : f32 to vector<8x16x16xf32>
    %114 = arith.select %112, %104, %113 : vector<8x16x16xi1>, vector<8x16x16xf32>
    %cst_118 = arith.constant dense<0xFF800000> : vector<8x16xf32>
    %115 = vector.multi_reduction <maximumf>, %114, %cst_118 [2] : vector<8x16x16xf32> to vector<8x16xf32>
    %116 = vector.shape_cast %115 : vector<8x16xf32> to vector<8x16x1xf32>
    %117 = vector.broadcast %116 : vector<8x16x1xf32> to vector<8x16x16xf32>
    %118 = arith.subf %114, %117 : vector<8x16x16xf32>
    %119 = math.exp %118 : vector<8x16x16xf32>
    %cst_119 = arith.constant dense<0.000000e+00> : vector<8x16xf32>
    %120 = vector.multi_reduction <add>, %119, %cst_119 [2] : vector<8x16x16xf32> to vector<8x16xf32>
    %121 = vector.shape_cast %120 : vector<8x16xf32> to vector<8x16x1xf32>
    "tpu.trace_start"() <{level = 10 : i32, message = "hqk,hkd->hqd"}> : () -> ()
    %cst_120 = arith.constant dense<0.000000e+00> : vector<8x16x4xf32>
    %122 = tpu.matmul %119, %103, %cst_120 {dimension_numbers = #tpu.dot_dimension_numbers<[2], [1], [1], [2], [0, 0, 0, 1, 1, 2], [0], [0]>} : vector<8x16x16xf32>, vector<8x16x4xf32>, vector<8x16x4xf32> -> vector<8x16x4xf32>
    "tpu.trace_stop"() : () -> ()
    %123 = vector.broadcast %121 : vector<8x16x1xf32> to vector<8x16x4xf32>
    %124 = arith.divf %122, %123 : vector<8x16x4xf32>
    %c0_121 = arith.constant 0 : index
    %c0_122 = arith.constant 0 : index
    %c0_123 = arith.constant 0 : index
    %125 = vector.load %arg8[%c0_121, %c0_122, %c0_123] : memref<8x4x32xf32, #tpu.memory_space<vmem>>, vector<8x4x32xf32>
    "tpu.trace_start"() <{level = 10 : i32, message = "hqd,hdo->hqo"}> : () -> ()
    %cst_124 = arith.constant dense<0.000000e+00> : vector<8x16x32xf32>
    %126 = tpu.matmul %124, %125, %cst_124 {dimension_numbers = #tpu.dot_dimension_numbers<[2], [1], [1], [2], [0, 0, 0, 1, 1, 2], [0], [0]>} : vector<8x16x4xf32>, vector<8x4x32xf32>, vector<8x16x32xf32> -> vector<8x16x32xf32>
    "tpu.trace_stop"() : () -> ()
    %cst_125 = arith.constant dense<0.000000e+00> : vector<16x32xf32>
    %127 = vector.multi_reduction <add>, %126, %cst_125 [0] : vector<8x16x32xf32> to vector<16x32xf32>
    %c0_126 = arith.constant 0 : index
    %c0_127 = arith.constant 0 : index
    %128 = vector.load %arg9[%c0_126, %c0_127] : memref<1x32xf32, #tpu.memory_space<vmem>>, vector<1x32xf32>
    %129 = vector.broadcast %128 : vector<1x32xf32> to vector<16x32xf32>
    %130 = arith.addf %127, %129 : vector<16x32xf32>
    %c0_128 = arith.constant 0 : index
    %c0_129 = arith.constant 0 : index
    %c0_130 = arith.constant 0 : index
    %131 = vector.load %arg10[%c0_128, %c0_129, %c0_130] : memref<1x16x32xf32, #tpu.memory_space<vmem>>, vector<1x16x32xf32>
    %132 = vector.shape_cast %131 : vector<1x16x32xf32> to vector<16x32xf32>
    %133 = vector.shape_cast %130 : vector<16x32xf32> to vector<1x16x32xf32>
    tpu.vector_store %arg10[%c0_128, %c0_129, %c0_130], %133 {strides = array<i32>} : memref<1x16x32xf32, #tpu.memory_space<vmem>>, vector<1x16x32xf32>,
    return
  }
  func.func @transform_0(%arg0: i32, %arg1: i32, %arg2: i32) -> (i32, i32, i32) {
    %c0_i32 = arith.constant 0 : i32
    %c0_i32_0 = arith.constant 0 : i32
    return %arg0, %arg1, %c0_i32 : i32, i32, i32
  }
  func.func @transform_1(%arg0: i32, %arg1: i32, %arg2: i32) -> (i32, i32, i32) {
    %c0_i32 = arith.constant 0 : i32
    %c0_i32_0 = arith.constant 0 : i32
    return %arg0, %arg2, %c0_i32 : i32, i32, i32
  }
  func.func @transform_2(%arg0: i32, %arg1: i32, %arg2: i32) -> (i32, i32, i32) {
    %c0_i32 = arith.constant 0 : i32
    %c0_i32_0 = arith.constant 0 : i32
    %c0_i32_1 = arith.constant 0 : i32
    %c0_i32_2 = arith.constant 0 : i32
    return %c0_i32, %c0_i32_0, %c0_i32_1 : i32, i32, i32
  }
  func.func @transform_3(%arg0: i32, %arg1: i32, %arg2: i32) -> (i32, i32, i32) {
    %c0_i32 = arith.constant 0 : i32
    %c0_i32_0 = arith.constant 0 : i32
    %c0_i32_1 = arith.constant 0 : i32
    %c0_i32_2 = arith.constant 0 : i32
    return %c0_i32, %c0_i32_0, %c0_i32_1 : i32, i32, i32
  }
  func.func @transform_4(%arg0: i32, %arg1: i32, %arg2: i32) -> (i32, i32, i32) {
    %c0_i32 = arith.constant 0 : i32
    %c0_i32_0 = arith.constant 0 : i32
    %c0_i32_1 = arith.constant 0 : i32
    %c0_i32_2 = arith.constant 0 : i32
    return %c0_i32, %c0_i32_0, %c0_i32_1 : i32, i32, i32
  }
  func.func @transform_5(%arg0: i32, %arg1: i32, %arg2: i32) -> (i32, i32, i32) {
    %c0_i32 = arith.constant 0 : i32
    %c0_i32_0 = arith.constant 0 : i32
    %c0_i32_1 = arith.constant 0 : i32
    %c0_i32_2 = arith.constant 0 : i32
    return %c0_i32, %c0_i32_0, %c0_i32_1 : i32, i32, i32
  }
  func.func @transform_6(%arg0: i32, %arg1: i32, %arg2: i32) -> (i32, i32) {
    %c0_i32 = arith.constant 0 : i32
    %c0_i32_0 = arith.constant 0 : i32
    %c0_i32_1 = arith.constant 0 : i32
    return %c0_i32, %c0_i32_0 : i32, i32
  }
  func.func @transform_7(%arg0: i32, %arg1: i32, %arg2: i32) -> (i32, i32, i32) {
    %c0_i32 = arith.constant 0 : i32
    %c0_i32_0 = arith.constant 0 : i32
    return %arg0, %arg1, %c0_i32 : i32, i32, i32
  }
}

module attributes {stable_mosaic.version = 11 : i64} {
  func.func @_msa_fused_kernel(%arg0: i32, %arg1: i32, %arg2: i32, %arg3: memref<1x16x32xf32, #tpu.memory_space<vmem>>, %arg4: memref<1x16x32xf32, #tpu.memory_space<vmem>>, %arg5: memref<8x32x4xf32, #tpu.memory_space<vmem>>, %arg6: memref<8x32x4xf32, #tpu.memory_space<vmem>>, %arg7: memref<8x32x4xf32, #tpu.memory_space<vmem>>, %arg8: memref<8x4x32xf32, #tpu.memory_space<vmem>>, %arg9: memref<1x32xf32, #tpu.memory_space<vmem>>, %arg10: memref<1x16x32xf32, #tpu.memory_space<vmem>>, %arg11: memref<8x16x4xf32, #tpu.memory_space<vmem>>, %arg12: memref<8x16x4xf32, #tpu.memory_space<vmem>>, %arg13: memref<8x16x4xf32, #tpu.memory_space<vmem>>, %arg14: memref<8x16x1xf32, #tpu.memory_space<vmem>>, %arg15: memref<8x16x1xf32, #tpu.memory_space<vmem>>, %arg16: memref<8x16x4xf32, #tpu.memory_space<vmem>>) attributes {dimension_semantics = [#tpu.dimension_semantics<parallel>, #tpu.dimension_semantics<parallel>, #tpu.dimension_semantics<arbitrary>], iteration_bounds = array<i64: 2, 1, 1>, scalar_prefetch = 0 : i64, scratch_operands = 6 : i64, tpu.core_type = #tpu.core_type<tc>, window_params = [{transform_indices = @transform_0, window_bounds = array<i64: 1, 16, 32>}, {transform_indices = @transform_1, window_bounds = array<i64: 1, 16, 32>}, {pipeline_mode = #tpu.pipeline_mode<synchronous>, transform_indices = @transform_2, window_bounds = array<i64: 8, 32, 4>}, {pipeline_mode = #tpu.pipeline_mode<synchronous>, transform_indices = @transform_3, window_bounds = array<i64: 8, 32, 4>}, {pipeline_mode = #tpu.pipeline_mode<synchronous>, transform_indices = @transform_4, window_bounds = array<i64: 8, 32, 4>}, {pipeline_mode = #tpu.pipeline_mode<synchronous>, transform_indices = @transform_5, window_bounds = array<i64: 8, 4, 32>}, {pipeline_mode = #tpu.pipeline_mode<synchronous>, transform_indices = @transform_6, window_bounds = array<i64: 1, 32>}, {transform_indices = @transform_7, window_bounds = array<i64: 1, 16, 32>}]} {
    %c0_i32 = arith.constant 0 : i32
    %0 = arith.cmpi eq, %arg2, %c0_i32 : i32
    %1 = arith.extui %0 : i1 to i32
    %c0_i32_0 = arith.constant 0 : i32
    %2 = arith.cmpi ne, %1, %c0_i32_0 : i32
    scf.if %2 {
      %c0_131 = arith.constant 0 : index
      %c0_132 = arith.constant 0 : index
      %c0_133 = arith.constant 0 : index
      %134 = vector.load %arg3[%c0_131, %c0_132, %c0_133] : memref<1x16x32xf32, #tpu.memory_space<vmem>>, vector<1x16x32xf32>
      %135 = vector.shape_cast %134 : vector<1x16x32xf32> to vector<16x32xf32>
      %c0_134 = arith.constant 0 : index
      %c0_135 = arith.constant 0 : index
      %c0_136 = arith.constant 0 : index
      %136 = vector.load %arg5[%c0_134, %c0_135, %c0_136] : memref<8x32x4xf32, #tpu.memory_space<vmem>>, vector<1x32x4xf32>
      %137 = vector.shape_cast %136 : vector<1x32x4xf32> to vector<32x4xf32>
      %cst_137 = arith.constant dense<0.000000e+00> : vector<16x4xf32>
      %138 = tpu.matmul %135, %137, %cst_137 {dimension_numbers = #tpu.dot_dimension_numbers<[1], [0], [0], [1], [0, 0, 1, 1], [], []>} : vector<16x32xf32>, vector<32x4xf32>, vector<16x4xf32> -> vector<16x4xf32>
      %c0_138 = arith.constant 0 : index
      %c0_139 = arith.constant 0 : index
      %c0_140 = arith.constant 0 : index
      %139 = vector.load %arg11[%c0_138, %c0_139, %c0_140] : memref<8x16x4xf32, #tpu.memory_space<vmem>>, vector<1x16x4xf32>
      %140 = vector.shape_cast %139 : vector<1x16x4xf32> to vector<16x4xf32>
      %141 = vector.shape_cast %138 : vector<16x4xf32> to vector<1x16x4xf32>
      tpu.vector_store %arg11[%c0_138, %c0_139, %c0_140], %141 {strides = array<i32>} : memref<8x16x4xf32, #tpu.memory_space<vmem>>, vector<1x16x4xf32>,
      %c1_141 = arith.constant 1 : index
      %c0_142 = arith.constant 0 : index
      %c0_143 = arith.constant 0 : index
      %142 = vector.load %arg5[%c1_141, %c0_142, %c0_143] : memref<8x32x4xf32, #tpu.memory_space<vmem>>, vector<1x32x4xf32>
      %143 = vector.shape_cast %142 : vector<1x32x4xf32> to vector<32x4xf32>
      %cst_144 = arith.constant dense<0.000000e+00> : vector<16x4xf32>
      %144 = tpu.matmul %135, %143, %cst_144 {dimension_numbers = #tpu.dot_dimension_numbers<[1], [0], [0], [1], [0, 0, 1, 1], [], []>} : vector<16x32xf32>, vector<32x4xf32>, vector<16x4xf32> -> vector<16x4xf32>
      %c1_145 = arith.constant 1 : index
      %c0_146 = arith.constant 0 : index
      %c0_147 = arith.constant 0 : index
      %145 = vector.load %arg11[%c1_145, %c0_146, %c0_147] : memref<8x16x4xf32, #tpu.memory_space<vmem>>, vector<1x16x4xf32>
      %146 = vector.shape_cast %145 : vector<1x16x4xf32> to vector<16x4xf32>
      %147 = vector.shape_cast %144 : vector<16x4xf32> to vector<1x16x4xf32>
      tpu.vector_store %arg11[%c1_145, %c0_146, %c0_147], %147 {strides = array<i32>} : memref<8x16x4xf32, #tpu.memory_space<vmem>>, vector<1x16x4xf32>,
      %c2_148 = arith.constant 2 : index
      %c0_149 = arith.constant 0 : index
      %c0_150 = arith.constant 0 : index
      %148 = vector.load %arg5[%c2_148, %c0_149, %c0_150] : memref<8x32x4xf32, #tpu.memory_space<vmem>>, vector<1x32x4xf32>
      %149 = vector.shape_cast %148 : vector<1x32x4xf32> to vector<32x4xf32>
      %cst_151 = arith.constant dense<0.000000e+00> : vector<16x4xf32>
      %150 = tpu.matmul %135, %149, %cst_151 {dimension_numbers = #tpu.dot_dimension_numbers<[1], [0], [0], [1], [0, 0, 1, 1], [], []>} : vector<16x32xf32>, vector<32x4xf32>, vector<16x4xf32> -> vector<16x4xf32>
      %c2_152 = arith.constant 2 : index
      %c0_153 = arith.constant 0 : index
      %c0_154 = arith.constant 0 : index
      %151 = vector.load %arg11[%c2_152, %c0_153, %c0_154] : memref<8x16x4xf32, #tpu.memory_space<vmem>>, vector<1x16x4xf32>
      %152 = vector.shape_cast %151 : vector<1x16x4xf32> to vector<16x4xf32>
      %153 = vector.shape_cast %150 : vector<16x4xf32> to vector<1x16x4xf32>
      tpu.vector_store %arg11[%c2_152, %c0_153, %c0_154], %153 {strides = array<i32>} : memref<8x16x4xf32, #tpu.memory_space<vmem>>, vector<1x16x4xf32>,
      %c3_155 = arith.constant 3 : index
      %c0_156 = arith.constant 0 : index
      %c0_157 = arith.constant 0 : index
      %154 = vector.load %arg5[%c3_155, %c0_156, %c0_157] : memref<8x32x4xf32, #tpu.memory_space<vmem>>, vector<1x32x4xf32>
      %155 = vector.shape_cast %154 : vector<1x32x4xf32> to vector<32x4xf32>
      %cst_158 = arith.constant dense<0.000000e+00> : vector<16x4xf32>
      %156 = tpu.matmul %135, %155, %cst_158 {dimension_numbers = #tpu.dot_dimension_numbers<[1], [0], [0], [1], [0, 0, 1, 1], [], []>} : vector<16x32xf32>, vector<32x4xf32>, vector<16x4xf32> -> vector<16x4xf32>
      %c3_159 = arith.constant 3 : index
      %c0_160 = arith.constant 0 : index
      %c0_161 = arith.constant 0 : index
      %157 = vector.load %arg11[%c3_159, %c0_160, %c0_161] : memref<8x16x4xf32, #tpu.memory_space<vmem>>, vector<1x16x4xf32>
      %158 = vector.shape_cast %157 : vector<1x16x4xf32> to vector<16x4xf32>
      %159 = vector.shape_cast %156 : vector<16x4xf32> to vector<1x16x4xf32>
      tpu.vector_store %arg11[%c3_159, %c0_160, %c0_161], %159 {strides = array<i32>} : memref<8x16x4xf32, #tpu.memory_space<vmem>>, vector<1x16x4xf32>,
      %c4_162 = arith.constant 4 : index
      %c0_163 = arith.constant 0 : index
      %c0_164 = arith.constant 0 : index
      %160 = vector.load %arg5[%c4_162, %c0_163, %c0_164] : memref<8x32x4xf32, #tpu.memory_space<vmem>>, vector<1x32x4xf32>
      %161 = vector.shape_cast %160 : vector<1x32x4xf32> to vector<32x4xf32>
      %cst_165 = arith.constant dense<0.000000e+00> : vector<16x4xf32>
      %162 = tpu.matmul %135, %161, %cst_165 {dimension_numbers = #tpu.dot_dimension_numbers<[1], [0], [0], [1], [0, 0, 1, 1], [], []>} : vector<16x32xf32>, vector<32x4xf32>, vector<16x4xf32> -> vector<16x4xf32>
      %c4_166 = arith.constant 4 : index
      %c0_167 = arith.constant 0 : index
      %c0_168 = arith.constant 0 : index
      %163 = vector.load %arg11[%c4_166, %c0_167, %c0_168] : memref<8x16x4xf32, #tpu.memory_space<vmem>>, vector<1x16x4xf32>
      %164 = vector.shape_cast %163 : vector<1x16x4xf32> to vector<16x4xf32>
      %165 = vector.shape_cast %162 : vector<16x4xf32> to vector<1x16x4xf32>
      tpu.vector_store %arg11[%c4_166, %c0_167, %c0_168], %165 {strides = array<i32>} : memref<8x16x4xf32, #tpu.memory_space<vmem>>, vector<1x16x4xf32>,
      %c5_169 = arith.constant 5 : index
      %c0_170 = arith.constant 0 : index
      %c0_171 = arith.constant 0 : index
      %166 = vector.load %arg5[%c5_169, %c0_170, %c0_171] : memref<8x32x4xf32, #tpu.memory_space<vmem>>, vector<1x32x4xf32>
      %167 = vector.shape_cast %166 : vector<1x32x4xf32> to vector<32x4xf32>
      %cst_172 = arith.constant dense<0.000000e+00> : vector<16x4xf32>
      %168 = tpu.matmul %135, %167, %cst_172 {dimension_numbers = #tpu.dot_dimension_numbers<[1], [0], [0], [1], [0, 0, 1, 1], [], []>} : vector<16x32xf32>, vector<32x4xf32>, vector<16x4xf32> -> vector<16x4xf32>
      %c5_173 = arith.constant 5 : index
      %c0_174 = arith.constant 0 : index
      %c0_175 = arith.constant 0 : index
      %169 = vector.load %arg11[%c5_173, %c0_174, %c0_175] : memref<8x16x4xf32, #tpu.memory_space<vmem>>, vector<1x16x4xf32>
      %170 = vector.shape_cast %169 : vector<1x16x4xf32> to vector<16x4xf32>
      %171 = vector.shape_cast %168 : vector<16x4xf32> to vector<1x16x4xf32>
      tpu.vector_store %arg11[%c5_173, %c0_174, %c0_175], %171 {strides = array<i32>} : memref<8x16x4xf32, #tpu.memory_space<vmem>>, vector<1x16x4xf32>,
      %c6_176 = arith.constant 6 : index
      %c0_177 = arith.constant 0 : index
      %c0_178 = arith.constant 0 : index
      %172 = vector.load %arg5[%c6_176, %c0_177, %c0_178] : memref<8x32x4xf32, #tpu.memory_space<vmem>>, vector<1x32x4xf32>
      %173 = vector.shape_cast %172 : vector<1x32x4xf32> to vector<32x4xf32>
      %cst_179 = arith.constant dense<0.000000e+00> : vector<16x4xf32>
      %174 = tpu.matmul %135, %173, %cst_179 {dimension_numbers = #tpu.dot_dimension_numbers<[1], [0], [0], [1], [0, 0, 1, 1], [], []>} : vector<16x32xf32>, vector<32x4xf32>, vector<16x4xf32> -> vector<16x4xf32>
      %c6_180 = arith.constant 6 : index
      %c0_181 = arith.constant 0 : index
      %c0_182 = arith.constant 0 : index
      %175 = vector.load %arg11[%c6_180, %c0_181, %c0_182] : memref<8x16x4xf32, #tpu.memory_space<vmem>>, vector<1x16x4xf32>
      %176 = vector.shape_cast %175 : vector<1x16x4xf32> to vector<16x4xf32>
      %177 = vector.shape_cast %174 : vector<16x4xf32> to vector<1x16x4xf32>
      tpu.vector_store %arg11[%c6_180, %c0_181, %c0_182], %177 {strides = array<i32>} : memref<8x16x4xf32, #tpu.memory_space<vmem>>, vector<1x16x4xf32>,
      %c7_183 = arith.constant 7 : index
      %c0_184 = arith.constant 0 : index
      %c0_185 = arith.constant 0 : index
      %178 = vector.load %arg5[%c7_183, %c0_184, %c0_185] : memref<8x32x4xf32, #tpu.memory_space<vmem>>, vector<1x32x4xf32>
      %179 = vector.shape_cast %178 : vector<1x32x4xf32> to vector<32x4xf32>
      %cst_186 = arith.constant dense<0.000000e+00> : vector<16x4xf32>
      %180 = tpu.matmul %135, %179, %cst_186 {dimension_numbers = #tpu.dot_dimension_numbers<[1], [0], [0], [1], [0, 0, 1, 1], [], []>} : vector<16x32xf32>, vector<32x4xf32>, vector<16x4xf32> -> vector<16x4xf32>
      %c7_187 = arith.constant 7 : index
      %c0_188 = arith.constant 0 : index
      %c0_189 = arith.constant 0 : index
      %181 = vector.load %arg11[%c7_187, %c0_188, %c0_189] : memref<8x16x4xf32, #tpu.memory_space<vmem>>, vector<1x16x4xf32>
      %182 = vector.shape_cast %181 : vector<1x16x4xf32> to vector<16x4xf32>
      %183 = vector.shape_cast %180 : vector<16x4xf32> to vector<1x16x4xf32>
      tpu.vector_store %arg11[%c7_187, %c0_188, %c0_189], %183 {strides = array<i32>} : memref<8x16x4xf32, #tpu.memory_space<vmem>>, vector<1x16x4xf32>,
    } else {
    }
    %c0 = arith.constant 0 : index
    %c0_1 = arith.constant 0 : index
    %c0_2 = arith.constant 0 : index
    %3 = vector.load %arg4[%c0, %c0_1, %c0_2] : memref<1x16x32xf32, #tpu.memory_space<vmem>>, vector<1x16x32xf32>
    %4 = vector.shape_cast %3 : vector<1x16x32xf32> to vector<16x32xf32>
    %c0_3 = arith.constant 0 : index
    %c0_4 = arith.constant 0 : index
    %c0_5 = arith.constant 0 : index
    %5 = vector.load %arg6[%c0_3, %c0_4, %c0_5] : memref<8x32x4xf32, #tpu.memory_space<vmem>>, vector<1x32x4xf32>
    %6 = vector.shape_cast %5 : vector<1x32x4xf32> to vector<32x4xf32>
    %cst = arith.constant dense<0.000000e+00> : vector<16x4xf32>
    %7 = tpu.matmul %4, %6, %cst {dimension_numbers = #tpu.dot_dimension_numbers<[1], [0], [0], [1], [0, 0, 1, 1], [], []>} : vector<16x32xf32>, vector<32x4xf32>, vector<16x4xf32> -> vector<16x4xf32>
    %c0_6 = arith.constant 0 : index
    %c0_7 = arith.constant 0 : index
    %c0_8 = arith.constant 0 : index
    %8 = vector.load %arg12[%c0_6, %c0_7, %c0_8] : memref<8x16x4xf32, #tpu.memory_space<vmem>>, vector<1x16x4xf32>
    %9 = vector.shape_cast %8 : vector<1x16x4xf32> to vector<16x4xf32>
    %10 = vector.shape_cast %7 : vector<16x4xf32> to vector<1x16x4xf32>
    tpu.vector_store %arg12[%c0_6, %c0_7, %c0_8], %10 {strides = array<i32>} : memref<8x16x4xf32, #tpu.memory_space<vmem>>, vector<1x16x4xf32>,
    %c0_9 = arith.constant 0 : index
    %c0_10 = arith.constant 0 : index
    %c0_11 = arith.constant 0 : index
    %11 = vector.load %arg7[%c0_9, %c0_10, %c0_11] : memref<8x32x4xf32, #tpu.memory_space<vmem>>, vector<1x32x4xf32>
    %12 = vector.shape_cast %11 : vector<1x32x4xf32> to vector<32x4xf32>
    %cst_12 = arith.constant dense<0.000000e+00> : vector<16x4xf32>
    %13 = tpu.matmul %4, %12, %cst_12 {dimension_numbers = #tpu.dot_dimension_numbers<[1], [0], [0], [1], [0, 0, 1, 1], [], []>} : vector<16x32xf32>, vector<32x4xf32>, vector<16x4xf32> -> vector<16x4xf32>
    %c0_13 = arith.constant 0 : index
    %c0_14 = arith.constant 0 : index
    %c0_15 = arith.constant 0 : index
    %14 = vector.load %arg13[%c0_13, %c0_14, %c0_15] : memref<8x16x4xf32, #tpu.memory_space<vmem>>, vector<1x16x4xf32>
    %15 = vector.shape_cast %14 : vector<1x16x4xf32> to vector<16x4xf32>
    %16 = vector.shape_cast %13 : vector<16x4xf32> to vector<1x16x4xf32>
    tpu.vector_store %arg13[%c0_13, %c0_14, %c0_15], %16 {strides = array<i32>} : memref<8x16x4xf32, #tpu.memory_space<vmem>>, vector<1x16x4xf32>,
    %c1 = arith.constant 1 : index
    %c0_16 = arith.constant 0 : index
    %c0_17 = arith.constant 0 : index
    %17 = vector.load %arg6[%c1, %c0_16, %c0_17] : memref<8x32x4xf32, #tpu.memory_space<vmem>>, vector<1x32x4xf32>
    %18 = vector.shape_cast %17 : vector<1x32x4xf32> to vector<32x4xf32>
    %cst_18 = arith.constant dense<0.000000e+00> : vector<16x4xf32>
    %19 = tpu.matmul %4, %18, %cst_18 {dimension_numbers = #tpu.dot_dimension_numbers<[1], [0], [0], [1], [0, 0, 1, 1], [], []>} : vector<16x32xf32>, vector<32x4xf32>, vector<16x4xf32> -> vector<16x4xf32>
    %c1_19 = arith.constant 1 : index
    %c0_20 = arith.constant 0 : index
    %c0_21 = arith.constant 0 : index
    %20 = vector.load %arg12[%c1_19, %c0_20, %c0_21] : memref<8x16x4xf32, #tpu.memory_space<vmem>>, vector<1x16x4xf32>
    %21 = vector.shape_cast %20 : vector<1x16x4xf32> to vector<16x4xf32>
    %22 = vector.shape_cast %19 : vector<16x4xf32> to vector<1x16x4xf32>
    tpu.vector_store %arg12[%c1_19, %c0_20, %c0_21], %22 {strides = array<i32>} : memref<8x16x4xf32, #tpu.memory_space<vmem>>, vector<1x16x4xf32>,
    %c1_22 = arith.constant 1 : index
    %c0_23 = arith.constant 0 : index
    %c0_24 = arith.constant 0 : index
    %23 = vector.load %arg7[%c1_22, %c0_23, %c0_24] : memref<8x32x4xf32, #tpu.memory_space<vmem>>, vector<1x32x4xf32>
    %24 = vector.shape_cast %23 : vector<1x32x4xf32> to vector<32x4xf32>
    %cst_25 = arith.constant dense<0.000000e+00> : vector<16x4xf32>
    %25 = tpu.matmul %4, %24, %cst_25 {dimension_numbers = #tpu.dot_dimension_numbers<[1], [0], [0], [1], [0, 0, 1, 1], [], []>} : vector<16x32xf32>, vector<32x4xf32>, vector<16x4xf32> -> vector<16x4xf32>
    %c1_26 = arith.constant 1 : index
    %c0_27 = arith.constant 0 : index
    %c0_28 = arith.constant 0 : index
    %26 = vector.load %arg13[%c1_26, %c0_27, %c0_28] : memref<8x16x4xf32, #tpu.memory_space<vmem>>, vector<1x16x4xf32>
    %27 = vector.shape_cast %26 : vector<1x16x4xf32> to vector<16x4xf32>
    %28 = vector.shape_cast %25 : vector<16x4xf32> to vector<1x16x4xf32>
    tpu.vector_store %arg13[%c1_26, %c0_27, %c0_28], %28 {strides = array<i32>} : memref<8x16x4xf32, #tpu.memory_space<vmem>>, vector<1x16x4xf32>,
    %c2 = arith.constant 2 : index
    %c0_29 = arith.constant 0 : index
    %c0_30 = arith.constant 0 : index
    %29 = vector.load %arg6[%c2, %c0_29, %c0_30] : memref<8x32x4xf32, #tpu.memory_space<vmem>>, vector<1x32x4xf32>
    %30 = vector.shape_cast %29 : vector<1x32x4xf32> to vector<32x4xf32>
    %cst_31 = arith.constant dense<0.000000e+00> : vector<16x4xf32>
    %31 = tpu.matmul %4, %30, %cst_31 {dimension_numbers = #tpu.dot_dimension_numbers<[1], [0], [0], [1], [0, 0, 1, 1], [], []>} : vector<16x32xf32>, vector<32x4xf32>, vector<16x4xf32> -> vector<16x4xf32>
    %c2_32 = arith.constant 2 : index
    %c0_33 = arith.constant 0 : index
    %c0_34 = arith.constant 0 : index
    %32 = vector.load %arg12[%c2_32, %c0_33, %c0_34] : memref<8x16x4xf32, #tpu.memory_space<vmem>>, vector<1x16x4xf32>
    %33 = vector.shape_cast %32 : vector<1x16x4xf32> to vector<16x4xf32>
    %34 = vector.shape_cast %31 : vector<16x4xf32> to vector<1x16x4xf32>
    tpu.vector_store %arg12[%c2_32, %c0_33, %c0_34], %34 {strides = array<i32>} : memref<8x16x4xf32, #tpu.memory_space<vmem>>, vector<1x16x4xf32>,
    %c2_35 = arith.constant 2 : index
    %c0_36 = arith.constant 0 : index
    %c0_37 = arith.constant 0 : index
    %35 = vector.load %arg7[%c2_35, %c0_36, %c0_37] : memref<8x32x4xf32, #tpu.memory_space<vmem>>, vector<1x32x4xf32>
    %36 = vector.shape_cast %35 : vector<1x32x4xf32> to vector<32x4xf32>
    %cst_38 = arith.constant dense<0.000000e+00> : vector<16x4xf32>
    %37 = tpu.matmul %4, %36, %cst_38 {dimension_numbers = #tpu.dot_dimension_numbers<[1], [0], [0], [1], [0, 0, 1, 1], [], []>} : vector<16x32xf32>, vector<32x4xf32>, vector<16x4xf32> -> vector<16x4xf32>
    %c2_39 = arith.constant 2 : index
    %c0_40 = arith.constant 0 : index
    %c0_41 = arith.constant 0 : index
    %38 = vector.load %arg13[%c2_39, %c0_40, %c0_41] : memref<8x16x4xf32, #tpu.memory_space<vmem>>, vector<1x16x4xf32>
    %39 = vector.shape_cast %38 : vector<1x16x4xf32> to vector<16x4xf32>
    %40 = vector.shape_cast %37 : vector<16x4xf32> to vector<1x16x4xf32>
    tpu.vector_store %arg13[%c2_39, %c0_40, %c0_41], %40 {strides = array<i32>} : memref<8x16x4xf32, #tpu.memory_space<vmem>>, vector<1x16x4xf32>,
    %c3 = arith.constant 3 : index
    %c0_42 = arith.constant 0 : index
    %c0_43 = arith.constant 0 : index
    %41 = vector.load %arg6[%c3, %c0_42, %c0_43] : memref<8x32x4xf32, #tpu.memory_space<vmem>>, vector<1x32x4xf32>
    %42 = vector.shape_cast %41 : vector<1x32x4xf32> to vector<32x4xf32>
    %cst_44 = arith.constant dense<0.000000e+00> : vector<16x4xf32>
    %43 = tpu.matmul %4, %42, %cst_44 {dimension_numbers = #tpu.dot_dimension_numbers<[1], [0], [0], [1], [0, 0, 1, 1], [], []>} : vector<16x32xf32>, vector<32x4xf32>, vector<16x4xf32> -> vector<16x4xf32>
    %c3_45 = arith.constant 3 : index
    %c0_46 = arith.constant 0 : index
    %c0_47 = arith.constant 0 : index
    %44 = vector.load %arg12[%c3_45, %c0_46, %c0_47] : memref<8x16x4xf32, #tpu.memory_space<vmem>>, vector<1x16x4xf32>
    %45 = vector.shape_cast %44 : vector<1x16x4xf32> to vector<16x4xf32>
    %46 = vector.shape_cast %43 : vector<16x4xf32> to vector<1x16x4xf32>
    tpu.vector_store %arg12[%c3_45, %c0_46, %c0_47], %46 {strides = array<i32>} : memref<8x16x4xf32, #tpu.memory_space<vmem>>, vector<1x16x4xf32>,
    %c3_48 = arith.constant 3 : index
    %c0_49 = arith.constant 0 : index
    %c0_50 = arith.constant 0 : index
    %47 = vector.load %arg7[%c3_48, %c0_49, %c0_50] : memref<8x32x4xf32, #tpu.memory_space<vmem>>, vector<1x32x4xf32>
    %48 = vector.shape_cast %47 : vector<1x32x4xf32> to vector<32x4xf32>
    %cst_51 = arith.constant dense<0.000000e+00> : vector<16x4xf32>
    %49 = tpu.matmul %4, %48, %cst_51 {dimension_numbers = #tpu.dot_dimension_numbers<[1], [0], [0], [1], [0, 0, 1, 1], [], []>} : vector<16x32xf32>, vector<32x4xf32>, vector<16x4xf32> -> vector<16x4xf32>
    %c3_52 = arith.constant 3 : index
    %c0_53 = arith.constant 0 : index
    %c0_54 = arith.constant 0 : index
    %50 = vector.load %arg13[%c3_52, %c0_53, %c0_54] : memref<8x16x4xf32, #tpu.memory_space<vmem>>, vector<1x16x4xf32>
    %51 = vector.shape_cast %50 : vector<1x16x4xf32> to vector<16x4xf32>
    %52 = vector.shape_cast %49 : vector<16x4xf32> to vector<1x16x4xf32>
    tpu.vector_store %arg13[%c3_52, %c0_53, %c0_54], %52 {strides = array<i32>} : memref<8x16x4xf32, #tpu.memory_space<vmem>>, vector<1x16x4xf32>,
    %c4 = arith.constant 4 : index
    %c0_55 = arith.constant 0 : index
    %c0_56 = arith.constant 0 : index
    %53 = vector.load %arg6[%c4, %c0_55, %c0_56] : memref<8x32x4xf32, #tpu.memory_space<vmem>>, vector<1x32x4xf32>
    %54 = vector.shape_cast %53 : vector<1x32x4xf32> to vector<32x4xf32>
    %cst_57 = arith.constant dense<0.000000e+00> : vector<16x4xf32>
    %55 = tpu.matmul %4, %54, %cst_57 {dimension_numbers = #tpu.dot_dimension_numbers<[1], [0], [0], [1], [0, 0, 1, 1], [], []>} : vector<16x32xf32>, vector<32x4xf32>, vector<16x4xf32> -> vector<16x4xf32>
    %c4_58 = arith.constant 4 : index
    %c0_59 = arith.constant 0 : index
    %c0_60 = arith.constant 0 : index
    %56 = vector.load %arg12[%c4_58, %c0_59, %c0_60] : memref<8x16x4xf32, #tpu.memory_space<vmem>>, vector<1x16x4xf32>
    %57 = vector.shape_cast %56 : vector<1x16x4xf32> to vector<16x4xf32>
    %58 = vector.shape_cast %55 : vector<16x4xf32> to vector<1x16x4xf32>
    tpu.vector_store %arg12[%c4_58, %c0_59, %c0_60], %58 {strides = array<i32>} : memref<8x16x4xf32, #tpu.memory_space<vmem>>, vector<1x16x4xf32>,
    %c4_61 = arith.constant 4 : index
    %c0_62 = arith.constant 0 : index
    %c0_63 = arith.constant 0 : index
    %59 = vector.load %arg7[%c4_61, %c0_62, %c0_63] : memref<8x32x4xf32, #tpu.memory_space<vmem>>, vector<1x32x4xf32>
    %60 = vector.shape_cast %59 : vector<1x32x4xf32> to vector<32x4xf32>
    %cst_64 = arith.constant dense<0.000000e+00> : vector<16x4xf32>
    %61 = tpu.matmul %4, %60, %cst_64 {dimension_numbers = #tpu.dot_dimension_numbers<[1], [0], [0], [1], [0, 0, 1, 1], [], []>} : vector<16x32xf32>, vector<32x4xf32>, vector<16x4xf32> -> vector<16x4xf32>
    %c4_65 = arith.constant 4 : index
    %c0_66 = arith.constant 0 : index
    %c0_67 = arith.constant 0 : index
    %62 = vector.load %arg13[%c4_65, %c0_66, %c0_67] : memref<8x16x4xf32, #tpu.memory_space<vmem>>, vector<1x16x4xf32>
    %63 = vector.shape_cast %62 : vector<1x16x4xf32> to vector<16x4xf32>
    %64 = vector.shape_cast %61 : vector<16x4xf32> to vector<1x16x4xf32>
    tpu.vector_store %arg13[%c4_65, %c0_66, %c0_67], %64 {strides = array<i32>} : memref<8x16x4xf32, #tpu.memory_space<vmem>>, vector<1x16x4xf32>,
    %c5 = arith.constant 5 : index
    %c0_68 = arith.constant 0 : index
    %c0_69 = arith.constant 0 : index
    %65 = vector.load %arg6[%c5, %c0_68, %c0_69] : memref<8x32x4xf32, #tpu.memory_space<vmem>>, vector<1x32x4xf32>
    %66 = vector.shape_cast %65 : vector<1x32x4xf32> to vector<32x4xf32>
    %cst_70 = arith.constant dense<0.000000e+00> : vector<16x4xf32>
    %67 = tpu.matmul %4, %66, %cst_70 {dimension_numbers = #tpu.dot_dimension_numbers<[1], [0], [0], [1], [0, 0, 1, 1], [], []>} : vector<16x32xf32>, vector<32x4xf32>, vector<16x4xf32> -> vector<16x4xf32>
    %c5_71 = arith.constant 5 : index
    %c0_72 = arith.constant 0 : index
    %c0_73 = arith.constant 0 : index
    %68 = vector.load %arg12[%c5_71, %c0_72, %c0_73] : memref<8x16x4xf32, #tpu.memory_space<vmem>>, vector<1x16x4xf32>
    %69 = vector.shape_cast %68 : vector<1x16x4xf32> to vector<16x4xf32>
    %70 = vector.shape_cast %67 : vector<16x4xf32> to vector<1x16x4xf32>
    tpu.vector_store %arg12[%c5_71, %c0_72, %c0_73], %70 {strides = array<i32>} : memref<8x16x4xf32, #tpu.memory_space<vmem>>, vector<1x16x4xf32>,
    %c5_74 = arith.constant 5 : index
    %c0_75 = arith.constant 0 : index
    %c0_76 = arith.constant 0 : index
    %71 = vector.load %arg7[%c5_74, %c0_75, %c0_76] : memref<8x32x4xf32, #tpu.memory_space<vmem>>, vector<1x32x4xf32>
    %72 = vector.shape_cast %71 : vector<1x32x4xf32> to vector<32x4xf32>
    %cst_77 = arith.constant dense<0.000000e+00> : vector<16x4xf32>
    %73 = tpu.matmul %4, %72, %cst_77 {dimension_numbers = #tpu.dot_dimension_numbers<[1], [0], [0], [1], [0, 0, 1, 1], [], []>} : vector<16x32xf32>, vector<32x4xf32>, vector<16x4xf32> -> vector<16x4xf32>
    %c5_78 = arith.constant 5 : index
    %c0_79 = arith.constant 0 : index
    %c0_80 = arith.constant 0 : index
    %74 = vector.load %arg13[%c5_78, %c0_79, %c0_80] : memref<8x16x4xf32, #tpu.memory_space<vmem>>, vector<1x16x4xf32>
    %75 = vector.shape_cast %74 : vector<1x16x4xf32> to vector<16x4xf32>
    %76 = vector.shape_cast %73 : vector<16x4xf32> to vector<1x16x4xf32>
    tpu.vector_store %arg13[%c5_78, %c0_79, %c0_80], %76 {strides = array<i32>} : memref<8x16x4xf32, #tpu.memory_space<vmem>>, vector<1x16x4xf32>,
    %c6 = arith.constant 6 : index
    %c0_81 = arith.constant 0 : index
    %c0_82 = arith.constant 0 : index
    %77 = vector.load %arg6[%c6, %c0_81, %c0_82] : memref<8x32x4xf32, #tpu.memory_space<vmem>>, vector<1x32x4xf32>
    %78 = vector.shape_cast %77 : vector<1x32x4xf32> to vector<32x4xf32>
    %cst_83 = arith.constant dense<0.000000e+00> : vector<16x4xf32>
    %79 = tpu.matmul %4, %78, %cst_83 {dimension_numbers = #tpu.dot_dimension_numbers<[1], [0], [0], [1], [0, 0, 1, 1], [], []>} : vector<16x32xf32>, vector<32x4xf32>, vector<16x4xf32> -> vector<16x4xf32>
    %c6_84 = arith.constant 6 : index
    %c0_85 = arith.constant 0 : index
    %c0_86 = arith.constant 0 : index
    %80 = vector.load %arg12[%c6_84, %c0_85, %c0_86] : memref<8x16x4xf32, #tpu.memory_space<vmem>>, vector<1x16x4xf32>
    %81 = vector.shape_cast %80 : vector<1x16x4xf32> to vector<16x4xf32>
    %82 = vector.shape_cast %79 : vector<16x4xf32> to vector<1x16x4xf32>
    tpu.vector_store %arg12[%c6_84, %c0_85, %c0_86], %82 {strides = array<i32>} : memref<8x16x4xf32, #tpu.memory_space<vmem>>, vector<1x16x4xf32>,
    %c6_87 = arith.constant 6 : index
    %c0_88 = arith.constant 0 : index
    %c0_89 = arith.constant 0 : index
    %83 = vector.load %arg7[%c6_87, %c0_88, %c0_89] : memref<8x32x4xf32, #tpu.memory_space<vmem>>, vector<1x32x4xf32>
    %84 = vector.shape_cast %83 : vector<1x32x4xf32> to vector<32x4xf32>
    %cst_90 = arith.constant dense<0.000000e+00> : vector<16x4xf32>
    %85 = tpu.matmul %4, %84, %cst_90 {dimension_numbers = #tpu.dot_dimension_numbers<[1], [0], [0], [1], [0, 0, 1, 1], [], []>} : vector<16x32xf32>, vector<32x4xf32>, vector<16x4xf32> -> vector<16x4xf32>
    %c6_91 = arith.constant 6 : index
    %c0_92 = arith.constant 0 : index
    %c0_93 = arith.constant 0 : index
    %86 = vector.load %arg13[%c6_91, %c0_92, %c0_93] : memref<8x16x4xf32, #tpu.memory_space<vmem>>, vector<1x16x4xf32>
    %87 = vector.shape_cast %86 : vector<1x16x4xf32> to vector<16x4xf32>
    %88 = vector.shape_cast %85 : vector<16x4xf32> to vector<1x16x4xf32>
    tpu.vector_store %arg13[%c6_91, %c0_92, %c0_93], %88 {strides = array<i32>} : memref<8x16x4xf32, #tpu.memory_space<vmem>>, vector<1x16x4xf32>,
    %c7 = arith.constant 7 : index
    %c0_94 = arith.constant 0 : index
    %c0_95 = arith.constant 0 : index
    %89 = vector.load %arg6[%c7, %c0_94, %c0_95] : memref<8x32x4xf32, #tpu.memory_space<vmem>>, vector<1x32x4xf32>
    %90 = vector.shape_cast %89 : vector<1x32x4xf32> to vector<32x4xf32>
    %cst_96 = arith.constant dense<0.000000e+00> : vector<16x4xf32>
    %91 = tpu.matmul %4, %90, %cst_96 {dimension_numbers = #tpu.dot_dimension_numbers<[1], [0], [0], [1], [0, 0, 1, 1], [], []>} : vector<16x32xf32>, vector<32x4xf32>, vector<16x4xf32> -> vector<16x4xf32>
    %c7_97 = arith.constant 7 : index
    %c0_98 = arith.constant 0 : index
    %c0_99 = arith.constant 0 : index
    %92 = vector.load %arg12[%c7_97, %c0_98, %c0_99] : memref<8x16x4xf32, #tpu.memory_space<vmem>>, vector<1x16x4xf32>
    %93 = vector.shape_cast %92 : vector<1x16x4xf32> to vector<16x4xf32>
    %94 = vector.shape_cast %91 : vector<16x4xf32> to vector<1x16x4xf32>
    tpu.vector_store %arg12[%c7_97, %c0_98, %c0_99], %94 {strides = array<i32>} : memref<8x16x4xf32, #tpu.memory_space<vmem>>, vector<1x16x4xf32>,
    %c7_100 = arith.constant 7 : index
    %c0_101 = arith.constant 0 : index
    %c0_102 = arith.constant 0 : index
    %95 = vector.load %arg7[%c7_100, %c0_101, %c0_102] : memref<8x32x4xf32, #tpu.memory_space<vmem>>, vector<1x32x4xf32>
    %96 = vector.shape_cast %95 : vector<1x32x4xf32> to vector<32x4xf32>
    %cst_103 = arith.constant dense<0.000000e+00> : vector<16x4xf32>
    %97 = tpu.matmul %4, %96, %cst_103 {dimension_numbers = #tpu.dot_dimension_numbers<[1], [0], [0], [1], [0, 0, 1, 1], [], []>} : vector<16x32xf32>, vector<32x4xf32>, vector<16x4xf32> -> vector<16x4xf32>
    %c7_104 = arith.constant 7 : index
    %c0_105 = arith.constant 0 : index
    %c0_106 = arith.constant 0 : index
    %98 = vector.load %arg13[%c7_104, %c0_105, %c0_106] : memref<8x16x4xf32, #tpu.memory_space<vmem>>, vector<1x16x4xf32>
    %99 = vector.shape_cast %98 : vector<1x16x4xf32> to vector<16x4xf32>
    %100 = vector.shape_cast %97 : vector<16x4xf32> to vector<1x16x4xf32>
    tpu.vector_store %arg13[%c7_104, %c0_105, %c0_106], %100 {strides = array<i32>} : memref<8x16x4xf32, #tpu.memory_space<vmem>>, vector<1x16x4xf32>,
    %c0_107 = arith.constant 0 : index
    %c0_108 = arith.constant 0 : index
    %c0_109 = arith.constant 0 : index
    %101 = vector.load %arg11[%c0_107, %c0_108, %c0_109] : memref<8x16x4xf32, #tpu.memory_space<vmem>>, vector<8x16x4xf32>
    %c0_110 = arith.constant 0 : index
    %c0_111 = arith.constant 0 : index
    %c0_112 = arith.constant 0 : index
    %102 = vector.load %arg12[%c0_110, %c0_111, %c0_112] : memref<8x16x4xf32, #tpu.memory_space<vmem>>, vector<8x16x4xf32>
    %c0_113 = arith.constant 0 : index
    %c0_114 = arith.constant 0 : index
    %c0_115 = arith.constant 0 : index
    %103 = vector.load %arg13[%c0_113, %c0_114, %c0_115] : memref<8x16x4xf32, #tpu.memory_space<vmem>>, vector<8x16x4xf32>
    "tpu.trace_start"() <{level = 10 : i32, message = "hqd,hkd->hqk"}> : () -> ()
    %cst_116 = arith.constant dense<0.000000e+00> : vector<8x16x16xf32>
    %104 = tpu.matmul %101, %102, %cst_116 {dimension_numbers = #tpu.dot_dimension_numbers<[2], [2], [1], [1], [0, 0, 0, 1, 1, 1], [0], [0]>} : vector<8x16x4xf32>, vector<8x16x4xf32>, vector<8x16x16xf32> -> vector<8x16x16xf32>
    "tpu.trace_stop"() : () -> ()
    %c16_i32 = arith.constant 16 : i32
    %105 = arith.muli %arg2, %c16_i32 : i32
    %106 = tpu.iota {dimensions = array<i32: 2>} : vector<1x1x16xi32>
    %107 = vector.broadcast %105 : i32 to vector<1x1x16xi32>
    %108 = arith.addi %107, %106 : vector<1x1x16xi32>
    %c9_i32 = arith.constant 9 : i32
    %109 = vector.broadcast %c9_i32 : i32 to vector<1x1x16xi32>
    %110 = arith.cmpi slt, %108, %109 : vector<1x1x16xi32>
    %cst_117 = arith.constant -1.000000e+30 : f32
    %111 = vector.shape_cast %110 : vector<1x1x16xi1> to vector<1x1x16xi1>
    %112 = vector.broadcast %111 : vector<1x1x16xi1> to vector<8x16x16xi1>
    %113 = vector.broadcast %cst_117 : f32 to vector<8x16x16xf32>
    %114 = arith.select %112, %104, %113 : vector<8x16x16xi1>, vector<8x16x16xf32>
    %cst_118 = arith.constant dense<0xFF800000> : vector<8x16xf32>
    %115 = vector.multi_reduction <maximumf>, %114, %cst_118 [2] : vector<8x16x16xf32> to vector<8x16xf32>
    %116 = vector.shape_cast %115 : vector<8x16xf32> to vector<8x16x1xf32>
    %117 = vector.broadcast %116 : vector<8x16x1xf32> to vector<8x16x16xf32>
    %118 = arith.subf %114, %117 : vector<8x16x16xf32>
    %119 = math.exp %118 : vector<8x16x16xf32>
    %cst_119 = arith.constant dense<0.000000e+00> : vector<8x16xf32>
    %120 = vector.multi_reduction <add>, %119, %cst_119 [2] : vector<8x16x16xf32> to vector<8x16xf32>
    %121 = vector.shape_cast %120 : vector<8x16xf32> to vector<8x16x1xf32>
    "tpu.trace_start"() <{level = 10 : i32, message = "hqk,hkd->hqd"}> : () -> ()
    %cst_120 = arith.constant dense<0.000000e+00> : vector<8x16x4xf32>
    %122 = tpu.matmul %119, %103, %cst_120 {dimension_numbers = #tpu.dot_dimension_numbers<[2], [1], [1], [2], [0, 0, 0, 1, 1, 2], [0], [0]>} : vector<8x16x16xf32>, vector<8x16x4xf32>, vector<8x16x4xf32> -> vector<8x16x4xf32>
    "tpu.trace_stop"() : () -> ()
    %123 = vector.broadcast %121 : vector<8x16x1xf32> to vector<8x16x4xf32>
    %124 = arith.divf %122, %123 : vector<8x16x4xf32>
    %c0_121 = arith.constant 0 : index
    %c0_122 = arith.constant 0 : index
    %c0_123 = arith.constant 0 : index
    %125 = vector.load %arg8[%c0_121, %c0_122, %c0_123] : memref<8x4x32xf32, #tpu.memory_space<vmem>>, vector<8x4x32xf32>
    "tpu.trace_start"() <{level = 10 : i32, message = "hqd,hdo->hqo"}> : () -> ()
    %cst_124 = arith.constant dense<0.000000e+00> : vector<8x16x32xf32>
    %126 = tpu.matmul %124, %125, %cst_124 {dimension_numbers = #tpu.dot_dimension_numbers<[2], [1], [1], [2], [0, 0, 0, 1, 1, 2], [0], [0]>} : vector<8x16x4xf32>, vector<8x4x32xf32>, vector<8x16x32xf32> -> vector<8x16x32xf32>
    "tpu.trace_stop"() : () -> ()
    %cst_125 = arith.constant dense<0.000000e+00> : vector<16x32xf32>
    %127 = vector.multi_reduction <add>, %126, %cst_125 [0] : vector<8x16x32xf32> to vector<16x32xf32>
    %c0_126 = arith.constant 0 : index
    %c0_127 = arith.constant 0 : index
    %128 = vector.load %arg9[%c0_126, %c0_127] : memref<1x32xf32, #tpu.memory_space<vmem>>, vector<1x32xf32>
    %129 = vector.broadcast %128 : vector<1x32xf32> to vector<16x32xf32>
    %130 = arith.addf %127, %129 : vector<16x32xf32>
    %c0_128 = arith.constant 0 : index
    %c0_129 = arith.constant 0 : index
    %c0_130 = arith.constant 0 : index
    %131 = vector.load %arg10[%c0_128, %c0_129, %c0_130] : memref<1x16x32xf32, #tpu.memory_space<vmem>>, vector<1x16x32xf32>
    %132 = vector.shape_cast %131 : vector<1x16x32xf32> to vector<16x32xf32>
    %133 = vector.shape_cast %130 : vector<16x32xf32> to vector<1x16x32xf32>
    tpu.vector_store %arg10[%c0_128, %c0_129, %c0_130], %133 {strides = array<i32>} : memref<1x16x32xf32, #tpu.memory_space<vmem>>, vector<1x16x32xf32>,
    return
  }
  func.func @transform_0(%arg0: i32, %arg1: i32, %arg2: i32) -> (i32, i32, i32) {
    %c0_i32 = arith.constant 0 : i32
    %c0_i32_0 = arith.constant 0 : i32
    return %arg0, %arg1, %c0_i32 : i32, i32, i32
  }
  func.func @transform_1(%arg0: i32, %arg1: i32, %arg2: i32) -> (i32, i32, i32) {
    %c0_i32 = arith.constant 0 : i32
    %c0_i32_0 = arith.constant 0 : i32
    return %arg0, %arg2, %c0_i32 : i32, i32, i32
  }
  func.func @transform_2(%arg0: i32, %arg1: i32, %arg2: i32) -> (i32, i32, i32) {
    %c0_i32 = arith.constant 0 : i32
    %c0_i32_0 = arith.constant 0 : i32
    %c0_i32_1 = arith.constant 0 : i32
    %c0_i32_2 = arith.constant 0 : i32
    return %c0_i32, %c0_i32_0, %c0_i32_1 : i32, i32, i32
  }
  func.func @transform_3(%arg0: i32, %arg1: i32, %arg2: i32) -> (i32, i32, i32) {
    %c0_i32 = arith.constant 0 : i32
    %c0_i32_0 = arith.constant 0 : i32
    %c0_i32_1 = arith.constant 0 : i32
    %c0_i32_2 = arith.constant 0 : i32
    return %c0_i32, %c0_i32_0, %c0_i32_1 : i32, i32, i32
  }
  func.func @transform_4(%arg0: i32, %arg1: i32, %arg2: i32) -> (i32, i32, i32) {
    %c0_i32 = arith.constant 0 : i32
    %c0_i32_0 = arith.constant 0 : i32
    %c0_i32_1 = arith.constant 0 : i32
    %c0_i32_2 = arith.constant 0 : i32
    return %c0_i32, %c0_i32_0, %c0_i32_1 : i32, i32, i32
  }
  func.func @transform_5(%arg0: i32, %arg1: i32, %arg2: i32) -> (i32, i32, i32) {
    %c0_i32 = arith.constant 0 : i32
    %c0_i32_0 = arith.constant 0 : i32
    %c0_i32_1 = arith.constant 0 : i32
    %c0_i32_2 = arith.constant 0 : i32
    return %c0_i32, %c0_i32_0, %c0_i32_1 : i32, i32, i32
  }
  func.func @transform_6(%arg0: i32, %arg1: i32, %arg2: i32) -> (i32, i32) {
    %c0_i32 = arith.constant 0 : i32
    %c0_i32_0 = arith.constant 0 : i32
    %c0_i32_1 = arith.constant 0 : i32
    return %c0_i32, %c0_i32_0 : i32, i32
  }
  func.func @transform_7(%arg0: i32, %arg1: i32, %arg2: i32) -> (i32, i32, i32) {
    %c0_i32 = arith.constant 0 : i32
    %c0_i32_0 = arith.constant 0 : i32
    return %arg0, %arg1, %c0_i32 : i32, i32, i32
  }
}

</mosaic_0001>

<llo_original>
// kernel: tpu_custom_call.1
$region0: #{tpu_custom_call.1}
  #allocation0 [shape = 'u32[]', space=smem, size = 0x4, offset = 0x4, fixed_abs, tag = 'smem constant byte address 0x4 - core index']
  #allocation1 [shape = 'u32[144,128]{1,0:T(1,128)}', space=vmem, size = 0x12000, scoped, tag = 'internal scratch']
  #allocation2 [shape = 'f32[8,16,4]{2,1,0:T(8,128)}', space=vmem, size = 0x10000, scoped, tag = 'scratch operand']
  #allocation3 [shape = 'f32[8,16,4]{2,1,0:T(8,128)}', space=vmem, size = 0x10000, scoped, tag = 'scratch operand']
  #allocation4 [shape = 'f32[8,16,4]{2,1,0:T(8,128)}', space=vmem, size = 0x10000, scoped, tag = 'scratch operand']
  #allocation5 [shape = 'f32[8,16,1]{2,1,0:T(8,128)}', space=vmem, size = 0x10000, scoped, tag = 'scratch operand']
  #allocation6 [shape = 'f32[8,16,1]{2,1,0:T(8,128)}', space=vmem, size = 0x10000, scoped, tag = 'scratch operand']
  #allocation7 [shape = 'f32[8,16,4]{2,1,0:T(8,128)}', space=vmem, size = 0x10000, scoped, tag = 'scratch operand']
  %s0 = inlined_call_operand.vmem [shape: f32[2,16,32], index: 0, kind: input, shape index: {}]
  %s1 = inlined_call_operand.vmem [shape: f32[2,16,32], index: 1, kind: input, shape index: {}]
  %s2 = inlined_call_operand.vmem [shape: f32[8,32,4], index: 2, kind: input, shape index: {}]
  %s3 = inlined_call_operand.vmem [shape: f32[8,32,4], index: 3, kind: input, shape index: {}]
  %s4 = inlined_call_operand.vmem [shape: f32[8,32,4], index: 4, kind: input, shape index: {}]
  %s5 = inlined_call_operand.vmem [shape: f32[8,4,32], index: 5, kind: input, shape index: {}]
  %s6 = inlined_call_operand.vmem [shape: f32[1,32], index: 6, kind: input, shape index: {}]
  %s7 = inlined_call_operand.hbm [shape: f32[2,16,32], index: 7, kind: output, shape index: {}]
  %s8 = sld [smem:[#allocation0]]
  $region65: #{tpu_custom_call.1} parent=0
    _
  %s10 = ssub.s32 1, %s8
  %s11 = scalar_select 0, %s10, %s8
  $region1: #{tpu_custom_call.1} parent=0
    #allocation8 [shape = 'u8[16384]{0}', space=vmem, size = 0x4000, scoped, tag = 'output window, operand 0']
    #allocation9 [shape = 's32[2]{0}', space=sflag, size = 0x8, scoped, tag = 'scoped memory for tpu_custom_call.1']
    %12 = vsyncpa [#allocation9], 0
    %s13 = scalar_lea.sflag [#allocation9], 1
    %14 = vsyncpa %s13, 0
    loop: start=0, step=1, limit=4
    $region2: #{tpu_custom_call.1} parent=1 // loop_pre_header
      _
    $region3: #{tpu_custom_call.1} parent=1 // loop_header
      %s16 = sphi 0, %s20
      %p17 = scmp.ge.s32.totalorder %s16, 4
      %s23 = sphi 0, %s42
      %s24 = sphi 0, %s38
      %s25 = sphi 0, %s34
      %s26 = sphi 0, %s23
      %s27 = sphi 0, %s24
      %s28 = sphi 0, %s25
      %s29 = sphi 0, %s26
      %s30 = sphi 0, %s27
      %s31 = sphi 0, %s28
      %s47 = sphi 0, %s49
      %s50 = sphi 0, %s47
      %s51 = sphi 0, %s50
      %s67 = sphi 0, %s51
      %s75 = sphi 0, %s77
      %s78 = sphi 0, %s75
      %s79 = sphi 0, %s78
      %s95 = sphi 0, %s79
      %s99 = sphi 0, %s99
      %s101 = sphi 0, %s99
      %s102 = sphi 0, %s101
      %s116 = sphi 0, %s102
      %s120 = sphi 0, %s120
      %s122 = sphi 0, %s120
      %s123 = sphi 0, %s122
      %s137 = sphi 0, %s123
      %s141 = sphi 0, %s141
      %s143 = sphi 0, %s141
      %s144 = sphi 0, %s143
      %s158 = sphi 0, %s144
      %s162 = sphi 0, %s162
      %s164 = sphi 0, %s162
      %s165 = sphi 0, %s164
      %s179 = sphi 0, %s165
      %s183 = sphi 0, %s183
      %s185 = sphi 0, %s183
      %s186 = sphi 0, %s185
      %s200 = sphi 0, %s186
      %s208 = sphi 0, %s210
      %s211 = sphi 0, %s208
      %s212 = sphi 0, %s211
      %s228 = sphi 0, %s212
    $region4: #{tpu_custom_call.1} parent=1 // loop_header_branch
      %19 = sbr.rel (%p17) target = $region8
    $region5: #{tpu_custom_call.1} parent=1 // loop_body
      %s21 = ssub.s32 %s16, 1
      %s22 = ssub.s32 %s16, 2
      %s32 = sadd.s32 1, %s25
      %p33 = scmp.ge.s32.totalorder %s32, 1
      %s34 = scalar_select %p33, 0, %s32
      %s35 = sadd.s32 1, %s24
      %s36 = scalar_select %p33, %s35, %s24
      %p37 = scmp.ge.s32.totalorder %s36, 1
      %s38 = scalar_select %p37, 0, %s36
      %s39 = sadd.s32 1, %s23
      %s40 = scalar_select %p37, %s39, %s23
      %p41 = scmp.ge.s32.totalorder %s40, 2
      %s42 = scalar_select %p41, 0, %s40
      %s43 = ssub.s32 %s23, %s42
      %s44 = ssub.s32 %s24, %s38
      %s45 = sor.u32 %s43, %s44
      %p46 = scmp.eq.s32.totalorder %s45, 0
      %s48 = sadd.s32 %s47, 1
      %s49 = scalar_select %p46, %s47, %s48
      %p52 = pneg %p46
      %p53 = scmp.eq.s32.totalorder %s16, 1
      %p54 = por %p52, %p53
      %p55 = scmp.ne.s32.totalorder %s47, %s50
      %p56 = scmp.eq.s32.totalorder %s16, 0
      %p57 = por %p55, %p56
      %p58 = scmp.ne.s32.totalorder %s47, %s50
      %p59 = scmp.eq.s32.totalorder %s21, 1
      %p60 = por %p58, %p59
      %p61 = scmp.ne.s32.totalorder %s50, %s51
      %p62 = scmp.eq.s32.totalorder %s21, 0
      %p63 = por %p61, %p62
      %p64 = scmp.ne.s32.totalorder %s50, %s51
      %p65 = scmp.eq.s32.totalorder %s22, 1
      %p66 = por %p64, %p65
      %p68 = scmp.ne.s32.totalorder %s51, %s67
      %p69 = scmp.eq.s32.totalorder %s22, 0
      %p70 = por %p68, %p69
      %s71 = ssub.s32 %s23, %s42
      %s72 = ssub.s32 %s25, %s34
      %s73 = sor.u32 %s71, %s72
      %p74 = scmp.eq.s32.totalorder %s73, 0
      %s76 = sadd.s32 %s75, 1
      %s77 = scalar_select %p74, %s75, %s76
      %p80 = pneg %p74
      %p81 = scmp.eq.s32.totalorder %s16, 1
      %p82 = por %p80, %p81
      %p83 = scmp.ne.s32.totalorder %s75, %s78
      %p84 = scmp.eq.s32.totalorder %s16, 0
      %p85 = por %p83, %p84
      %p86 = scmp.ne.s32.totalorder %s75, %s78
      %p87 = scmp.eq.s32.totalorder %s21, 1
      %p88 = por %p86, %p87
      %p89 = scmp.ne.s32.totalorder %s78, %s79
      %p90 = scmp.eq.s32.totalorder %s21, 0
      %p91 = por %p89, %p90
      %p92 = scmp.ne.s32.totalorder %s78, %s79
      %p93 = scmp.eq.s32.totalorder %s22, 1
      %p94 = por %p92, %p93
      %p96 = scmp.ne.s32.totalorder %s79, %s95
      %p97 = scmp.eq.s32.totalorder %s22, 0
      %p98 = por %p96, %p97
      %s100 = sadd.s32 %s99, 1
      %p103 = scmp.eq.s32.totalorder %s16, 1
      %p104 = scmp.ne.s32.totalorder %s99, %s101
      %p105 = scmp.eq.s32.totalorder %s16, 0
      %p106 = por %p104, %p105
      %p107 = scmp.ne.s32.totalorder %s99, %s101
      %p108 = scmp.eq.s32.totalorder %s21, 1
      %p109 = por %p107, %p108
      %p110 = scmp.ne.s32.totalorder %s101, %s102
      %p111 = scmp.eq.s32.totalorder %s21, 0
      %p112 = por %p110, %p111
      %p113 = scmp.ne.s32.totalorder %s101, %s102
      %p114 = scmp.eq.s32.totalorder %s22, 1
      %p115 = por %p113, %p114
      %p117 = scmp.ne.s32.totalorder %s102, %s116
      %p118 = scmp.eq.s32.totalorder %s22, 0
      %p119 = por %p117, %p118
      %s121 = sadd.s32 %s120, 1
      %p124 = scmp.eq.s32.totalorder %s16, 1
      %p125 = scmp.ne.s32.totalorder %s120, %s122
      %p126 = scmp.eq.s32.totalorder %s16, 0
      %p127 = por %p125, %p126
      %p128 = scmp.ne.s32.totalorder %s120, %s122
      %p129 = scmp.eq.s32.totalorder %s21, 1
      %p130 = por %p128, %p129
      %p131 = scmp.ne.s32.totalorder %s122, %s123
      %p132 = scmp.eq.s32.totalorder %s21, 0
      %p133 = por %p131, %p132
      %p134 = scmp.ne.s32.totalorder %s122, %s123
      %p135 = scmp.eq.s32.totalorder %s22, 1
      %p136 = por %p134, %p135
      %p138 = scmp.ne.s32.totalorder %s123, %s137
      %p139 = scmp.eq.s32.totalorder %s22, 0
      %p140 = por %p138, %p139
      %s142 = sadd.s32 %s141, 1
      %p145 = scmp.eq.s32.totalorder %s16, 1
      %p146 = scmp.ne.s32.totalorder %s141, %s143
      %p147 = scmp.eq.s32.totalorder %s16, 0
      %p148 = por %p146, %p147
      %p149 = scmp.ne.s32.totalorder %s141, %s143
      %p150 = scmp.eq.s32.totalorder %s21, 1
      %p151 = por %p149, %p150
      %p152 = scmp.ne.s32.totalorder %s143, %s144
      %p153 = scmp.eq.s32.totalorder %s21, 0
      %p154 = por %p152, %p153
      %p155 = scmp.ne.s32.totalorder %s143, %s144
      %p156 = scmp.eq.s32.totalorder %s22, 1
      %p157 = por %p155, %p156
      %p159 = scmp.ne.s32.totalorder %s144, %s158
      %p160 = scmp.eq.s32.totalorder %s22, 0
      %p161 = por %p159, %p160
      %s163 = sadd.s32 %s162, 1
      %p166 = scmp.eq.s32.totalorder %s16, 1
      %p167 = scmp.ne.s32.totalorder %s162, %s164
      %p168 = scmp.eq.s32.totalorder %s16, 0
      %p169 = por %p167, %p168
      %p170 = scmp.ne.s32.totalorder %s162, %s164
      %p171 = scmp.eq.s32.totalorder %s21, 1
      %p172 = por %p170, %p171
      %p173 = scmp.ne.s32.totalorder %s164, %s165
      %p174 = scmp.eq.s32.totalorder %s21, 0
      %p175 = por %p173, %p174
      %p176 = scmp.ne.s32.totalorder %s164, %s165
      %p177 = scmp.eq.s32.totalorder %s22, 1
      %p178 = por %p176, %p177
      %p180 = scmp.ne.s32.totalorder %s165, %s179
      %p181 = scmp.eq.s32.totalorder %s22, 0
      %p182 = por %p180, %p181
      %s184 = sadd.s32 %s183, 1
      %p187 = scmp.eq.s32.totalorder %s16, 1
      %p188 = scmp.ne.s32.totalorder %s183, %s185
      %p189 = scmp.eq.s32.totalorder %s16, 0
      %p190 = por %p188, %p189
      %p191 = scmp.ne.s32.totalorder %s183, %s185
      %p192 = scmp.eq.s32.totalorder %s21, 1
      %p193 = por %p191, %p192
      %p194 = scmp.ne.s32.totalorder %s185, %s186
      %p195 = scmp.eq.s32.totalorder %s21, 0
      %p196 = por %p194, %p195
      %p197 = scmp.ne.s32.totalorder %s185, %s186
      %p198 = scmp.eq.s32.totalorder %s22, 1
      %p199 = por %p197, %p198
      %p201 = scmp.ne.s32.totalorder %s186, %s200
      %p202 = scmp.eq.s32.totalorder %s22, 0
      %p203 = por %p201, %p202
      %s204 = ssub.s32 %s23, %s42
      %s205 = ssub.s32 %s24, %s38
      %s206 = sor.u32 %s204, %s205
      %p207 = scmp.eq.s32.totalorder %s206, 0
      %s209 = sadd.s32 %s208, 1
      %s210 = scalar_select %p207, %s208, %s209
      %p213 = pneg %p207
      %p214 = scmp.eq.s32.totalorder %s16, 1
      %p215 = por %p213, %p214
      %p216 = scmp.ne.s32.totalorder %s208, %s211
      %p217 = scmp.eq.s32.totalorder %s16, 0
      %p218 = por %p216, %p217
      %p219 = scmp.ne.s32.totalorder %s208, %s211
      %p220 = scmp.eq.s32.totalorder %s21, 1
      %p221 = por %p219, %p220
      %p222 = scmp.ne.s32.totalorder %s211, %s212
      %p223 = scmp.eq.s32.totalorder %s21, 0
      %p224 = por %p222, %p223
      %p225 = scmp.ne.s32.totalorder %s211, %s212
      %p226 = scmp.eq.s32.totalorder %s22, 1
      %p227 = por %p225, %p226
      %p229 = scmp.ne.s32.totalorder %s212, %s228
      %p230 = scmp.eq.s32.totalorder %s22, 0
      %p231 = por %p229, %p230
      %p232 = scmp.le.s32.totalorder 1, %s16
      %p233 = scmp.lt.s32.totalorder %s16, 3
      %p234 = pnand %p232, %p233
      %p235 = pneg %p234
      // Predicated region
      $region9: #{tpu_custom_call.1} parent=5 // pred_check
        _
      $region10: #{tpu_custom_call.1} parent=5 // pred_check_branch
        %237 = sbr.rel (%p234) target = $region12
      $region11: #{tpu_custom_call.1} parent=5 // pred_region
        %s238 = ssub.s32 %s16, 1
        // Predicated region
        $region13: #{tpu_custom_call.1} parent=11 // pred_check
          %p239 = pneg %p112
        $region14: #{tpu_custom_call.1} parent=11 // pred_check_branch
          %241 = sbr.rel (%p239) target = $region16
        $region15: #{tpu_custom_call.1} parent=11 // pred_region
          _
        $region16: #{tpu_custom_call.1} parent=11 // pred_fallthru
          _
        // Predicated region
        $region17: #{tpu_custom_call.1} parent=11 // pred_check
          %p242 = pneg %p133
        $region18: #{tpu_custom_call.1} parent=11 // pred_check_branch
          %244 = sbr.rel (%p242) target = $region20
        $region19: #{tpu_custom_call.1} parent=11 // pred_region
          _
        $region20: #{tpu_custom_call.1} parent=11 // pred_fallthru
          _
        // Predicated region
        $region21: #{tpu_custom_call.1} parent=11 // pred_check
          %p245 = pneg %p154
        $region22: #{tpu_custom_call.1} parent=11 // pred_check_branch
          %247 = sbr.rel (%p245) target = $region24
        $region23: #{tpu_custom_call.1} parent=11 // pred_region
          _
        $region24: #{tpu_custom_call.1} parent=11 // pred_fallthru
          _
        // Predicated region
        $region25: #{tpu_custom_call.1} parent=11 // pred_check
          %p248 = pneg %p175
        $region26: #{tpu_custom_call.1} parent=11 // pred_check_branch
          %250 = sbr.rel (%p248) target = $region28
        $region27: #{tpu_custom_call.1} parent=11 // pred_region
          _
        $region28: #{tpu_custom_call.1} parent=11 // pred_fallthru
          _
        // Predicated region
        $region29: #{tpu_custom_call.1} parent=11 // pred_check
          %p251 = pneg %p196
        $region30: #{tpu_custom_call.1} parent=11 // pred_check_branch
          %253 = sbr.rel (%p251) target = $region32
        $region31: #{tpu_custom_call.1} parent=11 // pred_region
          _
        $region32: #{tpu_custom_call.1} parent=11 // pred_fallthru
          _
      $region12: #{tpu_custom_call.1} parent=5 // pred_fallthru
        _
      %p254 = scmp.lt.s32.totalorder %s16, 2
      // Predicated region
      $region33: #{tpu_custom_call.1} parent=5 // pred_check
        %p255 = pneg %p254
      $region34: #{tpu_custom_call.1} parent=5 // pred_check_branch
        %257 = sbr.rel (%p255) target = $region36
      $region35: #{tpu_custom_call.1} parent=5 // pred_region
        // Predicated region
        $region37: #{tpu_custom_call.1} parent=35 // pred_check
          %p258 = pneg %p57
        $region38: #{tpu_custom_call.1} parent=35 // pred_check_branch
          %260 = sbr.rel (%p258) target = $region40
        $region39: #{tpu_custom_call.1} parent=35 // pred_region
          %s261 = smul.u32 2, %s24
          %p262 = scmp.lt.s32.totalorder %s23, 1
          %s263 = scalar_select %p262, %s23, 1
          %p264 = scmp.lt.s32.totalorder %s261, 1
          %s265 = scalar_select %p264, %s261, 1
          %s266 = smul.addr %s263, 2
          %s267 = sadd.s32 %s265, %s266
          %s268 = smul.addr %s267, 8
          %s269 = scalar_lea.vmem %s0, %s268
          %s270 = smul.u32 2, %s24
        $region40: #{tpu_custom_call.1} parent=35 // pred_fallthru
          _
        // Predicated region
        $region41: #{tpu_custom_call.1} parent=35 // pred_check
          %p271 = pneg %p85
        $region42: #{tpu_custom_call.1} parent=35 // pred_check_branch
          %273 = sbr.rel (%p271) target = $region44
        $region43: #{tpu_custom_call.1} parent=35 // pred_region
          %s274 = smul.u32 2, %s25
          %p275 = scmp.lt.s32.totalorder %s23, 1
          %s276 = scalar_select %p275, %s23, 1
          %p277 = scmp.lt.s32.totalorder %s274, 1
          %s278 = scalar_select %p277, %s274, 1
          %s279 = smul.addr %s276, 2
          %s280 = sadd.s32 %s278, %s279
          %s281 = smul.addr %s280, 8
          %s282 = scalar_lea.vmem %s1, %s281
          %s283 = smul.u32 2, %s25
        $region44: #{tpu_custom_call.1} parent=35 // pred_fallthru
          _
      $region36: #{tpu_custom_call.1} parent=5 // pred_fallthru
        _
      %p284 = scmp.le.s32.totalorder 1, %s16
      %p285 = scmp.lt.s32.totalorder %s16, 3
      %p286 = pnand %p284, %p285
      %p287 = pneg %p286
      // Predicated region
      $region45: #{tpu_custom_call.1} parent=5 // pred_check
        _
      $region46: #{tpu_custom_call.1} parent=5 // pred_check_branch
        %289 = sbr.rel (%p286) target = $region48
      $region47: #{tpu_custom_call.1} parent=5 // pred_region
        %s290 = ssub.s32 %s16, 1
        %s291 = smul.u32 2, %s27
        %p292 = scmp.lt.s32.totalorder %s26, 1
        %s293 = scalar_select %p292, %s26, 1
        %p294 = scmp.lt.s32.totalorder %s291, 1
        %s295 = scalar_select %p294, %s291, 1
        %s296 = smul.addr %s293, 2
        %s297 = sadd.s32 %s295, %s296
        %s298 = smul.addr %s297, 8
        %s299 = scalar_lea.vmem %s0, %s298
        %p300 = pneg %p63
        %p301 = pneg %p60
        %s302 = smul.u32 2, %s28
        %p303 = scmp.lt.s32.totalorder %s26, 1
        %s304 = scalar_select %p303, %s26, 1
        %p305 = scmp.lt.s32.totalorder %s302, 1
        %s306 = scalar_select %p305, %s302, 1
        %s307 = smul.addr %s304, 2
        %s308 = sadd.s32 %s306, %s307
        %s309 = smul.addr %s308, 8
        %s310 = scalar_lea.vmem %s1, %s309
        %p311 = pneg %p91
        %p312 = pneg %p88
        %p313 = pneg %p112
        %p314 = pneg %p109
        %p315 = pneg %p133
        %p316 = pneg %p130
        %p317 = pneg %p154
        %p318 = pneg %p151
        %p319 = pneg %p175
        %p320 = pneg %p172
        %p321 = pneg %p196
        %p322 = pneg %p193
        %p323 = pneg %p224
        %p324 = pneg %p221
        %s325 = sand.u32 %s211, 1
        %s326 = scalar_lea.sflag [#allocation9], %s325
        %s327 = sand.u32 %s211, 1
        %s328 = smul.addr %s327, 16
        %s329 = scalar_lea.vmem [#allocation8], %s328
        %s330 = smul.u32 2, %s27
        %p331 = scmp.lt.s32.totalorder %s26, 1
        %s332 = scalar_select %p331, %s26, 1
        %p333 = scmp.lt.s32.totalorder %s330, 1
        %s334 = scalar_select %p333, %s330, 1
        %s335 = smul.addr %s332, 2
        %s336 = sadd.s32 %s334, %s335
        %s337 = smul.addr %s336, 8
        %s338 = scalar_lea.vmem %s0, %s337
        %s339 = smul.u32 2, %s27
        %s340 = smul.u32 2, %s28
        %p341 = scmp.lt.s32.totalorder %s26, 1
        %s342 = scalar_select %p341, %s26, 1
        %p343 = scmp.lt.s32.totalorder %s340, 1
        %s344 = scalar_select %p343, %s340, 1
        %s345 = smul.addr %s342, 2
        %s346 = sadd.s32 %s344, %s345
        %s347 = smul.addr %s346, 8
        %s348 = scalar_lea.vmem %s1, %s347
        %s349 = smul.u32 2, %s28
        %s350 = smul.u32 2, %s27
        %p351 = scmp.eq.s32.totalorder %s28, 0
        // Predicated region
        $region49: #{tpu_custom_call.1} parent=47 // pred_check
          %p352 = pneg %p351
        $region50: #{tpu_custom_call.1} parent=47 // pred_check_branch
          %354 = sbr.rel (%p352) target = $region52
        $region51: #{tpu_custom_call.1} parent=47 // pred_region
          %v355 = vld [vmem:[%s338] sm:$0xff]
          %v356 = vld [vmem:[%s338 + $0x8] sm:$0xff]
          %v357 = vld [vmem:[%s2] sm:$0xff]
          %v358 = vld [vmem:[%s2 + $0x8] sm:$0xff]
          %v359 = vld [vmem:[%s2 + $0x10] sm:$0xff]
          %v360 = vld [vmem:[%s2 + $0x18] sm:$0xff]
          %vm361 = vcmask 261120
          %v363 = vsel %vm361, %v355, 0
          %v366 = vsel %vm361, %v356, 0
          %368 = vmatprep.subr.mxu0 0.0
          %369 = vmatpush1.msra.mxu0 0.0
          %370 = vmatprep.subr.mxu0 0.0
          %371 = vmatpush1.msra.mxu0 0.0
          %372 = vmatprep.subr.mxu0 0.0
          %373 = vmatpush1.msra.mxu0 0.0
          %374 = vmatprep.subr.mxu0 0.0
          %375 = vmatpush1.msra.mxu0 0.0
          %376 = vmatprep.subr.mxu0 0.0
          %377 = vmatpush1.msra.mxu0 0.0
          %378 = vmatprep.subr.mxu0 0.0
          %379 = vmatpush1.msra.mxu0 0.0
          %380 = vmatprep.subr.mxu0 0.0
          %381 = vmatpush1.msra.mxu0 0.0
          %382 = vmatprep.subr.mxu0 0.0
          %383 = vmatpush1.msra.mxu0 0.0
          %384 = vmatprep.subr.mxu0 0.0
          %385 = vmatpush1.msra.mxu0 0.0
          %386 = vmatprep.subr.mxu0 0.0
          %387 = vmatpush1.msra.mxu0 0.0
          %388 = vmatprep.subr.mxu0 0.0
          %389 = vmatpush1.msra.mxu0 0.0
          %390 = vmatprep.subr.mxu0 0.0
          %391 = vmatpush1.msra.mxu0 0.0
          %392 = vmatprep.subr.mxu0 0.0
          %393 = vmatpush1.msra.mxu0 %v360
          %394 = vmatprep.subr.mxu0 0.0
          %395 = vmatpush1.msra.mxu0 %v359
          %396 = vmatprep.subr.mxu0 0.0
          %397 = vmatpush1.msra.mxu0 %v358
          %398 = vmatprep.subr.mxu0 0.0
          %399 = vmatpush1.msra.mxu0 %v357
          %400 = vmatprep.subr.mxu0 0.0
          %401 = vmatpush2.msra.mxu0 0.0
          %402 = vmatprep.subr.mxu0 0.0
          %403 = vmatpush2.msra.mxu0 0.0
          %404 = vmatprep.subr.mxu0 0.0
          %405 = vmatpush2.msra.mxu0 0.0
          %406 = vmatprep.subr.mxu0 0.0
          %407 = vmatpush2.msra.mxu0 0.0
          %408 = vmatprep.subr.mxu0 0.0
          %409 = vmatpush2.msra.mxu0 0.0
          %410 = vmatprep.subr.mxu0 0.0
          %411 = vmatpush2.msra.mxu0 0.0
          %412 = vmatprep.subr.mxu0 0.0
          %413 = vmatpush2.msra.mxu0 0.0
          %414 = vmatprep.subr.mxu0 0.0
          %415 = vmatpush2.msra.mxu0 0.0
          %416 = vmatprep.subr.mxu0 0.0
          %417 = vmatpush2.msra.mxu0 0.0
          %418 = vmatprep.subr.mxu0 0.0
          %419 = vmatpush2.msra.mxu0 0.0
          %420 = vmatprep.subr.mxu0 0.0
          %421 = vmatpush2.msra.mxu0 0.0
          %422 = vmatprep.subr.mxu0 0.0
          %423 = vmatpush2.msra.mxu0 0.0
          %424 = vmatprep.subr.mxu0 0.0
          %425 = vmatpush2.msra.mxu0 0.0
          %426 = vmatprep.subr.mxu0 0.0
          %427 = vmatpush2.msra.mxu0 0.0
          %428 = vmatprep.subr.mxu0 0.0
          %429 = vmatpush2.msra.mxu0 0.0
          %430 = vmatprep.subr.mxu0 0.0
          %431 = vmatpush2.msra.mxu0 0.0
          %432 = vmatprep.mubr.f32.mxu0 0.0
          %433 = vmatmul.mubr.f32.gmra.mxu0 %v363
          %v434 = vpop.f32.mrf.mxu0
          %v435 = vadd.f32 0.0, %v434
          %v436 = vpop.f32.mrf.mxu0
          %437 = vmatprep.mubr.f32.mxu0 0.0
          %438 = vmatmul.mubr.f32.gmra.mxu0 %v366
          %v439 = vpop.f32.mrf.mxu0
          %v440 = vadd.f32 0.0, %v439
          %v441 = vpop.f32.mrf.mxu0
          %442 = vdwg.mxu0
          %vm443 = vcmask 31744
          %444 = vst.msk [vmem:[#allocation2] sm:$0xff] %vm443, %v435
          %445 = vst.msk [vmem:[#allocation2 + $0x8] sm:$0xff] %vm443, %v440
          %s446 = scalar_lea.vmem %s2, 32
          %v447 = vld [vmem:[%s446] sm:$0xff]
          %v448 = vld [vmem:[%s446 + $0x8] sm:$0xff]
          %v449 = vld [vmem:[%s446 + $0x10] sm:$0xff]
          %v450 = vld [vmem:[%s446 + $0x18] sm:$0xff]
          %451 = vmatprep.subr.mxu0 0.0
          %452 = vmatpush1.msra.mxu0 0.0
          %453 = vmatprep.subr.mxu0 0.0
          %454 = vmatpush1.msra.mxu0 0.0
          %455 = vmatprep.subr.mxu0 0.0
          %456 = vmatpush1.msra.mxu0 0.0
          %457 = vmatprep.subr.mxu0 0.0
          %458 = vmatpush1.msra.mxu0 0.0
          %459 = vmatprep.subr.mxu0 0.0
          %460 = vmatpush1.msra.mxu0 0.0
          %461 = vmatprep.subr.mxu0 0.0
          %462 = vmatpush1.msra.mxu0 0.0
          %463 = vmatprep.subr.mxu0 0.0
          %464 = vmatpush1.msra.mxu0 0.0
          %465 = vmatprep.subr.mxu0 0.0
          %466 = vmatpush1.msra.mxu0 0.0
          %467 = vmatprep.subr.mxu0 0.0
          %468 = vmatpush1.msra.mxu0 0.0
          %469 = vmatprep.subr.mxu0 0.0
          %470 = vmatpush1.msra.mxu0 0.0
          %471 = vmatprep.subr.mxu0 0.0
          %472 = vmatpush1.msra.mxu0 0.0
          %473 = vmatprep.subr.mxu0 0.0
          %474 = vmatpush1.msra.mxu0 0.0
          %475 = vmatprep.subr.mxu0 0.0
          %476 = vmatpush1.msra.mxu0 %v450
          %477 = vmatprep.subr.mxu0 0.0
          %478 = vmatpush1.msra.mxu0 %v449
          %479 = vmatprep.subr.mxu0 0.0
          %480 = vmatpush1.msra.mxu0 %v448
          %481 = vmatprep.subr.mxu0 0.0
          %482 = vmatpush1.msra.mxu0 %v447
          %483 = vmatprep.subr.mxu0 0.0
          %484 = vmatpush2.msra.mxu0 0.0
          %485 = vmatprep.subr.mxu0 0.0
          %486 = vmatpush2.msra.mxu0 0.0
          %487 = vmatprep.subr.mxu0 0.0
          %488 = vmatpush2.msra.mxu0 0.0
          %489 = vmatprep.subr.mxu0 0.0
          %490 = vmatpush2.msra.mxu0 0.0
          %491 = vmatprep.subr.mxu0 0.0
          %492 = vmatpush2.msra.mxu0 0.0
          %493 = vmatprep.subr.mxu0 0.0
          %494 = vmatpush2.msra.mxu0 0.0
          %495 = vmatprep.subr.mxu0 0.0
          %496 = vmatpush2.msra.mxu0 0.0
          %497 = vmatprep.subr.mxu0 0.0
          %498 = vmatpush2.msra.mxu0 0.0
          %499 = vmatprep.subr.mxu0 0.0
          %500 = vmatpush2.msra.mxu0 0.0
          %501 = vmatprep.subr.mxu0 0.0
          %502 = vmatpush2.msra.mxu0 0.0
          %503 = vmatprep.subr.mxu0 0.0
          %504 = vmatpush2.msra.mxu0 0.0
          %505 = vmatprep.subr.mxu0 0.0
          %506 = vmatpush2.msra.mxu0 0.0
          %507 = vmatprep.subr.mxu0 0.0
          %508 = vmatpush2.msra.mxu0 0.0
          %509 = vmatprep.subr.mxu0 0.0
          %510 = vmatpush2.msra.mxu0 0.0
          %511 = vmatprep.subr.mxu0 0.0
          %512 = vmatpush2.msra.mxu0 0.0
          %513 = vmatprep.subr.mxu0 0.0
          %514 = vmatpush2.msra.mxu0 0.0
          %515 = vmatprep.mubr.f32.mxu0 0.0
          %516 = vmatmul.mubr.f32.gmra.mxu0 %v363
          %v517 = vpop.f32.mrf.mxu0
          %v518 = vadd.f32 0.0, %v517
          %v519 = vpop.f32.mrf.mxu0
          %520 = vmatprep.mubr.f32.mxu0 0.0
          %521 = vmatmul.mubr.f32.gmra.mxu0 %v366
          %v522 = vpop.f32.mrf.mxu0
          %v523 = vadd.f32 0.0, %v522
          %v524 = vpop.f32.mrf.mxu0
          %525 = vdwg.mxu0
          %s526 = scalar_lea.vmem [#allocation2], 16
          %527 = vst.msk [vmem:[%s526] sm:$0xff] %vm443, %v518
          %528 = vst.msk [vmem:[%s526 + $0x8] sm:$0xff] %vm443, %v523
          %s529 = scalar_lea.vmem %s2, 64
          %v530 = vld [vmem:[%s529] sm:$0xff]
          %v531 = vld [vmem:[%s529 + $0x8] sm:$0xff]
          %v532 = vld [vmem:[%s529 + $0x10] sm:$0xff]
          %v533 = vld [vmem:[%s529 + $0x18] sm:$0xff]
          %534 = vmatprep.subr.mxu0 0.0
          %535 = vmatpush1.msra.mxu0 0.0
          %536 = vmatprep.subr.mxu0 0.0
          %537 = vmatpush1.msra.mxu0 0.0
          %538 = vmatprep.subr.mxu0 0.0
          %539 = vmatpush1.msra.mxu0 0.0
          %540 = vmatprep.subr.mxu0 0.0
          %541 = vmatpush1.msra.mxu0 0.0
          %542 = vmatprep.subr.mxu0 0.0
          %543 = vmatpush1.msra.mxu0 0.0
          %544 = vmatprep.subr.mxu0 0.0
          %545 = vmatpush1.msra.mxu0 0.0
          %546 = vmatprep.subr.mxu0 0.0
          %547 = vmatpush1.msra.mxu0 0.0
          %548 = vmatprep.subr.mxu0 0.0
          %549 = vmatpush1.msra.mxu0 0.0
          %550 = vmatprep.subr.mxu0 0.0
          %551 = vmatpush1.msra.mxu0 0.0
          %552 = vmatprep.subr.mxu0 0.0
          %553 = vmatpush1.msra.mxu0 0.0
          %554 = vmatprep.subr.mxu0 0.0
          %555 = vmatpush1.msra.mxu0 0.0
          %556 = vmatprep.subr.mxu0 0.0
          %557 = vmatpush1.msra.mxu0 0.0
          %558 = vmatprep.subr.mxu0 0.0
          %559 = vmatpush1.msra.mxu0 %v533
          %560 = vmatprep.subr.mxu0 0.0
          %561 = vmatpush1.msra.mxu0 %v532
          %562 = vmatprep.subr.mxu0 0.0
          %563 = vmatpush1.msra.mxu0 %v531
          %564 = vmatprep.subr.mxu0 0.0
          %565 = vmatpush1.msra.mxu0 %v530
          %566 = vmatprep.subr.mxu0 0.0
          %567 = vmatpush2.msra.mxu0 0.0
          %568 = vmatprep.subr.mxu0 0.0
          %569 = vmatpush2.msra.mxu0 0.0
          %570 = vmatprep.subr.mxu0 0.0
          %571 = vmatpush2.msra.mxu0 0.0
          %572 = vmatprep.subr.mxu0 0.0
          %573 = vmatpush2.msra.mxu0 0.0
          %574 = vmatprep.subr.mxu0 0.0
          %575 = vmatpush2.msra.mxu0 0.0
          %576 = vmatprep.subr.mxu0 0.0
          %577 = vmatpush2.msra.mxu0 0.0
          %578 = vmatprep.subr.mxu0 0.0
          %579 = vmatpush2.msra.mxu0 0.0
          %580 = vmatprep.subr.mxu0 0.0
          %581 = vmatpush2.msra.mxu0 0.0
          %582 = vmatprep.subr.mxu0 0.0
          %583 = vmatpush2.msra.mxu0 0.0
          %584 = vmatprep.subr.mxu0 0.0
          %585 = vmatpush2.msra.mxu0 0.0
          %586 = vmatprep.subr.mxu0 0.0
          %587 = vmatpush2.msra.mxu0 0.0
          %588 = vmatprep.subr.mxu0 0.0
          %589 = vmatpush2.msra.mxu0 0.0
          %590 = vmatprep.subr.mxu0 0.0
          %591 = vmatpush2.msra.mxu0 0.0
          %592 = vmatprep.subr.mxu0 0.0
          %593 = vmatpush2.msra.mxu0 0.0
          %594 = vmatprep.subr.mxu0 0.0
          %595 = vmatpush2.msra.mxu0 0.0
          %596 = vmatprep.subr.mxu0 0.0
          %597 = vmatpush2.msra.mxu0 0.0
          %598 = vmatprep.mubr.f32.mxu0 0.0
          %599 = vmatmul.mubr.f32.gmra.mxu0 %v363
          %v600 = vpop.f32.mrf.mxu0
          %v601 = vadd.f32 0.0, %v600
          %v602 = vpop.f32.mrf.mxu0
          %603 = vmatprep.mubr.f32.mxu0 0.0
          %604 = vmatmul.mubr.f32.gmra.mxu0 %v366
          %v605 = vpop.f32.mrf.mxu0
          %v606 = vadd.f32 0.0, %v605
          %v607 = vpop.f32.mrf.mxu0
          %608 = vdwg.mxu0
          %s609 = scalar_lea.vmem [#allocation2], 32
          %610 = vst.msk [vmem:[%s609] sm:$0xff] %vm443, %v601
          %611 = vst.msk [vmem:[%s609 + $0x8] sm:$0xff] %vm443, %v606
          %s612 = scalar_lea.vmem %s2, 96
          %v613 = vld [vmem:[%s612] sm:$0xff]
          %v614 = vld [vmem:[%s612 + $0x8] sm:$0xff]
          %v615 = vld [vmem:[%s612 + $0x10] sm:$0xff]
          %v616 = vld [vmem:[%s612 + $0x18] sm:$0xff]
          %617 = vmatprep.subr.mxu0 0.0
          %618 = vmatpush1.msra.mxu0 0.0
          %619 = vmatprep.subr.mxu0 0.0
          %620 = vmatpush1.msra.mxu0 0.0
          %621 = vmatprep.subr.mxu0 0.0
          %622 = vmatpush1.msra.mxu0 0.0
          %623 = vmatprep.subr.mxu0 0.0
          %624 = vmatpush1.msra.mxu0 0.0
          %625 = vmatprep.subr.mxu0 0.0
          %626 = vmatpush1.msra.mxu0 0.0
          %627 = vmatprep.subr.mxu0 0.0
          %628 = vmatpush1.msra.mxu0 0.0
          %629 = vmatprep.subr.mxu0 0.0
          %630 = vmatpush1.msra.mxu0 0.0
          %631 = vmatprep.subr.mxu0 0.0
          %632 = vmatpush1.msra.mxu0 0.0
          %633 = vmatprep.subr.mxu0 0.0
          %634 = vmatpush1.msra.mxu0 0.0
          %635 = vmatprep.subr.mxu0 0.0
          %636 = vmatpush1.msra.mxu0 0.0
          %637 = vmatprep.subr.mxu0 0.0
          %638 = vmatpush1.msra.mxu0 0.0
          %639 = vmatprep.subr.mxu0 0.0
          %640 = vmatpush1.msra.mxu0 0.0
          %641 = vmatprep.subr.mxu0 0.0
          %642 = vmatpush1.msra.mxu0 %v616
          %643 = vmatprep.subr.mxu0 0.0
          %644 = vmatpush1.msra.mxu0 %v615
          %645 = vmatprep.subr.mxu0 0.0
          %646 = vmatpush1.msra.mxu0 %v614
          %647 = vmatprep.subr.mxu0 0.0
          %648 = vmatpush1.msra.mxu0 %v613
          %649 = vmatprep.subr.mxu0 0.0
          %650 = vmatpush2.msra.mxu0 0.0
          %651 = vmatprep.subr.mxu0 0.0
          %652 = vmatpush2.msra.mxu0 0.0
          %653 = vmatprep.subr.mxu0 0.0
          %654 = vmatpush2.msra.mxu0 0.0
          %655 = vmatprep.subr.mxu0 0.0
          %656 = vmatpush2.msra.mxu0 0.0
          %657 = vmatprep.subr.mxu0 0.0
          %658 = vmatpush2.msra.mxu0 0.0
          %659 = vmatprep.subr.mxu0 0.0
          %660 = vmatpush2.msra.mxu0 0.0
          %661 = vmatprep.subr.mxu0 0.0
          %662 = vmatpush2.msra.mxu0 0.0
          %663 = vmatprep.subr.mxu0 0.0
          %664 = vmatpush2.msra.mxu0 0.0
          %665 = vmatprep.subr.mxu0 0.0
          %666 = vmatpush2.msra.mxu0 0.0
          %667 = vmatprep.subr.mxu0 0.0
          %668 = vmatpush2.msra.mxu0 0.0
          %669 = vmatprep.subr.mxu0 0.0
          %670 = vmatpush2.msra.mxu0 0.0
          %671 = vmatprep.subr.mxu0 0.0
          %672 = vmatpush2.msra.mxu0 0.0
          %673 = vmatprep.subr.mxu0 0.0
          %674 = vmatpush2.msra.mxu0 0.0
          %675 = vmatprep.subr.mxu0 0.0
          %676 = vmatpush2.msra.mxu0 0.0
          %677 = vmatprep.subr.mxu0 0.0
          %678 = vmatpush2.msra.mxu0 0.0
          %679 = vmatprep.subr.mxu0 0.0
          %680 = vmatpush2.msra.mxu0 0.0
          %681 = vmatprep.mubr.f32.mxu0 0.0
          %682 = vmatmul.mubr.f32.gmra.mxu0 %v363
          %v683 = vpop.f32.mrf.mxu0
          %v684 = vadd.f32 0.0, %v683
          %v685 = vpop.f32.mrf.mxu0
          %686 = vmatprep.mubr.f32.mxu0 0.0
          %687 = vmatmul.mubr.f32.gmra.mxu0 %v366
          %v688 = vpop.f32.mrf.mxu0
          %v689 = vadd.f32 0.0, %v688
          %v690 = vpop.f32.mrf.mxu0
          %691 = vdwg.mxu0
          %s692 = scalar_lea.vmem [#allocation2], 48
          %693 = vst.msk [vmem:[%s692] sm:$0xff] %vm443, %v684
          %694 = vst.msk [vmem:[%s692 + $0x8] sm:$0xff] %vm443, %v689
          %s695 = scalar_lea.vmem %s2, 128
          %v696 = vld [vmem:[%s695] sm:$0xff]
          %v697 = vld [vmem:[%s695 + $0x8] sm:$0xff]
          %v698 = vld [vmem:[%s695 + $0x10] sm:$0xff]
          %v699 = vld [vmem:[%s695 + $0x18] sm:$0xff]
          %700 = vmatprep.subr.mxu0 0.0
          %701 = vmatpush1.msra.mxu0 0.0
          %702 = vmatprep.subr.mxu0 0.0
          %703 = vmatpush1.msra.mxu0 0.0
          %704 = vmatprep.subr.mxu0 0.0
          %705 = vmatpush1.msra.mxu0 0.0
          %706 = vmatprep.subr.mxu0 0.0
          %707 = vmatpush1.msra.mxu0 0.0
          %708 = vmatprep.subr.mxu0 0.0
          %709 = vmatpush1.msra.mxu0 0.0
          %710 = vmatprep.subr.mxu0 0.0
          %711 = vmatpush1.msra.mxu0 0.0
          %712 = vmatprep.subr.mxu0 0.0
          %713 = vmatpush1.msra.mxu0 0.0
          %714 = vmatprep.subr.mxu0 0.0
          %715 = vmatpush1.msra.mxu0 0.0
          %716 = vmatprep.subr.mxu0 0.0
          %717 = vmatpush1.msra.mxu0 0.0
          %718 = vmatprep.subr.mxu0 0.0
          %719 = vmatpush1.msra.mxu0 0.0
          %720 = vmatprep.subr.mxu0 0.0
          %721 = vmatpush1.msra.mxu0 0.0
          %722 = vmatprep.subr.mxu0 0.0
          %723 = vmatpush1.msra.mxu0 0.0
          %724 = vmatprep.subr.mxu0 0.0
          %725 = vmatpush1.msra.mxu0 %v699
          %726 = vmatprep.subr.mxu0 0.0
          %727 = vmatpush1.msra.mxu0 %v698
          %728 = vmatprep.subr.mxu0 0.0
          %729 = vmatpush1.msra.mxu0 %v697
          %730 = vmatprep.subr.mxu0 0.0
          %731 = vmatpush1.msra.mxu0 %v696
          %732 = vmatprep.subr.mxu0 0.0
          %733 = vmatpush2.msra.mxu0 0.0
          %734 = vmatprep.subr.mxu0 0.0
          %735 = vmatpush2.msra.mxu0 0.0
          %736 = vmatprep.subr.mxu0 0.0
          %737 = vmatpush2.msra.mxu0 0.0
          %738 = vmatprep.subr.mxu0 0.0
          %739 = vmatpush2.msra.mxu0 0.0
          %740 = vmatprep.subr.mxu0 0.0
          %741 = vmatpush2.msra.mxu0 0.0
          %742 = vmatprep.subr.mxu0 0.0
          %743 = vmatpush2.msra.mxu0 0.0
          %744 = vmatprep.subr.mxu0 0.0
          %745 = vmatpush2.msra.mxu0 0.0
          %746 = vmatprep.subr.mxu0 0.0
          %747 = vmatpush2.msra.mxu0 0.0
          %748 = vmatprep.subr.mxu0 0.0
          %749 = vmatpush2.msra.mxu0 0.0
          %750 = vmatprep.subr.mxu0 0.0
          %751 = vmatpush2.msra.mxu0 0.0
          %752 = vmatprep.subr.mxu0 0.0
          %753 = vmatpush2.msra.mxu0 0.0
          %754 = vmatprep.subr.mxu0 0.0
          %755 = vmatpush2.msra.mxu0 0.0
          %756 = vmatprep.subr.mxu0 0.0
          %757 = vmatpush2.msra.mxu0 0.0
          %758 = vmatprep.subr.mxu0 0.0
          %759 = vmatpush2.msra.mxu0 0.0
          %760 = vmatprep.subr.mxu0 0.0
          %761 = vmatpush2.msra.mxu0 0.0
          %762 = vmatprep.subr.mxu0 0.0
          %763 = vmatpush2.msra.mxu0 0.0
          %764 = vmatprep.mubr.f32.mxu0 0.0
          %765 = vmatmul.mubr.f32.gmra.mxu0 %v363
          %v766 = vpop.f32.mrf.mxu0
          %v767 = vadd.f32 0.0, %v766
          %v768 = vpop.f32.mrf.mxu0
          %769 = vmatprep.mubr.f32.mxu0 0.0
          %770 = vmatmul.mubr.f32.gmra.mxu0 %v366
          %v771 = vpop.f32.mrf.mxu0
          %v772 = vadd.f32 0.0, %v771
          %v773 = vpop.f32.mrf.mxu0
          %774 = vdwg.mxu0
          %s775 = scalar_lea.vmem [#allocation2], 64
          %776 = vst.msk [vmem:[%s775] sm:$0xff] %vm443, %v767
          %777 = vst.msk [vmem:[%s775 + $0x8] sm:$0xff] %vm443, %v772
          %s778 = scalar_lea.vmem %s2, 160
          %v779 = vld [vmem:[%s778] sm:$0xff]
          %v780 = vld [vmem:[%s778 + $0x8] sm:$0xff]
          %v781 = vld [vmem:[%s778 + $0x10] sm:$0xff]
          %v782 = vld [vmem:[%s778 + $0x18] sm:$0xff]
          %783 = vmatprep.subr.mxu0 0.0
          %784 = vmatpush1.msra.mxu0 0.0
          %785 = vmatprep.subr.mxu0 0.0
          %786 = vmatpush1.msra.mxu0 0.0
          %787 = vmatprep.subr.mxu0 0.0
          %788 = vmatpush1.msra.mxu0 0.0
          %789 = vmatprep.subr.mxu0 0.0
          %790 = vmatpush1.msra.mxu0 0.0
          %791 = vmatprep.subr.mxu0 0.0
          %792 = vmatpush1.msra.mxu0 0.0
          %793 = vmatprep.subr.mxu0 0.0
          %794 = vmatpush1.msra.mxu0 0.0
          %795 = vmatprep.subr.mxu0 0.0
          %796 = vmatpush1.msra.mxu0 0.0
          %797 = vmatprep.subr.mxu0 0.0
          %798 = vmatpush1.msra.mxu0 0.0
          %799 = vmatprep.subr.mxu0 0.0
          %800 = vmatpush1.msra.mxu0 0.0
          %801 = vmatprep.subr.mxu0 0.0
          %802 = vmatpush1.msra.mxu0 0.0
          %803 = vmatprep.subr.mxu0 0.0
          %804 = vmatpush1.msra.mxu0 0.0
          %805 = vmatprep.subr.mxu0 0.0
          %806 = vmatpush1.msra.mxu0 0.0
          %807 = vmatprep.subr.mxu0 0.0
          %808 = vmatpush1.msra.mxu0 %v782
          %809 = vmatprep.subr.mxu0 0.0
          %810 = vmatpush1.msra.mxu0 %v781
          %811 = vmatprep.subr.mxu0 0.0
          %812 = vmatpush1.msra.mxu0 %v780
          %813 = vmatprep.subr.mxu0 0.0
          %814 = vmatpush1.msra.mxu0 %v779
          %815 = vmatprep.subr.mxu0 0.0
          %816 = vmatpush2.msra.mxu0 0.0
          %817 = vmatprep.subr.mxu0 0.0
          %818 = vmatpush2.msra.mxu0 0.0
          %819 = vmatprep.subr.mxu0 0.0
          %820 = vmatpush2.msra.mxu0 0.0
          %821 = vmatprep.subr.mxu0 0.0
          %822 = vmatpush2.msra.mxu0 0.0
          %823 = vmatprep.subr.mxu0 0.0
          %824 = vmatpush2.msra.mxu0 0.0
          %825 = vmatprep.subr.mxu0 0.0
          %826 = vmatpush2.msra.mxu0 0.0
          %827 = vmatprep.subr.mxu0 0.0
          %828 = vmatpush2.msra.mxu0 0.0
          %829 = vmatprep.subr.mxu0 0.0
          %830 = vmatpush2.msra.mxu0 0.0
          %831 = vmatprep.subr.mxu0 0.0
          %832 = vmatpush2.msra.mxu0 0.0
          %833 = vmatprep.subr.mxu0 0.0
          %834 = vmatpush2.msra.mxu0 0.0
          %835 = vmatprep.subr.mxu0 0.0
          %836 = vmatpush2.msra.mxu0 0.0
          %837 = vmatprep.subr.mxu0 0.0
          %838 = vmatpush2.msra.mxu0 0.0
          %839 = vmatprep.subr.mxu0 0.0
          %840 = vmatpush2.msra.mxu0 0.0
          %841 = vmatprep.subr.mxu0 0.0
          %842 = vmatpush2.msra.mxu0 0.0
          %843 = vmatprep.subr.mxu0 0.0
          %844 = vmatpush2.msra.mxu0 0.0
          %845 = vmatprep.subr.mxu0 0.0
          %846 = vmatpush2.msra.mxu0 0.0
          %847 = vmatprep.mubr.f32.mxu0 0.0
          %848 = vmatmul.mubr.f32.gmra.mxu0 %v363
          %v849 = vpop.f32.mrf.mxu0
          %v850 = vadd.f32 0.0, %v849
          %v851 = vpop.f32.mrf.mxu0
          %852 = vmatprep.mubr.f32.mxu0 0.0
          %853 = vmatmul.mubr.f32.gmra.mxu0 %v366
          %v854 = vpop.f32.mrf.mxu0
          %v855 = vadd.f32 0.0, %v854
          %v856 = vpop.f32.mrf.mxu0
          %857 = vdwg.mxu0
          %s858 = scalar_lea.vmem [#allocation2], 80
          %859 = vst.msk [vmem:[%s858] sm:$0xff] %vm443, %v850
          %860 = vst.msk [vmem:[%s858 + $0x8] sm:$0xff] %vm443, %v855
          %s861 = scalar_lea.vmem %s2, 192
          %v862 = vld [vmem:[%s861] sm:$0xff]
          %v863 = vld [vmem:[%s861 + $0x8] sm:$0xff]
          %v864 = vld [vmem:[%s861 + $0x10] sm:$0xff]
          %v865 = vld [vmem:[%s861 + $0x18] sm:$0xff]
          %866 = vmatprep.subr.mxu0 0.0
          %867 = vmatpush1.msra.mxu0 0.0
          %868 = vmatprep.subr.mxu0 0.0
          %869 = vmatpush1.msra.mxu0 0.0
          %870 = vmatprep.subr.mxu0 0.0
          %871 = vmatpush1.msra.mxu0 0.0
          %872 = vmatprep.subr.mxu0 0.0
          %873 = vmatpush1.msra.mxu0 0.0
          %874 = vmatprep.subr.mxu0 0.0
          %875 = vmatpush1.msra.mxu0 0.0
          %876 = vmatprep.subr.mxu0 0.0
          %877 = vmatpush1.msra.mxu0 0.0
          %878 = vmatprep.subr.mxu0 0.0
          %879 = vmatpush1.msra.mxu0 0.0
          %880 = vmatprep.subr.mxu0 0.0
          %881 = vmatpush1.msra.mxu0 0.0
          %882 = vmatprep.subr.mxu0 0.0
          %883 = vmatpush1.msra.mxu0 0.0
          %884 = vmatprep.subr.mxu0 0.0
          %885 = vmatpush1.msra.mxu0 0.0
          %886 = vmatprep.subr.mxu0 0.0
          %887 = vmatpush1.msra.mxu0 0.0
          %888 = vmatprep.subr.mxu0 0.0
          %889 = vmatpush1.msra.mxu0 0.0
          %890 = vmatprep.subr.mxu0 0.0
          %891 = vmatpush1.msra.mxu0 %v865
          %892 = vmatprep.subr.mxu0 0.0
          %893 = vmatpush1.msra.mxu0 %v864
          %894 = vmatprep.subr.mxu0 0.0
          %895 = vmatpush1.msra.mxu0 %v863
          %896 = vmatprep.subr.mxu0 0.0
          %897 = vmatpush1.msra.mxu0 %v862
          %898 = vmatprep.subr.mxu0 0.0
          %899 = vmatpush2.msra.mxu0 0.0
          %900 = vmatprep.subr.mxu0 0.0
          %901 = vmatpush2.msra.mxu0 0.0
          %902 = vmatprep.subr.mxu0 0.0
          %903 = vmatpush2.msra.mxu0 0.0
          %904 = vmatprep.subr.mxu0 0.0
          %905 = vmatpush2.msra.mxu0 0.0
          %906 = vmatprep.subr.mxu0 0.0
          %907 = vmatpush2.msra.mxu0 0.0
          %908 = vmatprep.subr.mxu0 0.0
          %909 = vmatpush2.msra.mxu0 0.0
          %910 = vmatprep.subr.mxu0 0.0
          %911 = vmatpush2.msra.mxu0 0.0
          %912 = vmatprep.subr.mxu0 0.0
          %913 = vmatpush2.msra.mxu0 0.0
          %914 = vmatprep.subr.mxu0 0.0
          %915 = vmatpush2.msra.mxu0 0.0
          %916 = vmatprep.subr.mxu0 0.0
          %917 = vmatpush2.msra.mxu0 0.0
          %918 = vmatprep.subr.mxu0 0.0
          %919 = vmatpush2.msra.mxu0 0.0
          %920 = vmatprep.subr.mxu0 0.0
          %921 = vmatpush2.msra.mxu0 0.0
          %922 = vmatprep.subr.mxu0 0.0
          %923 = vmatpush2.msra.mxu0 0.0
          %924 = vmatprep.subr.mxu0 0.0
          %925 = vmatpush2.msra.mxu0 0.0
          %926 = vmatprep.subr.mxu0 0.0
          %927 = vmatpush2.msra.mxu0 0.0
          %928 = vmatprep.subr.mxu0 0.0
          %929 = vmatpush2.msra.mxu0 0.0
          %930 = vmatprep.mubr.f32.mxu0 0.0
          %931 = vmatmul.mubr.f32.gmra.mxu0 %v363
          %v932 = vpop.f32.mrf.mxu0
          %v933 = vadd.f32 0.0, %v932
          %v934 = vpop.f32.mrf.mxu0
          %935 = vmatprep.mubr.f32.mxu0 0.0
          %936 = vmatmul.mubr.f32.gmra.mxu0 %v366
          %v937 = vpop.f32.mrf.mxu0
          %v938 = vadd.f32 0.0, %v937
          %v939 = vpop.f32.mrf.mxu0
          %940 = vdwg.mxu0
          %s941 = scalar_lea.vmem [#allocation2], 96
          %942 = vst.msk [vmem:[%s941] sm:$0xff] %vm443, %v933
          %943 = vst.msk [vmem:[%s941 + $0x8] sm:$0xff] %vm443, %v938
          %s944 = scalar_lea.vmem %s2, 224
          %v945 = vld [vmem:[%s944] sm:$0xff]
          %v946 = vld [vmem:[%s944 + $0x8] sm:$0xff]
          %v947 = vld [vmem:[%s944 + $0x10] sm:$0xff]
          %v948 = vld [vmem:[%s944 + $0x18] sm:$0xff]
          %949 = vmatprep.subr.mxu0 0.0
          %950 = vmatpush1.msra.mxu0 0.0
          %951 = vmatprep.subr.mxu0 0.0
          %952 = vmatpush1.msra.mxu0 0.0
          %953 = vmatprep.subr.mxu0 0.0
          %954 = vmatpush1.msra.mxu0 0.0
          %955 = vmatprep.subr.mxu0 0.0
          %956 = vmatpush1.msra.mxu0 0.0
          %957 = vmatprep.subr.mxu0 0.0
          %958 = vmatpush1.msra.mxu0 0.0
          %959 = vmatprep.subr.mxu0 0.0
          %960 = vmatpush1.msra.mxu0 0.0
          %961 = vmatprep.subr.mxu0 0.0
          %962 = vmatpush1.msra.mxu0 0.0
          %963 = vmatprep.subr.mxu0 0.0
          %964 = vmatpush1.msra.mxu0 0.0
          %965 = vmatprep.subr.mxu0 0.0
          %966 = vmatpush1.msra.mxu0 0.0
          %967 = vmatprep.subr.mxu0 0.0
          %968 = vmatpush1.msra.mxu0 0.0
          %969 = vmatprep.subr.mxu0 0.0
          %970 = vmatpush1.msra.mxu0 0.0
          %971 = vmatprep.subr.mxu0 0.0
          %972 = vmatpush1.msra.mxu0 0.0
          %973 = vmatprep.subr.mxu0 0.0
          %974 = vmatpush1.msra.mxu0 %v948
          %975 = vmatprep.subr.mxu0 0.0
          %976 = vmatpush1.msra.mxu0 %v947
          %977 = vmatprep.subr.mxu0 0.0
          %978 = vmatpush1.msra.mxu0 %v946
          %979 = vmatprep.subr.mxu0 0.0
          %980 = vmatpush1.msra.mxu0 %v945
          %981 = vmatprep.subr.mxu0 0.0
          %982 = vmatpush2.msra.mxu0 0.0
          %983 = vmatprep.subr.mxu0 0.0
          %984 = vmatpush2.msra.mxu0 0.0
          %985 = vmatprep.subr.mxu0 0.0
          %986 = vmatpush2.msra.mxu0 0.0
          %987 = vmatprep.subr.mxu0 0.0
          %988 = vmatpush2.msra.mxu0 0.0
          %989 = vmatprep.subr.mxu0 0.0
          %990 = vmatpush2.msra.mxu0 0.0
          %991 = vmatprep.subr.mxu0 0.0
          %992 = vmatpush2.msra.mxu0 0.0
          %993 = vmatprep.subr.mxu0 0.0
          %994 = vmatpush2.msra.mxu0 0.0
          %995 = vmatprep.subr.mxu0 0.0
          %996 = vmatpush2.msra.mxu0 0.0
          %997 = vmatprep.subr.mxu0 0.0
          %998 = vmatpush2.msra.mxu0 0.0
          %999 = vmatprep.subr.mxu0 0.0
          %1000 = vmatpush2.msra.mxu0 0.0
          %1001 = vmatprep.subr.mxu0 0.0
          %1002 = vmatpush2.msra.mxu0 0.0
          %1003 = vmatprep.subr.mxu0 0.0
          %1004 = vmatpush2.msra.mxu0 0.0
          %1005 = vmatprep.subr.mxu0 0.0
          %1006 = vmatpush2.msra.mxu0 0.0
          %1007 = vmatprep.subr.mxu0 0.0
          %1008 = vmatpush2.msra.mxu0 0.0
          %1009 = vmatprep.subr.mxu0 0.0
          %1010 = vmatpush2.msra.mxu0 0.0
          %1011 = vmatprep.subr.mxu0 0.0
          %1012 = vmatpush2.msra.mxu0 0.0
          %1013 = vmatprep.mubr.f32.mxu0 0.0
          %1014 = vmatmul.mubr.f32.gmra.mxu0 %v363
          %v1015 = vpop.f32.mrf.mxu0
          %v1016 = vadd.f32 0.0, %v1015
          %v1017 = vpop.f32.mrf.mxu0
          %1018 = vmatprep.mubr.f32.mxu0 0.0
          %1019 = vmatmul.mubr.f32.gmra.mxu0 %v366
          %v1020 = vpop.f32.mrf.mxu0
          %v1021 = vadd.f32 0.0, %v1020
          %v1022 = vpop.f32.mrf.mxu0
          %1023 = vdwg.mxu0
          %s1024 = scalar_lea.vmem [#allocation2], 112
          %1025 = vst.msk [vmem:[%s1024] sm:$0xff] %vm443, %v1016
          %1026 = vst.msk [vmem:[%s1024 + $0x8] sm:$0xff] %vm443, %v1021
        $region52: #{tpu_custom_call.1} parent=47 // pred_fallthru
          _
        %v1027 = vld [vmem:[%s348] sm:$0xff]
        %v1028 = vld [vmem:[%s348 + $0x8] sm:$0xff]
        %v1029 = vld [vmem:[%s3] sm:$0xff]
        %v1030 = vld [vmem:[%s3 + $0x8] sm:$0xff]
        %v1031 = vld [vmem:[%s3 + $0x10] sm:$0xff]
        %v1032 = vld [vmem:[%s3 + $0x18] sm:$0xff]
        %vm1033 = vcmask 261120
        %v1035 = vsel %vm1033, %v1027, 0
        %v1038 = vsel %vm1033, %v1028, 0
        %1040 = vmatprep.subr.mxu0 0.0
        %1041 = vmatpush1.msra.mxu0 0.0
        %1042 = vmatprep.subr.mxu0 0.0
        %1043 = vmatpush1.msra.mxu0 0.0
        %1044 = vmatprep.subr.mxu0 0.0
        %1045 = vmatpush1.msra.mxu0 0.0
        %1046 = vmatprep.subr.mxu0 0.0
        %1047 = vmatpush1.msra.mxu0 0.0
        %1048 = vmatprep.subr.mxu0 0.0
        %1049 = vmatpush1.msra.mxu0 0.0
        %1050 = vmatprep.subr.mxu0 0.0
        %1051 = vmatpush1.msra.mxu0 0.0
        %1052 = vmatprep.subr.mxu0 0.0
        %1053 = vmatpush1.msra.mxu0 0.0
        %1054 = vmatprep.subr.mxu0 0.0
        %1055 = vmatpush1.msra.mxu0 0.0
        %1056 = vmatprep.subr.mxu0 0.0
        %1057 = vmatpush1.msra.mxu0 0.0
        %1058 = vmatprep.subr.mxu0 0.0
        %1059 = vmatpush1.msra.mxu0 0.0
        %1060 = vmatprep.subr.mxu0 0.0
        %1061 = vmatpush1.msra.mxu0 0.0
        %1062 = vmatprep.subr.mxu0 0.0
        %1063 = vmatpush1.msra.mxu0 0.0
        %1064 = vmatprep.subr.mxu0 0.0
        %1065 = vmatpush1.msra.mxu0 %v1032
        %1066 = vmatprep.subr.mxu0 0.0
        %1067 = vmatpush1.msra.mxu0 %v1031
        %1068 = vmatprep.subr.mxu0 0.0
        %1069 = vmatpush1.msra.mxu0 %v1030
        %1070 = vmatprep.subr.mxu0 0.0
        %1071 = vmatpush1.msra.mxu0 %v1029
        %1072 = vmatprep.subr.mxu0 0.0
        %1073 = vmatpush2.msra.mxu0 0.0
        %1074 = vmatprep.subr.mxu0 0.0
        %1075 = vmatpush2.msra.mxu0 0.0
        %1076 = vmatprep.subr.mxu0 0.0
        %1077 = vmatpush2.msra.mxu0 0.0
        %1078 = vmatprep.subr.mxu0 0.0
        %1079 = vmatpush2.msra.mxu0 0.0
        %1080 = vmatprep.subr.mxu0 0.0
        %1081 = vmatpush2.msra.mxu0 0.0
        %1082 = vmatprep.subr.mxu0 0.0
        %1083 = vmatpush2.msra.mxu0 0.0
        %1084 = vmatprep.subr.mxu0 0.0
        %1085 = vmatpush2.msra.mxu0 0.0
        %1086 = vmatprep.subr.mxu0 0.0
        %1087 = vmatpush2.msra.mxu0 0.0
        %1088 = vmatprep.subr.mxu0 0.0
        %1089 = vmatpush2.msra.mxu0 0.0
        %1090 = vmatprep.subr.mxu0 0.0
        %1091 = vmatpush2.msra.mxu0 0.0
        %1092 = vmatprep.subr.mxu0 0.0
        %1093 = vmatpush2.msra.mxu0 0.0
        %1094 = vmatprep.subr.mxu0 0.0
        %1095 = vmatpush2.msra.mxu0 0.0
        %1096 = vmatprep.subr.mxu0 0.0
        %1097 = vmatpush2.msra.mxu0 0.0
        %1098 = vmatprep.subr.mxu0 0.0
        %1099 = vmatpush2.msra.mxu0 0.0
        %1100 = vmatprep.subr.mxu0 0.0
        %1101 = vmatpush2.msra.mxu0 0.0
        %1102 = vmatprep.subr.mxu0 0.0
        %1103 = vmatpush2.msra.mxu0 0.0
        %1104 = vmatprep.mubr.f32.mxu0 0.0
        %1105 = vmatmul.mubr.f32.gmra.mxu0 %v1035
        %v1106 = vpop.f32.mrf.mxu0
        %v1107 = vadd.f32 0.0, %v1106
        %v1108 = vpop.f32.mrf.mxu0
        %1109 = vmatprep.mubr.f32.mxu0 0.0
        %1110 = vmatmul.mubr.f32.gmra.mxu0 %v1038
        %v1111 = vpop.f32.mrf.mxu0
        %v1112 = vadd.f32 0.0, %v1111
        %v1113 = vpop.f32.mrf.mxu0
        %1114 = vdwg.mxu0
        %vm1115 = vcmask 31744
        %1116 = vst.msk [vmem:[#allocation3] sm:$0xff] %vm1115, %v1107
        %1117 = vst.msk [vmem:[#allocation3 + $0x8] sm:$0xff] %vm1115, %v1112
        %v1118 = vld [vmem:[%s4] sm:$0xff]
        %v1119 = vld [vmem:[%s4 + $0x8] sm:$0xff]
        %v1120 = vld [vmem:[%s4 + $0x10] sm:$0xff]
        %v1121 = vld [vmem:[%s4 + $0x18] sm:$0xff]
        %1122 = vmatprep.subr.mxu0 0.0
        %1123 = vmatpush1.msra.mxu0 0.0
        %1124 = vmatprep.subr.mxu0 0.0
        %1125 = vmatpush1.msra.mxu0 0.0
        %1126 = vmatprep.subr.mxu0 0.0
        %1127 = vmatpush1.msra.mxu0 0.0
        %1128 = vmatprep.subr.mxu0 0.0
        %1129 = vmatpush1.msra.mxu0 0.0
        %1130 = vmatprep.subr.mxu0 0.0
        %1131 = vmatpush1.msra.mxu0 0.0
        %1132 = vmatprep.subr.mxu0 0.0
        %1133 = vmatpush1.msra.mxu0 0.0
        %1134 = vmatprep.subr.mxu0 0.0
        %1135 = vmatpush1.msra.mxu0 0.0
        %1136 = vmatprep.subr.mxu0 0.0
        %1137 = vmatpush1.msra.mxu0 0.0
        %1138 = vmatprep.subr.mxu0 0.0
        %1139 = vmatpush1.msra.mxu0 0.0
        %1140 = vmatprep.subr.mxu0 0.0
        %1141 = vmatpush1.msra.mxu0 0.0
        %1142 = vmatprep.subr.mxu0 0.0
        %1143 = vmatpush1.msra.mxu0 0.0
        %1144 = vmatprep.subr.mxu0 0.0
        %1145 = vmatpush1.msra.mxu0 0.0
        %1146 = vmatprep.subr.mxu0 0.0
        %1147 = vmatpush1.msra.mxu0 %v1121
        %1148 = vmatprep.subr.mxu0 0.0
        %1149 = vmatpush1.msra.mxu0 %v1120
        %1150 = vmatprep.subr.mxu0 0.0
        %1151 = vmatpush1.msra.mxu0 %v1119
        %1152 = vmatprep.subr.mxu0 0.0
        %1153 = vmatpush1.msra.mxu0 %v1118
        %1154 = vmatprep.subr.mxu0 0.0
        %1155 = vmatpush2.msra.mxu0 0.0
        %1156 = vmatprep.subr.mxu0 0.0
        %1157 = vmatpush2.msra.mxu0 0.0
        %1158 = vmatprep.subr.mxu0 0.0
        %1159 = vmatpush2.msra.mxu0 0.0
        %1160 = vmatprep.subr.mxu0 0.0
        %1161 = vmatpush2.msra.mxu0 0.0
        %1162 = vmatprep.subr.mxu0 0.0
        %1163 = vmatpush2.msra.mxu0 0.0
        %1164 = vmatprep.subr.mxu0 0.0
        %1165 = vmatpush2.msra.mxu0 0.0
        %1166 = vmatprep.subr.mxu0 0.0
        %1167 = vmatpush2.msra.mxu0 0.0
        %1168 = vmatprep.subr.mxu0 0.0
        %1169 = vmatpush2.msra.mxu0 0.0
        %1170 = vmatprep.subr.mxu0 0.0
        %1171 = vmatpush2.msra.mxu0 0.0
        %1172 = vmatprep.subr.mxu0 0.0
        %1173 = vmatpush2.msra.mxu0 0.0
        %1174 = vmatprep.subr.mxu0 0.0
        %1175 = vmatpush2.msra.mxu0 0.0
        %1176 = vmatprep.subr.mxu0 0.0
        %1177 = vmatpush2.msra.mxu0 0.0
        %1178 = vmatprep.subr.mxu0 0.0
        %1179 = vmatpush2.msra.mxu0 0.0
        %1180 = vmatprep.subr.mxu0 0.0
        %1181 = vmatpush2.msra.mxu0 0.0
        %1182 = vmatprep.subr.mxu0 0.0
        %1183 = vmatpush2.msra.mxu0 0.0
        %1184 = vmatprep.subr.mxu0 0.0
        %1185 = vmatpush2.msra.mxu0 0.0
        %1186 = vmatprep.mubr.f32.mxu0 0.0
        %1187 = vmatmul.mubr.f32.gmra.mxu0 %v1035
        %v1188 = vpop.f32.mrf.mxu0
        %v1189 = vadd.f32 0.0, %v1188
        %v1190 = vpop.f32.mrf.mxu0
        %1191 = vmatprep.mubr.f32.mxu0 0.0
        %1192 = vmatmul.mubr.f32.gmra.mxu0 %v1038
        %v1193 = vpop.f32.mrf.mxu0
        %v1194 = vadd.f32 0.0, %v1193
        %v1195 = vpop.f32.mrf.mxu0
        %1196 = vdwg.mxu0
        %1197 = vst.msk [vmem:[#allocation4] sm:$0xff] %vm1115, %v1189
        %1198 = vst.msk [vmem:[#allocation4 + $0x8] sm:$0xff] %vm1115, %v1194
        %s1199 = scalar_lea.vmem %s3, 32
        %v1200 = vld [vmem:[%s1199] sm:$0xff]
        %v1201 = vld [vmem:[%s1199 + $0x8] sm:$0xff]
        %v1202 = vld [vmem:[%s1199 + $0x10] sm:$0xff]
        %v1203 = vld [vmem:[%s1199 + $0x18] sm:$0xff]
        %1204 = vmatprep.subr.mxu0 0.0
        %1205 = vmatpush1.msra.mxu0 0.0
        %1206 = vmatprep.subr.mxu0 0.0
        %1207 = vmatpush1.msra.mxu0 0.0
        %1208 = vmatprep.subr.mxu0 0.0
        %1209 = vmatpush1.msra.mxu0 0.0
        %1210 = vmatprep.subr.mxu0 0.0
        %1211 = vmatpush1.msra.mxu0 0.0
        %1212 = vmatprep.subr.mxu0 0.0
        %1213 = vmatpush1.msra.mxu0 0.0
        %1214 = vmatprep.subr.mxu0 0.0
        %1215 = vmatpush1.msra.mxu0 0.0
        %1216 = vmatprep.subr.mxu0 0.0
        %1217 = vmatpush1.msra.mxu0 0.0
        %1218 = vmatprep.subr.mxu0 0.0
        %1219 = vmatpush1.msra.mxu0 0.0
        %1220 = vmatprep.subr.mxu0 0.0
        %1221 = vmatpush1.msra.mxu0 0.0
        %1222 = vmatprep.subr.mxu0 0.0
        %1223 = vmatpush1.msra.mxu0 0.0
        %1224 = vmatprep.subr.mxu0 0.0
        %1225 = vmatpush1.msra.mxu0 0.0
        %1226 = vmatprep.subr.mxu0 0.0
        %1227 = vmatpush1.msra.mxu0 0.0
        %1228 = vmatprep.subr.mxu0 0.0
        %1229 = vmatpush1.msra.mxu0 %v1203
        %1230 = vmatprep.subr.mxu0 0.0
        %1231 = vmatpush1.msra.mxu0 %v1202
        %1232 = vmatprep.subr.mxu0 0.0
        %1233 = vmatpush1.msra.mxu0 %v1201
        %1234 = vmatprep.subr.mxu0 0.0
        %1235 = vmatpush1.msra.mxu0 %v1200
        %1236 = vmatprep.subr.mxu0 0.0
        %1237 = vmatpush2.msra.mxu0 0.0
        %1238 = vmatprep.subr.mxu0 0.0
        %1239 = vmatpush2.msra.mxu0 0.0
        %1240 = vmatprep.subr.mxu0 0.0
        %1241 = vmatpush2.msra.mxu0 0.0
        %1242 = vmatprep.subr.mxu0 0.0
        %1243 = vmatpush2.msra.mxu0 0.0
        %1244 = vmatprep.subr.mxu0 0.0
        %1245 = vmatpush2.msra.mxu0 0.0
        %1246 = vmatprep.subr.mxu0 0.0
        %1247 = vmatpush2.msra.mxu0 0.0
        %1248 = vmatprep.subr.mxu0 0.0
        %1249 = vmatpush2.msra.mxu0 0.0
        %1250 = vmatprep.subr.mxu0 0.0
        %1251 = vmatpush2.msra.mxu0 0.0
        %1252 = vmatprep.subr.mxu0 0.0
        %1253 = vmatpush2.msra.mxu0 0.0
        %1254 = vmatprep.subr.mxu0 0.0
        %1255 = vmatpush2.msra.mxu0 0.0
        %1256 = vmatprep.subr.mxu0 0.0
        %1257 = vmatpush2.msra.mxu0 0.0
        %1258 = vmatprep.subr.mxu0 0.0
        %1259 = vmatpush2.msra.mxu0 0.0
        %1260 = vmatprep.subr.mxu0 0.0
        %1261 = vmatpush2.msra.mxu0 0.0
        %1262 = vmatprep.subr.mxu0 0.0
        %1263 = vmatpush2.msra.mxu0 0.0
        %1264 = vmatprep.subr.mxu0 0.0
        %1265 = vmatpush2.msra.mxu0 0.0
        %1266 = vmatprep.subr.mxu0 0.0
        %1267 = vmatpush2.msra.mxu0 0.0
        %1268 = vmatprep.mubr.f32.mxu0 0.0
        %1269 = vmatmul.mubr.f32.gmra.mxu0 %v1035
        %v1270 = vpop.f32.mrf.mxu0
        %v1271 = vadd.f32 0.0, %v1270
        %v1272 = vpop.f32.mrf.mxu0
        %1273 = vmatprep.mubr.f32.mxu0 0.0
        %1274 = vmatmul.mubr.f32.gmra.mxu0 %v1038
        %v1275 = vpop.f32.mrf.mxu0
        %v1276 = vadd.f32 0.0, %v1275
        %v1277 = vpop.f32.mrf.mxu0
        %1278 = vdwg.mxu0
        %s1279 = scalar_lea.vmem [#allocation3], 16
        %1280 = vst.msk [vmem:[%s1279] sm:$0xff] %vm1115, %v1271
        %1281 = vst.msk [vmem:[%s1279 + $0x8] sm:$0xff] %vm1115, %v1276
        %s1282 = scalar_lea.vmem %s4, 32
        %v1283 = vld [vmem:[%s1282] sm:$0xff]
        %v1284 = vld [vmem:[%s1282 + $0x8] sm:$0xff]
        %v1285 = vld [vmem:[%s1282 + $0x10] sm:$0xff]
        %v1286 = vld [vmem:[%s1282 + $0x18] sm:$0xff]
        %1287 = vmatprep.subr.mxu0 0.0
        %1288 = vmatpush1.msra.mxu0 0.0
        %1289 = vmatprep.subr.mxu0 0.0
        %1290 = vmatpush1.msra.mxu0 0.0
        %1291 = vmatprep.subr.mxu0 0.0
        %1292 = vmatpush1.msra.mxu0 0.0
        %1293 = vmatprep.subr.mxu0 0.0
        %1294 = vmatpush1.msra.mxu0 0.0
        %1295 = vmatprep.subr.mxu0 0.0
        %1296 = vmatpush1.msra.mxu0 0.0
        %1297 = vmatprep.subr.mxu0 0.0
        %1298 = vmatpush1.msra.mxu0 0.0
        %1299 = vmatprep.subr.mxu0 0.0
        %1300 = vmatpush1.msra.mxu0 0.0
        %1301 = vmatprep.subr.mxu0 0.0
        %1302 = vmatpush1.msra.mxu0 0.0
        %1303 = vmatprep.subr.mxu0 0.0
        %1304 = vmatpush1.msra.mxu0 0.0
        %1305 = vmatprep.subr.mxu0 0.0
        %1306 = vmatpush1.msra.mxu0 0.0
        %1307 = vmatprep.subr.mxu0 0.0
        %1308 = vmatpush1.msra.mxu0 0.0
        %1309 = vmatprep.subr.mxu0 0.0
        %1310 = vmatpush1.msra.mxu0 0.0
        %1311 = vmatprep.subr.mxu0 0.0
        %1312 = vmatpush1.msra.mxu0 %v1286
        %1313 = vmatprep.subr.mxu0 0.0
        %1314 = vmatpush1.msra.mxu0 %v1285
        %1315 = vmatprep.subr.mxu0 0.0
        %1316 = vmatpush1.msra.mxu0 %v1284
        %1317 = vmatprep.subr.mxu0 0.0
        %1318 = vmatpush1.msra.mxu0 %v1283
        %1319 = vmatprep.subr.mxu0 0.0
        %1320 = vmatpush2.msra.mxu0 0.0
        %1321 = vmatprep.subr.mxu0 0.0
        %1322 = vmatpush2.msra.mxu0 0.0
        %1323 = vmatprep.subr.mxu0 0.0
        %1324 = vmatpush2.msra.mxu0 0.0
        %1325 = vmatprep.subr.mxu0 0.0
        %1326 = vmatpush2.msra.mxu0 0.0
        %1327 = vmatprep.subr.mxu0 0.0
        %1328 = vmatpush2.msra.mxu0 0.0
        %1329 = vmatprep.subr.mxu0 0.0
        %1330 = vmatpush2.msra.mxu0 0.0
        %1331 = vmatprep.subr.mxu0 0.0
        %1332 = vmatpush2.msra.mxu0 0.0
        %1333 = vmatprep.subr.mxu0 0.0
        %1334 = vmatpush2.msra.mxu0 0.0
        %1335 = vmatprep.subr.mxu0 0.0
        %1336 = vmatpush2.msra.mxu0 0.0
        %1337 = vmatprep.subr.mxu0 0.0
        %1338 = vmatpush2.msra.mxu0 0.0
        %1339 = vmatprep.subr.mxu0 0.0
        %1340 = vmatpush2.msra.mxu0 0.0
        %1341 = vmatprep.subr.mxu0 0.0
        %1342 = vmatpush2.msra.mxu0 0.0
        %1343 = vmatprep.subr.mxu0 0.0
        %1344 = vmatpush2.msra.mxu0 0.0
        %1345 = vmatprep.subr.mxu0 0.0
        %1346 = vmatpush2.msra.mxu0 0.0
        %1347 = vmatprep.subr.mxu0 0.0
        %1348 = vmatpush2.msra.mxu0 0.0
        %1349 = vmatprep.subr.mxu0 0.0
        %1350 = vmatpush2.msra.mxu0 0.0
        %1351 = vmatprep.mubr.f32.mxu0 0.0
        %1352 = vmatmul.mubr.f32.gmra.mxu0 %v1035
        %v1353 = vpop.f32.mrf.mxu0
        %v1354 = vadd.f32 0.0, %v1353
        %v1355 = vpop.f32.mrf.mxu0
        %1356 = vmatprep.mubr.f32.mxu0 0.0
        %1357 = vmatmul.mubr.f32.gmra.mxu0 %v1038
        %v1358 = vpop.f32.mrf.mxu0
        %v1359 = vadd.f32 0.0, %v1358
        %v1360 = vpop.f32.mrf.mxu0
        %1361 = vdwg.mxu0
        %s1362 = scalar_lea.vmem [#allocation4], 16
        %1363 = vst.msk [vmem:[%s1362] sm:$0xff] %vm1115, %v1354
        %1364 = vst.msk [vmem:[%s1362 + $0x8] sm:$0xff] %vm1115, %v1359
        %s1365 = scalar_lea.vmem %s3, 64
        %v1366 = vld [vmem:[%s1365] sm:$0xff]
        %v1367 = vld [vmem:[%s1365 + $0x8] sm:$0xff]
        %v1368 = vld [vmem:[%s1365 + $0x10] sm:$0xff]
        %v1369 = vld [vmem:[%s1365 + $0x18] sm:$0xff]
        %1370 = vmatprep.subr.mxu0 0.0
        %1371 = vmatpush1.msra.mxu0 0.0
        %1372 = vmatprep.subr.mxu0 0.0
        %1373 = vmatpush1.msra.mxu0 0.0
        %1374 = vmatprep.subr.mxu0 0.0
        %1375 = vmatpush1.msra.mxu0 0.0
        %1376 = vmatprep.subr.mxu0 0.0
        %1377 = vmatpush1.msra.mxu0 0.0
        %1378 = vmatprep.subr.mxu0 0.0
        %1379 = vmatpush1.msra.mxu0 0.0
        %1380 = vmatprep.subr.mxu0 0.0
        %1381 = vmatpush1.msra.mxu0 0.0
        %1382 = vmatprep.subr.mxu0 0.0
        %1383 = vmatpush1.msra.mxu0 0.0
        %1384 = vmatprep.subr.mxu0 0.0
        %1385 = vmatpush1.msra.mxu0 0.0
        %1386 = vmatprep.subr.mxu0 0.0
        %1387 = vmatpush1.msra.mxu0 0.0
        %1388 = vmatprep.subr.mxu0 0.0
        %1389 = vmatpush1.msra.mxu0 0.0
        %1390 = vmatprep.subr.mxu0 0.0
        %1391 = vmatpush1.msra.mxu0 0.0
        %1392 = vmatprep.subr.mxu0 0.0
        %1393 = vmatpush1.msra.mxu0 0.0
        %1394 = vmatprep.subr.mxu0 0.0
        %1395 = vmatpush1.msra.mxu0 %v1369
        %1396 = vmatprep.subr.mxu0 0.0
        %1397 = vmatpush1.msra.mxu0 %v1368
        %1398 = vmatprep.subr.mxu0 0.0
        %1399 = vmatpush1.msra.mxu0 %v1367
        %1400 = vmatprep.subr.mxu0 0.0
        %1401 = vmatpush1.msra.mxu0 %v1366
        %1402 = vmatprep.subr.mxu0 0.0
        %1403 = vmatpush2.msra.mxu0 0.0
        %1404 = vmatprep.subr.mxu0 0.0
        %1405 = vmatpush2.msra.mxu0 0.0
        %1406 = vmatprep.subr.mxu0 0.0
        %1407 = vmatpush2.msra.mxu0 0.0
        %1408 = vmatprep.subr.mxu0 0.0
        %1409 = vmatpush2.msra.mxu0 0.0
        %1410 = vmatprep.subr.mxu0 0.0
        %1411 = vmatpush2.msra.mxu0 0.0
        %1412 = vmatprep.subr.mxu0 0.0
        %1413 = vmatpush2.msra.mxu0 0.0
        %1414 = vmatprep.subr.mxu0 0.0
        %1415 = vmatpush2.msra.mxu0 0.0
        %1416 = vmatprep.subr.mxu0 0.0
        %1417 = vmatpush2.msra.mxu0 0.0
        %1418 = vmatprep.subr.mxu0 0.0
        %1419 = vmatpush2.msra.mxu0 0.0
        %1420 = vmatprep.subr.mxu0 0.0
        %1421 = vmatpush2.msra.mxu0 0.0
        %1422 = vmatprep.subr.mxu0 0.0
        %1423 = vmatpush2.msra.mxu0 0.0
        %1424 = vmatprep.subr.mxu0 0.0
        %1425 = vmatpush2.msra.mxu0 0.0
        %1426 = vmatprep.subr.mxu0 0.0
        %1427 = vmatpush2.msra.mxu0 0.0
        %1428 = vmatprep.subr.mxu0 0.0
        %1429 = vmatpush2.msra.mxu0 0.0
        %1430 = vmatprep.subr.mxu0 0.0
        %1431 = vmatpush2.msra.mxu0 0.0
        %1432 = vmatprep.subr.mxu0 0.0
        %1433 = vmatpush2.msra.mxu0 0.0
        %1434 = vmatprep.mubr.f32.mxu0 0.0
        %1435 = vmatmul.mubr.f32.gmra.mxu0 %v1035
        %v1436 = vpop.f32.mrf.mxu0
        %v1437 = vadd.f32 0.0, %v1436
        %v1438 = vpop.f32.mrf.mxu0
        %1439 = vmatprep.mubr.f32.mxu0 0.0
        %1440 = vmatmul.mubr.f32.gmra.mxu0 %v1038
        %v1441 = vpop.f32.mrf.mxu0
        %v1442 = vadd.f32 0.0, %v1441
        %v1443 = vpop.f32.mrf.mxu0
        %1444 = vdwg.mxu0
        %s1445 = scalar_lea.vmem [#allocation3], 32
        %1446 = vst.msk [vmem:[%s1445] sm:$0xff] %vm1115, %v1437
        %1447 = vst.msk [vmem:[%s1445 + $0x8] sm:$0xff] %vm1115, %v1442
        %s1448 = scalar_lea.vmem %s4, 64
        %v1449 = vld [vmem:[%s1448] sm:$0xff]
        %v1450 = vld [vmem:[%s1448 + $0x8] sm:$0xff]
        %v1451 = vld [vmem:[%s1448 + $0x10] sm:$0xff]
        %v1452 = vld [vmem:[%s1448 + $0x18] sm:$0xff]
        %1453 = vmatprep.subr.mxu0 0.0
        %1454 = vmatpush1.msra.mxu0 0.0
        %1455 = vmatprep.subr.mxu0 0.0
        %1456 = vmatpush1.msra.mxu0 0.0
        %1457 = vmatprep.subr.mxu0 0.0
        %1458 = vmatpush1.msra.mxu0 0.0
        %1459 = vmatprep.subr.mxu0 0.0
        %1460 = vmatpush1.msra.mxu0 0.0
        %1461 = vmatprep.subr.mxu0 0.0
        %1462 = vmatpush1.msra.mxu0 0.0
        %1463 = vmatprep.subr.mxu0 0.0
        %1464 = vmatpush1.msra.mxu0 0.0
        %1465 = vmatprep.subr.mxu0 0.0
        %1466 = vmatpush1.msra.mxu0 0.0
        %1467 = vmatprep.subr.mxu0 0.0
        %1468 = vmatpush1.msra.mxu0 0.0
        %1469 = vmatprep.subr.mxu0 0.0
        %1470 = vmatpush1.msra.mxu0 0.0
        %1471 = vmatprep.subr.mxu0 0.0
        %1472 = vmatpush1.msra.mxu0 0.0
        %1473 = vmatprep.subr.mxu0 0.0
        %1474 = vmatpush1.msra.mxu0 0.0
        %1475 = vmatprep.subr.mxu0 0.0
        %1476 = vmatpush1.msra.mxu0 0.0
        %1477 = vmatprep.subr.mxu0 0.0
        %1478 = vmatpush1.msra.mxu0 %v1452
        %1479 = vmatprep.subr.mxu0 0.0
        %1480 = vmatpush1.msra.mxu0 %v1451
        %1481 = vmatprep.subr.mxu0 0.0
        %1482 = vmatpush1.msra.mxu0 %v1450
        %1483 = vmatprep.subr.mxu0 0.0
        %1484 = vmatpush1.msra.mxu0 %v1449
        %1485 = vmatprep.subr.mxu0 0.0
        %1486 = vmatpush2.msra.mxu0 0.0
        %1487 = vmatprep.subr.mxu0 0.0
        %1488 = vmatpush2.msra.mxu0 0.0
        %1489 = vmatprep.subr.mxu0 0.0
        %1490 = vmatpush2.msra.mxu0 0.0
        %1491 = vmatprep.subr.mxu0 0.0
        %1492 = vmatpush2.msra.mxu0 0.0
        %1493 = vmatprep.subr.mxu0 0.0
        %1494 = vmatpush2.msra.mxu0 0.0
        %1495 = vmatprep.subr.mxu0 0.0
        %1496 = vmatpush2.msra.mxu0 0.0
        %1497 = vmatprep.subr.mxu0 0.0
        %1498 = vmatpush2.msra.mxu0 0.0
        %1499 = vmatprep.subr.mxu0 0.0
        %1500 = vmatpush2.msra.mxu0 0.0
        %1501 = vmatprep.subr.mxu0 0.0
        %1502 = vmatpush2.msra.mxu0 0.0
        %1503 = vmatprep.subr.mxu0 0.0
        %1504 = vmatpush2.msra.mxu0 0.0
        %1505 = vmatprep.subr.mxu0 0.0
        %1506 = vmatpush2.msra.mxu0 0.0
        %1507 = vmatprep.subr.mxu0 0.0
        %1508 = vmatpush2.msra.mxu0 0.0
        %1509 = vmatprep.subr.mxu0 0.0
        %1510 = vmatpush2.msra.mxu0 0.0
        %1511 = vmatprep.subr.mxu0 0.0
        %1512 = vmatpush2.msra.mxu0 0.0
        %1513 = vmatprep.subr.mxu0 0.0
        %1514 = vmatpush2.msra.mxu0 0.0
        %1515 = vmatprep.subr.mxu0 0.0
        %1516 = vmatpush2.msra.mxu0 0.0
        %1517 = vmatprep.mubr.f32.mxu0 0.0
        %1518 = vmatmul.mubr.f32.gmra.mxu0 %v1035
        %v1519 = vpop.f32.mrf.mxu0
        %v1520 = vadd.f32 0.0, %v1519
        %v1521 = vpop.f32.mrf.mxu0
        %1522 = vmatprep.mubr.f32.mxu0 0.0
        %1523 = vmatmul.mubr.f32.gmra.mxu0 %v1038
        %v1524 = vpop.f32.mrf.mxu0
        %v1525 = vadd.f32 0.0, %v1524
        %v1526 = vpop.f32.mrf.mxu0
        %1527 = vdwg.mxu0
        %s1528 = scalar_lea.vmem [#allocation4], 32
        %1529 = vst.msk [vmem:[%s1528] sm:$0xff] %vm1115, %v1520
        %1530 = vst.msk [vmem:[%s1528 + $0x8] sm:$0xff] %vm1115, %v1525
        %s1531 = scalar_lea.vmem %s3, 96
        %v1532 = vld [vmem:[%s1531] sm:$0xff]
        %v1533 = vld [vmem:[%s1531 + $0x8] sm:$0xff]
        %v1534 = vld [vmem:[%s1531 + $0x10] sm:$0xff]
        %v1535 = vld [vmem:[%s1531 + $0x18] sm:$0xff]
        %1536 = vmatprep.subr.mxu0 0.0
        %1537 = vmatpush1.msra.mxu0 0.0
        %1538 = vmatprep.subr.mxu0 0.0
        %1539 = vmatpush1.msra.mxu0 0.0
        %1540 = vmatprep.subr.mxu0 0.0
        %1541 = vmatpush1.msra.mxu0 0.0
        %1542 = vmatprep.subr.mxu0 0.0
        %1543 = vmatpush1.msra.mxu0 0.0
        %1544 = vmatprep.subr.mxu0 0.0
        %1545 = vmatpush1.msra.mxu0 0.0
        %1546 = vmatprep.subr.mxu0 0.0
        %1547 = vmatpush1.msra.mxu0 0.0
        %1548 = vmatprep.subr.mxu0 0.0
        %1549 = vmatpush1.msra.mxu0 0.0
        %1550 = vmatprep.subr.mxu0 0.0
        %1551 = vmatpush1.msra.mxu0 0.0
        %1552 = vmatprep.subr.mxu0 0.0
        %1553 = vmatpush1.msra.mxu0 0.0
        %1554 = vmatprep.subr.mxu0 0.0
        %1555 = vmatpush1.msra.mxu0 0.0
        %1556 = vmatprep.subr.mxu0 0.0
        %1557 = vmatpush1.msra.mxu0 0.0
        %1558 = vmatprep.subr.mxu0 0.0
        %1559 = vmatpush1.msra.mxu0 0.0
        %1560 = vmatprep.subr.mxu0 0.0
        %1561 = vmatpush1.msra.mxu0 %v1535
        %1562 = vmatprep.subr.mxu0 0.0
        %1563 = vmatpush1.msra.mxu0 %v1534
        %1564 = vmatprep.subr.mxu0 0.0
        %1565 = vmatpush1.msra.mxu0 %v1533
        %1566 = vmatprep.subr.mxu0 0.0
        %1567 = vmatpush1.msra.mxu0 %v1532
        %1568 = vmatprep.subr.mxu0 0.0
        %1569 = vmatpush2.msra.mxu0 0.0
        %1570 = vmatprep.subr.mxu0 0.0
        %1571 = vmatpush2.msra.mxu0 0.0
        %1572 = vmatprep.subr.mxu0 0.0
        %1573 = vmatpush2.msra.mxu0 0.0
        %1574 = vmatprep.subr.mxu0 0.0
        %1575 = vmatpush2.msra.mxu0 0.0
        %1576 = vmatprep.subr.mxu0 0.0
        %1577 = vmatpush2.msra.mxu0 0.0
        %1578 = vmatprep.subr.mxu0 0.0
        %1579 = vmatpush2.msra.mxu0 0.0
        %1580 = vmatprep.subr.mxu0 0.0
        %1581 = vmatpush2.msra.mxu0 0.0
        %1582 = vmatprep.subr.mxu0 0.0
        %1583 = vmatpush2.msra.mxu0 0.0
        %1584 = vmatprep.subr.mxu0 0.0
        %1585 = vmatpush2.msra.mxu0 0.0
        %1586 = vmatprep.subr.mxu0 0.0
        %1587 = vmatpush2.msra.mxu0 0.0
        %1588 = vmatprep.subr.mxu0 0.0
        %1589 = vmatpush2.msra.mxu0 0.0
        %1590 = vmatprep.subr.mxu0 0.0
        %1591 = vmatpush2.msra.mxu0 0.0
        %1592 = vmatprep.subr.mxu0 0.0
        %1593 = vmatpush2.msra.mxu0 0.0
        %1594 = vmatprep.subr.mxu0 0.0
        %1595 = vmatpush2.msra.mxu0 0.0
        %1596 = vmatprep.subr.mxu0 0.0
        %1597 = vmatpush2.msra.mxu0 0.0
        %1598 = vmatprep.subr.mxu0 0.0
        %1599 = vmatpush2.msra.mxu0 0.0
        %1600 = vmatprep.mubr.f32.mxu0 0.0
        %1601 = vmatmul.mubr.f32.gmra.mxu0 %v1035
        %v1602 = vpop.f32.mrf.mxu0
        %v1603 = vadd.f32 0.0, %v1602
        %v1604 = vpop.f32.mrf.mxu0
        %1605 = vmatprep.mubr.f32.mxu0 0.0
        %1606 = vmatmul.mubr.f32.gmra.mxu0 %v1038
        %v1607 = vpop.f32.mrf.mxu0
        %v1608 = vadd.f32 0.0, %v1607
        %v1609 = vpop.f32.mrf.mxu0
        %1610 = vdwg.mxu0
        %s1611 = scalar_lea.vmem [#allocation3], 48
        %1612 = vst.msk [vmem:[%s1611] sm:$0xff] %vm1115, %v1603
        %1613 = vst.msk [vmem:[%s1611 + $0x8] sm:$0xff] %vm1115, %v1608
        %s1614 = scalar_lea.vmem %s4, 96
        %v1615 = vld [vmem:[%s1614] sm:$0xff]
        %v1616 = vld [vmem:[%s1614 + $0x8] sm:$0xff]
        %v1617 = vld [vmem:[%s1614 + $0x10] sm:$0xff]
        %v1618 = vld [vmem:[%s1614 + $0x18] sm:$0xff]
        %1619 = vmatprep.subr.mxu0 0.0
        %1620 = vmatpush1.msra.mxu0 0.0
        %1621 = vmatprep.subr.mxu0 0.0
        %1622 = vmatpush1.msra.mxu0 0.0
        %1623 = vmatprep.subr.mxu0 0.0
        %1624 = vmatpush1.msra.mxu0 0.0
        %1625 = vmatprep.subr.mxu0 0.0
        %1626 = vmatpush1.msra.mxu0 0.0
        %1627 = vmatprep.subr.mxu0 0.0
        %1628 = vmatpush1.msra.mxu0 0.0
        %1629 = vmatprep.subr.mxu0 0.0
        %1630 = vmatpush1.msra.mxu0 0.0
        %1631 = vmatprep.subr.mxu0 0.0
        %1632 = vmatpush1.msra.mxu0 0.0
        %1633 = vmatprep.subr.mxu0 0.0
        %1634 = vmatpush1.msra.mxu0 0.0
        %1635 = vmatprep.subr.mxu0 0.0
        %1636 = vmatpush1.msra.mxu0 0.0
        %1637 = vmatprep.subr.mxu0 0.0
        %1638 = vmatpush1.msra.mxu0 0.0
        %1639 = vmatprep.subr.mxu0 0.0
        %1640 = vmatpush1.msra.mxu0 0.0
        %1641 = vmatprep.subr.mxu0 0.0
        %1642 = vmatpush1.msra.mxu0 0.0
        %1643 = vmatprep.subr.mxu0 0.0
        %1644 = vmatpush1.msra.mxu0 %v1618
        %1645 = vmatprep.subr.mxu0 0.0
        %1646 = vmatpush1.msra.mxu0 %v1617
        %1647 = vmatprep.subr.mxu0 0.0
        %1648 = vmatpush1.msra.mxu0 %v1616
        %1649 = vmatprep.subr.mxu0 0.0
        %1650 = vmatpush1.msra.mxu0 %v1615
        %1651 = vmatprep.subr.mxu0 0.0
        %1652 = vmatpush2.msra.mxu0 0.0
        %1653 = vmatprep.subr.mxu0 0.0
        %1654 = vmatpush2.msra.mxu0 0.0
        %1655 = vmatprep.subr.mxu0 0.0
        %1656 = vmatpush2.msra.mxu0 0.0
        %1657 = vmatprep.subr.mxu0 0.0
        %1658 = vmatpush2.msra.mxu0 0.0
        %1659 = vmatprep.subr.mxu0 0.0
        %1660 = vmatpush2.msra.mxu0 0.0
        %1661 = vmatprep.subr.mxu0 0.0
        %1662 = vmatpush2.msra.mxu0 0.0
        %1663 = vmatprep.subr.mxu0 0.0
        %1664 = vmatpush2.msra.mxu0 0.0
        %1665 = vmatprep.subr.mxu0 0.0
        %1666 = vmatpush2.msra.mxu0 0.0
        %1667 = vmatprep.subr.mxu0 0.0
        %1668 = vmatpush2.msra.mxu0 0.0
        %1669 = vmatprep.subr.mxu0 0.0
        %1670 = vmatpush2.msra.mxu0 0.0
        %1671 = vmatprep.subr.mxu0 0.0
        %1672 = vmatpush2.msra.mxu0 0.0
        %1673 = vmatprep.subr.mxu0 0.0
        %1674 = vmatpush2.msra.mxu0 0.0
        %1675 = vmatprep.subr.mxu0 0.0
        %1676 = vmatpush2.msra.mxu0 0.0
        %1677 = vmatprep.subr.mxu0 0.0
        %1678 = vmatpush2.msra.mxu0 0.0
        %1679 = vmatprep.subr.mxu0 0.0
        %1680 = vmatpush2.msra.mxu0 0.0
        %1681 = vmatprep.subr.mxu0 0.0
        %1682 = vmatpush2.msra.mxu0 0.0
        %1683 = vmatprep.mubr.f32.mxu0 0.0
        %1684 = vmatmul.mubr.f32.gmra.mxu0 %v1035
        %v1685 = vpop.f32.mrf.mxu0
        %v1686 = vadd.f32 0.0, %v1685
        %v1687 = vpop.f32.mrf.mxu0
        %1688 = vmatprep.mubr.f32.mxu0 0.0
        %1689 = vmatmul.mubr.f32.gmra.mxu0 %v1038
        %v1690 = vpop.f32.mrf.mxu0
        %v1691 = vadd.f32 0.0, %v1690
        %v1692 = vpop.f32.mrf.mxu0
        %1693 = vdwg.mxu0
        %s1694 = scalar_lea.vmem [#allocation4], 48
        %1695 = vst.msk [vmem:[%s1694] sm:$0xff] %vm1115, %v1686
        %1696 = vst.msk [vmem:[%s1694 + $0x8] sm:$0xff] %vm1115, %v1691
        %s1697 = scalar_lea.vmem %s3, 128
        %v1698 = vld [vmem:[%s1697] sm:$0xff]
        %v1699 = vld [vmem:[%s1697 + $0x8] sm:$0xff]
        %v1700 = vld [vmem:[%s1697 + $0x10] sm:$0xff]
        %v1701 = vld [vmem:[%s1697 + $0x18] sm:$0xff]
        %1702 = vmatprep.subr.mxu0 0.0
        %1703 = vmatpush1.msra.mxu0 0.0
        %1704 = vmatprep.subr.mxu0 0.0
        %1705 = vmatpush1.msra.mxu0 0.0
        %1706 = vmatprep.subr.mxu0 0.0
        %1707 = vmatpush1.msra.mxu0 0.0
        %1708 = vmatprep.subr.mxu0 0.0
        %1709 = vmatpush1.msra.mxu0 0.0
        %1710 = vmatprep.subr.mxu0 0.0
        %1711 = vmatpush1.msra.mxu0 0.0
        %1712 = vmatprep.subr.mxu0 0.0
        %1713 = vmatpush1.msra.mxu0 0.0
        %1714 = vmatprep.subr.mxu0 0.0
        %1715 = vmatpush1.msra.mxu0 0.0
        %1716 = vmatprep.subr.mxu0 0.0
        %1717 = vmatpush1.msra.mxu0 0.0
        %1718 = vmatprep.subr.mxu0 0.0
        %1719 = vmatpush1.msra.mxu0 0.0
        %1720 = vmatprep.subr.mxu0 0.0
        %1721 = vmatpush1.msra.mxu0 0.0
        %1722 = vmatprep.subr.mxu0 0.0
        %1723 = vmatpush1.msra.mxu0 0.0
        %1724 = vmatprep.subr.mxu0 0.0
        %1725 = vmatpush1.msra.mxu0 0.0
        %1726 = vmatprep.subr.mxu0 0.0
        %1727 = vmatpush1.msra.mxu0 %v1701
        %1728 = vmatprep.subr.mxu0 0.0
        %1729 = vmatpush1.msra.mxu0 %v1700
        %1730 = vmatprep.subr.mxu0 0.0
        %1731 = vmatpush1.msra.mxu0 %v1699
        %1732 = vmatprep.subr.mxu0 0.0
        %1733 = vmatpush1.msra.mxu0 %v1698
        %1734 = vmatprep.subr.mxu0 0.0
        %1735 = vmatpush2.msra.mxu0 0.0
        %1736 = vmatprep.subr.mxu0 0.0
        %1737 = vmatpush2.msra.mxu0 0.0
        %1738 = vmatprep.subr.mxu0 0.0
        %1739 = vmatpush2.msra.mxu0 0.0
        %1740 = vmatprep.subr.mxu0 0.0
        %1741 = vmatpush2.msra.mxu0 0.0
        %1742 = vmatprep.subr.mxu0 0.0
        %1743 = vmatpush2.msra.mxu0 0.0
        %1744 = vmatprep.subr.mxu0 0.0
        %1745 = vmatpush2.msra.mxu0 0.0
        %1746 = vmatprep.subr.mxu0 0.0
        %1747 = vmatpush2.msra.mxu0 0.0
        %1748 = vmatprep.subr.mxu0 0.0
        %1749 = vmatpush2.msra.mxu0 0.0
        %1750 = vmatprep.subr.mxu0 0.0
        %1751 = vmatpush2.msra.mxu0 0.0
        %1752 = vmatprep.subr.mxu0 0.0
        %1753 = vmatpush2.msra.mxu0 0.0
        %1754 = vmatprep.subr.mxu0 0.0
        %1755 = vmatpush2.msra.mxu0 0.0
        %1756 = vmatprep.subr.mxu0 0.0
        %1757 = vmatpush2.msra.mxu0 0.0
        %1758 = vmatprep.subr.mxu0 0.0
        %1759 = vmatpush2.msra.mxu0 0.0
        %1760 = vmatprep.subr.mxu0 0.0
        %1761 = vmatpush2.msra.mxu0 0.0
        %1762 = vmatprep.subr.mxu0 0.0
        %1763 = vmatpush2.msra.mxu0 0.0
        %1764 = vmatprep.subr.mxu0 0.0
        %1765 = vmatpush2.msra.mxu0 0.0
        %1766 = vmatprep.mubr.f32.mxu0 0.0
        %1767 = vmatmul.mubr.f32.gmra.mxu0 %v1035
        %v1768 = vpop.f32.mrf.mxu0
        %v1769 = vadd.f32 0.0, %v1768
        %v1770 = vpop.f32.mrf.mxu0
        %1771 = vmatprep.mubr.f32.mxu0 0.0
        %1772 = vmatmul.mubr.f32.gmra.mxu0 %v1038
        %v1773 = vpop.f32.mrf.mxu0
        %v1774 = vadd.f32 0.0, %v1773
        %v1775 = vpop.f32.mrf.mxu0
        %1776 = vdwg.mxu0
        %s1777 = scalar_lea.vmem [#allocation3], 64
        %1778 = vst.msk [vmem:[%s1777] sm:$0xff] %vm1115, %v1769
        %1779 = vst.msk [vmem:[%s1777 + $0x8] sm:$0xff] %vm1115, %v1774
        %s1780 = scalar_lea.vmem %s4, 128
        %v1781 = vld [vmem:[%s1780] sm:$0xff]
        %v1782 = vld [vmem:[%s1780 + $0x8] sm:$0xff]
        %v1783 = vld [vmem:[%s1780 + $0x10] sm:$0xff]
        %v1784 = vld [vmem:[%s1780 + $0x18] sm:$0xff]
        %1785 = vmatprep.subr.mxu0 0.0
        %1786 = vmatpush1.msra.mxu0 0.0
        %1787 = vmatprep.subr.mxu0 0.0
        %1788 = vmatpush1.msra.mxu0 0.0
        %1789 = vmatprep.subr.mxu0 0.0
        %1790 = vmatpush1.msra.mxu0 0.0
        %1791 = vmatprep.subr.mxu0 0.0
        %1792 = vmatpush1.msra.mxu0 0.0
        %1793 = vmatprep.subr.mxu0 0.0
        %1794 = vmatpush1.msra.mxu0 0.0
        %1795 = vmatprep.subr.mxu0 0.0
        %1796 = vmatpush1.msra.mxu0 0.0
        %1797 = vmatprep.subr.mxu0 0.0
        %1798 = vmatpush1.msra.mxu0 0.0
        %1799 = vmatprep.subr.mxu0 0.0
        %1800 = vmatpush1.msra.mxu0 0.0
        %1801 = vmatprep.subr.mxu0 0.0
        %1802 = vmatpush1.msra.mxu0 0.0
        %1803 = vmatprep.subr.mxu0 0.0
        %1804 = vmatpush1.msra.mxu0 0.0
        %1805 = vmatprep.subr.mxu0 0.0
        %1806 = vmatpush1.msra.mxu0 0.0
        %1807 = vmatprep.subr.mxu0 0.0
        %1808 = vmatpush1.msra.mxu0 0.0
        %1809 = vmatprep.subr.mxu0 0.0
        %1810 = vmatpush1.msra.mxu0 %v1784
        %1811 = vmatprep.subr.mxu0 0.0
        %1812 = vmatpush1.msra.mxu0 %v1783
        %1813 = vmatprep.subr.mxu0 0.0
        %1814 = vmatpush1.msra.mxu0 %v1782
        %1815 = vmatprep.subr.mxu0 0.0
        %1816 = vmatpush1.msra.mxu0 %v1781
        %1817 = vmatprep.subr.mxu0 0.0
        %1818 = vmatpush2.msra.mxu0 0.0
        %1819 = vmatprep.subr.mxu0 0.0
        %1820 = vmatpush2.msra.mxu0 0.0
        %1821 = vmatprep.subr.mxu0 0.0
        %1822 = vmatpush2.msra.mxu0 0.0
        %1823 = vmatprep.subr.mxu0 0.0
        %1824 = vmatpush2.msra.mxu0 0.0
        %1825 = vmatprep.subr.mxu0 0.0
        %1826 = vmatpush2.msra.mxu0 0.0
        %1827 = vmatprep.subr.mxu0 0.0
        %1828 = vmatpush2.msra.mxu0 0.0
        %1829 = vmatprep.subr.mxu0 0.0
        %1830 = vmatpush2.msra.mxu0 0.0
        %1831 = vmatprep.subr.mxu0 0.0
        %1832 = vmatpush2.msra.mxu0 0.0
        %1833 = vmatprep.subr.mxu0 0.0
        %1834 = vmatpush2.msra.mxu0 0.0
        %1835 = vmatprep.subr.mxu0 0.0
        %1836 = vmatpush2.msra.mxu0 0.0
        %1837 = vmatprep.subr.mxu0 0.0
        %1838 = vmatpush2.msra.mxu0 0.0
        %1839 = vmatprep.subr.mxu0 0.0
        %1840 = vmatpush2.msra.mxu0 0.0
        %1841 = vmatprep.subr.mxu0 0.0
        %1842 = vmatpush2.msra.mxu0 0.0
        %1843 = vmatprep.subr.mxu0 0.0
        %1844 = vmatpush2.msra.mxu0 0.0
        %1845 = vmatprep.subr.mxu0 0.0
        %1846 = vmatpush2.msra.mxu0 0.0
        %1847 = vmatprep.subr.mxu0 0.0
        %1848 = vmatpush2.msra.mxu0 0.0
        %1849 = vmatprep.mubr.f32.mxu0 0.0
        %1850 = vmatmul.mubr.f32.gmra.mxu0 %v1035
        %v1851 = vpop.f32.mrf.mxu0
        %v1852 = vadd.f32 0.0, %v1851
        %v1853 = vpop.f32.mrf.mxu0
        %1854 = vmatprep.mubr.f32.mxu0 0.0
        %1855 = vmatmul.mubr.f32.gmra.mxu0 %v1038
        %v1856 = vpop.f32.mrf.mxu0
        %v1857 = vadd.f32 0.0, %v1856
        %v1858 = vpop.f32.mrf.mxu0
        %1859 = vdwg.mxu0
        %s1860 = scalar_lea.vmem [#allocation4], 64
        %1861 = vst.msk [vmem:[%s1860] sm:$0xff] %vm1115, %v1852
        %1862 = vst.msk [vmem:[%s1860 + $0x8] sm:$0xff] %vm1115, %v1857
        %s1863 = scalar_lea.vmem %s3, 160
        %v1864 = vld [vmem:[%s1863] sm:$0xff]
        %v1865 = vld [vmem:[%s1863 + $0x8] sm:$0xff]
        %v1866 = vld [vmem:[%s1863 + $0x10] sm:$0xff]
        %v1867 = vld [vmem:[%s1863 + $0x18] sm:$0xff]
        %1868 = vmatprep.subr.mxu0 0.0
        %1869 = vmatpush1.msra.mxu0 0.0
        %1870 = vmatprep.subr.mxu0 0.0
        %1871 = vmatpush1.msra.mxu0 0.0
        %1872 = vmatprep.subr.mxu0 0.0
        %1873 = vmatpush1.msra.mxu0 0.0
        %1874 = vmatprep.subr.mxu0 0.0
        %1875 = vmatpush1.msra.mxu0 0.0
        %1876 = vmatprep.subr.mxu0 0.0
        %1877 = vmatpush1.msra.mxu0 0.0
        %1878 = vmatprep.subr.mxu0 0.0
        %1879 = vmatpush1.msra.mxu0 0.0
        %1880 = vmatprep.subr.mxu0 0.0
        %1881 = vmatpush1.msra.mxu0 0.0
        %1882 = vmatprep.subr.mxu0 0.0
        %1883 = vmatpush1.msra.mxu0 0.0
        %1884 = vmatprep.subr.mxu0 0.0
        %1885 = vmatpush1.msra.mxu0 0.0
        %1886 = vmatprep.subr.mxu0 0.0
        %1887 = vmatpush1.msra.mxu0 0.0
        %1888 = vmatprep.subr.mxu0 0.0
        %1889 = vmatpush1.msra.mxu0 0.0
        %1890 = vmatprep.subr.mxu0 0.0
        %1891 = vmatpush1.msra.mxu0 0.0
        %1892 = vmatprep.subr.mxu0 0.0
        %1893 = vmatpush1.msra.mxu0 %v1867
        %1894 = vmatprep.subr.mxu0 0.0
        %1895 = vmatpush1.msra.mxu0 %v1866
        %1896 = vmatprep.subr.mxu0 0.0
        %1897 = vmatpush1.msra.mxu0 %v1865
        %1898 = vmatprep.subr.mxu0 0.0
        %1899 = vmatpush1.msra.mxu0 %v1864
        %1900 = vmatprep.subr.mxu0 0.0
        %1901 = vmatpush2.msra.mxu0 0.0
        %1902 = vmatprep.subr.mxu0 0.0
        %1903 = vmatpush2.msra.mxu0 0.0
        %1904 = vmatprep.subr.mxu0 0.0
        %1905 = vmatpush2.msra.mxu0 0.0
        %1906 = vmatprep.subr.mxu0 0.0
        %1907 = vmatpush2.msra.mxu0 0.0
        %1908 = vmatprep.subr.mxu0 0.0
        %1909 = vmatpush2.msra.mxu0 0.0
        %1910 = vmatprep.subr.mxu0 0.0
        %1911 = vmatpush2.msra.mxu0 0.0
        %1912 = vmatprep.subr.mxu0 0.0
        %1913 = vmatpush2.msra.mxu0 0.0
        %1914 = vmatprep.subr.mxu0 0.0
        %1915 = vmatpush2.msra.mxu0 0.0
        %1916 = vmatprep.subr.mxu0 0.0
        %1917 = vmatpush2.msra.mxu0 0.0
        %1918 = vmatprep.subr.mxu0 0.0
        %1919 = vmatpush2.msra.mxu0 0.0
        %1920 = vmatprep.subr.mxu0 0.0
        %1921 = vmatpush2.msra.mxu0 0.0
        %1922 = vmatprep.subr.mxu0 0.0
        %1923 = vmatpush2.msra.mxu0 0.0
        %1924 = vmatprep.subr.mxu0 0.0
        %1925 = vmatpush2.msra.mxu0 0.0
        %1926 = vmatprep.subr.mxu0 0.0
        %1927 = vmatpush2.msra.mxu0 0.0
        %1928 = vmatprep.subr.mxu0 0.0
        %1929 = vmatpush2.msra.mxu0 0.0
        %1930 = vmatprep.subr.mxu0 0.0
        %1931 = vmatpush2.msra.mxu0 0.0
        %1932 = vmatprep.mubr.f32.mxu0 0.0
        %1933 = vmatmul.mubr.f32.gmra.mxu0 %v1035
        %v1934 = vpop.f32.mrf.mxu0
        %v1935 = vadd.f32 0.0, %v1934
        %v1936 = vpop.f32.mrf.mxu0
        %1937 = vmatprep.mubr.f32.mxu0 0.0
        %1938 = vmatmul.mubr.f32.gmra.mxu0 %v1038
        %v1939 = vpop.f32.mrf.mxu0
        %v1940 = vadd.f32 0.0, %v1939
        %v1941 = vpop.f32.mrf.mxu0
        %1942 = vdwg.mxu0
        %s1943 = scalar_lea.vmem [#allocation3], 80
        %1944 = vst.msk [vmem:[%s1943] sm:$0xff] %vm1115, %v1935
        %1945 = vst.msk [vmem:[%s1943 + $0x8] sm:$0xff] %vm1115, %v1940
        %s1946 = scalar_lea.vmem %s4, 160
        %v1947 = vld [vmem:[%s1946] sm:$0xff]
        %v1948 = vld [vmem:[%s1946 + $0x8] sm:$0xff]
        %v1949 = vld [vmem:[%s1946 + $0x10] sm:$0xff]
        %v1950 = vld [vmem:[%s1946 + $0x18] sm:$0xff]
        %1951 = vmatprep.subr.mxu0 0.0
        %1952 = vmatpush1.msra.mxu0 0.0
        %1953 = vmatprep.subr.mxu0 0.0
        %1954 = vmatpush1.msra.mxu0 0.0
        %1955 = vmatprep.subr.mxu0 0.0
        %1956 = vmatpush1.msra.mxu0 0.0
        %1957 = vmatprep.subr.mxu0 0.0
        %1958 = vmatpush1.msra.mxu0 0.0
        %1959 = vmatprep.subr.mxu0 0.0
        %1960 = vmatpush1.msra.mxu0 0.0
        %1961 = vmatprep.subr.mxu0 0.0
        %1962 = vmatpush1.msra.mxu0 0.0
        %1963 = vmatprep.subr.mxu0 0.0
        %1964 = vmatpush1.msra.mxu0 0.0
        %1965 = vmatprep.subr.mxu0 0.0
        %1966 = vmatpush1.msra.mxu0 0.0
        %1967 = vmatprep.subr.mxu0 0.0
        %1968 = vmatpush1.msra.mxu0 0.0
        %1969 = vmatprep.subr.mxu0 0.0
        %1970 = vmatpush1.msra.mxu0 0.0
        %1971 = vmatprep.subr.mxu0 0.0
        %1972 = vmatpush1.msra.mxu0 0.0
        %1973 = vmatprep.subr.mxu0 0.0
        %1974 = vmatpush1.msra.mxu0 0.0
        %1975 = vmatprep.subr.mxu0 0.0
        %1976 = vmatpush1.msra.mxu0 %v1950
        %1977 = vmatprep.subr.mxu0 0.0
        %1978 = vmatpush1.msra.mxu0 %v1949
        %1979 = vmatprep.subr.mxu0 0.0
        %1980 = vmatpush1.msra.mxu0 %v1948
        %1981 = vmatprep.subr.mxu0 0.0
        %1982 = vmatpush1.msra.mxu0 %v1947
        %1983 = vmatprep.subr.mxu0 0.0
        %1984 = vmatpush2.msra.mxu0 0.0
        %1985 = vmatprep.subr.mxu0 0.0
        %1986 = vmatpush2.msra.mxu0 0.0
        %1987 = vmatprep.subr.mxu0 0.0
        %1988 = vmatpush2.msra.mxu0 0.0
        %1989 = vmatprep.subr.mxu0 0.0
        %1990 = vmatpush2.msra.mxu0 0.0
        %1991 = vmatprep.subr.mxu0 0.0
        %1992 = vmatpush2.msra.mxu0 0.0
        %1993 = vmatprep.subr.mxu0 0.0
        %1994 = vmatpush2.msra.mxu0 0.0
        %1995 = vmatprep.subr.mxu0 0.0
        %1996 = vmatpush2.msra.mxu0 0.0
        %1997 = vmatprep.subr.mxu0 0.0
        %1998 = vmatpush2.msra.mxu0 0.0
        %1999 = vmatprep.subr.mxu0 0.0
        %2000 = vmatpush2.msra.mxu0 0.0
        %2001 = vmatprep.subr.mxu0 0.0
        %2002 = vmatpush2.msra.mxu0 0.0
        %2003 = vmatprep.subr.mxu0 0.0
        %2004 = vmatpush2.msra.mxu0 0.0
        %2005 = vmatprep.subr.mxu0 0.0
        %2006 = vmatpush2.msra.mxu0 0.0
        %2007 = vmatprep.subr.mxu0 0.0
        %2008 = vmatpush2.msra.mxu0 0.0
        %2009 = vmatprep.subr.mxu0 0.0
        %2010 = vmatpush2.msra.mxu0 0.0
        %2011 = vmatprep.subr.mxu0 0.0
        %2012 = vmatpush2.msra.mxu0 0.0
        %2013 = vmatprep.subr.mxu0 0.0
        %2014 = vmatpush2.msra.mxu0 0.0
        %2015 = vmatprep.mubr.f32.mxu0 0.0
        %2016 = vmatmul.mubr.f32.gmra.mxu0 %v1035
        %v2017 = vpop.f32.mrf.mxu0
        %v2018 = vadd.f32 0.0, %v2017
        %v2019 = vpop.f32.mrf.mxu0
        %2020 = vmatprep.mubr.f32.mxu0 0.0
        %2021 = vmatmul.mubr.f32.gmra.mxu0 %v1038
        %v2022 = vpop.f32.mrf.mxu0
        %v2023 = vadd.f32 0.0, %v2022
        %v2024 = vpop.f32.mrf.mxu0
        %2025 = vdwg.mxu0
        %s2026 = scalar_lea.vmem [#allocation4], 80
        %2027 = vst.msk [vmem:[%s2026] sm:$0xff] %vm1115, %v2018
        %2028 = vst.msk [vmem:[%s2026 + $0x8] sm:$0xff] %vm1115, %v2023
        %s2029 = scalar_lea.vmem %s3, 192
        %v2030 = vld [vmem:[%s2029] sm:$0xff]
        %v2031 = vld [vmem:[%s2029 + $0x8] sm:$0xff]
        %v2032 = vld [vmem:[%s2029 + $0x10] sm:$0xff]
        %v2033 = vld [vmem:[%s2029 + $0x18] sm:$0xff]
        %2034 = vmatprep.subr.mxu0 0.0
        %2035 = vmatpush1.msra.mxu0 0.0
        %2036 = vmatprep.subr.mxu0 0.0
        %2037 = vmatpush1.msra.mxu0 0.0
        %2038 = vmatprep.subr.mxu0 0.0
        %2039 = vmatpush1.msra.mxu0 0.0
        %2040 = vmatprep.subr.mxu0 0.0
        %2041 = vmatpush1.msra.mxu0 0.0
        %2042 = vmatprep.subr.mxu0 0.0
        %2043 = vmatpush1.msra.mxu0 0.0
        %2044 = vmatprep.subr.mxu0 0.0
        %2045 = vmatpush1.msra.mxu0 0.0
        %2046 = vmatprep.subr.mxu0 0.0
        %2047 = vmatpush1.msra.mxu0 0.0
        %2048 = vmatprep.subr.mxu0 0.0
        %2049 = vmatpush1.msra.mxu0 0.0
        %2050 = vmatprep.subr.mxu0 0.0
        %2051 = vmatpush1.msra.mxu0 0.0
        %2052 = vmatprep.subr.mxu0 0.0
        %2053 = vmatpush1.msra.mxu0 0.0
        %2054 = vmatprep.subr.mxu0 0.0
        %2055 = vmatpush1.msra.mxu0 0.0
        %2056 = vmatprep.subr.mxu0 0.0
        %2057 = vmatpush1.msra.mxu0 0.0
        %2058 = vmatprep.subr.mxu0 0.0
        %2059 = vmatpush1.msra.mxu0 %v2033
        %2060 = vmatprep.subr.mxu0 0.0
        %2061 = vmatpush1.msra.mxu0 %v2032
        %2062 = vmatprep.subr.mxu0 0.0
        %2063 = vmatpush1.msra.mxu0 %v2031
        %2064 = vmatprep.subr.mxu0 0.0
        %2065 = vmatpush1.msra.mxu0 %v2030
        %2066 = vmatprep.subr.mxu0 0.0
        %2067 = vmatpush2.msra.mxu0 0.0
        %2068 = vmatprep.subr.mxu0 0.0
        %2069 = vmatpush2.msra.mxu0 0.0
        %2070 = vmatprep.subr.mxu0 0.0
        %2071 = vmatpush2.msra.mxu0 0.0
        %2072 = vmatprep.subr.mxu0 0.0
        %2073 = vmatpush2.msra.mxu0 0.0
        %2074 = vmatprep.subr.mxu0 0.0
        %2075 = vmatpush2.msra.mxu0 0.0
        %2076 = vmatprep.subr.mxu0 0.0
        %2077 = vmatpush2.msra.mxu0 0.0
        %2078 = vmatprep.subr.mxu0 0.0
        %2079 = vmatpush2.msra.mxu0 0.0
        %2080 = vmatprep.subr.mxu0 0.0
        %2081 = vmatpush2.msra.mxu0 0.0
        %2082 = vmatprep.subr.mxu0 0.0
        %2083 = vmatpush2.msra.mxu0 0.0
        %2084 = vmatprep.subr.mxu0 0.0
        %2085 = vmatpush2.msra.mxu0 0.0
        %2086 = vmatprep.subr.mxu0 0.0
        %2087 = vmatpush2.msra.mxu0 0.0
        %2088 = vmatprep.subr.mxu0 0.0
        %2089 = vmatpush2.msra.mxu0 0.0
        %2090 = vmatprep.subr.mxu0 0.0
        %2091 = vmatpush2.msra.mxu0 0.0
        %2092 = vmatprep.subr.mxu0 0.0
        %2093 = vmatpush2.msra.mxu0 0.0
        %2094 = vmatprep.subr.mxu0 0.0
        %2095 = vmatpush2.msra.mxu0 0.0
        %2096 = vmatprep.subr.mxu0 0.0
        %2097 = vmatpush2.msra.mxu0 0.0
        %2098 = vmatprep.mubr.f32.mxu0 0.0
        %2099 = vmatmul.mubr.f32.gmra.mxu0 %v1035
        %v2100 = vpop.f32.mrf.mxu0
        %v2101 = vadd.f32 0.0, %v2100
        %v2102 = vpop.f32.mrf.mxu0
        %2103 = vmatprep.mubr.f32.mxu0 0.0
        %2104 = vmatmul.mubr.f32.gmra.mxu0 %v1038
        %v2105 = vpop.f32.mrf.mxu0
        %v2106 = vadd.f32 0.0, %v2105
        %v2107 = vpop.f32.mrf.mxu0
        %2108 = vdwg.mxu0
        %s2109 = scalar_lea.vmem [#allocation3], 96
        %2110 = vst.msk [vmem:[%s2109] sm:$0xff] %vm1115, %v2101
        %2111 = vst.msk [vmem:[%s2109 + $0x8] sm:$0xff] %vm1115, %v2106
        %s2112 = scalar_lea.vmem %s4, 192
        %v2113 = vld [vmem:[%s2112] sm:$0xff]
        %v2114 = vld [vmem:[%s2112 + $0x8] sm:$0xff]
        %v2115 = vld [vmem:[%s2112 + $0x10] sm:$0xff]
        %v2116 = vld [vmem:[%s2112 + $0x18] sm:$0xff]
        %2117 = vmatprep.subr.mxu0 0.0
        %2118 = vmatpush1.msra.mxu0 0.0
        %2119 = vmatprep.subr.mxu0 0.0
        %2120 = vmatpush1.msra.mxu0 0.0
        %2121 = vmatprep.subr.mxu0 0.0
        %2122 = vmatpush1.msra.mxu0 0.0
        %2123 = vmatprep.subr.mxu0 0.0
        %2124 = vmatpush1.msra.mxu0 0.0
        %2125 = vmatprep.subr.mxu0 0.0
        %2126 = vmatpush1.msra.mxu0 0.0
        %2127 = vmatprep.subr.mxu0 0.0
        %2128 = vmatpush1.msra.mxu0 0.0
        %2129 = vmatprep.subr.mxu0 0.0
        %2130 = vmatpush1.msra.mxu0 0.0
        %2131 = vmatprep.subr.mxu0 0.0
        %2132 = vmatpush1.msra.mxu0 0.0
        %2133 = vmatprep.subr.mxu0 0.0
        %2134 = vmatpush1.msra.mxu0 0.0
        %2135 = vmatprep.subr.mxu0 0.0
        %2136 = vmatpush1.msra.mxu0 0.0
        %2137 = vmatprep.subr.mxu0 0.0
        %2138 = vmatpush1.msra.mxu0 0.0
        %2139 = vmatprep.subr.mxu0 0.0
        %2140 = vmatpush1.msra.mxu0 0.0
        %2141 = vmatprep.subr.mxu0 0.0
        %2142 = vmatpush1.msra.mxu0 %v2116
        %2143 = vmatprep.subr.mxu0 0.0
        %2144 = vmatpush1.msra.mxu0 %v2115
        %2145 = vmatprep.subr.mxu0 0.0
        %2146 = vmatpush1.msra.mxu0 %v2114
        %2147 = vmatprep.subr.mxu0 0.0
        %2148 = vmatpush1.msra.mxu0 %v2113
        %2149 = vmatprep.subr.mxu0 0.0
        %2150 = vmatpush2.msra.mxu0 0.0
        %2151 = vmatprep.subr.mxu0 0.0
        %2152 = vmatpush2.msra.mxu0 0.0
        %2153 = vmatprep.subr.mxu0 0.0
        %2154 = vmatpush2.msra.mxu0 0.0
        %2155 = vmatprep.subr.mxu0 0.0
        %2156 = vmatpush2.msra.mxu0 0.0
        %2157 = vmatprep.subr.mxu0 0.0
        %2158 = vmatpush2.msra.mxu0 0.0
        %2159 = vmatprep.subr.mxu0 0.0
        %2160 = vmatpush2.msra.mxu0 0.0
        %2161 = vmatprep.subr.mxu0 0.0
        %2162 = vmatpush2.msra.mxu0 0.0
        %2163 = vmatprep.subr.mxu0 0.0
        %2164 = vmatpush2.msra.mxu0 0.0
        %2165 = vmatprep.subr.mxu0 0.0
        %2166 = vmatpush2.msra.mxu0 0.0
        %2167 = vmatprep.subr.mxu0 0.0
        %2168 = vmatpush2.msra.mxu0 0.0
        %2169 = vmatprep.subr.mxu0 0.0
        %2170 = vmatpush2.msra.mxu0 0.0
        %2171 = vmatprep.subr.mxu0 0.0
        %2172 = vmatpush2.msra.mxu0 0.0
        %2173 = vmatprep.subr.mxu0 0.0
        %2174 = vmatpush2.msra.mxu0 0.0
        %2175 = vmatprep.subr.mxu0 0.0
        %2176 = vmatpush2.msra.mxu0 0.0
        %2177 = vmatprep.subr.mxu0 0.0
        %2178 = vmatpush2.msra.mxu0 0.0
        %2179 = vmatprep.subr.mxu0 0.0
        %2180 = vmatpush2.msra.mxu0 0.0
        %2181 = vmatprep.mubr.f32.mxu0 0.0
        %2182 = vmatmul.mubr.f32.gmra.mxu0 %v1035
        %v2183 = vpop.f32.mrf.mxu0
        %v2184 = vadd.f32 0.0, %v2183
        %v2185 = vpop.f32.mrf.mxu0
        %2186 = vmatprep.mubr.f32.mxu0 0.0
        %2187 = vmatmul.mubr.f32.gmra.mxu0 %v1038
        %v2188 = vpop.f32.mrf.mxu0
        %v2189 = vadd.f32 0.0, %v2188
        %v2190 = vpop.f32.mrf.mxu0
        %2191 = vdwg.mxu0
        %s2192 = scalar_lea.vmem [#allocation4], 96
        %2193 = vst.msk [vmem:[%s2192] sm:$0xff] %vm1115, %v2184
        %2194 = vst.msk [vmem:[%s2192 + $0x8] sm:$0xff] %vm1115, %v2189
        %s2195 = scalar_lea.vmem %s3, 224
        %v2196 = vld [vmem:[%s2195] sm:$0xff]
        %v2197 = vld [vmem:[%s2195 + $0x8] sm:$0xff]
        %v2198 = vld [vmem:[%s2195 + $0x10] sm:$0xff]
        %v2199 = vld [vmem:[%s2195 + $0x18] sm:$0xff]
        %2200 = vmatprep.subr.mxu0 0.0
        %2201 = vmatpush1.msra.mxu0 0.0
        %2202 = vmatprep.subr.mxu0 0.0
        %2203 = vmatpush1.msra.mxu0 0.0
        %2204 = vmatprep.subr.mxu0 0.0
        %2205 = vmatpush1.msra.mxu0 0.0
        %2206 = vmatprep.subr.mxu0 0.0
        %2207 = vmatpush1.msra.mxu0 0.0
        %2208 = vmatprep.subr.mxu0 0.0
        %2209 = vmatpush1.msra.mxu0 0.0
        %2210 = vmatprep.subr.mxu0 0.0
        %2211 = vmatpush1.msra.mxu0 0.0
        %2212 = vmatprep.subr.mxu0 0.0
        %2213 = vmatpush1.msra.mxu0 0.0
        %2214 = vmatprep.subr.mxu0 0.0
        %2215 = vmatpush1.msra.mxu0 0.0
        %2216 = vmatprep.subr.mxu0 0.0
        %2217 = vmatpush1.msra.mxu0 0.0
        %2218 = vmatprep.subr.mxu0 0.0
        %2219 = vmatpush1.msra.mxu0 0.0
        %2220 = vmatprep.subr.mxu0 0.0
        %2221 = vmatpush1.msra.mxu0 0.0
        %2222 = vmatprep.subr.mxu0 0.0
        %2223 = vmatpush1.msra.mxu0 0.0
        %2224 = vmatprep.subr.mxu0 0.0
        %2225 = vmatpush1.msra.mxu0 %v2199
        %2226 = vmatprep.subr.mxu0 0.0
        %2227 = vmatpush1.msra.mxu0 %v2198
        %2228 = vmatprep.subr.mxu0 0.0
        %2229 = vmatpush1.msra.mxu0 %v2197
        %2230 = vmatprep.subr.mxu0 0.0
        %2231 = vmatpush1.msra.mxu0 %v2196
        %2232 = vmatprep.subr.mxu0 0.0
        %2233 = vmatpush2.msra.mxu0 0.0
        %2234 = vmatprep.subr.mxu0 0.0
        %2235 = vmatpush2.msra.mxu0 0.0
        %2236 = vmatprep.subr.mxu0 0.0
        %2237 = vmatpush2.msra.mxu0 0.0
        %2238 = vmatprep.subr.mxu0 0.0
        %2239 = vmatpush2.msra.mxu0 0.0
        %2240 = vmatprep.subr.mxu0 0.0
        %2241 = vmatpush2.msra.mxu0 0.0
        %2242 = vmatprep.subr.mxu0 0.0
        %2243 = vmatpush2.msra.mxu0 0.0
        %2244 = vmatprep.subr.mxu0 0.0
        %2245 = vmatpush2.msra.mxu0 0.0
        %2246 = vmatprep.subr.mxu0 0.0
        %2247 = vmatpush2.msra.mxu0 0.0
        %2248 = vmatprep.subr.mxu0 0.0
        %2249 = vmatpush2.msra.mxu0 0.0
        %2250 = vmatprep.subr.mxu0 0.0
        %2251 = vmatpush2.msra.mxu0 0.0
        %2252 = vmatprep.subr.mxu0 0.0
        %2253 = vmatpush2.msra.mxu0 0.0
        %2254 = vmatprep.subr.mxu0 0.0
        %2255 = vmatpush2.msra.mxu0 0.0
        %2256 = vmatprep.subr.mxu0 0.0
        %2257 = vmatpush2.msra.mxu0 0.0
        %2258 = vmatprep.subr.mxu0 0.0
        %2259 = vmatpush2.msra.mxu0 0.0
        %2260 = vmatprep.subr.mxu0 0.0
        %2261 = vmatpush2.msra.mxu0 0.0
        %2262 = vmatprep.subr.mxu0 0.0
        %2263 = vmatpush2.msra.mxu0 0.0
        %2264 = vmatprep.mubr.f32.mxu0 0.0
        %2265 = vmatmul.mubr.f32.gmra.mxu0 %v1035
        %v2266 = vpop.f32.mrf.mxu0
        %v2267 = vadd.f32 0.0, %v2266
        %v2268 = vpop.f32.mrf.mxu0
        %2269 = vmatprep.mubr.f32.mxu0 0.0
        %2270 = vmatmul.mubr.f32.gmra.mxu0 %v1038
        %v2271 = vpop.f32.mrf.mxu0
        %v2272 = vadd.f32 0.0, %v2271
        %v2273 = vpop.f32.mrf.mxu0
        %2274 = vdwg.mxu0
        %s2275 = scalar_lea.vmem [#allocation3], 112
        %2276 = vst.msk [vmem:[%s2275] sm:$0xff] %vm1115, %v2267
        %2277 = vst.msk [vmem:[%s2275 + $0x8] sm:$0xff] %vm1115, %v2272
        %s2278 = scalar_lea.vmem %s4, 224
        %v2279 = vld [vmem:[%s2278] sm:$0xff]
        %v2280 = vld [vmem:[%s2278 + $0x8] sm:$0xff]
        %v2281 = vld [vmem:[%s2278 + $0x10] sm:$0xff]
        %v2282 = vld [vmem:[%s2278 + $0x18] sm:$0xff]
        %2283 = vmatprep.subr.mxu0 0.0
        %2284 = vmatpush1.msra.mxu0 0.0
        %2285 = vmatprep.subr.mxu0 0.0
        %2286 = vmatpush1.msra.mxu0 0.0
        %2287 = vmatprep.subr.mxu0 0.0
        %2288 = vmatpush1.msra.mxu0 0.0
        %2289 = vmatprep.subr.mxu0 0.0
        %2290 = vmatpush1.msra.mxu0 0.0
        %2291 = vmatprep.subr.mxu0 0.0
        %2292 = vmatpush1.msra.mxu0 0.0
        %2293 = vmatprep.subr.mxu0 0.0
        %2294 = vmatpush1.msra.mxu0 0.0
        %2295 = vmatprep.subr.mxu0 0.0
        %2296 = vmatpush1.msra.mxu0 0.0
        %2297 = vmatprep.subr.mxu0 0.0
        %2298 = vmatpush1.msra.mxu0 0.0
        %2299 = vmatprep.subr.mxu0 0.0
        %2300 = vmatpush1.msra.mxu0 0.0
        %2301 = vmatprep.subr.mxu0 0.0
        %2302 = vmatpush1.msra.mxu0 0.0
        %2303 = vmatprep.subr.mxu0 0.0
        %2304 = vmatpush1.msra.mxu0 0.0
        %2305 = vmatprep.subr.mxu0 0.0
        %2306 = vmatpush1.msra.mxu0 0.0
        %2307 = vmatprep.subr.mxu0 0.0
        %2308 = vmatpush1.msra.mxu0 %v2282
        %2309 = vmatprep.subr.mxu0 0.0
        %2310 = vmatpush1.msra.mxu0 %v2281
        %2311 = vmatprep.subr.mxu0 0.0
        %2312 = vmatpush1.msra.mxu0 %v2280
        %2313 = vmatprep.subr.mxu0 0.0
        %2314 = vmatpush1.msra.mxu0 %v2279
        %2315 = vmatprep.subr.mxu0 0.0
        %2316 = vmatpush2.msra.mxu0 0.0
        %2317 = vmatprep.subr.mxu0 0.0
        %2318 = vmatpush2.msra.mxu0 0.0
        %2319 = vmatprep.subr.mxu0 0.0
        %2320 = vmatpush2.msra.mxu0 0.0
        %2321 = vmatprep.subr.mxu0 0.0
        %2322 = vmatpush2.msra.mxu0 0.0
        %2323 = vmatprep.subr.mxu0 0.0
        %2324 = vmatpush2.msra.mxu0 0.0
        %2325 = vmatprep.subr.mxu0 0.0
        %2326 = vmatpush2.msra.mxu0 0.0
        %2327 = vmatprep.subr.mxu0 0.0
        %2328 = vmatpush2.msra.mxu0 0.0
        %2329 = vmatprep.subr.mxu0 0.0
        %2330 = vmatpush2.msra.mxu0 0.0
        %2331 = vmatprep.subr.mxu0 0.0
        %2332 = vmatpush2.msra.mxu0 0.0
        %2333 = vmatprep.subr.mxu0 0.0
        %2334 = vmatpush2.msra.mxu0 0.0
        %2335 = vmatprep.subr.mxu0 0.0
        %2336 = vmatpush2.msra.mxu0 0.0
        %2337 = vmatprep.subr.mxu0 0.0
        %2338 = vmatpush2.msra.mxu0 0.0
        %2339 = vmatprep.subr.mxu0 0.0
        %2340 = vmatpush2.msra.mxu0 0.0
        %2341 = vmatprep.subr.mxu0 0.0
        %2342 = vmatpush2.msra.mxu0 0.0
        %2343 = vmatprep.subr.mxu0 0.0
        %2344 = vmatpush2.msra.mxu0 0.0
        %2345 = vmatprep.subr.mxu0 0.0
        %2346 = vmatpush2.msra.mxu0 0.0
        %2347 = vmatprep.mubr.f32.mxu0 0.0
        %2348 = vmatmul.mubr.f32.gmra.mxu0 %v1035
        %v2349 = vpop.f32.mrf.mxu0
        %v2350 = vadd.f32 0.0, %v2349
        %v2351 = vpop.f32.mrf.mxu0
        %2352 = vmatprep.mubr.f32.mxu0 0.0
        %2353 = vmatmul.mubr.f32.gmra.mxu0 %v1038
        %v2354 = vpop.f32.mrf.mxu0
        %v2355 = vadd.f32 0.0, %v2354
        %v2356 = vpop.f32.mrf.mxu0
        %2357 = vdwg.mxu0
        %s2358 = scalar_lea.vmem [#allocation4], 112
        %2359 = vst.msk [vmem:[%s2358] sm:$0xff] %vm1115, %v2350
        %2360 = vst.msk [vmem:[%s2358 + $0x8] sm:$0xff] %vm1115, %v2355
        %v2361 = vld [vmem:[#allocation2] sm:$0xff]
        %v2362 = vld [vmem:[#allocation2 + $0x8] sm:$0xff]
        %v2363 = vld [vmem:[#allocation2 + $0x10] sm:$0xff]
        %v2364 = vld [vmem:[#allocation2 + $0x18] sm:$0xff]
        %v2365 = vld [vmem:[#allocation2 + $0x20] sm:$0xff]
        %v2366 = vld [vmem:[#allocation2 + $0x28] sm:$0xff]
        %v2367 = vld [vmem:[#allocation2 + $0x30] sm:$0xff]
        %v2368 = vld [vmem:[#allocation2 + $0x38] sm:$0xff]
        %v2369 = vld [vmem:[#allocation2 + $0x40] sm:$0xff]
        %v2370 = vld [vmem:[#allocation2 + $0x48] sm:$0xff]
        %v2371 = vld [vmem:[#allocation2 + $0x50] sm:$0xff]
        %v2372 = vld [vmem:[#allocation2 + $0x58] sm:$0xff]
        %v2373 = vld [vmem:[#allocation2 + $0x60] sm:$0xff]
        %v2374 = vld [vmem:[#allocation2 + $0x68] sm:$0xff]
        %v2375 = vld [vmem:[#allocation2 + $0x70] sm:$0xff]
        %v2376 = vld [vmem:[#allocation2 + $0x78] sm:$0xff]
        %v2377 = vld [vmem:[#allocation3] sm:$0xff]
        %v2378 = vld [vmem:[#allocation3 + $0x8] sm:$0xff]
        %v2379 = vld [vmem:[#allocation3 + $0x10] sm:$0xff]
        %v2380 = vld [vmem:[#allocation3 + $0x18] sm:$0xff]
        %v2381 = vld [vmem:[#allocation3 + $0x20] sm:$0xff]
        %v2382 = vld [vmem:[#allocation3 + $0x28] sm:$0xff]
        %v2383 = vld [vmem:[#allocation3 + $0x30] sm:$0xff]
        %v2384 = vld [vmem:[#allocation3 + $0x38] sm:$0xff]
        %v2385 = vld [vmem:[#allocation3 + $0x40] sm:$0xff]
        %v2386 = vld [vmem:[#allocation3 + $0x48] sm:$0xff]
        %v2387 = vld [vmem:[#allocation3 + $0x50] sm:$0xff]
        %v2388 = vld [vmem:[#allocation3 + $0x58] sm:$0xff]
        %v2389 = vld [vmem:[#allocation3 + $0x60] sm:$0xff]
        %v2390 = vld [vmem:[#allocation3 + $0x68] sm:$0xff]
        %v2391 = vld [vmem:[#allocation3 + $0x70] sm:$0xff]
        %v2392 = vld [vmem:[#allocation3 + $0x78] sm:$0xff]
        %v2393 = vld [vmem:[#allocation4] sm:$0xff]
        %v2394 = vld [vmem:[#allocation4 + $0x8] sm:$0xff]
        %v2395 = vld [vmem:[#allocation4 + $0x10] sm:$0xff]
        %v2396 = vld [vmem:[#allocation4 + $0x18] sm:$0xff]
        %v2397 = vld [vmem:[#allocation4 + $0x20] sm:$0xff]
        %v2398 = vld [vmem:[#allocation4 + $0x28] sm:$0xff]
        %v2399 = vld [vmem:[#allocation4 + $0x30] sm:$0xff]
        %v2400 = vld [vmem:[#allocation4 + $0x38] sm:$0xff]
        %v2401 = vld [vmem:[#allocation4 + $0x40] sm:$0xff]
        %v2402 = vld [vmem:[#allocation4 + $0x48] sm:$0xff]
        %v2403 = vld [vmem:[#allocation4 + $0x50] sm:$0xff]
        %v2404 = vld [vmem:[#allocation4 + $0x58] sm:$0xff]
        %v2405 = vld [vmem:[#allocation4 + $0x60] sm:$0xff]
        %v2406 = vld [vmem:[#allocation4 + $0x68] sm:$0xff]
        %v2407 = vld [vmem:[#allocation4 + $0x70] sm:$0xff]
        %v2408 = vld [vmem:[#allocation4 + $0x78] sm:$0xff]
        %v2410 = vsel %vm1115, %v2361, 0
        %v2413 = vsel %vm1115, %v2362, 0
        %v2416 = vsel %vm1115, %v2377, 0
        %v2419 = vsel %vm1115, %v2378, 0
        %2421 = vmatprep.subr.mxu0 0.0
        %2422 = vmatpush1.xpose.msra.mxu0 0.0
        %2423 = vmatprep.subr.mxu0 0.0
        %2424 = vmatpush1.xpose.msra.mxu0 0.0
        %2425 = vmatprep.subr.mxu0 0.0
        %2426 = vmatpush1.xpose.msra.mxu0 0.0
        %2427 = vmatprep.subr.mxu0 0.0
        %2428 = vmatpush1.xpose.msra.mxu0 0.0
        %2429 = vmatprep.subr.mxu0 0.0
        %2430 = vmatpush1.xpose.msra.mxu0 0.0
        %2431 = vmatprep.subr.mxu0 0.0
        %2432 = vmatpush1.xpose.msra.mxu0 0.0
        %2433 = vmatprep.subr.mxu0 0.0
        %2434 = vmatpush1.xpose.msra.mxu0 0.0
        %2435 = vmatprep.subr.mxu0 0.0
        %2436 = vmatpush1.xpose.msra.mxu0 0.0
        %2437 = vmatprep.subr.mxu0 0.0
        %2438 = vmatpush1.xpose.msra.mxu0 0.0
        %2439 = vmatprep.subr.mxu0 0.0
        %2440 = vmatpush1.xpose.msra.mxu0 0.0
        %2441 = vmatprep.subr.mxu0 0.0
        %2442 = vmatpush1.xpose.msra.mxu0 0.0
        %2443 = vmatprep.subr.mxu0 0.0
        %2444 = vmatpush1.xpose.msra.mxu0 0.0
        %2445 = vmatprep.subr.mxu0 0.0
        %2446 = vmatpush1.xpose.msra.mxu0 0.0
        %2447 = vmatprep.subr.mxu0 0.0
        %2448 = vmatpush1.xpose.msra.mxu0 0.0
        %2449 = vmatprep.subr.mxu0 0.0
        %2450 = vmatpush1.xpose.msra.mxu0 %v2419
        %2451 = vmatprep.subr.mxu0 0.0
        %2452 = vmatpush1.xpose.msra.mxu0 %v2416
        %2453 = vmatprep.subr.mxu0 0.0
        %2454 = vmatpush2.xpose.msra.mxu0 0.0
        %2455 = vmatprep.subr.mxu0 0.0
        %2456 = vmatpush2.xpose.msra.mxu0 0.0
        %2457 = vmatprep.subr.mxu0 0.0
        %2458 = vmatpush2.xpose.msra.mxu0 0.0
        %2459 = vmatprep.subr.mxu0 0.0
        %2460 = vmatpush2.xpose.msra.mxu0 0.0
        %2461 = vmatprep.subr.mxu0 0.0
        %2462 = vmatpush2.xpose.msra.mxu0 0.0
        %2463 = vmatprep.subr.mxu0 0.0
        %2464 = vmatpush2.xpose.msra.mxu0 0.0
        %2465 = vmatprep.subr.mxu0 0.0
        %2466 = vmatpush2.xpose.msra.mxu0 0.0
        %2467 = vmatprep.subr.mxu0 0.0
        %2468 = vmatpush2.xpose.msra.mxu0 0.0
        %2469 = vmatprep.subr.mxu0 0.0
        %2470 = vmatpush2.xpose.msra.mxu0 0.0
        %2471 = vmatprep.subr.mxu0 0.0
        %2472 = vmatpush2.xpose.msra.mxu0 0.0
        %2473 = vmatprep.subr.mxu0 0.0
        %2474 = vmatpush2.xpose.msra.mxu0 0.0
        %2475 = vmatprep.subr.mxu0 0.0
        %2476 = vmatpush2.xpose.msra.mxu0 0.0
        %2477 = vmatprep.subr.mxu0 0.0
        %2478 = vmatpush2.xpose.msra.mxu0 0.0
        %2479 = vmatprep.subr.mxu0 0.0
        %2480 = vmatpush2.xpose.msra.mxu0 0.0
        %2481 = vmatprep.subr.mxu0 0.0
        %2482 = vmatpush2.xpose.msra.mxu0 0.0
        %2483 = vmatprep.subr.mxu0 0.0
        %2484 = vmatpush2.xpose.msra.mxu0 0.0
        %2485 = vmatprep.mubr.f32.mxu0 0.0
        %2486 = vmatmul.mubr.f32.gmra.mxu0 %v2410
        %v2487 = vpop.f32.mrf.mxu0
        %v2488 = vadd.f32 0.0, %v2487
        %v2489 = vpop.f32.mrf.mxu0
        %2490 = vmatprep.mubr.f32.mxu0 0.0
        %2491 = vmatmul.mubr.f32.gmra.mxu0 %v2413
        %v2492 = vpop.f32.mrf.mxu0
        %v2493 = vadd.f32 0.0, %v2492
        %v2494 = vpop.f32.mrf.mxu0
        %2495 = vdwg.mxu0
        %v2497 = vsel %vm1115, %v2363, 0
        %v2500 = vsel %vm1115, %v2364, 0
        %v2503 = vsel %vm1115, %v2379, 0
        %v2506 = vsel %vm1115, %v2380, 0
        %2508 = vmatprep.subr.mxu0 0.0
        %2509 = vmatpush1.xpose.msra.mxu0 0.0
        %2510 = vmatprep.subr.mxu0 0.0
        %2511 = vmatpush1.xpose.msra.mxu0 0.0
        %2512 = vmatprep.subr.mxu0 0.0
        %2513 = vmatpush1.xpose.msra.mxu0 0.0
        %2514 = vmatprep.subr.mxu0 0.0
        %2515 = vmatpush1.xpose.msra.mxu0 0.0
        %2516 = vmatprep.subr.mxu0 0.0
        %2517 = vmatpush1.xpose.msra.mxu0 0.0
        %2518 = vmatprep.subr.mxu0 0.0
        %2519 = vmatpush1.xpose.msra.mxu0 0.0
        %2520 = vmatprep.subr.mxu0 0.0
        %2521 = vmatpush1.xpose.msra.mxu0 0.0
        %2522 = vmatprep.subr.mxu0 0.0
        %2523 = vmatpush1.xpose.msra.mxu0 0.0
        %2524 = vmatprep.subr.mxu0 0.0
        %2525 = vmatpush1.xpose.msra.mxu0 0.0
        %2526 = vmatprep.subr.mxu0 0.0
        %2527 = vmatpush1.xpose.msra.mxu0 0.0
        %2528 = vmatprep.subr.mxu0 0.0
        %2529 = vmatpush1.xpose.msra.mxu0 0.0
        %2530 = vmatprep.subr.mxu0 0.0
        %2531 = vmatpush1.xpose.msra.mxu0 0.0
        %2532 = vmatprep.subr.mxu0 0.0
        %2533 = vmatpush1.xpose.msra.mxu0 0.0
        %2534 = vmatprep.subr.mxu0 0.0
        %2535 = vmatpush1.xpose.msra.mxu0 0.0
        %2536 = vmatprep.subr.mxu0 0.0
        %2537 = vmatpush1.xpose.msra.mxu0 %v2506
        %2538 = vmatprep.subr.mxu0 0.0
        %2539 = vmatpush1.xpose.msra.mxu0 %v2503
        %2540 = vmatprep.subr.mxu0 0.0
        %2541 = vmatpush2.xpose.msra.mxu0 0.0
        %2542 = vmatprep.subr.mxu0 0.0
        %2543 = vmatpush2.xpose.msra.mxu0 0.0
        %2544 = vmatprep.subr.mxu0 0.0
        %2545 = vmatpush2.xpose.msra.mxu0 0.0
        %2546 = vmatprep.subr.mxu0 0.0
        %2547 = vmatpush2.xpose.msra.mxu0 0.0
        %2548 = vmatprep.subr.mxu0 0.0
        %2549 = vmatpush2.xpose.msra.mxu0 0.0
        %2550 = vmatprep.subr.mxu0 0.0
        %2551 = vmatpush2.xpose.msra.mxu0 0.0
        %2552 = vmatprep.subr.mxu0 0.0
        %2553 = vmatpush2.xpose.msra.mxu0 0.0
        %2554 = vmatprep.subr.mxu0 0.0
        %2555 = vmatpush2.xpose.msra.mxu0 0.0
        %2556 = vmatprep.subr.mxu0 0.0
        %2557 = vmatpush2.xpose.msra.mxu0 0.0
        %2558 = vmatprep.subr.mxu0 0.0
        %2559 = vmatpush2.xpose.msra.mxu0 0.0
        %2560 = vmatprep.subr.mxu0 0.0
        %2561 = vmatpush2.xpose.msra.mxu0 0.0
        %2562 = vmatprep.subr.mxu0 0.0
        %2563 = vmatpush2.xpose.msra.mxu0 0.0
        %2564 = vmatprep.subr.mxu0 0.0
        %2565 = vmatpush2.xpose.msra.mxu0 0.0
        %2566 = vmatprep.subr.mxu0 0.0
        %2567 = vmatpush2.xpose.msra.mxu0 0.0
        %2568 = vmatprep.subr.mxu0 0.0
        %2569 = vmatpush2.xpose.msra.mxu0 0.0
        %2570 = vmatprep.subr.mxu0 0.0
        %2571 = vmatpush2.xpose.msra.mxu0 0.0
        %2572 = vmatprep.mubr.f32.mxu0 0.0
        %2573 = vmatmul.mubr.f32.gmra.mxu0 %v2497
        %v2574 = vpop.f32.mrf.mxu0
        %v2575 = vadd.f32 0.0, %v2574
        %v2576 = vpop.f32.mrf.mxu0
        %2577 = vmatprep.mubr.f32.mxu0 0.0
        %2578 = vmatmul.mubr.f32.gmra.mxu0 %v2500
        %v2579 = vpop.f32.mrf.mxu0
        %v2580 = vadd.f32 0.0, %v2579
        %v2581 = vpop.f32.mrf.mxu0
        %2582 = vdwg.mxu0
        %v2584 = vsel %vm1115, %v2365, 0
        %v2587 = vsel %vm1115, %v2366, 0
        %v2590 = vsel %vm1115, %v2381, 0
        %v2593 = vsel %vm1115, %v2382, 0
        %2595 = vmatprep.subr.mxu0 0.0
        %2596 = vmatpush1.xpose.msra.mxu0 0.0
        %2597 = vmatprep.subr.mxu0 0.0
        %2598 = vmatpush1.xpose.msra.mxu0 0.0
        %2599 = vmatprep.subr.mxu0 0.0
        %2600 = vmatpush1.xpose.msra.mxu0 0.0
        %2601 = vmatprep.subr.mxu0 0.0
        %2602 = vmatpush1.xpose.msra.mxu0 0.0
        %2603 = vmatprep.subr.mxu0 0.0
        %2604 = vmatpush1.xpose.msra.mxu0 0.0
        %2605 = vmatprep.subr.mxu0 0.0
        %2606 = vmatpush1.xpose.msra.mxu0 0.0
        %2607 = vmatprep.subr.mxu0 0.0
        %2608 = vmatpush1.xpose.msra.mxu0 0.0
        %2609 = vmatprep.subr.mxu0 0.0
        %2610 = vmatpush1.xpose.msra.mxu0 0.0
        %2611 = vmatprep.subr.mxu0 0.0
        %2612 = vmatpush1.xpose.msra.mxu0 0.0
        %2613 = vmatprep.subr.mxu0 0.0
        %2614 = vmatpush1.xpose.msra.mxu0 0.0
        %2615 = vmatprep.subr.mxu0 0.0
        %2616 = vmatpush1.xpose.msra.mxu0 0.0
        %2617 = vmatprep.subr.mxu0 0.0
        %2618 = vmatpush1.xpose.msra.mxu0 0.0
        %2619 = vmatprep.subr.mxu0 0.0
        %2620 = vmatpush1.xpose.msra.mxu0 0.0
        %2621 = vmatprep.subr.mxu0 0.0
        %2622 = vmatpush1.xpose.msra.mxu0 0.0
        %2623 = vmatprep.subr.mxu0 0.0
        %2624 = vmatpush1.xpose.msra.mxu0 %v2593
        %2625 = vmatprep.subr.mxu0 0.0
        %2626 = vmatpush1.xpose.msra.mxu0 %v2590
        %2627 = vmatprep.subr.mxu0 0.0
        %2628 = vmatpush2.xpose.msra.mxu0 0.0
        %2629 = vmatprep.subr.mxu0 0.0
        %2630 = vmatpush2.xpose.msra.mxu0 0.0
        %2631 = vmatprep.subr.mxu0 0.0
        %2632 = vmatpush2.xpose.msra.mxu0 0.0
        %2633 = vmatprep.subr.mxu0 0.0
        %2634 = vmatpush2.xpose.msra.mxu0 0.0
        %2635 = vmatprep.subr.mxu0 0.0
        %2636 = vmatpush2.xpose.msra.mxu0 0.0
        %2637 = vmatprep.subr.mxu0 0.0
        %2638 = vmatpush2.xpose.msra.mxu0 0.0
        %2639 = vmatprep.subr.mxu0 0.0
        %2640 = vmatpush2.xpose.msra.mxu0 0.0
        %2641 = vmatprep.subr.mxu0 0.0
        %2642 = vmatpush2.xpose.msra.mxu0 0.0
        %2643 = vmatprep.subr.mxu0 0.0
        %2644 = vmatpush2.xpose.msra.mxu0 0.0
        %2645 = vmatprep.subr.mxu0 0.0
        %2646 = vmatpush2.xpose.msra.mxu0 0.0
        %2647 = vmatprep.subr.mxu0 0.0
        %2648 = vmatpush2.xpose.msra.mxu0 0.0
        %2649 = vmatprep.subr.mxu0 0.0
        %2650 = vmatpush2.xpose.msra.mxu0 0.0
        %2651 = vmatprep.subr.mxu0 0.0
        %2652 = vmatpush2.xpose.msra.mxu0 0.0
        %2653 = vmatprep.subr.mxu0 0.0
        %2654 = vmatpush2.xpose.msra.mxu0 0.0
        %2655 = vmatprep.subr.mxu0 0.0
        %2656 = vmatpush2.xpose.msra.mxu0 0.0
        %2657 = vmatprep.subr.mxu0 0.0
        %2658 = vmatpush2.xpose.msra.mxu0 0.0
        %2659 = vmatprep.mubr.f32.mxu0 0.0
        %2660 = vmatmul.mubr.f32.gmra.mxu0 %v2584
        %v2661 = vpop.f32.mrf.mxu0
        %v2662 = vadd.f32 0.0, %v2661
        %v2663 = vpop.f32.mrf.mxu0
        %2664 = vmatprep.mubr.f32.mxu0 0.0
        %2665 = vmatmul.mubr.f32.gmra.mxu0 %v2587
        %v2666 = vpop.f32.mrf.mxu0
        %v2667 = vadd.f32 0.0, %v2666
        %v2668 = vpop.f32.mrf.mxu0
        %2669 = vdwg.mxu0
        %v2671 = vsel %vm1115, %v2367, 0
        %v2674 = vsel %vm1115, %v2368, 0
        %v2677 = vsel %vm1115, %v2383, 0
        %v2680 = vsel %vm1115, %v2384, 0
        %2682 = vmatprep.subr.mxu0 0.0
        %2683 = vmatpush1.xpose.msra.mxu0 0.0
        %2684 = vmatprep.subr.mxu0 0.0
        %2685 = vmatpush1.xpose.msra.mxu0 0.0
        %2686 = vmatprep.subr.mxu0 0.0
        %2687 = vmatpush1.xpose.msra.mxu0 0.0
        %2688 = vmatprep.subr.mxu0 0.0
        %2689 = vmatpush1.xpose.msra.mxu0 0.0
        %2690 = vmatprep.subr.mxu0 0.0
        %2691 = vmatpush1.xpose.msra.mxu0 0.0
        %2692 = vmatprep.subr.mxu0 0.0
        %2693 = vmatpush1.xpose.msra.mxu0 0.0
        %2694 = vmatprep.subr.mxu0 0.0
        %2695 = vmatpush1.xpose.msra.mxu0 0.0
        %2696 = vmatprep.subr.mxu0 0.0
        %2697 = vmatpush1.xpose.msra.mxu0 0.0
        %2698 = vmatprep.subr.mxu0 0.0
        %2699 = vmatpush1.xpose.msra.mxu0 0.0
        %2700 = vmatprep.subr.mxu0 0.0
        %2701 = vmatpush1.xpose.msra.mxu0 0.0
        %2702 = vmatprep.subr.mxu0 0.0
        %2703 = vmatpush1.xpose.msra.mxu0 0.0
        %2704 = vmatprep.subr.mxu0 0.0
        %2705 = vmatpush1.xpose.msra.mxu0 0.0
        %2706 = vmatprep.subr.mxu0 0.0
        %2707 = vmatpush1.xpose.msra.mxu0 0.0
        %2708 = vmatprep.subr.mxu0 0.0
        %2709 = vmatpush1.xpose.msra.mxu0 0.0
        %2710 = vmatprep.subr.mxu0 0.0
        %2711 = vmatpush1.xpose.msra.mxu0 %v2680
        %2712 = vmatprep.subr.mxu0 0.0
        %2713 = vmatpush1.xpose.msra.mxu0 %v2677
        %2714 = vmatprep.subr.mxu0 0.0
        %2715 = vmatpush2.xpose.msra.mxu0 0.0
        %2716 = vmatprep.subr.mxu0 0.0
        %2717 = vmatpush2.xpose.msra.mxu0 0.0
        %2718 = vmatprep.subr.mxu0 0.0
        %2719 = vmatpush2.xpose.msra.mxu0 0.0
        %2720 = vmatprep.subr.mxu0 0.0
        %2721 = vmatpush2.xpose.msra.mxu0 0.0
        %2722 = vmatprep.subr.mxu0 0.0
        %2723 = vmatpush2.xpose.msra.mxu0 0.0
        %2724 = vmatprep.subr.mxu0 0.0
        %2725 = vmatpush2.xpose.msra.mxu0 0.0
        %2726 = vmatprep.subr.mxu0 0.0
        %2727 = vmatpush2.xpose.msra.mxu0 0.0
        %2728 = vmatprep.subr.mxu0 0.0
        %2729 = vmatpush2.xpose.msra.mxu0 0.0
        %2730 = vmatprep.subr.mxu0 0.0
        %2731 = vmatpush2.xpose.msra.mxu0 0.0
        %2732 = vmatprep.subr.mxu0 0.0
        %2733 = vmatpush2.xpose.msra.mxu0 0.0
        %2734 = vmatprep.subr.mxu0 0.0
        %2735 = vmatpush2.xpose.msra.mxu0 0.0
        %2736 = vmatprep.subr.mxu0 0.0
        %2737 = vmatpush2.xpose.msra.mxu0 0.0
        %2738 = vmatprep.subr.mxu0 0.0
        %2739 = vmatpush2.xpose.msra.mxu0 0.0
        %2740 = vmatprep.subr.mxu0 0.0
        %2741 = vmatpush2.xpose.msra.mxu0 0.0
        %2742 = vmatprep.subr.mxu0 0.0
        %2743 = vmatpush2.xpose.msra.mxu0 0.0
        %2744 = vmatprep.subr.mxu0 0.0
        %2745 = vmatpush2.xpose.msra.mxu0 0.0
        %2746 = vmatprep.mubr.f32.mxu0 0.0
        %2747 = vmatmul.mubr.f32.gmra.mxu0 %v2671
        %v2748 = vpop.f32.mrf.mxu0
        %v2749 = vadd.f32 0.0, %v2748
        %v2750 = vpop.f32.mrf.mxu0
        %2751 = vmatprep.mubr.f32.mxu0 0.0
        %2752 = vmatmul.mubr.f32.gmra.mxu0 %v2674
        %v2753 = vpop.f32.mrf.mxu0
        %v2754 = vadd.f32 0.0, %v2753
        %v2755 = vpop.f32.mrf.mxu0
        %2756 = vdwg.mxu0
        %v2758 = vsel %vm1115, %v2369, 0
        %v2761 = vsel %vm1115, %v2370, 0
        %v2764 = vsel %vm1115, %v2385, 0
        %v2767 = vsel %vm1115, %v2386, 0
        %2769 = vmatprep.subr.mxu0 0.0
        %2770 = vmatpush1.xpose.msra.mxu0 0.0
        %2771 = vmatprep.subr.mxu0 0.0
        %2772 = vmatpush1.xpose.msra.mxu0 0.0
        %2773 = vmatprep.subr.mxu0 0.0
        %2774 = vmatpush1.xpose.msra.mxu0 0.0
        %2775 = vmatprep.subr.mxu0 0.0
        %2776 = vmatpush1.xpose.msra.mxu0 0.0
        %2777 = vmatprep.subr.mxu0 0.0
        %2778 = vmatpush1.xpose.msra.mxu0 0.0
        %2779 = vmatprep.subr.mxu0 0.0
        %2780 = vmatpush1.xpose.msra.mxu0 0.0
        %2781 = vmatprep.subr.mxu0 0.0
        %2782 = vmatpush1.xpose.msra.mxu0 0.0
        %2783 = vmatprep.subr.mxu0 0.0
        %2784 = vmatpush1.xpose.msra.mxu0 0.0
        %2785 = vmatprep.subr.mxu0 0.0
        %2786 = vmatpush1.xpose.msra.mxu0 0.0
        %2787 = vmatprep.subr.mxu0 0.0
        %2788 = vmatpush1.xpose.msra.mxu0 0.0
        %2789 = vmatprep.subr.mxu0 0.0
        %2790 = vmatpush1.xpose.msra.mxu0 0.0
        %2791 = vmatprep.subr.mxu0 0.0
        %2792 = vmatpush1.xpose.msra.mxu0 0.0
        %2793 = vmatprep.subr.mxu0 0.0
        %2794 = vmatpush1.xpose.msra.mxu0 0.0
        %2795 = vmatprep.subr.mxu0 0.0
        %2796 = vmatpush1.xpose.msra.mxu0 0.0
        %2797 = vmatprep.subr.mxu0 0.0
        %2798 = vmatpush1.xpose.msra.mxu0 %v2767
        %2799 = vmatprep.subr.mxu0 0.0
        %2800 = vmatpush1.xpose.msra.mxu0 %v2764
        %2801 = vmatprep.subr.mxu0 0.0
        %2802 = vmatpush2.xpose.msra.mxu0 0.0
        %2803 = vmatprep.subr.mxu0 0.0
        %2804 = vmatpush2.xpose.msra.mxu0 0.0
        %2805 = vmatprep.subr.mxu0 0.0
        %2806 = vmatpush2.xpose.msra.mxu0 0.0
        %2807 = vmatprep.subr.mxu0 0.0
        %2808 = vmatpush2.xpose.msra.mxu0 0.0
        %2809 = vmatprep.subr.mxu0 0.0
        %2810 = vmatpush2.xpose.msra.mxu0 0.0
        %2811 = vmatprep.subr.mxu0 0.0
        %2812 = vmatpush2.xpose.msra.mxu0 0.0
        %2813 = vmatprep.subr.mxu0 0.0
        %2814 = vmatpush2.xpose.msra.mxu0 0.0
        %2815 = vmatprep.subr.mxu0 0.0
        %2816 = vmatpush2.xpose.msra.mxu0 0.0
        %2817 = vmatprep.subr.mxu0 0.0
        %2818 = vmatpush2.xpose.msra.mxu0 0.0
        %2819 = vmatprep.subr.mxu0 0.0
        %2820 = vmatpush2.xpose.msra.mxu0 0.0
        %2821 = vmatprep.subr.mxu0 0.0
        %2822 = vmatpush2.xpose.msra.mxu0 0.0
        %2823 = vmatprep.subr.mxu0 0.0
        %2824 = vmatpush2.xpose.msra.mxu0 0.0
        %2825 = vmatprep.subr.mxu0 0.0
        %2826 = vmatpush2.xpose.msra.mxu0 0.0
        %2827 = vmatprep.subr.mxu0 0.0
        %2828 = vmatpush2.xpose.msra.mxu0 0.0
        %2829 = vmatprep.subr.mxu0 0.0
        %2830 = vmatpush2.xpose.msra.mxu0 0.0
        %2831 = vmatprep.subr.mxu0 0.0
        %2832 = vmatpush2.xpose.msra.mxu0 0.0
        %2833 = vmatprep.mubr.f32.mxu0 0.0
        %2834 = vmatmul.mubr.f32.gmra.mxu0 %v2758
        %v2835 = vpop.f32.mrf.mxu0
        %v2836 = vadd.f32 0.0, %v2835
        %v2837 = vpop.f32.mrf.mxu0
        %2838 = vmatprep.mubr.f32.mxu0 0.0
        %2839 = vmatmul.mubr.f32.gmra.mxu0 %v2761
        %v2840 = vpop.f32.mrf.mxu0
        %v2841 = vadd.f32 0.0, %v2840
        %v2842 = vpop.f32.mrf.mxu0
        %2843 = vdwg.mxu0
        %v2845 = vsel %vm1115, %v2371, 0
        %v2848 = vsel %vm1115, %v2372, 0
        %v2851 = vsel %vm1115, %v2387, 0
        %v2854 = vsel %vm1115, %v2388, 0
        %2856 = vmatprep.subr.mxu0 0.0
        %2857 = vmatpush1.xpose.msra.mxu0 0.0
        %2858 = vmatprep.subr.mxu0 0.0
        %2859 = vmatpush1.xpose.msra.mxu0 0.0
        %2860 = vmatprep.subr.mxu0 0.0
        %2861 = vmatpush1.xpose.msra.mxu0 0.0
        %2862 = vmatprep.subr.mxu0 0.0
        %2863 = vmatpush1.xpose.msra.mxu0 0.0
        %2864 = vmatprep.subr.mxu0 0.0
        %2865 = vmatpush1.xpose.msra.mxu0 0.0
        %2866 = vmatprep.subr.mxu0 0.0
        %2867 = vmatpush1.xpose.msra.mxu0 0.0
        %2868 = vmatprep.subr.mxu0 0.0
        %2869 = vmatpush1.xpose.msra.mxu0 0.0
        %2870 = vmatprep.subr.mxu0 0.0
        %2871 = vmatpush1.xpose.msra.mxu0 0.0
        %2872 = vmatprep.subr.mxu0 0.0
        %2873 = vmatpush1.xpose.msra.mxu0 0.0
        %2874 = vmatprep.subr.mxu0 0.0
        %2875 = vmatpush1.xpose.msra.mxu0 0.0
        %2876 = vmatprep.subr.mxu0 0.0
        %2877 = vmatpush1.xpose.msra.mxu0 0.0
        %2878 = vmatprep.subr.mxu0 0.0
        %2879 = vmatpush1.xpose.msra.mxu0 0.0
        %2880 = vmatprep.subr.mxu0 0.0
        %2881 = vmatpush1.xpose.msra.mxu0 0.0
        %2882 = vmatprep.subr.mxu0 0.0
        %2883 = vmatpush1.xpose.msra.mxu0 0.0
        %2884 = vmatprep.subr.mxu0 0.0
        %2885 = vmatpush1.xpose.msra.mxu0 %v2854
        %2886 = vmatprep.subr.mxu0 0.0
        %2887 = vmatpush1.xpose.msra.mxu0 %v2851
        %2888 = vmatprep.subr.mxu0 0.0
        %2889 = vmatpush2.xpose.msra.mxu0 0.0
        %2890 = vmatprep.subr.mxu0 0.0
        %2891 = vmatpush2.xpose.msra.mxu0 0.0
        %2892 = vmatprep.subr.mxu0 0.0
        %2893 = vmatpush2.xpose.msra.mxu0 0.0
        %2894 = vmatprep.subr.mxu0 0.0
        %2895 = vmatpush2.xpose.msra.mxu0 0.0
        %2896 = vmatprep.subr.mxu0 0.0
        %2897 = vmatpush2.xpose.msra.mxu0 0.0
        %2898 = vmatprep.subr.mxu0 0.0
        %2899 = vmatpush2.xpose.msra.mxu0 0.0
        %2900 = vmatprep.subr.mxu0 0.0
        %2901 = vmatpush2.xpose.msra.mxu0 0.0
        %2902 = vmatprep.subr.mxu0 0.0
        %2903 = vmatpush2.xpose.msra.mxu0 0.0
        %2904 = vmatprep.subr.mxu0 0.0
        %2905 = vmatpush2.xpose.msra.mxu0 0.0
        %2906 = vmatprep.subr.mxu0 0.0
        %2907 = vmatpush2.xpose.msra.mxu0 0.0
        %2908 = vmatprep.subr.mxu0 0.0
        %2909 = vmatpush2.xpose.msra.mxu0 0.0
        %2910 = vmatprep.subr.mxu0 0.0
        %2911 = vmatpush2.xpose.msra.mxu0 0.0
        %2912 = vmatprep.subr.mxu0 0.0
        %2913 = vmatpush2.xpose.msra.mxu0 0.0
        %2914 = vmatprep.subr.mxu0 0.0
        %2915 = vmatpush2.xpose.msra.mxu0 0.0
        %2916 = vmatprep.subr.mxu0 0.0
        %2917 = vmatpush2.xpose.msra.mxu0 0.0
        %2918 = vmatprep.subr.mxu0 0.0
        %2919 = vmatpush2.xpose.msra.mxu0 0.0
        %2920 = vmatprep.mubr.f32.mxu0 0.0
        %2921 = vmatmul.mubr.f32.gmra.mxu0 %v2845
        %v2922 = vpop.f32.mrf.mxu0
        %v2923 = vadd.f32 0.0, %v2922
        %v2924 = vpop.f32.mrf.mxu0
        %2925 = vmatprep.mubr.f32.mxu0 0.0
        %2926 = vmatmul.mubr.f32.gmra.mxu0 %v2848
        %v2927 = vpop.f32.mrf.mxu0
        %v2928 = vadd.f32 0.0, %v2927
        %v2929 = vpop.f32.mrf.mxu0
        %2930 = vdwg.mxu0
        %v2932 = vsel %vm1115, %v2373, 0
        %v2935 = vsel %vm1115, %v2374, 0
        %v2938 = vsel %vm1115, %v2389, 0
        %v2941 = vsel %vm1115, %v2390, 0
        %2943 = vmatprep.subr.mxu0 0.0
        %2944 = vmatpush1.xpose.msra.mxu0 0.0
        %2945 = vmatprep.subr.mxu0 0.0
        %2946 = vmatpush1.xpose.msra.mxu0 0.0
        %2947 = vmatprep.subr.mxu0 0.0
        %2948 = vmatpush1.xpose.msra.mxu0 0.0
        %2949 = vmatprep.subr.mxu0 0.0
        %2950 = vmatpush1.xpose.msra.mxu0 0.0
        %2951 = vmatprep.subr.mxu0 0.0
        %2952 = vmatpush1.xpose.msra.mxu0 0.0
        %2953 = vmatprep.subr.mxu0 0.0
        %2954 = vmatpush1.xpose.msra.mxu0 0.0
        %2955 = vmatprep.subr.mxu0 0.0
        %2956 = vmatpush1.xpose.msra.mxu0 0.0
        %2957 = vmatprep.subr.mxu0 0.0
        %2958 = vmatpush1.xpose.msra.mxu0 0.0
        %2959 = vmatprep.subr.mxu0 0.0
        %2960 = vmatpush1.xpose.msra.mxu0 0.0
        %2961 = vmatprep.subr.mxu0 0.0
        %2962 = vmatpush1.xpose.msra.mxu0 0.0
        %2963 = vmatprep.subr.mxu0 0.0
        %2964 = vmatpush1.xpose.msra.mxu0 0.0
        %2965 = vmatprep.subr.mxu0 0.0
        %2966 = vmatpush1.xpose.msra.mxu0 0.0
        %2967 = vmatprep.subr.mxu0 0.0
        %2968 = vmatpush1.xpose.msra.mxu0 0.0
        %2969 = vmatprep.subr.mxu0 0.0
        %2970 = vmatpush1.xpose.msra.mxu0 0.0
        %2971 = vmatprep.subr.mxu0 0.0
        %2972 = vmatpush1.xpose.msra.mxu0 %v2941
        %2973 = vmatprep.subr.mxu0 0.0
        %2974 = vmatpush1.xpose.msra.mxu0 %v2938
        %2975 = vmatprep.subr.mxu0 0.0
        %2976 = vmatpush2.xpose.msra.mxu0 0.0
        %2977 = vmatprep.subr.mxu0 0.0
        %2978 = vmatpush2.xpose.msra.mxu0 0.0
        %2979 = vmatprep.subr.mxu0 0.0
        %2980 = vmatpush2.xpose.msra.mxu0 0.0
        %2981 = vmatprep.subr.mxu0 0.0
        %2982 = vmatpush2.xpose.msra.mxu0 0.0
        %2983 = vmatprep.subr.mxu0 0.0
        %2984 = vmatpush2.xpose.msra.mxu0 0.0
        %2985 = vmatprep.subr.mxu0 0.0
        %2986 = vmatpush2.xpose.msra.mxu0 0.0
        %2987 = vmatprep.subr.mxu0 0.0
        %2988 = vmatpush2.xpose.msra.mxu0 0.0
        %2989 = vmatprep.subr.mxu0 0.0
        %2990 = vmatpush2.xpose.msra.mxu0 0.0
        %2991 = vmatprep.subr.mxu0 0.0
        %2992 = vmatpush2.xpose.msra.mxu0 0.0
        %2993 = vmatprep.subr.mxu0 0.0
        %2994 = vmatpush2.xpose.msra.mxu0 0.0
        %2995 = vmatprep.subr.mxu0 0.0
        %2996 = vmatpush2.xpose.msra.mxu0 0.0
        %2997 = vmatprep.subr.mxu0 0.0
        %2998 = vmatpush2.xpose.msra.mxu0 0.0
        %2999 = vmatprep.subr.mxu0 0.0
        %3000 = vmatpush2.xpose.msra.mxu0 0.0
        %3001 = vmatprep.subr.mxu0 0.0
        %3002 = vmatpush2.xpose.msra.mxu0 0.0
        %3003 = vmatprep.subr.mxu0 0.0
        %3004 = vmatpush2.xpose.msra.mxu0 0.0
        %3005 = vmatprep.subr.mxu0 0.0
        %3006 = vmatpush2.xpose.msra.mxu0 0.0
        %3007 = vmatprep.mubr.f32.mxu0 0.0
        %3008 = vmatmul.mubr.f32.gmra.mxu0 %v2932
        %v3009 = vpop.f32.mrf.mxu0
        %v3010 = vadd.f32 0.0, %v3009
        %v3011 = vpop.f32.mrf.mxu0
        %3012 = vmatprep.mubr.f32.mxu0 0.0
        %3013 = vmatmul.mubr.f32.gmra.mxu0 %v2935
        %v3014 = vpop.f32.mrf.mxu0
        %v3015 = vadd.f32 0.0, %v3014
        %v3016 = vpop.f32.mrf.mxu0
        %3017 = vdwg.mxu0
        %v3019 = vsel %vm1115, %v2375, 0
        %v3022 = vsel %vm1115, %v2376, 0
        %v3025 = vsel %vm1115, %v2391, 0
        %v3028 = vsel %vm1115, %v2392, 0
        %3030 = vmatprep.subr.mxu0 0.0
        %3031 = vmatpush1.xpose.msra.mxu0 0.0
        %3032 = vmatprep.subr.mxu0 0.0
        %3033 = vmatpush1.xpose.msra.mxu0 0.0
        %3034 = vmatprep.subr.mxu0 0.0
        %3035 = vmatpush1.xpose.msra.mxu0 0.0
        %3036 = vmatprep.subr.mxu0 0.0
        %3037 = vmatpush1.xpose.msra.mxu0 0.0
        %3038 = vmatprep.subr.mxu0 0.0
        %3039 = vmatpush1.xpose.msra.mxu0 0.0
        %3040 = vmatprep.subr.mxu0 0.0
        %3041 = vmatpush1.xpose.msra.mxu0 0.0
        %3042 = vmatprep.subr.mxu0 0.0
        %3043 = vmatpush1.xpose.msra.mxu0 0.0
        %3044 = vmatprep.subr.mxu0 0.0
        %3045 = vmatpush1.xpose.msra.mxu0 0.0
        %3046 = vmatprep.subr.mxu0 0.0
        %3047 = vmatpush1.xpose.msra.mxu0 0.0
        %3048 = vmatprep.subr.mxu0 0.0
        %3049 = vmatpush1.xpose.msra.mxu0 0.0
        %3050 = vmatprep.subr.mxu0 0.0
        %3051 = vmatpush1.xpose.msra.mxu0 0.0
        %3052 = vmatprep.subr.mxu0 0.0
        %3053 = vmatpush1.xpose.msra.mxu0 0.0
        %3054 = vmatprep.subr.mxu0 0.0
        %3055 = vmatpush1.xpose.msra.mxu0 0.0
        %3056 = vmatprep.subr.mxu0 0.0
        %3057 = vmatpush1.xpose.msra.mxu0 0.0
        %3058 = vmatprep.subr.mxu0 0.0
        %3059 = vmatpush1.xpose.msra.mxu0 %v3028
        %3060 = vmatprep.subr.mxu0 0.0
        %3061 = vmatpush1.xpose.msra.mxu0 %v3025
        %3062 = vmatprep.subr.mxu0 0.0
        %3063 = vmatpush2.xpose.msra.mxu0 0.0
        %3064 = vmatprep.subr.mxu0 0.0
        %3065 = vmatpush2.xpose.msra.mxu0 0.0
        %3066 = vmatprep.subr.mxu0 0.0
        %3067 = vmatpush2.xpose.msra.mxu0 0.0
        %3068 = vmatprep.subr.mxu0 0.0
        %3069 = vmatpush2.xpose.msra.mxu0 0.0
        %3070 = vmatprep.subr.mxu0 0.0
        %3071 = vmatpush2.xpose.msra.mxu0 0.0
        %3072 = vmatprep.subr.mxu0 0.0
        %3073 = vmatpush2.xpose.msra.mxu0 0.0
        %3074 = vmatprep.subr.mxu0 0.0
        %3075 = vmatpush2.xpose.msra.mxu0 0.0
        %3076 = vmatprep.subr.mxu0 0.0
        %3077 = vmatpush2.xpose.msra.mxu0 0.0
        %3078 = vmatprep.subr.mxu0 0.0
        %3079 = vmatpush2.xpose.msra.mxu0 0.0
        %3080 = vmatprep.subr.mxu0 0.0
        %3081 = vmatpush2.xpose.msra.mxu0 0.0
        %3082 = vmatprep.subr.mxu0 0.0
        %3083 = vmatpush2.xpose.msra.mxu0 0.0
        %3084 = vmatprep.subr.mxu0 0.0
        %3085 = vmatpush2.xpose.msra.mxu0 0.0
        %3086 = vmatprep.subr.mxu0 0.0
        %3087 = vmatpush2.xpose.msra.mxu0 0.0
        %3088 = vmatprep.subr.mxu0 0.0
        %3089 = vmatpush2.xpose.msra.mxu0 0.0
        %3090 = vmatprep.subr.mxu0 0.0
        %3091 = vmatpush2.xpose.msra.mxu0 0.0
        %3092 = vmatprep.subr.mxu0 0.0
        %3093 = vmatpush2.xpose.msra.mxu0 0.0
        %3094 = vmatprep.mubr.f32.mxu0 0.0
        %3095 = vmatmul.mubr.f32.gmra.mxu0 %v3019
        %v3096 = vpop.f32.mrf.mxu0
        %v3097 = vadd.f32 0.0, %v3096
        %v3098 = vpop.f32.mrf.mxu0
        %3099 = vmatprep.mubr.f32.mxu0 0.0
        %3100 = vmatmul.mubr.f32.gmra.mxu0 %v3022
        %v3101 = vpop.f32.mrf.mxu0
        %v3102 = vadd.f32 0.0, %v3101
        %v3103 = vpop.f32.mrf.mxu0
        %3104 = vdwg.mxu0
        %s3105 = smul.u32 %s28, 16
        %v3106 = vlaneseq
        %v3107 = vand.u32 %v3106, 127
        %v3108 = vstv %s3105
        %v3109 = vadd.s32 %v3108, %v3107
        %vm3110 = vcmp.lt.s32.totalorder %v3109, 9
        %v3111 = vsel %vm3110, 1, 0
        %vm3112 = vcmp.eq.s32.totalorder %v3111, 1
        %v3113 = vsel %vm3112, %v2488, -1e+30
        %v3114 = vsel %vm3112, %v2493, -1e+30
        %v3115 = vsel %vm3112, %v2575, -1e+30
        %v3116 = vsel %vm3112, %v2580, -1e+30
        %v3117 = vsel %vm3112, %v2662, -1e+30
        %v3118 = vsel %vm3112, %v2667, -1e+30
        %v3119 = vsel %vm3112, %v2749, -1e+30
        %v3120 = vsel %vm3112, %v2754, -1e+30
        %v3121 = vsel %vm3112, %v2836, -1e+30
        %v3122 = vsel %vm3112, %v2841, -1e+30
        %v3123 = vsel %vm3112, %v2923, -1e+30
        %v3124 = vsel %vm3112, %v2928, -1e+30
        %v3125 = vsel %vm3112, %v3010, -1e+30
        %v3126 = vsel %vm3112, %v3015, -1e+30
        %v3127 = vsel %vm3112, %v3097, -1e+30
        %v3128 = vsel %vm3112, %v3102, -1e+30
        %vm3129 = vcmask 130048
        %v3130 = vsel %vm3129, %v3113, -inf
        %3131 = vmax.xlane.f32.xlu0 %v3130
        %v3132 = vpop.xlane.xlu0 %3131
        %v3133 = vsel %vm3129, %v3114, -inf
        %3134 = vmax.xlane.f32.xlu0 %v3133
        %v3135 = vpop.xlane.xlu0 %3134
        %v3136 = vsel %vm3129, %v3115, -inf
        %3137 = vmax.xlane.f32.xlu0 %v3136
        %v3138 = vpop.xlane.xlu0 %3137
        %v3139 = vsel %vm3129, %v3116, -inf
        %3140 = vmax.xlane.f32.xlu0 %v3139
        %v3141 = vpop.xlane.xlu0 %3140
        %v3142 = vsel %vm3129, %v3117, -inf
        %3143 = vmax.xlane.f32.xlu0 %v3142
        %v3144 = vpop.xlane.xlu0 %3143
        %v3145 = vsel %vm3129, %v3118, -inf
        %3146 = vmax.xlane.f32.xlu0 %v3145
        %v3147 = vpop.xlane.xlu0 %3146
        %v3148 = vsel %vm3129, %v3119, -inf
        %3149 = vmax.xlane.f32.xlu0 %v3148
        %v3150 = vpop.xlane.xlu0 %3149
        %v3151 = vsel %vm3129, %v3120, -inf
        %3152 = vmax.xlane.f32.xlu0 %v3151
        %v3153 = vpop.xlane.xlu0 %3152
        %v3154 = vsel %vm3129, %v3121, -inf
        %3155 = vmax.xlane.f32.xlu0 %v3154
        %v3156 = vpop.xlane.xlu0 %3155
        %v3157 = vsel %vm3129, %v3122, -inf
        %3158 = vmax.xlane.f32.xlu0 %v3157
        %v3159 = vpop.xlane.xlu0 %3158
        %v3160 = vsel %vm3129, %v3123, -inf
        %3161 = vmax.xlane.f32.xlu0 %v3160
        %v3162 = vpop.xlane.xlu0 %3161
        %v3163 = vsel %vm3129, %v3124, -inf
        %3164 = vmax.xlane.f32.xlu0 %v3163
        %v3165 = vpop.xlane.xlu0 %3164
        %v3166 = vsel %vm3129, %v3125, -inf
        %3167 = vmax.xlane.f32.xlu0 %v3166
        %v3168 = vpop.xlane.xlu0 %3167
        %v3169 = vsel %vm3129, %v3126, -inf
        %3170 = vmax.xlane.f32.xlu0 %v3169
        %v3171 = vpop.xlane.xlu0 %3170
        %v3172 = vsel %vm3129, %v3127, -inf
        %3173 = vmax.xlane.f32.xlu0 %v3172
        %v3174 = vpop.xlane.xlu0 %3173
        %v3175 = vsel %vm3129, %v3128, -inf
        %3176 = vmax.xlane.f32.xlu0 %v3175
        %v3177 = vpop.xlane.xlu0 %3176
        %v3178 = vsub.f32 %v3113, %v3132
        %v3179 = vsub.f32 %v3114, %v3135
        %v3180 = vsub.f32 %v3115, %v3138
        %v3181 = vsub.f32 %v3116, %v3141
        %v3182 = vsub.f32 %v3117, %v3144
        %v3183 = vsub.f32 %v3118, %v3147
        %v3184 = vsub.f32 %v3119, %v3150
        %v3185 = vsub.f32 %v3120, %v3153
        %v3186 = vsub.f32 %v3121, %v3156
        %v3187 = vsub.f32 %v3122, %v3159
        %v3188 = vsub.f32 %v3123, %v3162
        %v3189 = vsub.f32 %v3124, %v3165
        %v3190 = vsub.f32 %v3125, %v3168
        %v3191 = vsub.f32 %v3126, %v3171
        %v3192 = vsub.f32 %v3127, %v3174
        %v3193 = vsub.f32 %v3128, %v3177
        %v3194 = vmul.f32 %v3178, 1.442695
        %v3195 = vpow.pop %v3194
        %v3196 = vmul.f32 %v3179, 1.442695
        %v3197 = vpow.pop %v3196
        %v3198 = vmul.f32 %v3180, 1.442695
        %v3199 = vpow.pop %v3198
        %v3200 = vmul.f32 %v3181, 1.442695
        %v3201 = vpow.pop %v3200
        %v3202 = vmul.f32 %v3182, 1.442695
        %v3203 = vpow.pop %v3202
        %v3204 = vmul.f32 %v3183, 1.442695
        %v3205 = vpow.pop %v3204
        %v3206 = vmul.f32 %v3184, 1.442695
        %v3207 = vpow.pop %v3206
        %v3208 = vmul.f32 %v3185, 1.442695
        %v3209 = vpow.pop %v3208
        %v3210 = vmul.f32 %v3186, 1.442695
        %v3211 = vpow.pop %v3210
        %v3212 = vmul.f32 %v3187, 1.442695
        %v3213 = vpow.pop %v3212
        %v3214 = vmul.f32 %v3188, 1.442695
        %v3215 = vpow.pop %v3214
        %v3216 = vmul.f32 %v3189, 1.442695
        %v3217 = vpow.pop %v3216
        %v3218 = vmul.f32 %v3190, 1.442695
        %v3219 = vpow.pop %v3218
        %v3220 = vmul.f32 %v3191, 1.442695
        %v3221 = vpow.pop %v3220
        %v3222 = vmul.f32 %v3192, 1.442695
        %v3223 = vpow.pop %v3222
        %v3224 = vmul.f32 %v3193, 1.442695
        %v3225 = vpow.pop %v3224
        %v3226 = vsel %vm3129, %v3195, 0.0
        %3227 = vadd.xlane.f32.xlu0 %v3226
        %v3228 = vpop.xlane.xlu0 %3227
        %v3229 = vsel %vm3129, %v3197, 0.0
        %3230 = vadd.xlane.f32.xlu0 %v3229
        %v3231 = vpop.xlane.xlu0 %3230
        %v3232 = vsel %vm3129, %v3199, 0.0
        %3233 = vadd.xlane.f32.xlu0 %v3232
        %v3234 = vpop.xlane.xlu0 %3233
        %v3235 = vsel %vm3129, %v3201, 0.0
        %3236 = vadd.xlane.f32.xlu0 %v3235
        %v3237 = vpop.xlane.xlu0 %3236
        %v3238 = vsel %vm3129, %v3203, 0.0
        %3239 = vadd.xlane.f32.xlu0 %v3238
        %v3240 = vpop.xlane.xlu0 %3239
        %v3241 = vsel %vm3129, %v3205, 0.0
        %3242 = vadd.xlane.f32.xlu0 %v3241
        %v3243 = vpop.xlane.xlu0 %3242
        %v3244 = vsel %vm3129, %v3207, 0.0
        %3245 = vadd.xlane.f32.xlu0 %v3244
        %v3246 = vpop.xlane.xlu0 %3245
        %v3247 = vsel %vm3129, %v3209, 0.0
        %3248 = vadd.xlane.f32.xlu0 %v3247
        %v3249 = vpop.xlane.xlu0 %3248
        %v3250 = vsel %vm3129, %v3211, 0.0
        %3251 = vadd.xlane.f32.xlu0 %v3250
        %v3252 = vpop.xlane.xlu0 %3251
        %v3253 = vsel %vm3129, %v3213, 0.0
        %3254 = vadd.xlane.f32.xlu0 %v3253
        %v3255 = vpop.xlane.xlu0 %3254
        %v3256 = vsel %vm3129, %v3215, 0.0
        %3257 = vadd.xlane.f32.xlu0 %v3256
        %v3258 = vpop.xlane.xlu0 %3257
        %v3259 = vsel %vm3129, %v3217, 0.0
        %3260 = vadd.xlane.f32.xlu0 %v3259
        %v3261 = vpop.xlane.xlu0 %3260
        %v3262 = vsel %vm3129, %v3219, 0.0
        %3263 = vadd.xlane.f32.xlu0 %v3262
        %v3264 = vpop.xlane.xlu0 %3263
        %v3265 = vsel %vm3129, %v3221, 0.0
        %3266 = vadd.xlane.f32.xlu0 %v3265
        %v3267 = vpop.xlane.xlu0 %3266
        %v3268 = vsel %vm3129, %v3223, 0.0
        %3269 = vadd.xlane.f32.xlu0 %v3268
        %v3270 = vpop.xlane.xlu0 %3269
        %v3271 = vsel %vm3129, %v3225, 0.0
        %3272 = vadd.xlane.f32.xlu0 %v3271
        %v3273 = vpop.xlane.xlu0 %3272
        %v3275 = vsel %vm3129, %v3195, 0
        %v3278 = vsel %vm3129, %v3197, 0
        %3280 = vmatprep.subr.mxu0 0.0
        %3281 = vmatpush1.msra.mxu0 0.0
        %3282 = vmatprep.subr.mxu0 0.0
        %3283 = vmatpush1.msra.mxu0 0.0
        %3284 = vmatprep.subr.mxu0 0.0
        %3285 = vmatpush1.msra.mxu0 0.0
        %3286 = vmatprep.subr.mxu0 0.0
        %3287 = vmatpush1.msra.mxu0 0.0
        %3288 = vmatprep.subr.mxu0 0.0
        %3289 = vmatpush1.msra.mxu0 0.0
        %3290 = vmatprep.subr.mxu0 0.0
        %3291 = vmatpush1.msra.mxu0 0.0
        %3292 = vmatprep.subr.mxu0 0.0
        %3293 = vmatpush1.msra.mxu0 0.0
        %3294 = vmatprep.subr.mxu0 0.0
        %3295 = vmatpush1.msra.mxu0 0.0
        %3296 = vmatprep.subr.mxu0 0.0
        %3297 = vmatpush1.msra.mxu0 0.0
        %3298 = vmatprep.subr.mxu0 0.0
        %3299 = vmatpush1.msra.mxu0 0.0
        %3300 = vmatprep.subr.mxu0 0.0
        %3301 = vmatpush1.msra.mxu0 0.0
        %3302 = vmatprep.subr.mxu0 0.0
        %3303 = vmatpush1.msra.mxu0 0.0
        %3304 = vmatprep.subr.mxu0 0.0
        %3305 = vmatpush1.msra.mxu0 0.0
        %3306 = vmatprep.subr.mxu0 0.0
        %3307 = vmatpush1.msra.mxu0 0.0
        %3308 = vmatprep.subr.mxu0 0.0
        %3309 = vmatpush1.msra.mxu0 %v2394
        %3310 = vmatprep.subr.mxu0 0.0
        %3311 = vmatpush1.msra.mxu0 %v2393
        %3312 = vmatprep.subr.mxu0 0.0
        %3313 = vmatpush2.msra.mxu0 0.0
        %3314 = vmatprep.subr.mxu0 0.0
        %3315 = vmatpush2.msra.mxu0 0.0
        %3316 = vmatprep.subr.mxu0 0.0
        %3317 = vmatpush2.msra.mxu0 0.0
        %3318 = vmatprep.subr.mxu0 0.0
        %3319 = vmatpush2.msra.mxu0 0.0
        %3320 = vmatprep.subr.mxu0 0.0
        %3321 = vmatpush2.msra.mxu0 0.0
        %3322 = vmatprep.subr.mxu0 0.0
        %3323 = vmatpush2.msra.mxu0 0.0
        %3324 = vmatprep.subr.mxu0 0.0
        %3325 = vmatpush2.msra.mxu0 0.0
        %3326 = vmatprep.subr.mxu0 0.0
        %3327 = vmatpush2.msra.mxu0 0.0
        %3328 = vmatprep.subr.mxu0 0.0
        %3329 = vmatpush2.msra.mxu0 0.0
        %3330 = vmatprep.subr.mxu0 0.0
        %3331 = vmatpush2.msra.mxu0 0.0
        %3332 = vmatprep.subr.mxu0 0.0
        %3333 = vmatpush2.msra.mxu0 0.0
        %3334 = vmatprep.subr.mxu0 0.0
        %3335 = vmatpush2.msra.mxu0 0.0
        %3336 = vmatprep.subr.mxu0 0.0
        %3337 = vmatpush2.msra.mxu0 0.0
        %3338 = vmatprep.subr.mxu0 0.0
        %3339 = vmatpush2.msra.mxu0 0.0
        %3340 = vmatprep.subr.mxu0 0.0
        %3341 = vmatpush2.msra.mxu0 0.0
        %3342 = vmatprep.subr.mxu0 0.0
        %3343 = vmatpush2.msra.mxu0 0.0
        %3344 = vmatprep.mubr.f32.mxu0 0.0
        %3345 = vmatmul.mubr.f32.gmra.mxu0 %v3275
        %v3346 = vpop.f32.mrf.mxu0
        %v3347 = vadd.f32 0.0, %v3346
        %v3348 = vpop.f32.mrf.mxu0
        %3349 = vmatprep.mubr.f32.mxu0 0.0
        %3350 = vmatmul.mubr.f32.gmra.mxu0 %v3278
        %v3351 = vpop.f32.mrf.mxu0
        %v3352 = vadd.f32 0.0, %v3351
        %v3353 = vpop.f32.mrf.mxu0
        %3354 = vdwg.mxu0
        %v3356 = vsel %vm3129, %v3199, 0
        %v3359 = vsel %vm3129, %v3201, 0
        %3361 = vmatprep.subr.mxu0 0.0
        %3362 = vmatpush1.msra.mxu0 0.0
        %3363 = vmatprep.subr.mxu0 0.0
        %3364 = vmatpush1.msra.mxu0 0.0
        %3365 = vmatprep.subr.mxu0 0.0
        %3366 = vmatpush1.msra.mxu0 0.0
        %3367 = vmatprep.subr.mxu0 0.0
        %3368 = vmatpush1.msra.mxu0 0.0
        %3369 = vmatprep.subr.mxu0 0.0
        %3370 = vmatpush1.msra.mxu0 0.0
        %3371 = vmatprep.subr.mxu0 0.0
        %3372 = vmatpush1.msra.mxu0 0.0
        %3373 = vmatprep.subr.mxu0 0.0
        %3374 = vmatpush1.msra.mxu0 0.0
        %3375 = vmatprep.subr.mxu0 0.0
        %3376 = vmatpush1.msra.mxu0 0.0
        %3377 = vmatprep.subr.mxu0 0.0
        %3378 = vmatpush1.msra.mxu0 0.0
        %3379 = vmatprep.subr.mxu0 0.0
        %3380 = vmatpush1.msra.mxu0 0.0
        %3381 = vmatprep.subr.mxu0 0.0
        %3382 = vmatpush1.msra.mxu0 0.0
        %3383 = vmatprep.subr.mxu0 0.0
        %3384 = vmatpush1.msra.mxu0 0.0
        %3385 = vmatprep.subr.mxu0 0.0
        %3386 = vmatpush1.msra.mxu0 0.0
        %3387 = vmatprep.subr.mxu0 0.0
        %3388 = vmatpush1.msra.mxu0 0.0
        %3389 = vmatprep.subr.mxu0 0.0
        %3390 = vmatpush1.msra.mxu0 %v2396
        %3391 = vmatprep.subr.mxu0 0.0
        %3392 = vmatpush1.msra.mxu0 %v2395
        %3393 = vmatprep.subr.mxu0 0.0
        %3394 = vmatpush2.msra.mxu0 0.0
        %3395 = vmatprep.subr.mxu0 0.0
        %3396 = vmatpush2.msra.mxu0 0.0
        %3397 = vmatprep.subr.mxu0 0.0
        %3398 = vmatpush2.msra.mxu0 0.0
        %3399 = vmatprep.subr.mxu0 0.0
        %3400 = vmatpush2.msra.mxu0 0.0
        %3401 = vmatprep.subr.mxu0 0.0
        %3402 = vmatpush2.msra.mxu0 0.0
        %3403 = vmatprep.subr.mxu0 0.0
        %3404 = vmatpush2.msra.mxu0 0.0
        %3405 = vmatprep.subr.mxu0 0.0
        %3406 = vmatpush2.msra.mxu0 0.0
        %3407 = vmatprep.subr.mxu0 0.0
        %3408 = vmatpush2.msra.mxu0 0.0
        %3409 = vmatprep.subr.mxu0 0.0
        %3410 = vmatpush2.msra.mxu0 0.0
        %3411 = vmatprep.subr.mxu0 0.0
        %3412 = vmatpush2.msra.mxu0 0.0
        %3413 = vmatprep.subr.mxu0 0.0
        %3414 = vmatpush2.msra.mxu0 0.0
        %3415 = vmatprep.subr.mxu0 0.0
        %3416 = vmatpush2.msra.mxu0 0.0
        %3417 = vmatprep.subr.mxu0 0.0
        %3418 = vmatpush2.msra.mxu0 0.0
        %3419 = vmatprep.subr.mxu0 0.0
        %3420 = vmatpush2.msra.mxu0 0.0
        %3421 = vmatprep.subr.mxu0 0.0
        %3422 = vmatpush2.msra.mxu0 0.0
        %3423 = vmatprep.subr.mxu0 0.0
        %3424 = vmatpush2.msra.mxu0 0.0
        %3425 = vmatprep.mubr.f32.mxu0 0.0
        %3426 = vmatmul.mubr.f32.gmra.mxu0 %v3356
        %v3427 = vpop.f32.mrf.mxu0
        %v3428 = vadd.f32 0.0, %v3427
        %v3429 = vpop.f32.mrf.mxu0
        %3430 = vmatprep.mubr.f32.mxu0 0.0
        %3431 = vmatmul.mubr.f32.gmra.mxu0 %v3359
        %v3432 = vpop.f32.mrf.mxu0
        %v3433 = vadd.f32 0.0, %v3432
        %v3434 = vpop.f32.mrf.mxu0
        %3435 = vdwg.mxu0
        %v3437 = vsel %vm3129, %v3203, 0
        %v3440 = vsel %vm3129, %v3205, 0
        %3442 = vmatprep.subr.mxu0 0.0
        %3443 = vmatpush1.msra.mxu0 0.0
        %3444 = vmatprep.subr.mxu0 0.0
        %3445 = vmatpush1.msra.mxu0 0.0
        %3446 = vmatprep.subr.mxu0 0.0
        %3447 = vmatpush1.msra.mxu0 0.0
        %3448 = vmatprep.subr.mxu0 0.0
        %3449 = vmatpush1.msra.mxu0 0.0
        %3450 = vmatprep.subr.mxu0 0.0
        %3451 = vmatpush1.msra.mxu0 0.0
        %3452 = vmatprep.subr.mxu0 0.0
        %3453 = vmatpush1.msra.mxu0 0.0
        %3454 = vmatprep.subr.mxu0 0.0
        %3455 = vmatpush1.msra.mxu0 0.0
        %3456 = vmatprep.subr.mxu0 0.0
        %3457 = vmatpush1.msra.mxu0 0.0
        %3458 = vmatprep.subr.mxu0 0.0
        %3459 = vmatpush1.msra.mxu0 0.0
        %3460 = vmatprep.subr.mxu0 0.0
        %3461 = vmatpush1.msra.mxu0 0.0
        %3462 = vmatprep.subr.mxu0 0.0
        %3463 = vmatpush1.msra.mxu0 0.0
        %3464 = vmatprep.subr.mxu0 0.0
        %3465 = vmatpush1.msra.mxu0 0.0
        %3466 = vmatprep.subr.mxu0 0.0
        %3467 = vmatpush1.msra.mxu0 0.0
        %3468 = vmatprep.subr.mxu0 0.0
        %3469 = vmatpush1.msra.mxu0 0.0
        %3470 = vmatprep.subr.mxu0 0.0
        %3471 = vmatpush1.msra.mxu0 %v2398
        %3472 = vmatprep.subr.mxu0 0.0
        %3473 = vmatpush1.msra.mxu0 %v2397
        %3474 = vmatprep.subr.mxu0 0.0
        %3475 = vmatpush2.msra.mxu0 0.0
        %3476 = vmatprep.subr.mxu0 0.0
        %3477 = vmatpush2.msra.mxu0 0.0
        %3478 = vmatprep.subr.mxu0 0.0
        %3479 = vmatpush2.msra.mxu0 0.0
        %3480 = vmatprep.subr.mxu0 0.0
        %3481 = vmatpush2.msra.mxu0 0.0
        %3482 = vmatprep.subr.mxu0 0.0
        %3483 = vmatpush2.msra.mxu0 0.0
        %3484 = vmatprep.subr.mxu0 0.0
        %3485 = vmatpush2.msra.mxu0 0.0
        %3486 = vmatprep.subr.mxu0 0.0
        %3487 = vmatpush2.msra.mxu0 0.0
        %3488 = vmatprep.subr.mxu0 0.0
        %3489 = vmatpush2.msra.mxu0 0.0
        %3490 = vmatprep.subr.mxu0 0.0
        %3491 = vmatpush2.msra.mxu0 0.0
        %3492 = vmatprep.subr.mxu0 0.0
        %3493 = vmatpush2.msra.mxu0 0.0
        %3494 = vmatprep.subr.mxu0 0.0
        %3495 = vmatpush2.msra.mxu0 0.0
        %3496 = vmatprep.subr.mxu0 0.0
        %3497 = vmatpush2.msra.mxu0 0.0
        %3498 = vmatprep.subr.mxu0 0.0
        %3499 = vmatpush2.msra.mxu0 0.0
        %3500 = vmatprep.subr.mxu0 0.0
        %3501 = vmatpush2.msra.mxu0 0.0
        %3502 = vmatprep.subr.mxu0 0.0
        %3503 = vmatpush2.msra.mxu0 0.0
        %3504 = vmatprep.subr.mxu0 0.0
        %3505 = vmatpush2.msra.mxu0 0.0
        %3506 = vmatprep.mubr.f32.mxu0 0.0
        %3507 = vmatmul.mubr.f32.gmra.mxu0 %v3437
        %v3508 = vpop.f32.mrf.mxu0
        %v3509 = vadd.f32 0.0, %v3508
        %v3510 = vpop.f32.mrf.mxu0
        %3511 = vmatprep.mubr.f32.mxu0 0.0
        %3512 = vmatmul.mubr.f32.gmra.mxu0 %v3440
        %v3513 = vpop.f32.mrf.mxu0
        %v3514 = vadd.f32 0.0, %v3513
        %v3515 = vpop.f32.mrf.mxu0
        %3516 = vdwg.mxu0
        %v3518 = vsel %vm3129, %v3207, 0
        %v3521 = vsel %vm3129, %v3209, 0
        %3523 = vmatprep.subr.mxu0 0.0
        %3524 = vmatpush1.msra.mxu0 0.0
        %3525 = vmatprep.subr.mxu0 0.0
        %3526 = vmatpush1.msra.mxu0 0.0
        %3527 = vmatprep.subr.mxu0 0.0
        %3528 = vmatpush1.msra.mxu0 0.0
        %3529 = vmatprep.subr.mxu0 0.0
        %3530 = vmatpush1.msra.mxu0 0.0
        %3531 = vmatprep.subr.mxu0 0.0
        %3532 = vmatpush1.msra.mxu0 0.0
        %3533 = vmatprep.subr.mxu0 0.0
        %3534 = vmatpush1.msra.mxu0 0.0
        %3535 = vmatprep.subr.mxu0 0.0
        %3536 = vmatpush1.msra.mxu0 0.0
        %3537 = vmatprep.subr.mxu0 0.0
        %3538 = vmatpush1.msra.mxu0 0.0
        %3539 = vmatprep.subr.mxu0 0.0
        %3540 = vmatpush1.msra.mxu0 0.0
        %3541 = vmatprep.subr.mxu0 0.0
        %3542 = vmatpush1.msra.mxu0 0.0
        %3543 = vmatprep.subr.mxu0 0.0
        %3544 = vmatpush1.msra.mxu0 0.0
        %3545 = vmatprep.subr.mxu0 0.0
        %3546 = vmatpush1.msra.mxu0 0.0
        %3547 = vmatprep.subr.mxu0 0.0
        %3548 = vmatpush1.msra.mxu0 0.0
        %3549 = vmatprep.subr.mxu0 0.0
        %3550 = vmatpush1.msra.mxu0 0.0
        %3551 = vmatprep.subr.mxu0 0.0
        %3552 = vmatpush1.msra.mxu0 %v2400
        %3553 = vmatprep.subr.mxu0 0.0
        %3554 = vmatpush1.msra.mxu0 %v2399
        %3555 = vmatprep.subr.mxu0 0.0
        %3556 = vmatpush2.msra.mxu0 0.0
        %3557 = vmatprep.subr.mxu0 0.0
        %3558 = vmatpush2.msra.mxu0 0.0
        %3559 = vmatprep.subr.mxu0 0.0
        %3560 = vmatpush2.msra.mxu0 0.0
        %3561 = vmatprep.subr.mxu0 0.0
        %3562 = vmatpush2.msra.mxu0 0.0
        %3563 = vmatprep.subr.mxu0 0.0
        %3564 = vmatpush2.msra.mxu0 0.0
        %3565 = vmatprep.subr.mxu0 0.0
        %3566 = vmatpush2.msra.mxu0 0.0
        %3567 = vmatprep.subr.mxu0 0.0
        %3568 = vmatpush2.msra.mxu0 0.0
        %3569 = vmatprep.subr.mxu0 0.0
        %3570 = vmatpush2.msra.mxu0 0.0
        %3571 = vmatprep.subr.mxu0 0.0
        %3572 = vmatpush2.msra.mxu0 0.0
        %3573 = vmatprep.subr.mxu0 0.0
        %3574 = vmatpush2.msra.mxu0 0.0
        %3575 = vmatprep.subr.mxu0 0.0
        %3576 = vmatpush2.msra.mxu0 0.0
        %3577 = vmatprep.subr.mxu0 0.0
        %3578 = vmatpush2.msra.mxu0 0.0
        %3579 = vmatprep.subr.mxu0 0.0
        %3580 = vmatpush2.msra.mxu0 0.0
        %3581 = vmatprep.subr.mxu0 0.0
        %3582 = vmatpush2.msra.mxu0 0.0
        %3583 = vmatprep.subr.mxu0 0.0
        %3584 = vmatpush2.msra.mxu0 0.0
        %3585 = vmatprep.subr.mxu0 0.0
        %3586 = vmatpush2.msra.mxu0 0.0
        %3587 = vmatprep.mubr.f32.mxu0 0.0
        %3588 = vmatmul.mubr.f32.gmra.mxu0 %v3518
        %v3589 = vpop.f32.mrf.mxu0
        %v3590 = vadd.f32 0.0, %v3589
        %v3591 = vpop.f32.mrf.mxu0
        %3592 = vmatprep.mubr.f32.mxu0 0.0
        %3593 = vmatmul.mubr.f32.gmra.mxu0 %v3521
        %v3594 = vpop.f32.mrf.mxu0
        %v3595 = vadd.f32 0.0, %v3594
        %v3596 = vpop.f32.mrf.mxu0
        %3597 = vdwg.mxu0
        %v3599 = vsel %vm3129, %v3211, 0
        %v3602 = vsel %vm3129, %v3213, 0
        %3604 = vmatprep.subr.mxu0 0.0
        %3605 = vmatpush1.msra.mxu0 0.0
        %3606 = vmatprep.subr.mxu0 0.0
        %3607 = vmatpush1.msra.mxu0 0.0
        %3608 = vmatprep.subr.mxu0 0.0
        %3609 = vmatpush1.msra.mxu0 0.0
        %3610 = vmatprep.subr.mxu0 0.0
        %3611 = vmatpush1.msra.mxu0 0.0
        %3612 = vmatprep.subr.mxu0 0.0
        %3613 = vmatpush1.msra.mxu0 0.0
        %3614 = vmatprep.subr.mxu0 0.0
        %3615 = vmatpush1.msra.mxu0 0.0
        %3616 = vmatprep.subr.mxu0 0.0
        %3617 = vmatpush1.msra.mxu0 0.0
        %3618 = vmatprep.subr.mxu0 0.0
        %3619 = vmatpush1.msra.mxu0 0.0
        %3620 = vmatprep.subr.mxu0 0.0
        %3621 = vmatpush1.msra.mxu0 0.0
        %3622 = vmatprep.subr.mxu0 0.0
        %3623 = vmatpush1.msra.mxu0 0.0
        %3624 = vmatprep.subr.mxu0 0.0
        %3625 = vmatpush1.msra.mxu0 0.0
        %3626 = vmatprep.subr.mxu0 0.0
        %3627 = vmatpush1.msra.mxu0 0.0
        %3628 = vmatprep.subr.mxu0 0.0
        %3629 = vmatpush1.msra.mxu0 0.0
        %3630 = vmatprep.subr.mxu0 0.0
        %3631 = vmatpush1.msra.mxu0 0.0
        %3632 = vmatprep.subr.mxu0 0.0
        %3633 = vmatpush1.msra.mxu0 %v2402
        %3634 = vmatprep.subr.mxu0 0.0
        %3635 = vmatpush1.msra.mxu0 %v2401
        %3636 = vmatprep.subr.mxu0 0.0
        %3637 = vmatpush2.msra.mxu0 0.0
        %3638 = vmatprep.subr.mxu0 0.0
        %3639 = vmatpush2.msra.mxu0 0.0
        %3640 = vmatprep.subr.mxu0 0.0
        %3641 = vmatpush2.msra.mxu0 0.0
        %3642 = vmatprep.subr.mxu0 0.0
        %3643 = vmatpush2.msra.mxu0 0.0
        %3644 = vmatprep.subr.mxu0 0.0
        %3645 = vmatpush2.msra.mxu0 0.0
        %3646 = vmatprep.subr.mxu0 0.0
        %3647 = vmatpush2.msra.mxu0 0.0
        %3648 = vmatprep.subr.mxu0 0.0
        %3649 = vmatpush2.msra.mxu0 0.0
        %3650 = vmatprep.subr.mxu0 0.0
        %3651 = vmatpush2.msra.mxu0 0.0
        %3652 = vmatprep.subr.mxu0 0.0
        %3653 = vmatpush2.msra.mxu0 0.0
        %3654 = vmatprep.subr.mxu0 0.0
        %3655 = vmatpush2.msra.mxu0 0.0
        %3656 = vmatprep.subr.mxu0 0.0
        %3657 = vmatpush2.msra.mxu0 0.0
        %3658 = vmatprep.subr.mxu0 0.0
        %3659 = vmatpush2.msra.mxu0 0.0
        %3660 = vmatprep.subr.mxu0 0.0
        %3661 = vmatpush2.msra.mxu0 0.0
        %3662 = vmatprep.subr.mxu0 0.0
        %3663 = vmatpush2.msra.mxu0 0.0
        %3664 = vmatprep.subr.mxu0 0.0
        %3665 = vmatpush2.msra.mxu0 0.0
        %3666 = vmatprep.subr.mxu0 0.0
        %3667 = vmatpush2.msra.mxu0 0.0
        %3668 = vmatprep.mubr.f32.mxu0 0.0
        %3669 = vmatmul.mubr.f32.gmra.mxu0 %v3599
        %v3670 = vpop.f32.mrf.mxu0
        %v3671 = vadd.f32 0.0, %v3670
        %v3672 = vpop.f32.mrf.mxu0
        %3673 = vmatprep.mubr.f32.mxu0 0.0
        %3674 = vmatmul.mubr.f32.gmra.mxu0 %v3602
        %v3675 = vpop.f32.mrf.mxu0
        %v3676 = vadd.f32 0.0, %v3675
        %v3677 = vpop.f32.mrf.mxu0
        %3678 = vdwg.mxu0
        %v3680 = vsel %vm3129, %v3215, 0
        %v3683 = vsel %vm3129, %v3217, 0
        %3685 = vmatprep.subr.mxu0 0.0
        %3686 = vmatpush1.msra.mxu0 0.0
        %3687 = vmatprep.subr.mxu0 0.0
        %3688 = vmatpush1.msra.mxu0 0.0
        %3689 = vmatprep.subr.mxu0 0.0
        %3690 = vmatpush1.msra.mxu0 0.0
        %3691 = vmatprep.subr.mxu0 0.0
        %3692 = vmatpush1.msra.mxu0 0.0
        %3693 = vmatprep.subr.mxu0 0.0
        %3694 = vmatpush1.msra.mxu0 0.0
        %3695 = vmatprep.subr.mxu0 0.0
        %3696 = vmatpush1.msra.mxu0 0.0
        %3697 = vmatprep.subr.mxu0 0.0
        %3698 = vmatpush1.msra.mxu0 0.0
        %3699 = vmatprep.subr.mxu0 0.0
        %3700 = vmatpush1.msra.mxu0 0.0
        %3701 = vmatprep.subr.mxu0 0.0
        %3702 = vmatpush1.msra.mxu0 0.0
        %3703 = vmatprep.subr.mxu0 0.0
        %3704 = vmatpush1.msra.mxu0 0.0
        %3705 = vmatprep.subr.mxu0 0.0
        %3706 = vmatpush1.msra.mxu0 0.0
        %3707 = vmatprep.subr.mxu0 0.0
        %3708 = vmatpush1.msra.mxu0 0.0
        %3709 = vmatprep.subr.mxu0 0.0
        %3710 = vmatpush1.msra.mxu0 0.0
        %3711 = vmatprep.subr.mxu0 0.0
        %3712 = vmatpush1.msra.mxu0 0.0
        %3713 = vmatprep.subr.mxu0 0.0
        %3714 = vmatpush1.msra.mxu0 %v2404
        %3715 = vmatprep.subr.mxu0 0.0
        %3716 = vmatpush1.msra.mxu0 %v2403
        %3717 = vmatprep.subr.mxu0 0.0
        %3718 = vmatpush2.msra.mxu0 0.0
        %3719 = vmatprep.subr.mxu0 0.0
        %3720 = vmatpush2.msra.mxu0 0.0
        %3721 = vmatprep.subr.mxu0 0.0
        %3722 = vmatpush2.msra.mxu0 0.0
        %3723 = vmatprep.subr.mxu0 0.0
        %3724 = vmatpush2.msra.mxu0 0.0
        %3725 = vmatprep.subr.mxu0 0.0
        %3726 = vmatpush2.msra.mxu0 0.0
        %3727 = vmatprep.subr.mxu0 0.0
        %3728 = vmatpush2.msra.mxu0 0.0
        %3729 = vmatprep.subr.mxu0 0.0
        %3730 = vmatpush2.msra.mxu0 0.0
        %3731 = vmatprep.subr.mxu0 0.0
        %3732 = vmatpush2.msra.mxu0 0.0
        %3733 = vmatprep.subr.mxu0 0.0
        %3734 = vmatpush2.msra.mxu0 0.0
        %3735 = vmatprep.subr.mxu0 0.0
        %3736 = vmatpush2.msra.mxu0 0.0
        %3737 = vmatprep.subr.mxu0 0.0
        %3738 = vmatpush2.msra.mxu0 0.0
        %3739 = vmatprep.subr.mxu0 0.0
        %3740 = vmatpush2.msra.mxu0 0.0
        %3741 = vmatprep.subr.mxu0 0.0
        %3742 = vmatpush2.msra.mxu0 0.0
        %3743 = vmatprep.subr.mxu0 0.0
        %3744 = vmatpush2.msra.mxu0 0.0
        %3745 = vmatprep.subr.mxu0 0.0
        %3746 = vmatpush2.msra.mxu0 0.0
        %3747 = vmatprep.subr.mxu0 0.0
        %3748 = vmatpush2.msra.mxu0 0.0
        %3749 = vmatprep.mubr.f32.mxu0 0.0
        %3750 = vmatmul.mubr.f32.gmra.mxu0 %v3680
        %v3751 = vpop.f32.mrf.mxu0
        %v3752 = vadd.f32 0.0, %v3751
        %v3753 = vpop.f32.mrf.mxu0
        %3754 = vmatprep.mubr.f32.mxu0 0.0
        %3755 = vmatmul.mubr.f32.gmra.mxu0 %v3683
        %v3756 = vpop.f32.mrf.mxu0
        %v3757 = vadd.f32 0.0, %v3756
        %v3758 = vpop.f32.mrf.mxu0
        %3759 = vdwg.mxu0
        %v3761 = vsel %vm3129, %v3219, 0
        %v3764 = vsel %vm3129, %v3221, 0
        %3766 = vmatprep.subr.mxu0 0.0
        %3767 = vmatpush1.msra.mxu0 0.0
        %3768 = vmatprep.subr.mxu0 0.0
        %3769 = vmatpush1.msra.mxu0 0.0
        %3770 = vmatprep.subr.mxu0 0.0
        %3771 = vmatpush1.msra.mxu0 0.0
        %3772 = vmatprep.subr.mxu0 0.0
        %3773 = vmatpush1.msra.mxu0 0.0
        %3774 = vmatprep.subr.mxu0 0.0
        %3775 = vmatpush1.msra.mxu0 0.0
        %3776 = vmatprep.subr.mxu0 0.0
        %3777 = vmatpush1.msra.mxu0 0.0
        %3778 = vmatprep.subr.mxu0 0.0
        %3779 = vmatpush1.msra.mxu0 0.0
        %3780 = vmatprep.subr.mxu0 0.0
        %3781 = vmatpush1.msra.mxu0 0.0
        %3782 = vmatprep.subr.mxu0 0.0
        %3783 = vmatpush1.msra.mxu0 0.0
        %3784 = vmatprep.subr.mxu0 0.0
        %3785 = vmatpush1.msra.mxu0 0.0
        %3786 = vmatprep.subr.mxu0 0.0
        %3787 = vmatpush1.msra.mxu0 0.0
        %3788 = vmatprep.subr.mxu0 0.0
        %3789 = vmatpush1.msra.mxu0 0.0
        %3790 = vmatprep.subr.mxu0 0.0
        %3791 = vmatpush1.msra.mxu0 0.0
        %3792 = vmatprep.subr.mxu0 0.0
        %3793 = vmatpush1.msra.mxu0 0.0
        %3794 = vmatprep.subr.mxu0 0.0
        %3795 = vmatpush1.msra.mxu0 %v2406
        %3796 = vmatprep.subr.mxu0 0.0
        %3797 = vmatpush1.msra.mxu0 %v2405
        %3798 = vmatprep.subr.mxu0 0.0
        %3799 = vmatpush2.msra.mxu0 0.0
        %3800 = vmatprep.subr.mxu0 0.0
        %3801 = vmatpush2.msra.mxu0 0.0
        %3802 = vmatprep.subr.mxu0 0.0
        %3803 = vmatpush2.msra.mxu0 0.0
        %3804 = vmatprep.subr.mxu0 0.0
        %3805 = vmatpush2.msra.mxu0 0.0
        %3806 = vmatprep.subr.mxu0 0.0
        %3807 = vmatpush2.msra.mxu0 0.0
        %3808 = vmatprep.subr.mxu0 0.0
        %3809 = vmatpush2.msra.mxu0 0.0
        %3810 = vmatprep.subr.mxu0 0.0
        %3811 = vmatpush2.msra.mxu0 0.0
        %3812 = vmatprep.subr.mxu0 0.0
        %3813 = vmatpush2.msra.mxu0 0.0
        %3814 = vmatprep.subr.mxu0 0.0
        %3815 = vmatpush2.msra.mxu0 0.0
        %3816 = vmatprep.subr.mxu0 0.0
        %3817 = vmatpush2.msra.mxu0 0.0
        %3818 = vmatprep.subr.mxu0 0.0
        %3819 = vmatpush2.msra.mxu0 0.0
        %3820 = vmatprep.subr.mxu0 0.0
        %3821 = vmatpush2.msra.mxu0 0.0
        %3822 = vmatprep.subr.mxu0 0.0
        %3823 = vmatpush2.msra.mxu0 0.0
        %3824 = vmatprep.subr.mxu0 0.0
        %3825 = vmatpush2.msra.mxu0 0.0
        %3826 = vmatprep.subr.mxu0 0.0
        %3827 = vmatpush2.msra.mxu0 0.0
        %3828 = vmatprep.subr.mxu0 0.0
        %3829 = vmatpush2.msra.mxu0 0.0
        %3830 = vmatprep.mubr.f32.mxu0 0.0
        %3831 = vmatmul.mubr.f32.gmra.mxu0 %v3761
        %v3832 = vpop.f32.mrf.mxu0
        %v3833 = vadd.f32 0.0, %v3832
        %v3834 = vpop.f32.mrf.mxu0
        %3835 = vmatprep.mubr.f32.mxu0 0.0
        %3836 = vmatmul.mubr.f32.gmra.mxu0 %v3764
        %v3837 = vpop.f32.mrf.mxu0
        %v3838 = vadd.f32 0.0, %v3837
        %v3839 = vpop.f32.mrf.mxu0
        %3840 = vdwg.mxu0
        %v3842 = vsel %vm3129, %v3223, 0
        %v3845 = vsel %vm3129, %v3225, 0
        %3847 = vmatprep.subr.mxu0 0.0
        %3848 = vmatpush1.msra.mxu0 0.0
        %3849 = vmatprep.subr.mxu0 0.0
        %3850 = vmatpush1.msra.mxu0 0.0
        %3851 = vmatprep.subr.mxu0 0.0
        %3852 = vmatpush1.msra.mxu0 0.0
        %3853 = vmatprep.subr.mxu0 0.0
        %3854 = vmatpush1.msra.mxu0 0.0
        %3855 = vmatprep.subr.mxu0 0.0
        %3856 = vmatpush1.msra.mxu0 0.0
        %3857 = vmatprep.subr.mxu0 0.0
        %3858 = vmatpush1.msra.mxu0 0.0
        %3859 = vmatprep.subr.mxu0 0.0
        %3860 = vmatpush1.msra.mxu0 0.0
        %3861 = vmatprep.subr.mxu0 0.0
        %3862 = vmatpush1.msra.mxu0 0.0
        %3863 = vmatprep.subr.mxu0 0.0
        %3864 = vmatpush1.msra.mxu0 0.0
        %3865 = vmatprep.subr.mxu0 0.0
        %3866 = vmatpush1.msra.mxu0 0.0
        %3867 = vmatprep.subr.mxu0 0.0
        %3868 = vmatpush1.msra.mxu0 0.0
        %3869 = vmatprep.subr.mxu0 0.0
        %3870 = vmatpush1.msra.mxu0 0.0
        %3871 = vmatprep.subr.mxu0 0.0
        %3872 = vmatpush1.msra.mxu0 0.0
        %3873 = vmatprep.subr.mxu0 0.0
        %3874 = vmatpush1.msra.mxu0 0.0
        %3875 = vmatprep.subr.mxu0 0.0
        %3876 = vmatpush1.msra.mxu0 %v2408
        %3877 = vmatprep.subr.mxu0 0.0
        %3878 = vmatpush1.msra.mxu0 %v2407
        %3879 = vmatprep.subr.mxu0 0.0
        %3880 = vmatpush2.msra.mxu0 0.0
        %3881 = vmatprep.subr.mxu0 0.0
        %3882 = vmatpush2.msra.mxu0 0.0
        %3883 = vmatprep.subr.mxu0 0.0
        %3884 = vmatpush2.msra.mxu0 0.0
        %3885 = vmatprep.subr.mxu0 0.0
        %3886 = vmatpush2.msra.mxu0 0.0
        %3887 = vmatprep.subr.mxu0 0.0
        %3888 = vmatpush2.msra.mxu0 0.0
        %3889 = vmatprep.subr.mxu0 0.0
        %3890 = vmatpush2.msra.mxu0 0.0
        %3891 = vmatprep.subr.mxu0 0.0
        %3892 = vmatpush2.msra.mxu0 0.0
        %3893 = vmatprep.subr.mxu0 0.0
        %3894 = vmatpush2.msra.mxu0 0.0
        %3895 = vmatprep.subr.mxu0 0.0
        %3896 = vmatpush2.msra.mxu0 0.0
        %3897 = vmatprep.subr.mxu0 0.0
        %3898 = vmatpush2.msra.mxu0 0.0
        %3899 = vmatprep.subr.mxu0 0.0
        %3900 = vmatpush2.msra.mxu0 0.0
        %3901 = vmatprep.subr.mxu0 0.0
        %3902 = vmatpush2.msra.mxu0 0.0
        %3903 = vmatprep.subr.mxu0 0.0
        %3904 = vmatpush2.msra.mxu0 0.0
        %3905 = vmatprep.subr.mxu0 0.0
        %3906 = vmatpush2.msra.mxu0 0.0
        %3907 = vmatprep.subr.mxu0 0.0
        %3908 = vmatpush2.msra.mxu0 0.0
        %3909 = vmatprep.subr.mxu0 0.0
        %3910 = vmatpush2.msra.mxu0 0.0
        %3911 = vmatprep.mubr.f32.mxu0 0.0
        %3912 = vmatmul.mubr.f32.gmra.mxu0 %v3842
        %v3913 = vpop.f32.mrf.mxu0
        %v3914 = vadd.f32 0.0, %v3913
        %v3915 = vpop.f32.mrf.mxu0
        %3916 = vmatprep.mubr.f32.mxu0 0.0
        %3917 = vmatmul.mubr.f32.gmra.mxu0 %v3845
        %v3918 = vpop.f32.mrf.mxu0
        %v3919 = vadd.f32 0.0, %v3918
        %v3920 = vpop.f32.mrf.mxu0
        %3921 = vdwg.mxu0
        %v3922 = vrcp.pop %v3228
        %v3923 = vmul.f32 %v3347, %v3922
        %v3924 = vrcp.pop %v3231
        %v3925 = vmul.f32 %v3352, %v3924
        %v3926 = vrcp.pop %v3234
        %v3927 = vmul.f32 %v3428, %v3926
        %v3928 = vrcp.pop %v3237
        %v3929 = vmul.f32 %v3433, %v3928
        %v3930 = vrcp.pop %v3240
        %v3931 = vmul.f32 %v3509, %v3930
        %v3932 = vrcp.pop %v3243
        %v3933 = vmul.f32 %v3514, %v3932
        %v3934 = vrcp.pop %v3246
        %v3935 = vmul.f32 %v3590, %v3934
        %v3936 = vrcp.pop %v3249
        %v3937 = vmul.f32 %v3595, %v3936
        %v3938 = vrcp.pop %v3252
        %v3939 = vmul.f32 %v3671, %v3938
        %v3940 = vrcp.pop %v3255
        %v3941 = vmul.f32 %v3676, %v3940
        %v3942 = vrcp.pop %v3258
        %v3943 = vmul.f32 %v3752, %v3942
        %v3944 = vrcp.pop %v3261
        %v3945 = vmul.f32 %v3757, %v3944
        %v3946 = vrcp.pop %v3264
        %v3947 = vmul.f32 %v3833, %v3946
        %v3948 = vrcp.pop %v3267
        %v3949 = vmul.f32 %v3838, %v3948
        %v3950 = vrcp.pop %v3270
        %v3951 = vmul.f32 %v3914, %v3950
        %v3952 = vrcp.pop %v3273
        %v3953 = vmul.f32 %v3919, %v3952
        %v3954 = vld [vmem:[%s5] sm:$0xf]
        %v3955 = vld [vmem:[%s5 + $0x4] sm:$0xf]
        %v3956 = vld [vmem:[%s5 + $0x8] sm:$0xf]
        %v3957 = vld [vmem:[%s5 + $0xc] sm:$0xf]
        %v3958 = vld [vmem:[%s5 + $0x10] sm:$0xf]
        %v3959 = vld [vmem:[%s5 + $0x14] sm:$0xf]
        %v3960 = vld [vmem:[%s5 + $0x18] sm:$0xf]
        %v3961 = vld [vmem:[%s5 + $0x1c] sm:$0xf]
        %v3963 = vsel %vm1115, %v3923, 0
        %v3966 = vsel %vm1115, %v3925, 0
        %vm3968 = vcmask 1043456
        %v3970 = vsel %vm3968, %v3954, 0
        %3972 = vmatprep.subr.mxu0 0.0
        %3973 = vmatpush1.msra.mxu0 0.0
        %3974 = vmatprep.subr.mxu0 0.0
        %3975 = vmatpush1.msra.mxu0 0.0
        %3976 = vmatprep.subr.mxu0 0.0
        %3977 = vmatpush1.msra.mxu0 0.0
        %3978 = vmatprep.subr.mxu0 0.0
        %3979 = vmatpush1.msra.mxu0 0.0
        %3980 = vmatprep.subr.mxu0 0.0
        %3981 = vmatpush1.msra.mxu0 0.0
        %3982 = vmatprep.subr.mxu0 0.0
        %3983 = vmatpush1.msra.mxu0 0.0
        %3984 = vmatprep.subr.mxu0 0.0
        %3985 = vmatpush1.msra.mxu0 0.0
        %3986 = vmatprep.subr.mxu0 0.0
        %3987 = vmatpush1.msra.mxu0 0.0
        %3988 = vmatprep.subr.mxu0 0.0
        %3989 = vmatpush1.msra.mxu0 0.0
        %3990 = vmatprep.subr.mxu0 0.0
        %3991 = vmatpush1.msra.mxu0 0.0
        %3992 = vmatprep.subr.mxu0 0.0
        %3993 = vmatpush1.msra.mxu0 0.0
        %3994 = vmatprep.subr.mxu0 0.0
        %3995 = vmatpush1.msra.mxu0 0.0
        %3996 = vmatprep.subr.mxu0 0.0
        %3997 = vmatpush1.msra.mxu0 0.0
        %3998 = vmatprep.subr.mxu0 0.0
        %3999 = vmatpush1.msra.mxu0 0.0
        %4000 = vmatprep.subr.mxu0 0.0
        %4001 = vmatpush1.msra.mxu0 0.0
        %4002 = vmatprep.subr.mxu0 0.0
        %4003 = vmatpush1.msra.mxu0 %v3970
        %4004 = vmatprep.subr.mxu0 0.0
        %4005 = vmatpush2.msra.mxu0 0.0
        %4006 = vmatprep.subr.mxu0 0.0
        %4007 = vmatpush2.msra.mxu0 0.0
        %4008 = vmatprep.subr.mxu0 0.0
        %4009 = vmatpush2.msra.mxu0 0.0
        %4010 = vmatprep.subr.mxu0 0.0
        %4011 = vmatpush2.msra.mxu0 0.0
        %4012 = vmatprep.subr.mxu0 0.0
        %4013 = vmatpush2.msra.mxu0 0.0
        %4014 = vmatprep.subr.mxu0 0.0
        %4015 = vmatpush2.msra.mxu0 0.0
        %4016 = vmatprep.subr.mxu0 0.0
        %4017 = vmatpush2.msra.mxu0 0.0
        %4018 = vmatprep.subr.mxu0 0.0
        %4019 = vmatpush2.msra.mxu0 0.0
        %4020 = vmatprep.subr.mxu0 0.0
        %4021 = vmatpush2.msra.mxu0 0.0
        %4022 = vmatprep.subr.mxu0 0.0
        %4023 = vmatpush2.msra.mxu0 0.0
        %4024 = vmatprep.subr.mxu0 0.0
        %4025 = vmatpush2.msra.mxu0 0.0
        %4026 = vmatprep.subr.mxu0 0.0
        %4027 = vmatpush2.msra.mxu0 0.0
        %4028 = vmatprep.subr.mxu0 0.0
        %4029 = vmatpush2.msra.mxu0 0.0
        %4030 = vmatprep.subr.mxu0 0.0
        %4031 = vmatpush2.msra.mxu0 0.0
        %4032 = vmatprep.subr.mxu0 0.0
        %4033 = vmatpush2.msra.mxu0 0.0
        %4034 = vmatprep.subr.mxu0 0.0
        %4035 = vmatpush2.msra.mxu0 0.0
        %4036 = vmatprep.mubr.f32.mxu0 0.0
        %4037 = vmatmul.mubr.f32.gmra.mxu0 %v3963
        %v4038 = vpop.f32.mrf.mxu0
        %v4039 = vadd.f32 0.0, %v4038
        %v4040 = vpop.f32.mrf.mxu0
        %4041 = vmatprep.mubr.f32.mxu0 0.0
        %4042 = vmatmul.mubr.f32.gmra.mxu0 %v3966
        %v4043 = vpop.f32.mrf.mxu0
        %v4044 = vadd.f32 0.0, %v4043
        %v4045 = vpop.f32.mrf.mxu0
        %4046 = vdwg.mxu0
        %v4048 = vsel %vm1115, %v3927, 0
        %v4051 = vsel %vm1115, %v3929, 0
        %v4054 = vsel %vm3968, %v3955, 0
        %4056 = vmatprep.subr.mxu0 0.0
        %4057 = vmatpush1.msra.mxu0 0.0
        %4058 = vmatprep.subr.mxu0 0.0
        %4059 = vmatpush1.msra.mxu0 0.0
        %4060 = vmatprep.subr.mxu0 0.0
        %4061 = vmatpush1.msra.mxu0 0.0
        %4062 = vmatprep.subr.mxu0 0.0
        %4063 = vmatpush1.msra.mxu0 0.0
        %4064 = vmatprep.subr.mxu0 0.0
        %4065 = vmatpush1.msra.mxu0 0.0
        %4066 = vmatprep.subr.mxu0 0.0
        %4067 = vmatpush1.msra.mxu0 0.0
        %4068 = vmatprep.subr.mxu0 0.0
        %4069 = vmatpush1.msra.mxu0 0.0
        %4070 = vmatprep.subr.mxu0 0.0
        %4071 = vmatpush1.msra.mxu0 0.0
        %4072 = vmatprep.subr.mxu0 0.0
        %4073 = vmatpush1.msra.mxu0 0.0
        %4074 = vmatprep.subr.mxu0 0.0
        %4075 = vmatpush1.msra.mxu0 0.0
        %4076 = vmatprep.subr.mxu0 0.0
        %4077 = vmatpush1.msra.mxu0 0.0
        %4078 = vmatprep.subr.mxu0 0.0
        %4079 = vmatpush1.msra.mxu0 0.0
        %4080 = vmatprep.subr.mxu0 0.0
        %4081 = vmatpush1.msra.mxu0 0.0
        %4082 = vmatprep.subr.mxu0 0.0
        %4083 = vmatpush1.msra.mxu0 0.0
        %4084 = vmatprep.subr.mxu0 0.0
        %4085 = vmatpush1.msra.mxu0 0.0
        %4086 = vmatprep.subr.mxu0 0.0
        %4087 = vmatpush1.msra.mxu0 %v4054
        %4088 = vmatprep.subr.mxu0 0.0
        %4089 = vmatpush2.msra.mxu0 0.0
        %4090 = vmatprep.subr.mxu0 0.0
        %4091 = vmatpush2.msra.mxu0 0.0
        %4092 = vmatprep.subr.mxu0 0.0
        %4093 = vmatpush2.msra.mxu0 0.0
        %4094 = vmatprep.subr.mxu0 0.0
        %4095 = vmatpush2.msra.mxu0 0.0
        %4096 = vmatprep.subr.mxu0 0.0
        %4097 = vmatpush2.msra.mxu0 0.0
        %4098 = vmatprep.subr.mxu0 0.0
        %4099 = vmatpush2.msra.mxu0 0.0
        %4100 = vmatprep.subr.mxu0 0.0
        %4101 = vmatpush2.msra.mxu0 0.0
        %4102 = vmatprep.subr.mxu0 0.0
        %4103 = vmatpush2.msra.mxu0 0.0
        %4104 = vmatprep.subr.mxu0 0.0
        %4105 = vmatpush2.msra.mxu0 0.0
        %4106 = vmatprep.subr.mxu0 0.0
        %4107 = vmatpush2.msra.mxu0 0.0
        %4108 = vmatprep.subr.mxu0 0.0
        %4109 = vmatpush2.msra.mxu0 0.0
        %4110 = vmatprep.subr.mxu0 0.0
        %4111 = vmatpush2.msra.mxu0 0.0
        %4112 = vmatprep.subr.mxu0 0.0
        %4113 = vmatpush2.msra.mxu0 0.0
        %4114 = vmatprep.subr.mxu0 0.0
        %4115 = vmatpush2.msra.mxu0 0.0
        %4116 = vmatprep.subr.mxu0 0.0
        %4117 = vmatpush2.msra.mxu0 0.0
        %4118 = vmatprep.subr.mxu0 0.0
        %4119 = vmatpush2.msra.mxu0 0.0
        %4120 = vmatprep.mubr.f32.mxu0 0.0
        %4121 = vmatmul.mubr.f32.gmra.mxu0 %v4048
        %v4122 = vpop.f32.mrf.mxu0
        %v4123 = vadd.f32 0.0, %v4122
        %v4124 = vpop.f32.mrf.mxu0
        %4125 = vmatprep.mubr.f32.mxu0 0.0
        %4126 = vmatmul.mubr.f32.gmra.mxu0 %v4051
        %v4127 = vpop.f32.mrf.mxu0
        %v4128 = vadd.f32 0.0, %v4127
        %v4129 = vpop.f32.mrf.mxu0
        %4130 = vdwg.mxu0
        %v4132 = vsel %vm1115, %v3931, 0
        %v4135 = vsel %vm1115, %v3933, 0
        %v4138 = vsel %vm3968, %v3956, 0
        %4140 = vmatprep.subr.mxu0 0.0
        %4141 = vmatpush1.msra.mxu0 0.0
        %4142 = vmatprep.subr.mxu0 0.0
        %4143 = vmatpush1.msra.mxu0 0.0
        %4144 = vmatprep.subr.mxu0 0.0
        %4145 = vmatpush1.msra.mxu0 0.0
        %4146 = vmatprep.subr.mxu0 0.0
        %4147 = vmatpush1.msra.mxu0 0.0
        %4148 = vmatprep.subr.mxu0 0.0
        %4149 = vmatpush1.msra.mxu0 0.0
        %4150 = vmatprep.subr.mxu0 0.0
        %4151 = vmatpush1.msra.mxu0 0.0
        %4152 = vmatprep.subr.mxu0 0.0
        %4153 = vmatpush1.msra.mxu0 0.0
        %4154 = vmatprep.subr.mxu0 0.0
        %4155 = vmatpush1.msra.mxu0 0.0
        %4156 = vmatprep.subr.mxu0 0.0
        %4157 = vmatpush1.msra.mxu0 0.0
        %4158 = vmatprep.subr.mxu0 0.0
        %4159 = vmatpush1.msra.mxu0 0.0
        %4160 = vmatprep.subr.mxu0 0.0
        %4161 = vmatpush1.msra.mxu0 0.0
        %4162 = vmatprep.subr.mxu0 0.0
        %4163 = vmatpush1.msra.mxu0 0.0
        %4164 = vmatprep.subr.mxu0 0.0
        %4165 = vmatpush1.msra.mxu0 0.0
        %4166 = vmatprep.subr.mxu0 0.0
        %4167 = vmatpush1.msra.mxu0 0.0
        %4168 = vmatprep.subr.mxu0 0.0
        %4169 = vmatpush1.msra.mxu0 0.0
        %4170 = vmatprep.subr.mxu0 0.0
        %4171 = vmatpush1.msra.mxu0 %v4138
        %4172 = vmatprep.subr.mxu0 0.0
        %4173 = vmatpush2.msra.mxu0 0.0
        %4174 = vmatprep.subr.mxu0 0.0
        %4175 = vmatpush2.msra.mxu0 0.0
        %4176 = vmatprep.subr.mxu0 0.0
        %4177 = vmatpush2.msra.mxu0 0.0
        %4178 = vmatprep.subr.mxu0 0.0
        %4179 = vmatpush2.msra.mxu0 0.0
        %4180 = vmatprep.subr.mxu0 0.0
        %4181 = vmatpush2.msra.mxu0 0.0
        %4182 = vmatprep.subr.mxu0 0.0
        %4183 = vmatpush2.msra.mxu0 0.0
        %4184 = vmatprep.subr.mxu0 0.0
        %4185 = vmatpush2.msra.mxu0 0.0
        %4186 = vmatprep.subr.mxu0 0.0
        %4187 = vmatpush2.msra.mxu0 0.0
        %4188 = vmatprep.subr.mxu0 0.0
        %4189 = vmatpush2.msra.mxu0 0.0
        %4190 = vmatprep.subr.mxu0 0.0
        %4191 = vmatpush2.msra.mxu0 0.0
        %4192 = vmatprep.subr.mxu0 0.0
        %4193 = vmatpush2.msra.mxu0 0.0
        %4194 = vmatprep.subr.mxu0 0.0
        %4195 = vmatpush2.msra.mxu0 0.0
        %4196 = vmatprep.subr.mxu0 0.0
        %4197 = vmatpush2.msra.mxu0 0.0
        %4198 = vmatprep.subr.mxu0 0.0
        %4199 = vmatpush2.msra.mxu0 0.0
        %4200 = vmatprep.subr.mxu0 0.0
        %4201 = vmatpush2.msra.mxu0 0.0
        %4202 = vmatprep.subr.mxu0 0.0
        %4203 = vmatpush2.msra.mxu0 0.0
        %4204 = vmatprep.mubr.f32.mxu0 0.0
        %4205 = vmatmul.mubr.f32.gmra.mxu0 %v4132
        %v4206 = vpop.f32.mrf.mxu0
        %v4207 = vadd.f32 0.0, %v4206
        %v4208 = vpop.f32.mrf.mxu0
        %4209 = vmatprep.mubr.f32.mxu0 0.0
        %4210 = vmatmul.mubr.f32.gmra.mxu0 %v4135
        %v4211 = vpop.f32.mrf.mxu0
        %v4212 = vadd.f32 0.0, %v4211
        %v4213 = vpop.f32.mrf.mxu0
        %4214 = vdwg.mxu0
        %v4216 = vsel %vm1115, %v3935, 0
        %v4219 = vsel %vm1115, %v3937, 0
        %v4222 = vsel %vm3968, %v3957, 0
        %4224 = vmatprep.subr.mxu0 0.0
        %4225 = vmatpush1.msra.mxu0 0.0
        %4226 = vmatprep.subr.mxu0 0.0
        %4227 = vmatpush1.msra.mxu0 0.0
        %4228 = vmatprep.subr.mxu0 0.0
        %4229 = vmatpush1.msra.mxu0 0.0
        %4230 = vmatprep.subr.mxu0 0.0
        %4231 = vmatpush1.msra.mxu0 0.0
        %4232 = vmatprep.subr.mxu0 0.0
        %4233 = vmatpush1.msra.mxu0 0.0
        %4234 = vmatprep.subr.mxu0 0.0
        %4235 = vmatpush1.msra.mxu0 0.0
        %4236 = vmatprep.subr.mxu0 0.0
        %4237 = vmatpush1.msra.mxu0 0.0
        %4238 = vmatprep.subr.mxu0 0.0
        %4239 = vmatpush1.msra.mxu0 0.0
        %4240 = vmatprep.subr.mxu0 0.0
        %4241 = vmatpush1.msra.mxu0 0.0
        %4242 = vmatprep.subr.mxu0 0.0
        %4243 = vmatpush1.msra.mxu0 0.0
        %4244 = vmatprep.subr.mxu0 0.0
        %4245 = vmatpush1.msra.mxu0 0.0
        %4246 = vmatprep.subr.mxu0 0.0
        %4247 = vmatpush1.msra.mxu0 0.0
        %4248 = vmatprep.subr.mxu0 0.0
        %4249 = vmatpush1.msra.mxu0 0.0
        %4250 = vmatprep.subr.mxu0 0.0
        %4251 = vmatpush1.msra.mxu0 0.0
        %4252 = vmatprep.subr.mxu0 0.0
        %4253 = vmatpush1.msra.mxu0 0.0
        %4254 = vmatprep.subr.mxu0 0.0
        %4255 = vmatpush1.msra.mxu0 %v4222
        %4256 = vmatprep.subr.mxu0 0.0
        %4257 = vmatpush2.msra.mxu0 0.0
        %4258 = vmatprep.subr.mxu0 0.0
        %4259 = vmatpush2.msra.mxu0 0.0
        %4260 = vmatprep.subr.mxu0 0.0
        %4261 = vmatpush2.msra.mxu0 0.0
        %4262 = vmatprep.subr.mxu0 0.0
        %4263 = vmatpush2.msra.mxu0 0.0
        %4264 = vmatprep.subr.mxu0 0.0
        %4265 = vmatpush2.msra.mxu0 0.0
        %4266 = vmatprep.subr.mxu0 0.0
        %4267 = vmatpush2.msra.mxu0 0.0
        %4268 = vmatprep.subr.mxu0 0.0
        %4269 = vmatpush2.msra.mxu0 0.0
        %4270 = vmatprep.subr.mxu0 0.0
        %4271 = vmatpush2.msra.mxu0 0.0
        %4272 = vmatprep.subr.mxu0 0.0
        %4273 = vmatpush2.msra.mxu0 0.0
        %4274 = vmatprep.subr.mxu0 0.0
        %4275 = vmatpush2.msra.mxu0 0.0
        %4276 = vmatprep.subr.mxu0 0.0
        %4277 = vmatpush2.msra.mxu0 0.0
        %4278 = vmatprep.subr.mxu0 0.0
        %4279 = vmatpush2.msra.mxu0 0.0
        %4280 = vmatprep.subr.mxu0 0.0
        %4281 = vmatpush2.msra.mxu0 0.0
        %4282 = vmatprep.subr.mxu0 0.0
        %4283 = vmatpush2.msra.mxu0 0.0
        %4284 = vmatprep.subr.mxu0 0.0
        %4285 = vmatpush2.msra.mxu0 0.0
        %4286 = vmatprep.subr.mxu0 0.0
        %4287 = vmatpush2.msra.mxu0 0.0
        %4288 = vmatprep.mubr.f32.mxu0 0.0
        %4289 = vmatmul.mubr.f32.gmra.mxu0 %v4216
        %v4290 = vpop.f32.mrf.mxu0
        %v4291 = vadd.f32 0.0, %v4290
        %v4292 = vpop.f32.mrf.mxu0
        %4293 = vmatprep.mubr.f32.mxu0 0.0
        %4294 = vmatmul.mubr.f32.gmra.mxu0 %v4219
        %v4295 = vpop.f32.mrf.mxu0
        %v4296 = vadd.f32 0.0, %v4295
        %v4297 = vpop.f32.mrf.mxu0
        %4298 = vdwg.mxu0
        %v4300 = vsel %vm1115, %v3939, 0
        %v4303 = vsel %vm1115, %v3941, 0
        %v4306 = vsel %vm3968, %v3958, 0
        %4308 = vmatprep.subr.mxu0 0.0
        %4309 = vmatpush1.msra.mxu0 0.0
        %4310 = vmatprep.subr.mxu0 0.0
        %4311 = vmatpush1.msra.mxu0 0.0
        %4312 = vmatprep.subr.mxu0 0.0
        %4313 = vmatpush1.msra.mxu0 0.0
        %4314 = vmatprep.subr.mxu0 0.0
        %4315 = vmatpush1.msra.mxu0 0.0
        %4316 = vmatprep.subr.mxu0 0.0
        %4317 = vmatpush1.msra.mxu0 0.0
        %4318 = vmatprep.subr.mxu0 0.0
        %4319 = vmatpush1.msra.mxu0 0.0
        %4320 = vmatprep.subr.mxu0 0.0
        %4321 = vmatpush1.msra.mxu0 0.0
        %4322 = vmatprep.subr.mxu0 0.0
        %4323 = vmatpush1.msra.mxu0 0.0
        %4324 = vmatprep.subr.mxu0 0.0
        %4325 = vmatpush1.msra.mxu0 0.0
        %4326 = vmatprep.subr.mxu0 0.0
        %4327 = vmatpush1.msra.mxu0 0.0
        %4328 = vmatprep.subr.mxu0 0.0
        %4329 = vmatpush1.msra.mxu0 0.0
        %4330 = vmatprep.subr.mxu0 0.0
        %4331 = vmatpush1.msra.mxu0 0.0
        %4332 = vmatprep.subr.mxu0 0.0
        %4333 = vmatpush1.msra.mxu0 0.0
        %4334 = vmatprep.subr.mxu0 0.0
        %4335 = vmatpush1.msra.mxu0 0.0
        %4336 = vmatprep.subr.mxu0 0.0
        %4337 = vmatpush1.msra.mxu0 0.0
        %4338 = vmatprep.subr.mxu0 0.0
        %4339 = vmatpush1.msra.mxu0 %v4306
        %4340 = vmatprep.subr.mxu0 0.0
        %4341 = vmatpush2.msra.mxu0 0.0
        %4342 = vmatprep.subr.mxu0 0.0
        %4343 = vmatpush2.msra.mxu0 0.0
        %4344 = vmatprep.subr.mxu0 0.0
        %4345 = vmatpush2.msra.mxu0 0.0
        %4346 = vmatprep.subr.mxu0 0.0
        %4347 = vmatpush2.msra.mxu0 0.0
        %4348 = vmatprep.subr.mxu0 0.0
        %4349 = vmatpush2.msra.mxu0 0.0
        %4350 = vmatprep.subr.mxu0 0.0
        %4351 = vmatpush2.msra.mxu0 0.0
        %4352 = vmatprep.subr.mxu0 0.0
        %4353 = vmatpush2.msra.mxu0 0.0
        %4354 = vmatprep.subr.mxu0 0.0
        %4355 = vmatpush2.msra.mxu0 0.0
        %4356 = vmatprep.subr.mxu0 0.0
        %4357 = vmatpush2.msra.mxu0 0.0
        %4358 = vmatprep.subr.mxu0 0.0
        %4359 = vmatpush2.msra.mxu0 0.0
        %4360 = vmatprep.subr.mxu0 0.0
        %4361 = vmatpush2.msra.mxu0 0.0
        %4362 = vmatprep.subr.mxu0 0.0
        %4363 = vmatpush2.msra.mxu0 0.0
        %4364 = vmatprep.subr.mxu0 0.0
        %4365 = vmatpush2.msra.mxu0 0.0
        %4366 = vmatprep.subr.mxu0 0.0
        %4367 = vmatpush2.msra.mxu0 0.0
        %4368 = vmatprep.subr.mxu0 0.0
        %4369 = vmatpush2.msra.mxu0 0.0
        %4370 = vmatprep.subr.mxu0 0.0
        %4371 = vmatpush2.msra.mxu0 0.0
        %4372 = vmatprep.mubr.f32.mxu0 0.0
        %4373 = vmatmul.mubr.f32.gmra.mxu0 %v4300
        %v4374 = vpop.f32.mrf.mxu0
        %v4375 = vadd.f32 0.0, %v4374
        %v4376 = vpop.f32.mrf.mxu0
        %4377 = vmatprep.mubr.f32.mxu0 0.0
        %4378 = vmatmul.mubr.f32.gmra.mxu0 %v4303
        %v4379 = vpop.f32.mrf.mxu0
        %v4380 = vadd.f32 0.0, %v4379
        %v4381 = vpop.f32.mrf.mxu0
        %4382 = vdwg.mxu0
        %v4384 = vsel %vm1115, %v3943, 0
        %v4387 = vsel %vm1115, %v3945, 0
        %v4390 = vsel %vm3968, %v3959, 0
        %4392 = vmatprep.subr.mxu0 0.0
        %4393 = vmatpush1.msra.mxu0 0.0
        %4394 = vmatprep.subr.mxu0 0.0
        %4395 = vmatpush1.msra.mxu0 0.0
        %4396 = vmatprep.subr.mxu0 0.0
        %4397 = vmatpush1.msra.mxu0 0.0
        %4398 = vmatprep.subr.mxu0 0.0
        %4399 = vmatpush1.msra.mxu0 0.0
        %4400 = vmatprep.subr.mxu0 0.0
        %4401 = vmatpush1.msra.mxu0 0.0
        %4402 = vmatprep.subr.mxu0 0.0
        %4403 = vmatpush1.msra.mxu0 0.0
        %4404 = vmatprep.subr.mxu0 0.0
        %4405 = vmatpush1.msra.mxu0 0.0
        %4406 = vmatprep.subr.mxu0 0.0
        %4407 = vmatpush1.msra.mxu0 0.0
        %4408 = vmatprep.subr.mxu0 0.0
        %4409 = vmatpush1.msra.mxu0 0.0
        %4410 = vmatprep.subr.mxu0 0.0
        %4411 = vmatpush1.msra.mxu0 0.0
        %4412 = vmatprep.subr.mxu0 0.0
        %4413 = vmatpush1.msra.mxu0 0.0
        %4414 = vmatprep.subr.mxu0 0.0
        %4415 = vmatpush1.msra.mxu0 0.0
        %4416 = vmatprep.subr.mxu0 0.0
        %4417 = vmatpush1.msra.mxu0 0.0
        %4418 = vmatprep.subr.mxu0 0.0
        %4419 = vmatpush1.msra.mxu0 0.0
        %4420 = vmatprep.subr.mxu0 0.0
        %4421 = vmatpush1.msra.mxu0 0.0
        %4422 = vmatprep.subr.mxu0 0.0
        %4423 = vmatpush1.msra.mxu0 %v4390
        %4424 = vmatprep.subr.mxu0 0.0
        %4425 = vmatpush2.msra.mxu0 0.0
        %4426 = vmatprep.subr.mxu0 0.0
        %4427 = vmatpush2.msra.mxu0 0.0
        %4428 = vmatprep.subr.mxu0 0.0
        %4429 = vmatpush2.msra.mxu0 0.0
        %4430 = vmatprep.subr.mxu0 0.0
        %4431 = vmatpush2.msra.mxu0 0.0
        %4432 = vmatprep.subr.mxu0 0.0
        %4433 = vmatpush2.msra.mxu0 0.0
        %4434 = vmatprep.subr.mxu0 0.0
        %4435 = vmatpush2.msra.mxu0 0.0
        %4436 = vmatprep.subr.mxu0 0.0
        %4437 = vmatpush2.msra.mxu0 0.0
        %4438 = vmatprep.subr.mxu0 0.0
        %4439 = vmatpush2.msra.mxu0 0.0
        %4440 = vmatprep.subr.mxu0 0.0
        %4441 = vmatpush2.msra.mxu0 0.0
        %4442 = vmatprep.subr.mxu0 0.0
        %4443 = vmatpush2.msra.mxu0 0.0
        %4444 = vmatprep.subr.mxu0 0.0
        %4445 = vmatpush2.msra.mxu0 0.0
        %4446 = vmatprep.subr.mxu0 0.0
        %4447 = vmatpush2.msra.mxu0 0.0
        %4448 = vmatprep.subr.mxu0 0.0
        %4449 = vmatpush2.msra.mxu0 0.0
        %4450 = vmatprep.subr.mxu0 0.0
        %4451 = vmatpush2.msra.mxu0 0.0
        %4452 = vmatprep.subr.mxu0 0.0
        %4453 = vmatpush2.msra.mxu0 0.0
        %4454 = vmatprep.subr.mxu0 0.0
        %4455 = vmatpush2.msra.mxu0 0.0
        %4456 = vmatprep.mubr.f32.mxu0 0.0
        %4457 = vmatmul.mubr.f32.gmra.mxu0 %v4384
        %v4458 = vpop.f32.mrf.mxu0
        %v4459 = vadd.f32 0.0, %v4458
        %v4460 = vpop.f32.mrf.mxu0
        %4461 = vmatprep.mubr.f32.mxu0 0.0
        %4462 = vmatmul.mubr.f32.gmra.mxu0 %v4387
        %v4463 = vpop.f32.mrf.mxu0
        %v4464 = vadd.f32 0.0, %v4463
        %v4465 = vpop.f32.mrf.mxu0
        %4466 = vdwg.mxu0
        %v4468 = vsel %vm1115, %v3947, 0
        %v4471 = vsel %vm1115, %v3949, 0
        %v4474 = vsel %vm3968, %v3960, 0
        %4476 = vmatprep.subr.mxu0 0.0
        %4477 = vmatpush1.msra.mxu0 0.0
        %4478 = vmatprep.subr.mxu0 0.0
        %4479 = vmatpush1.msra.mxu0 0.0
        %4480 = vmatprep.subr.mxu0 0.0
        %4481 = vmatpush1.msra.mxu0 0.0
        %4482 = vmatprep.subr.mxu0 0.0
        %4483 = vmatpush1.msra.mxu0 0.0
        %4484 = vmatprep.subr.mxu0 0.0
        %4485 = vmatpush1.msra.mxu0 0.0
        %4486 = vmatprep.subr.mxu0 0.0
        %4487 = vmatpush1.msra.mxu0 0.0
        %4488 = vmatprep.subr.mxu0 0.0
        %4489 = vmatpush1.msra.mxu0 0.0
        %4490 = vmatprep.subr.mxu0 0.0
        %4491 = vmatpush1.msra.mxu0 0.0
        %4492 = vmatprep.subr.mxu0 0.0
        %4493 = vmatpush1.msra.mxu0 0.0
        %4494 = vmatprep.subr.mxu0 0.0
        %4495 = vmatpush1.msra.mxu0 0.0
        %4496 = vmatprep.subr.mxu0 0.0
        %4497 = vmatpush1.msra.mxu0 0.0
        %4498 = vmatprep.subr.mxu0 0.0
        %4499 = vmatpush1.msra.mxu0 0.0
        %4500 = vmatprep.subr.mxu0 0.0
        %4501 = vmatpush1.msra.mxu0 0.0
        %4502 = vmatprep.subr.mxu0 0.0
        %4503 = vmatpush1.msra.mxu0 0.0
        %4504 = vmatprep.subr.mxu0 0.0
        %4505 = vmatpush1.msra.mxu0 0.0
        %4506 = vmatprep.subr.mxu0 0.0
        %4507 = vmatpush1.msra.mxu0 %v4474
        %4508 = vmatprep.subr.mxu0 0.0
        %4509 = vmatpush2.msra.mxu0 0.0
        %4510 = vmatprep.subr.mxu0 0.0
        %4511 = vmatpush2.msra.mxu0 0.0
        %4512 = vmatprep.subr.mxu0 0.0
        %4513 = vmatpush2.msra.mxu0 0.0
        %4514 = vmatprep.subr.mxu0 0.0
        %4515 = vmatpush2.msra.mxu0 0.0
        %4516 = vmatprep.subr.mxu0 0.0
        %4517 = vmatpush2.msra.mxu0 0.0
        %4518 = vmatprep.subr.mxu0 0.0
        %4519 = vmatpush2.msra.mxu0 0.0
        %4520 = vmatprep.subr.mxu0 0.0
        %4521 = vmatpush2.msra.mxu0 0.0
        %4522 = vmatprep.subr.mxu0 0.0
        %4523 = vmatpush2.msra.mxu0 0.0
        %4524 = vmatprep.subr.mxu0 0.0
        %4525 = vmatpush2.msra.mxu0 0.0
        %4526 = vmatprep.subr.mxu0 0.0
        %4527 = vmatpush2.msra.mxu0 0.0
        %4528 = vmatprep.subr.mxu0 0.0
        %4529 = vmatpush2.msra.mxu0 0.0
        %4530 = vmatprep.subr.mxu0 0.0
        %4531 = vmatpush2.msra.mxu0 0.0
        %4532 = vmatprep.subr.mxu0 0.0
        %4533 = vmatpush2.msra.mxu0 0.0
        %4534 = vmatprep.subr.mxu0 0.0
        %4535 = vmatpush2.msra.mxu0 0.0
        %4536 = vmatprep.subr.mxu0 0.0
        %4537 = vmatpush2.msra.mxu0 0.0
        %4538 = vmatprep.subr.mxu0 0.0
        %4539 = vmatpush2.msra.mxu0 0.0
        %4540 = vmatprep.mubr.f32.mxu0 0.0
        %4541 = vmatmul.mubr.f32.gmra.mxu0 %v4468
        %v4542 = vpop.f32.mrf.mxu0
        %v4543 = vadd.f32 0.0, %v4542
        %v4544 = vpop.f32.mrf.mxu0
        %4545 = vmatprep.mubr.f32.mxu0 0.0
        %4546 = vmatmul.mubr.f32.gmra.mxu0 %v4471
        %v4547 = vpop.f32.mrf.mxu0
        %v4548 = vadd.f32 0.0, %v4547
        %v4549 = vpop.f32.mrf.mxu0
        %4550 = vdwg.mxu0
        %v4552 = vsel %vm1115, %v3951, 0
        %v4555 = vsel %vm1115, %v3953, 0
        %v4558 = vsel %vm3968, %v3961, 0
        %4560 = vmatprep.subr.mxu0 0.0
        %4561 = vmatpush1.msra.mxu0 0.0
        %4562 = vmatprep.subr.mxu0 0.0
        %4563 = vmatpush1.msra.mxu0 0.0
        %4564 = vmatprep.subr.mxu0 0.0
        %4565 = vmatpush1.msra.mxu0 0.0
        %4566 = vmatprep.subr.mxu0 0.0
        %4567 = vmatpush1.msra.mxu0 0.0
        %4568 = vmatprep.subr.mxu0 0.0
        %4569 = vmatpush1.msra.mxu0 0.0
        %4570 = vmatprep.subr.mxu0 0.0
        %4571 = vmatpush1.msra.mxu0 0.0
        %4572 = vmatprep.subr.mxu0 0.0
        %4573 = vmatpush1.msra.mxu0 0.0
        %4574 = vmatprep.subr.mxu0 0.0
        %4575 = vmatpush1.msra.mxu0 0.0
        %4576 = vmatprep.subr.mxu0 0.0
        %4577 = vmatpush1.msra.mxu0 0.0
        %4578 = vmatprep.subr.mxu0 0.0
        %4579 = vmatpush1.msra.mxu0 0.0
        %4580 = vmatprep.subr.mxu0 0.0
        %4581 = vmatpush1.msra.mxu0 0.0
        %4582 = vmatprep.subr.mxu0 0.0
        %4583 = vmatpush1.msra.mxu0 0.0
        %4584 = vmatprep.subr.mxu0 0.0
        %4585 = vmatpush1.msra.mxu0 0.0
        %4586 = vmatprep.subr.mxu0 0.0
        %4587 = vmatpush1.msra.mxu0 0.0
        %4588 = vmatprep.subr.mxu0 0.0
        %4589 = vmatpush1.msra.mxu0 0.0
        %4590 = vmatprep.subr.mxu0 0.0
        %4591 = vmatpush1.msra.mxu0 %v4558
        %4592 = vmatprep.subr.mxu0 0.0
        %4593 = vmatpush2.msra.mxu0 0.0
        %4594 = vmatprep.subr.mxu0 0.0
        %4595 = vmatpush2.msra.mxu0 0.0
        %4596 = vmatprep.subr.mxu0 0.0
        %4597 = vmatpush2.msra.mxu0 0.0
        %4598 = vmatprep.subr.mxu0 0.0
        %4599 = vmatpush2.msra.mxu0 0.0
        %4600 = vmatprep.subr.mxu0 0.0
        %4601 = vmatpush2.msra.mxu0 0.0
        %4602 = vmatprep.subr.mxu0 0.0
        %4603 = vmatpush2.msra.mxu0 0.0
        %4604 = vmatprep.subr.mxu0 0.0
        %4605 = vmatpush2.msra.mxu0 0.0
        %4606 = vmatprep.subr.mxu0 0.0
        %4607 = vmatpush2.msra.mxu0 0.0
        %4608 = vmatprep.subr.mxu0 0.0
        %4609 = vmatpush2.msra.mxu0 0.0
        %4610 = vmatprep.subr.mxu0 0.0
        %4611 = vmatpush2.msra.mxu0 0.0
        %4612 = vmatprep.subr.mxu0 0.0
        %4613 = vmatpush2.msra.mxu0 0.0
        %4614 = vmatprep.subr.mxu0 0.0
        %4615 = vmatpush2.msra.mxu0 0.0
        %4616 = vmatprep.subr.mxu0 0.0
        %4617 = vmatpush2.msra.mxu0 0.0
        %4618 = vmatprep.subr.mxu0 0.0
        %4619 = vmatpush2.msra.mxu0 0.0
        %4620 = vmatprep.subr.mxu0 0.0
        %4621 = vmatpush2.msra.mxu0 0.0
        %4622 = vmatprep.subr.mxu0 0.0
        %4623 = vmatpush2.msra.mxu0 0.0
        %4624 = vmatprep.mubr.f32.mxu0 0.0
        %4625 = vmatmul.mubr.f32.gmra.mxu0 %v4552
        %v4626 = vpop.f32.mrf.mxu0
        %v4627 = vadd.f32 0.0, %v4626
        %v4628 = vpop.f32.mrf.mxu0
        %4629 = vmatprep.mubr.f32.mxu0 0.0
        %4630 = vmatmul.mubr.f32.gmra.mxu0 %v4555
        %v4631 = vpop.f32.mrf.mxu0
        %v4632 = vadd.f32 0.0, %v4631
        %v4633 = vpop.f32.mrf.mxu0
        %4634 = vdwg.mxu0
        %v4635 = vsel %vm1033, %v4039, 0.0
        %v4636 = vsel %vm1033, %v4123, 0.0
        %v4637 = vadd.f32 %v4635, %v4636
        %v4638 = vsel %vm1033, %v4207, 0.0
        %v4639 = vadd.f32 %v4637, %v4638
        %v4640 = vsel %vm1033, %v4291, 0.0
        %v4641 = vadd.f32 %v4639, %v4640
        %v4642 = vsel %vm1033, %v4375, 0.0
        %v4643 = vadd.f32 %v4641, %v4642
        %v4644 = vsel %vm1033, %v4459, 0.0
        %v4645 = vadd.f32 %v4643, %v4644
        %v4646 = vsel %vm1033, %v4543, 0.0
        %v4647 = vadd.f32 %v4645, %v4646
        %v4648 = vsel %vm1033, %v4627, 0.0
        %v4649 = vadd.f32 %v4647, %v4648
        %v4650 = vsel %vm1033, %v4044, 0.0
        %v4651 = vsel %vm1033, %v4128, 0.0
        %v4652 = vadd.f32 %v4650, %v4651
        %v4653 = vsel %vm1033, %v4212, 0.0
        %v4654 = vadd.f32 %v4652, %v4653
        %v4655 = vsel %vm1033, %v4296, 0.0
        %v4656 = vadd.f32 %v4654, %v4655
        %v4657 = vsel %vm1033, %v4380, 0.0
        %v4658 = vadd.f32 %v4656, %v4657
        %v4659 = vsel %vm1033, %v4464, 0.0
        %v4660 = vadd.f32 %v4658, %v4659
        %v4661 = vsel %vm1033, %v4548, 0.0
        %v4662 = vadd.f32 %v4660, %v4661
        %v4663 = vsel %vm1033, %v4632, 0.0
        %v4664 = vadd.f32 %v4662, %v4663
        %v4665 = vld [vmem:[%s6] sm:$0x1]
        %v4667 = vlaneseq
        %v4668 = vshrl.u32 %v4667, 7
        %v4669 = vsub.s32 0, %v4668
        %v4670 = vrot.slane %v4665, %v4669
        %v4672 = vadd.f32 %v4649, %v4670
        %v4673 = vadd.f32 %v4664, %v4670
        %4674 = vst.msk [vmem:[%s329] sm:$0xff] %vm1033, %v4672
        %4675 = vst.msk [vmem:[%s329 + $0x8] sm:$0xff] %vm1033, %v4673
        %s4676 = sand.u32 %s211, 1
        %s4677 = scalar_lea.sflag [#allocation9], %s4676
        %s4678 = sand.u32 %s211, 1
        %s4679 = smul.addr %s4678, 16
        %s4680 = scalar_lea.vmem [#allocation8], %s4679
        // Predicated region
        $region53: #{tpu_custom_call.1} parent=47 // pred_check
          %p4681 = pneg %p221
        $region54: #{tpu_custom_call.1} parent=47 // pred_check_branch
          %4683 = sbr.rel (%p4681) target = $region56
        $region55: #{tpu_custom_call.1} parent=47 // pred_region
          %s4684 = smul.u32 2, %s27
          %s4686 = ssub.s32 256, 256
          %4687 = vsyncadd %s4677, %s4686
          %s4688 = smul.addr %s26, 2
          %s4689 = sadd.s32 %s4684, %s4688
          %s4690 = smul.addr %s4689, 128
          %s4691 = scalar_lea.hbm %s7, %s4690
          %s4692 = sshll.u32 %s4680, 4
          %s4693 = int_to_ptr.vmem [resolvable:$true] %s4692
          %4698 = dma.vmem_to_hbm [thread:$0]  %s4693, 256, %s4691, %s4677, 128, 128, 8
        $region56: #{tpu_custom_call.1} parent=47 // pred_fallthru
          _
      $region48: #{tpu_custom_call.1} parent=5 // pred_fallthru
        _
      %p4699 = scmp.le.s32.totalorder 2, %s16
      // Predicated region
      $region57: #{tpu_custom_call.1} parent=5 // pred_check
        %p4700 = pneg %p4699
      $region58: #{tpu_custom_call.1} parent=5 // pred_check_branch
        %4702 = sbr.rel (%p4700) target = $region60
      $region59: #{tpu_custom_call.1} parent=5 // pred_region
        %s4703 = ssub.s32 %s16, 2
        // Predicated region
        $region61: #{tpu_custom_call.1} parent=59 // pred_check
          %p4704 = pneg %p227
        $region62: #{tpu_custom_call.1} parent=59 // pred_check_branch
          %4706 = sbr.rel (%p4704) target = $region64
        $region63: #{tpu_custom_call.1} parent=59 // pred_region
          %s4707 = sand.u32 %s212, 1
          %s4708 = scalar_lea.sflag [#allocation9], %s4707
          %s4709 = sand.u32 %s212, 1
          %s4710 = smul.addr %s4709, 16
          %s4711 = scalar_lea.vmem [#allocation8], %s4710
          %4712 = dma.done %s4708, 256
        $region64: #{tpu_custom_call.1} parent=59 // pred_fallthru
          _
      $region60: #{tpu_custom_call.1} parent=5 // pred_fallthru
        _
    $region6: #{tpu_custom_call.1} parent=1 // loop_footer
      %s20 = sadd.s32 1, %s16
    $region7: #{tpu_custom_call.1} parent=1 // loop_footer_branch
      %15 = sbr.rel target = $region3
    $region8: #{tpu_custom_call.1} parent=1 // loop_exit
      _
    %4713 = vsyncpa [#allocation9], 1
    %s4714 = scalar_lea.sflag [#allocation9], 1
    %4715 = vsyncpa %s4714, 1

// kernel: tpu_custom_call.1
$region0: #{tpu_custom_call.1}
  #allocation0 [shape = 'u32[]', space=smem, size = 0x4, offset = 0x4, fixed_abs, tag = 'smem constant byte address 0x4 - core index']
  #allocation1 [shape = 'u32[144,128]{1,0:T(1,128)}', space=vmem, size = 0x12000, scoped, tag = 'internal scratch']
  #allocation2 [shape = 'f32[8,16,4]{2,1,0:T(8,128)}', space=vmem, size = 0x10000, scoped, tag = 'scratch operand']
  #allocation3 [shape = 'f32[8,16,4]{2,1,0:T(8,128)}', space=vmem, size = 0x10000, scoped, tag = 'scratch operand']
  #allocation4 [shape = 'f32[8,16,4]{2,1,0:T(8,128)}', space=vmem, size = 0x10000, scoped, tag = 'scratch operand']
  #allocation5 [shape = 'f32[8,16,1]{2,1,0:T(8,128)}', space=vmem, size = 0x10000, scoped, tag = 'scratch operand']
  #allocation6 [shape = 'f32[8,16,1]{2,1,0:T(8,128)}', space=vmem, size = 0x10000, scoped, tag = 'scratch operand']
  #allocation7 [shape = 'f32[8,16,4]{2,1,0:T(8,128)}', space=vmem, size = 0x10000, scoped, tag = 'scratch operand']
  %s0 = inlined_call_operand.vmem [shape: f32[2,16,32], index: 0, kind: input, shape index: {}]
  %s1 = inlined_call_operand.vmem [shape: f32[2,16,32], index: 1, kind: input, shape index: {}]
  %s2 = inlined_call_operand.vmem [shape: f32[8,32,4], index: 2, kind: input, shape index: {}]
  %s3 = inlined_call_operand.vmem [shape: f32[8,32,4], index: 3, kind: input, shape index: {}]
  %s4 = inlined_call_operand.vmem [shape: f32[8,32,4], index: 4, kind: input, shape index: {}]
  %s5 = inlined_call_operand.vmem [shape: f32[8,4,32], index: 5, kind: input, shape index: {}]
  %s6 = inlined_call_operand.vmem [shape: f32[1,32], index: 6, kind: input, shape index: {}]
  %s7 = inlined_call_operand.hbm [shape: f32[2,16,32], index: 7, kind: output, shape index: {}]
  %s8 = sld [smem:[#allocation0]]
  $region65: #{tpu_custom_call.1} parent=0
    _
  %s10 = ssub.s32 1, %s8
  %s11 = scalar_select 0, %s10, %s8
  $region1: #{tpu_custom_call.1} parent=0
    #allocation8 [shape = 'u8[16384]{0}', space=vmem, size = 0x4000, scoped, tag = 'output window, operand 0']
    #allocation9 [shape = 's32[2]{0}', space=sflag, size = 0x8, scoped, tag = 'scoped memory for tpu_custom_call.1']
    %12 = vsyncpa [#allocation9], 0
    %s13 = scalar_lea.sflag [#allocation9], 1
    %14 = vsyncpa %s13, 0
    loop: start=0, step=1, limit=4
    $region2: #{tpu_custom_call.1} parent=1 // loop_pre_header
      _
    $region3: #{tpu_custom_call.1} parent=1 // loop_header
      %s16 = sphi 0, %s20
      %p17 = scmp.ge.s32.totalorder %s16, 4
      %s23 = sphi 0, %s42
      %s24 = sphi 0, %s38
      %s25 = sphi 0, %s34
      %s26 = sphi 0, %s23
      %s27 = sphi 0, %s24
      %s28 = sphi 0, %s25
      %s29 = sphi 0, %s26
      %s30 = sphi 0, %s27
      %s31 = sphi 0, %s28
      %s47 = sphi 0, %s49
      %s50 = sphi 0, %s47
      %s51 = sphi 0, %s50
      %s67 = sphi 0, %s51
      %s75 = sphi 0, %s77
      %s78 = sphi 0, %s75
      %s79 = sphi 0, %s78
      %s95 = sphi 0, %s79
      %s99 = sphi 0, %s99
      %s101 = sphi 0, %s99
      %s102 = sphi 0, %s101
      %s116 = sphi 0, %s102
      %s120 = sphi 0, %s120
      %s122 = sphi 0, %s120
      %s123 = sphi 0, %s122
      %s137 = sphi 0, %s123
      %s141 = sphi 0, %s141
      %s143 = sphi 0, %s141
      %s144 = sphi 0, %s143
      %s158 = sphi 0, %s144
      %s162 = sphi 0, %s162
      %s164 = sphi 0, %s162
      %s165 = sphi 0, %s164
      %s179 = sphi 0, %s165
      %s183 = sphi 0, %s183
      %s185 = sphi 0, %s183
      %s186 = sphi 0, %s185
      %s200 = sphi 0, %s186
      %s208 = sphi 0, %s210
      %s211 = sphi 0, %s208
      %s212 = sphi 0, %s211
      %s228 = sphi 0, %s212
    $region4: #{tpu_custom_call.1} parent=1 // loop_header_branch
      %19 = sbr.rel (%p17) target = $region8
    $region5: #{tpu_custom_call.1} parent=1 // loop_body
      %s21 = ssub.s32 %s16, 1
      %s22 = ssub.s32 %s16, 2
      %s32 = sadd.s32 1, %s25
      %p33 = scmp.ge.s32.totalorder %s32, 1
      %s34 = scalar_select %p33, 0, %s32
      %s35 = sadd.s32 1, %s24
      %s36 = scalar_select %p33, %s35, %s24
      %p37 = scmp.ge.s32.totalorder %s36, 1
      %s38 = scalar_select %p37, 0, %s36
      %s39 = sadd.s32 1, %s23
      %s40 = scalar_select %p37, %s39, %s23
      %p41 = scmp.ge.s32.totalorder %s40, 2
      %s42 = scalar_select %p41, 0, %s40
      %s43 = ssub.s32 %s23, %s42
      %s44 = ssub.s32 %s24, %s38
      %s45 = sor.u32 %s43, %s44
      %p46 = scmp.eq.s32.totalorder %s45, 0
      %s48 = sadd.s32 %s47, 1
      %s49 = scalar_select %p46, %s47, %s48
      %p52 = pneg %p46
      %p53 = scmp.eq.s32.totalorder %s16, 1
      %p54 = por %p52, %p53
      %p55 = scmp.ne.s32.totalorder %s47, %s50
      %p56 = scmp.eq.s32.totalorder %s16, 0
      %p57 = por %p55, %p56
      %p58 = scmp.ne.s32.totalorder %s47, %s50
      %p59 = scmp.eq.s32.totalorder %s21, 1
      %p60 = por %p58, %p59
      %p61 = scmp.ne.s32.totalorder %s50, %s51
      %p62 = scmp.eq.s32.totalorder %s21, 0
      %p63 = por %p61, %p62
      %p64 = scmp.ne.s32.totalorder %s50, %s51
      %p65 = scmp.eq.s32.totalorder %s22, 1
      %p66 = por %p64, %p65
      %p68 = scmp.ne.s32.totalorder %s51, %s67
      %p69 = scmp.eq.s32.totalorder %s22, 0
      %p70 = por %p68, %p69
      %s71 = ssub.s32 %s23, %s42
      %s72 = ssub.s32 %s25, %s34
      %s73 = sor.u32 %s71, %s72
      %p74 = scmp.eq.s32.totalorder %s73, 0
      %s76 = sadd.s32 %s75, 1
      %s77 = scalar_select %p74, %s75, %s76
      %p80 = pneg %p74
      %p81 = scmp.eq.s32.totalorder %s16, 1
      %p82 = por %p80, %p81
      %p83 = scmp.ne.s32.totalorder %s75, %s78
      %p84 = scmp.eq.s32.totalorder %s16, 0
      %p85 = por %p83, %p84
      %p86 = scmp.ne.s32.totalorder %s75, %s78
      %p87 = scmp.eq.s32.totalorder %s21, 1
      %p88 = por %p86, %p87
      %p89 = scmp.ne.s32.totalorder %s78, %s79
      %p90 = scmp.eq.s32.totalorder %s21, 0
      %p91 = por %p89, %p90
      %p92 = scmp.ne.s32.totalorder %s78, %s79
      %p93 = scmp.eq.s32.totalorder %s22, 1
      %p94 = por %p92, %p93
      %p96 = scmp.ne.s32.totalorder %s79, %s95
      %p97 = scmp.eq.s32.totalorder %s22, 0
      %p98 = por %p96, %p97
      %s100 = sadd.s32 %s99, 1
      %p103 = scmp.eq.s32.totalorder %s16, 1
      %p104 = scmp.ne.s32.totalorder %s99, %s101
      %p105 = scmp.eq.s32.totalorder %s16, 0
      %p106 = por %p104, %p105
      %p107 = scmp.ne.s32.totalorder %s99, %s101
      %p108 = scmp.eq.s32.totalorder %s21, 1
      %p109 = por %p107, %p108
      %p110 = scmp.ne.s32.totalorder %s101, %s102
      %p111 = scmp.eq.s32.totalorder %s21, 0
      %p112 = por %p110, %p111
      %p113 = scmp.ne.s32.totalorder %s101, %s102
      %p114 = scmp.eq.s32.totalorder %s22, 1
      %p115 = por %p113, %p114
      %p117 = scmp.ne.s32.totalorder %s102, %s116
      %p118 = scmp.eq.s32.totalorder %s22, 0
      %p119 = por %p117, %p118
      %s121 = sadd.s32 %s120, 1
      %p124 = scmp.eq.s32.totalorder %s16, 1
      %p125 = scmp.ne.s32.totalorder %s120, %s122
      %p126 = scmp.eq.s32.totalorder %s16, 0
      %p127 = por %p125, %p126
      %p128 = scmp.ne.s32.totalorder %s120, %s122
      %p129 = scmp.eq.s32.totalorder %s21, 1
      %p130 = por %p128, %p129
      %p131 = scmp.ne.s32.totalorder %s122, %s123
      %p132 = scmp.eq.s32.totalorder %s21, 0
      %p133 = por %p131, %p132
      %p134 = scmp.ne.s32.totalorder %s122, %s123
      %p135 = scmp.eq.s32.totalorder %s22, 1
      %p136 = por %p134, %p135
      %p138 = scmp.ne.s32.totalorder %s123, %s137
      %p139 = scmp.eq.s32.totalorder %s22, 0
      %p140 = por %p138, %p139
      %s142 = sadd.s32 %s141, 1
      %p145 = scmp.eq.s32.totalorder %s16, 1
      %p146 = scmp.ne.s32.totalorder %s141, %s143
      %p147 = scmp.eq.s32.totalorder %s16, 0
      %p148 = por %p146, %p147
      %p149 = scmp.ne.s32.totalorder %s141, %s143
      %p150 = scmp.eq.s32.totalorder %s21, 1
      %p151 = por %p149, %p150
      %p152 = scmp.ne.s32.totalorder %s143, %s144
      %p153 = scmp.eq.s32.totalorder %s21, 0
      %p154 = por %p152, %p153
      %p155 = scmp.ne.s32.totalorder %s143, %s144
      %p156 = scmp.eq.s32.totalorder %s22, 1
      %p157 = por %p155, %p156
      %p159 = scmp.ne.s32.totalorder %s144, %s158
      %p160 = scmp.eq.s32.totalorder %s22, 0
      %p161 = por %p159, %p160
      %s163 = sadd.s32 %s162, 1
      %p166 = scmp.eq.s32.totalorder %s16, 1
      %p167 = scmp.ne.s32.totalorder %s162, %s164
      %p168 = scmp.eq.s32.totalorder %s16, 0
      %p169 = por %p167, %p168
      %p170 = scmp.ne.s32.totalorder %s162, %s164
      %p171 = scmp.eq.s32.totalorder %s21, 1
      %p172 = por %p170, %p171
      %p173 = scmp.ne.s32.totalorder %s164, %s165
      %p174 = scmp.eq.s32.totalorder %s21, 0
      %p175 = por %p173, %p174
      %p176 = scmp.ne.s32.totalorder %s164, %s165
      %p177 = scmp.eq.s32.totalorder %s22, 1
      %p178 = por %p176, %p177
      %p180 = scmp.ne.s32.totalorder %s165, %s179
      %p181 = scmp.eq.s32.totalorder %s22, 0
      %p182 = por %p180, %p181
      %s184 = sadd.s32 %s183, 1
      %p187 = scmp.eq.s32.totalorder %s16, 1
      %p188 = scmp.ne.s32.totalorder %s183, %s185
      %p189 = scmp.eq.s32.totalorder %s16, 0
      %p190 = por %p188, %p189
      %p191 = scmp.ne.s32.totalorder %s183, %s185
      %p192 = scmp.eq.s32.totalorder %s21, 1
      %p193 = por %p191, %p192
      %p194 = scmp.ne.s32.totalorder %s185, %s186
      %p195 = scmp.eq.s32.totalorder %s21, 0
      %p196 = por %p194, %p195
      %p197 = scmp.ne.s32.totalorder %s185, %s186
      %p198 = scmp.eq.s32.totalorder %s22, 1
      %p199 = por %p197, %p198
      %p201 = scmp.ne.s32.totalorder %s186, %s200
      %p202 = scmp.eq.s32.totalorder %s22, 0
      %p203 = por %p201, %p202
      %s204 = ssub.s32 %s23, %s42
      %s205 = ssub.s32 %s24, %s38
      %s206 = sor.u32 %s204, %s205
      %p207 = scmp.eq.s32.totalorder %s206, 0
      %s209 = sadd.s32 %s208, 1
      %s210 = scalar_select %p207, %s208, %s209
      %p213 = pneg %p207
      %p214 = scmp.eq.s32.totalorder %s16, 1
      %p215 = por %p213, %p214
      %p216 = scmp.ne.s32.totalorder %s208, %s211
      %p217 = scmp.eq.s32.totalorder %s16, 0
      %p218 = por %p216, %p217
      %p219 = scmp.ne.s32.totalorder %s208, %s211
      %p220 = scmp.eq.s32.totalorder %s21, 1
      %p221 = por %p219, %p220
      %p222 = scmp.ne.s32.totalorder %s211, %s212
      %p223 = scmp.eq.s32.totalorder %s21, 0
      %p224 = por %p222, %p223
      %p225 = scmp.ne.s32.totalorder %s211, %s212
      %p226 = scmp.eq.s32.totalorder %s22, 1
      %p227 = por %p225, %p226
      %p229 = scmp.ne.s32.totalorder %s212, %s228
      %p230 = scmp.eq.s32.totalorder %s22, 0
      %p231 = por %p229, %p230
      %p232 = scmp.le.s32.totalorder 1, %s16
      %p233 = scmp.lt.s32.totalorder %s16, 3
      %p234 = pnand %p232, %p233
      %p235 = pneg %p234
      // Predicated region
      $region9: #{tpu_custom_call.1} parent=5 // pred_check
        _
      $region10: #{tpu_custom_call.1} parent=5 // pred_check_branch
        %237 = sbr.rel (%p234) target = $region12
      $region11: #{tpu_custom_call.1} parent=5 // pred_region
        %s238 = ssub.s32 %s16, 1
        // Predicated region
        $region13: #{tpu_custom_call.1} parent=11 // pred_check
          %p239 = pneg %p112
        $region14: #{tpu_custom_call.1} parent=11 // pred_check_branch
          %241 = sbr.rel (%p239) target = $region16
        $region15: #{tpu_custom_call.1} parent=11 // pred_region
          _
        $region16: #{tpu_custom_call.1} parent=11 // pred_fallthru
          _
        // Predicated region
        $region17: #{tpu_custom_call.1} parent=11 // pred_check
          %p242 = pneg %p133
        $region18: #{tpu_custom_call.1} parent=11 // pred_check_branch
          %244 = sbr.rel (%p242) target = $region20
        $region19: #{tpu_custom_call.1} parent=11 // pred_region
          _
        $region20: #{tpu_custom_call.1} parent=11 // pred_fallthru
          _
        // Predicated region
        $region21: #{tpu_custom_call.1} parent=11 // pred_check
          %p245 = pneg %p154
        $region22: #{tpu_custom_call.1} parent=11 // pred_check_branch
          %247 = sbr.rel (%p245) target = $region24
        $region23: #{tpu_custom_call.1} parent=11 // pred_region
          _
        $region24: #{tpu_custom_call.1} parent=11 // pred_fallthru
          _
        // Predicated region
        $region25: #{tpu_custom_call.1} parent=11 // pred_check
          %p248 = pneg %p175
        $region26: #{tpu_custom_call.1} parent=11 // pred_check_branch
          %250 = sbr.rel (%p248) target = $region28
        $region27: #{tpu_custom_call.1} parent=11 // pred_region
          _
        $region28: #{tpu_custom_call.1} parent=11 // pred_fallthru
          _
        // Predicated region
        $region29: #{tpu_custom_call.1} parent=11 // pred_check
          %p251 = pneg %p196
        $region30: #{tpu_custom_call.1} parent=11 // pred_check_branch
          %253 = sbr.rel (%p251) target = $region32
        $region31: #{tpu_custom_call.1} parent=11 // pred_region
          _
        $region32: #{tpu_custom_call.1} parent=11 // pred_fallthru
          _
      $region12: #{tpu_custom_call.1} parent=5 // pred_fallthru
        _
      %p254 = scmp.lt.s32.totalorder %s16, 2
      // Predicated region
      $region33: #{tpu_custom_call.1} parent=5 // pred_check
        %p255 = pneg %p254
      $region34: #{tpu_custom_call.1} parent=5 // pred_check_branch
        %257 = sbr.rel (%p255) target = $region36
      $region35: #{tpu_custom_call.1} parent=5 // pred_region
        // Predicated region
        $region37: #{tpu_custom_call.1} parent=35 // pred_check
          %p258 = pneg %p57
        $region38: #{tpu_custom_call.1} parent=35 // pred_check_branch
          %260 = sbr.rel (%p258) target = $region40
        $region39: #{tpu_custom_call.1} parent=35 // pred_region
          %s261 = smul.u32 2, %s24
          %p262 = scmp.lt.s32.totalorder %s23, 1
          %s263 = scalar_select %p262, %s23, 1
          %p264 = scmp.lt.s32.totalorder %s261, 1
          %s265 = scalar_select %p264, %s261, 1
          %s266 = smul.addr %s263, 2
          %s267 = sadd.s32 %s265, %s266
          %s268 = smul.addr %s267, 8
          %s269 = scalar_lea.vmem %s0, %s268
          %s270 = smul.u32 2, %s24
        $region40: #{tpu_custom_call.1} parent=35 // pred_fallthru
          _
        // Predicated region
        $region41: #{tpu_custom_call.1} parent=35 // pred_check
          %p271 = pneg %p85
        $region42: #{tpu_custom_call.1} parent=35 // pred_check_branch
          %273 = sbr.rel (%p271) target = $region44
        $region43: #{tpu_custom_call.1} parent=35 // pred_region
          %s274 = smul.u32 2, %s25
          %p275 = scmp.lt.s32.totalorder %s23, 1
          %s276 = scalar_select %p275, %s23, 1
          %p277 = scmp.lt.s32.totalorder %s274, 1
          %s278 = scalar_select %p277, %s274, 1
          %s279 = smul.addr %s276, 2
          %s280 = sadd.s32 %s278, %s279
          %s281 = smul.addr %s280, 8
          %s282 = scalar_lea.vmem %s1, %s281
          %s283 = smul.u32 2, %s25
        $region44: #{tpu_custom_call.1} parent=35 // pred_fallthru
          _
      $region36: #{tpu_custom_call.1} parent=5 // pred_fallthru
        _
      %p284 = scmp.le.s32.totalorder 1, %s16
      %p285 = scmp.lt.s32.totalorder %s16, 3
      %p286 = pnand %p284, %p285
      %p287 = pneg %p286
      // Predicated region
      $region45: #{tpu_custom_call.1} parent=5 // pred_check
        _
      $region46: #{tpu_custom_call.1} parent=5 // pred_check_branch
        %289 = sbr.rel (%p286) target = $region48
      $region47: #{tpu_custom_call.1} parent=5 // pred_region
        %s290 = ssub.s32 %s16, 1
        %s291 = smul.u32 2, %s27
        %p292 = scmp.lt.s32.totalorder %s26, 1
        %s293 = scalar_select %p292, %s26, 1
        %p294 = scmp.lt.s32.totalorder %s291, 1
        %s295 = scalar_select %p294, %s291, 1
        %s296 = smul.addr %s293, 2
        %s297 = sadd.s32 %s295, %s296
        %s298 = smul.addr %s297, 8
        %s299 = scalar_lea.vmem %s0, %s298
        %p300 = pneg %p63
        %p301 = pneg %p60
        %s302 = smul.u32 2, %s28
        %p303 = scmp.lt.s32.totalorder %s26, 1
        %s304 = scalar_select %p303, %s26, 1
        %p305 = scmp.lt.s32.totalorder %s302, 1
        %s306 = scalar_select %p305, %s302, 1
        %s307 = smul.addr %s304, 2
        %s308 = sadd.s32 %s306, %s307
        %s309 = smul.addr %s308, 8
        %s310 = scalar_lea.vmem %s1, %s309
        %p311 = pneg %p91
        %p312 = pneg %p88
        %p313 = pneg %p112
        %p314 = pneg %p109
        %p315 = pneg %p133
        %p316 = pneg %p130
        %p317 = pneg %p154
        %p318 = pneg %p151
        %p319 = pneg %p175
        %p320 = pneg %p172
        %p321 = pneg %p196
        %p322 = pneg %p193
        %p323 = pneg %p224
        %p324 = pneg %p221
        %s325 = sand.u32 %s211, 1
        %s326 = scalar_lea.sflag [#allocation9], %s325
        %s327 = sand.u32 %s211, 1
        %s328 = smul.addr %s327, 16
        %s329 = scalar_lea.vmem [#allocation8], %s328
        %s330 = smul.u32 2, %s27
        %p331 = scmp.lt.s32.totalorder %s26, 1
        %s332 = scalar_select %p331, %s26, 1
        %p333 = scmp.lt.s32.totalorder %s330, 1
        %s334 = scalar_select %p333, %s330, 1
        %s335 = smul.addr %s332, 2
        %s336 = sadd.s32 %s334, %s335
        %s337 = smul.addr %s336, 8
        %s338 = scalar_lea.vmem %s0, %s337
        %s339 = smul.u32 2, %s27
        %s340 = smul.u32 2, %s28
        %p341 = scmp.lt.s32.totalorder %s26, 1
        %s342 = scalar_select %p341, %s26, 1
        %p343 = scmp.lt.s32.totalorder %s340, 1
        %s344 = scalar_select %p343, %s340, 1
        %s345 = smul.addr %s342, 2
        %s346 = sadd.s32 %s344, %s345
        %s347 = smul.addr %s346, 8
        %s348 = scalar_lea.vmem %s1, %s347
        %s349 = smul.u32 2, %s28
        %s350 = smul.u32 2, %s27
        %p351 = scmp.eq.s32.totalorder %s28, 0
        // Predicated region
        $region49: #{tpu_custom_call.1} parent=47 // pred_check
          %p352 = pneg %p351
        $region50: #{tpu_custom_call.1} parent=47 // pred_check_branch
          %354 = sbr.rel (%p352) target = $region52
        $region51: #{tpu_custom_call.1} parent=47 // pred_region
          %v355 = vld [vmem:[%s338] sm:$0xff]
          %v356 = vld [vmem:[%s338 + $0x8] sm:$0xff]
          %v357 = vld [vmem:[%s2] sm:$0xff]
          %v358 = vld [vmem:[%s2 + $0x8] sm:$0xff]
          %v359 = vld [vmem:[%s2 + $0x10] sm:$0xff]
          %v360 = vld [vmem:[%s2 + $0x18] sm:$0xff]
          %vm361 = vcmask 261120
          %v363 = vsel %vm361, %v355, 0
          %v366 = vsel %vm361, %v356, 0
          %368 = vmatprep.subr.mxu0 0.0
          %369 = vmatpush1.msra.mxu0 0.0
          %370 = vmatprep.subr.mxu0 0.0
          %371 = vmatpush1.msra.mxu0 0.0
          %372 = vmatprep.subr.mxu0 0.0
          %373 = vmatpush1.msra.mxu0 0.0
          %374 = vmatprep.subr.mxu0 0.0
          %375 = vmatpush1.msra.mxu0 0.0
          %376 = vmatprep.subr.mxu0 0.0
          %377 = vmatpush1.msra.mxu0 0.0
          %378 = vmatprep.subr.mxu0 0.0
          %379 = vmatpush1.msra.mxu0 0.0
          %380 = vmatprep.subr.mxu0 0.0
          %381 = vmatpush1.msra.mxu0 0.0
          %382 = vmatprep.subr.mxu0 0.0
          %383 = vmatpush1.msra.mxu0 0.0
          %384 = vmatprep.subr.mxu0 0.0
          %385 = vmatpush1.msra.mxu0 0.0
          %386 = vmatprep.subr.mxu0 0.0
          %387 = vmatpush1.msra.mxu0 0.0
          %388 = vmatprep.subr.mxu0 0.0
          %389 = vmatpush1.msra.mxu0 0.0
          %390 = vmatprep.subr.mxu0 0.0
          %391 = vmatpush1.msra.mxu0 0.0
          %392 = vmatprep.subr.mxu0 0.0
          %393 = vmatpush1.msra.mxu0 %v360
          %394 = vmatprep.subr.mxu0 0.0
          %395 = vmatpush1.msra.mxu0 %v359
          %396 = vmatprep.subr.mxu0 0.0
          %397 = vmatpush1.msra.mxu0 %v358
          %398 = vmatprep.subr.mxu0 0.0
          %399 = vmatpush1.msra.mxu0 %v357
          %400 = vmatprep.subr.mxu0 0.0
          %401 = vmatpush2.msra.mxu0 0.0
          %402 = vmatprep.subr.mxu0 0.0
          %403 = vmatpush2.msra.mxu0 0.0
          %404 = vmatprep.subr.mxu0 0.0
          %405 = vmatpush2.msra.mxu0 0.0
          %406 = vmatprep.subr.mxu0 0.0
          %407 = vmatpush2.msra.mxu0 0.0
          %408 = vmatprep.subr.mxu0 0.0
          %409 = vmatpush2.msra.mxu0 0.0
          %410 = vmatprep.subr.mxu0 0.0
          %411 = vmatpush2.msra.mxu0 0.0
          %412 = vmatprep.subr.mxu0 0.0
          %413 = vmatpush2.msra.mxu0 0.0
          %414 = vmatprep.subr.mxu0 0.0
          %415 = vmatpush2.msra.mxu0 0.0
          %416 = vmatprep.subr.mxu0 0.0
          %417 = vmatpush2.msra.mxu0 0.0
          %418 = vmatprep.subr.mxu0 0.0
          %419 = vmatpush2.msra.mxu0 0.0
          %420 = vmatprep.subr.mxu0 0.0
          %421 = vmatpush2.msra.mxu0 0.0
          %422 = vmatprep.subr.mxu0 0.0
          %423 = vmatpush2.msra.mxu0 0.0
          %424 = vmatprep.subr.mxu0 0.0
          %425 = vmatpush2.msra.mxu0 0.0
          %426 = vmatprep.subr.mxu0 0.0
          %427 = vmatpush2.msra.mxu0 0.0
          %428 = vmatprep.subr.mxu0 0.0
          %429 = vmatpush2.msra.mxu0 0.0
          %430 = vmatprep.subr.mxu0 0.0
          %431 = vmatpush2.msra.mxu0 0.0
          %432 = vmatprep.mubr.f32.mxu0 0.0
          %433 = vmatmul.mubr.f32.gmra.mxu0 %v363
          %v434 = vpop.f32.mrf.mxu0
          %v435 = vadd.f32 0.0, %v434
          %v436 = vpop.f32.mrf.mxu0
          %437 = vmatprep.mubr.f32.mxu0 0.0
          %438 = vmatmul.mubr.f32.gmra.mxu0 %v366
          %v439 = vpop.f32.mrf.mxu0
          %v440 = vadd.f32 0.0, %v439
          %v441 = vpop.f32.mrf.mxu0
          %442 = vdwg.mxu0
          %vm443 = vcmask 31744
          %444 = vst.msk [vmem:[#allocation2] sm:$0xff] %vm443, %v435
          %445 = vst.msk [vmem:[#allocation2 + $0x8] sm:$0xff] %vm443, %v440
          %s446 = scalar_lea.vmem %s2, 32
          %v447 = vld [vmem:[%s446] sm:$0xff]
          %v448 = vld [vmem:[%s446 + $0x8] sm:$0xff]
          %v449 = vld [vmem:[%s446 + $0x10] sm:$0xff]
          %v450 = vld [vmem:[%s446 + $0x18] sm:$0xff]
          %451 = vmatprep.subr.mxu0 0.0
          %452 = vmatpush1.msra.mxu0 0.0
          %453 = vmatprep.subr.mxu0 0.0
          %454 = vmatpush1.msra.mxu0 0.0
          %455 = vmatprep.subr.mxu0 0.0
          %456 = vmatpush1.msra.mxu0 0.0
          %457 = vmatprep.subr.mxu0 0.0
          %458 = vmatpush1.msra.mxu0 0.0
          %459 = vmatprep.subr.mxu0 0.0
          %460 = vmatpush1.msra.mxu0 0.0
          %461 = vmatprep.subr.mxu0 0.0
          %462 = vmatpush1.msra.mxu0 0.0
          %463 = vmatprep.subr.mxu0 0.0
          %464 = vmatpush1.msra.mxu0 0.0
          %465 = vmatprep.subr.mxu0 0.0
          %466 = vmatpush1.msra.mxu0 0.0
          %467 = vmatprep.subr.mxu0 0.0
          %468 = vmatpush1.msra.mxu0 0.0
          %469 = vmatprep.subr.mxu0 0.0
          %470 = vmatpush1.msra.mxu0 0.0
          %471 = vmatprep.subr.mxu0 0.0
          %472 = vmatpush1.msra.mxu0 0.0
          %473 = vmatprep.subr.mxu0 0.0
          %474 = vmatpush1.msra.mxu0 0.0
          %475 = vmatprep.subr.mxu0 0.0
          %476 = vmatpush1.msra.mxu0 %v450
          %477 = vmatprep.subr.mxu0 0.0
          %478 = vmatpush1.msra.mxu0 %v449
          %479 = vmatprep.subr.mxu0 0.0
          %480 = vmatpush1.msra.mxu0 %v448
          %481 = vmatprep.subr.mxu0 0.0
          %482 = vmatpush1.msra.mxu0 %v447
          %483 = vmatprep.subr.mxu0 0.0
          %484 = vmatpush2.msra.mxu0 0.0
          %485 = vmatprep.subr.mxu0 0.0
          %486 = vmatpush2.msra.mxu0 0.0
          %487 = vmatprep.subr.mxu0 0.0
          %488 = vmatpush2.msra.mxu0 0.0
          %489 = vmatprep.subr.mxu0 0.0
          %490 = vmatpush2.msra.mxu0 0.0
          %491 = vmatprep.subr.mxu0 0.0
          %492 = vmatpush2.msra.mxu0 0.0
          %493 = vmatprep.subr.mxu0 0.0
          %494 = vmatpush2.msra.mxu0 0.0
          %495 = vmatprep.subr.mxu0 0.0
          %496 = vmatpush2.msra.mxu0 0.0
          %497 = vmatprep.subr.mxu0 0.0
          %498 = vmatpush2.msra.mxu0 0.0
          %499 = vmatprep.subr.mxu0 0.0
          %500 = vmatpush2.msra.mxu0 0.0
          %501 = vmatprep.subr.mxu0 0.0
          %502 = vmatpush2.msra.mxu0 0.0
          %503 = vmatprep.subr.mxu0 0.0
          %504 = vmatpush2.msra.mxu0 0.0
          %505 = vmatprep.subr.mxu0 0.0
          %506 = vmatpush2.msra.mxu0 0.0
          %507 = vmatprep.subr.mxu0 0.0
          %508 = vmatpush2.msra.mxu0 0.0
          %509 = vmatprep.subr.mxu0 0.0
          %510 = vmatpush2.msra.mxu0 0.0
          %511 = vmatprep.subr.mxu0 0.0
          %512 = vmatpush2.msra.mxu0 0.0
          %513 = vmatprep.subr.mxu0 0.0
          %514 = vmatpush2.msra.mxu0 0.0
          %515 = vmatprep.mubr.f32.mxu0 0.0
          %516 = vmatmul.mubr.f32.gmra.mxu0 %v363
          %v517 = vpop.f32.mrf.mxu0
          %v518 = vadd.f32 0.0, %v517
          %v519 = vpop.f32.mrf.mxu0
          %520 = vmatprep.mubr.f32.mxu0 0.0
          %521 = vmatmul.mubr.f32.gmra.mxu0 %v366
          %v522 = vpop.f32.mrf.mxu0
          %v523 = vadd.f32 0.0, %v522
          %v524 = vpop.f32.mrf.mxu0
          %525 = vdwg.mxu0
          %s526 = scalar_lea.vmem [#allocation2], 16
          %527 = vst.msk [vmem:[%s526] sm:$0xff] %vm443, %v518
          %528 = vst.msk [vmem:[%s526 + $0x8] sm:$0xff] %vm443, %v523
          %s529 = scalar_lea.vmem %s2, 64
          %v530 = vld [vmem:[%s529] sm:$0xff]
          %v531 = vld [vmem:[%s529 + $0x8] sm:$0xff]
          %v532 = vld [vmem:[%s529 + $0x10] sm:$0xff]
          %v533 = vld [vmem:[%s529 + $0x18] sm:$0xff]
          %534 = vmatprep.subr.mxu0 0.0
          %535 = vmatpush1.msra.mxu0 0.0
          %536 = vmatprep.subr.mxu0 0.0
          %537 = vmatpush1.msra.mxu0 0.0
          %538 = vmatprep.subr.mxu0 0.0
          %539 = vmatpush1.msra.mxu0 0.0
          %540 = vmatprep.subr.mxu0 0.0
          %541 = vmatpush1.msra.mxu0 0.0
          %542 = vmatprep.subr.mxu0 0.0
          %543 = vmatpush1.msra.mxu0 0.0
          %544 = vmatprep.subr.mxu0 0.0
          %545 = vmatpush1.msra.mxu0 0.0
          %546 = vmatprep.subr.mxu0 0.0
          %547 = vmatpush1.msra.mxu0 0.0
          %548 = vmatprep.subr.mxu0 0.0
          %549 = vmatpush1.msra.mxu0 0.0
          %550 = vmatprep.subr.mxu0 0.0
          %551 = vmatpush1.msra.mxu0 0.0
          %552 = vmatprep.subr.mxu0 0.0
          %553 = vmatpush1.msra.mxu0 0.0
          %554 = vmatprep.subr.mxu0 0.0
          %555 = vmatpush1.msra.mxu0 0.0
          %556 = vmatprep.subr.mxu0 0.0
          %557 = vmatpush1.msra.mxu0 0.0
          %558 = vmatprep.subr.mxu0 0.0
          %559 = vmatpush1.msra.mxu0 %v533
          %560 = vmatprep.subr.mxu0 0.0
          %561 = vmatpush1.msra.mxu0 %v532
          %562 = vmatprep.subr.mxu0 0.0
          %563 = vmatpush1.msra.mxu0 %v531
          %564 = vmatprep.subr.mxu0 0.0
          %565 = vmatpush1.msra.mxu0 %v530
          %566 = vmatprep.subr.mxu0 0.0
          %567 = vmatpush2.msra.mxu0 0.0
          %568 = vmatprep.subr.mxu0 0.0
          %569 = vmatpush2.msra.mxu0 0.0
          %570 = vmatprep.subr.mxu0 0.0
          %571 = vmatpush2.msra.mxu0 0.0
          %572 = vmatprep.subr.mxu0 0.0
          %573 = vmatpush2.msra.mxu0 0.0
          %574 = vmatprep.subr.mxu0 0.0
          %575 = vmatpush2.msra.mxu0 0.0
          %576 = vmatprep.subr.mxu0 0.0
          %577 = vmatpush2.msra.mxu0 0.0
          %578 = vmatprep.subr.mxu0 0.0
          %579 = vmatpush2.msra.mxu0 0.0
          %580 = vmatprep.subr.mxu0 0.0
          %581 = vmatpush2.msra.mxu0 0.0
          %582 = vmatprep.subr.mxu0 0.0
          %583 = vmatpush2.msra.mxu0 0.0
          %584 = vmatprep.subr.mxu0 0.0
          %585 = vmatpush2.msra.mxu0 0.0
          %586 = vmatprep.subr.mxu0 0.0
          %587 = vmatpush2.msra.mxu0 0.0
          %588 = vmatprep.subr.mxu0 0.0
          %589 = vmatpush2.msra.mxu0 0.0
          %590 = vmatprep.subr.mxu0 0.0
          %591 = vmatpush2.msra.mxu0 0.0
          %592 = vmatprep.subr.mxu0 0.0
          %593 = vmatpush2.msra.mxu0 0.0
          %594 = vmatprep.subr.mxu0 0.0
          %595 = vmatpush2.msra.mxu0 0.0
          %596 = vmatprep.subr.mxu0 0.0
          %597 = vmatpush2.msra.mxu0 0.0
          %598 = vmatprep.mubr.f32.mxu0 0.0
          %599 = vmatmul.mubr.f32.gmra.mxu0 %v363
          %v600 = vpop.f32.mrf.mxu0
          %v601 = vadd.f32 0.0, %v600
          %v602 = vpop.f32.mrf.mxu0
          %603 = vmatprep.mubr.f32.mxu0 0.0
          %604 = vmatmul.mubr.f32.gmra.mxu0 %v366
          %v605 = vpop.f32.mrf.mxu0
          %v606 = vadd.f32 0.0, %v605
          %v607 = vpop.f32.mrf.mxu0
          %608 = vdwg.mxu0
          %s609 = scalar_lea.vmem [#allocation2], 32
          %610 = vst.msk [vmem:[%s609] sm:$0xff] %vm443, %v601
          %611 = vst.msk [vmem:[%s609 + $0x8] sm:$0xff] %vm443, %v606
          %s612 = scalar_lea.vmem %s2, 96
          %v613 = vld [vmem:[%s612] sm:$0xff]
          %v614 = vld [vmem:[%s612 + $0x8] sm:$0xff]
          %v615 = vld [vmem:[%s612 + $0x10] sm:$0xff]
          %v616 = vld [vmem:[%s612 + $0x18] sm:$0xff]
          %617 = vmatprep.subr.mxu0 0.0
          %618 = vmatpush1.msra.mxu0 0.0
          %619 = vmatprep.subr.mxu0 0.0
          %620 = vmatpush1.msra.mxu0 0.0
          %621 = vmatprep.subr.mxu0 0.0
          %622 = vmatpush1.msra.mxu0 0.0
          %623 = vmatprep.subr.mxu0 0.0
          %624 = vmatpush1.msra.mxu0 0.0
          %625 = vmatprep.subr.mxu0 0.0
          %626 = vmatpush1.msra.mxu0 0.0
          %627 = vmatprep.subr.mxu0 0.0
          %628 = vmatpush1.msra.mxu0 0.0
          %629 = vmatprep.subr.mxu0 0.0
          %630 = vmatpush1.msra.mxu0 0.0
          %631 = vmatprep.subr.mxu0 0.0
          %632 = vmatpush1.msra.mxu0 0.0
          %633 = vmatprep.subr.mxu0 0.0
          %634 = vmatpush1.msra.mxu0 0.0
          %635 = vmatprep.subr.mxu0 0.0
          %636 = vmatpush1.msra.mxu0 0.0
          %637 = vmatprep.subr.mxu0 0.0
          %638 = vmatpush1.msra.mxu0 0.0
          %639 = vmatprep.subr.mxu0 0.0
          %640 = vmatpush1.msra.mxu0 0.0
          %641 = vmatprep.subr.mxu0 0.0
          %642 = vmatpush1.msra.mxu0 %v616
          %643 = vmatprep.subr.mxu0 0.0
          %644 = vmatpush1.msra.mxu0 %v615
          %645 = vmatprep.subr.mxu0 0.0
          %646 = vmatpush1.msra.mxu0 %v614
          %647 = vmatprep.subr.mxu0 0.0
          %648 = vmatpush1.msra.mxu0 %v613
          %649 = vmatprep.subr.mxu0 0.0
          %650 = vmatpush2.msra.mxu0 0.0
          %651 = vmatprep.subr.mxu0 0.0
          %652 = vmatpush2.msra.mxu0 0.0
          %653 = vmatprep.subr.mxu0 0.0
          %654 = vmatpush2.msra.mxu0 0.0
          %655 = vmatprep.subr.mxu0 0.0
          %656 = vmatpush2.msra.mxu0 0.0
          %657 = vmatprep.subr.mxu0 0.0
          %658 = vmatpush2.msra.mxu0 0.0
          %659 = vmatprep.subr.mxu0 0.0
          %660 = vmatpush2.msra.mxu0 0.0
          %661 = vmatprep.subr.mxu0 0.0
          %662 = vmatpush2.msra.mxu0 0.0
          %663 = vmatprep.subr.mxu0 0.0
          %664 = vmatpush2.msra.mxu0 0.0
          %665 = vmatprep.subr.mxu0 0.0
          %666 = vmatpush2.msra.mxu0 0.0
          %667 = vmatprep.subr.mxu0 0.0
          %668 = vmatpush2.msra.mxu0 0.0
          %669 = vmatprep.subr.mxu0 0.0
          %670 = vmatpush2.msra.mxu0 0.0
          %671 = vmatprep.subr.mxu0 0.0
          %672 = vmatpush2.msra.mxu0 0.0
          %673 = vmatprep.subr.mxu0 0.0
          %674 = vmatpush2.msra.mxu0 0.0
          %675 = vmatprep.subr.mxu0 0.0
          %676 = vmatpush2.msra.mxu0 0.0
          %677 = vmatprep.subr.mxu0 0.0
          %678 = vmatpush2.msra.mxu0 0.0
          %679 = vmatprep.subr.mxu0 0.0
          %680 = vmatpush2.msra.mxu0 0.0
          %681 = vmatprep.mubr.f32.mxu0 0.0
          %682 = vmatmul.mubr.f32.gmra.mxu0 %v363
          %v683 = vpop.f32.mrf.mxu0
          %v684 = vadd.f32 0.0, %v683
          %v685 = vpop.f32.mrf.mxu0
          %686 = vmatprep.mubr.f32.mxu0 0.0
          %687 = vmatmul.mubr.f32.gmra.mxu0 %v366
          %v688 = vpop.f32.mrf.mxu0
          %v689 = vadd.f32 0.0, %v688
          %v690 = vpop.f32.mrf.mxu0
          %691 = vdwg.mxu0
          %s692 = scalar_lea.vmem [#allocation2], 48
          %693 = vst.msk [vmem:[%s692] sm:$0xff] %vm443, %v684
          %694 = vst.msk [vmem:[%s692 + $0x8] sm:$0xff] %vm443, %v689
          %s695 = scalar_lea.vmem %s2, 128
          %v696 = vld [vmem:[%s695] sm:$0xff]
          %v697 = vld [vmem:[%s695 + $0x8] sm:$0xff]
          %v698 = vld [vmem:[%s695 + $0x10] sm:$0xff]
          %v699 = vld [vmem:[%s695 + $0x18] sm:$0xff]
          %700 = vmatprep.subr.mxu0 0.0
          %701 = vmatpush1.msra.mxu0 0.0
          %702 = vmatprep.subr.mxu0 0.0
          %703 = vmatpush1.msra.mxu0 0.0
          %704 = vmatprep.subr.mxu0 0.0
          %705 = vmatpush1.msra.mxu0 0.0
          %706 = vmatprep.subr.mxu0 0.0
          %707 = vmatpush1.msra.mxu0 0.0
          %708 = vmatprep.subr.mxu0 0.0
          %709 = vmatpush1.msra.mxu0 0.0
          %710 = vmatprep.subr.mxu0 0.0
          %711 = vmatpush1.msra.mxu0 0.0
          %712 = vmatprep.subr.mxu0 0.0
          %713 = vmatpush1.msra.mxu0 0.0
          %714 = vmatprep.subr.mxu0 0.0
          %715 = vmatpush1.msra.mxu0 0.0
          %716 = vmatprep.subr.mxu0 0.0
          %717 = vmatpush1.msra.mxu0 0.0
          %718 = vmatprep.subr.mxu0 0.0
          %719 = vmatpush1.msra.mxu0 0.0
          %720 = vmatprep.subr.mxu0 0.0
          %721 = vmatpush1.msra.mxu0 0.0
          %722 = vmatprep.subr.mxu0 0.0
          %723 = vmatpush1.msra.mxu0 0.0
          %724 = vmatprep.subr.mxu0 0.0
          %725 = vmatpush1.msra.mxu0 %v699
          %726 = vmatprep.subr.mxu0 0.0
          %727 = vmatpush1.msra.mxu0 %v698
          %728 = vmatprep.subr.mxu0 0.0
          %729 = vmatpush1.msra.mxu0 %v697
          %730 = vmatprep.subr.mxu0 0.0
          %731 = vmatpush1.msra.mxu0 %v696
          %732 = vmatprep.subr.mxu0 0.0
          %733 = vmatpush2.msra.mxu0 0.0
          %734 = vmatprep.subr.mxu0 0.0
          %735 = vmatpush2.msra.mxu0 0.0
          %736 = vmatprep.subr.mxu0 0.0
          %737 = vmatpush2.msra.mxu0 0.0
          %738 = vmatprep.subr.mxu0 0.0
          %739 = vmatpush2.msra.mxu0 0.0
          %740 = vmatprep.subr.mxu0 0.0
          %741 = vmatpush2.msra.mxu0 0.0
          %742 = vmatprep.subr.mxu0 0.0
          %743 = vmatpush2.msra.mxu0 0.0
          %744 = vmatprep.subr.mxu0 0.0
          %745 = vmatpush2.msra.mxu0 0.0
          %746 = vmatprep.subr.mxu0 0.0
          %747 = vmatpush2.msra.mxu0 0.0
          %748 = vmatprep.subr.mxu0 0.0
          %749 = vmatpush2.msra.mxu0 0.0
          %750 = vmatprep.subr.mxu0 0.0
          %751 = vmatpush2.msra.mxu0 0.0
          %752 = vmatprep.subr.mxu0 0.0
          %753 = vmatpush2.msra.mxu0 0.0
          %754 = vmatprep.subr.mxu0 0.0
          %755 = vmatpush2.msra.mxu0 0.0
          %756 = vmatprep.subr.mxu0 0.0
          %757 = vmatpush2.msra.mxu0 0.0
          %758 = vmatprep.subr.mxu0 0.0
          %759 = vmatpush2.msra.mxu0 0.0
          %760 = vmatprep.subr.mxu0 0.0
          %761 = vmatpush2.msra.mxu0 0.0
          %762 = vmatprep.subr.mxu0 0.0
          %763 = vmatpush2.msra.mxu0 0.0
          %764 = vmatprep.mubr.f32.mxu0 0.0
          %765 = vmatmul.mubr.f32.gmra.mxu0 %v363
          %v766 = vpop.f32.mrf.mxu0
          %v767 = vadd.f32 0.0, %v766
          %v768 = vpop.f32.mrf.mxu0
          %769 = vmatprep.mubr.f32.mxu0 0.0
          %770 = vmatmul.mubr.f32.gmra.mxu0 %v366
          %v771 = vpop.f32.mrf.mxu0
          %v772 = vadd.f32 0.0, %v771
          %v773 = vpop.f32.mrf.mxu0
          %774 = vdwg.mxu0
          %s775 = scalar_lea.vmem [#allocation2], 64
          %776 = vst.msk [vmem:[%s775] sm:$0xff] %vm443, %v767
          %777 = vst.msk [vmem:[%s775 + $0x8] sm:$0xff] %vm443, %v772
          %s778 = scalar_lea.vmem %s2, 160
          %v779 = vld [vmem:[%s778] sm:$0xff]
          %v780 = vld [vmem:[%s778 + $0x8] sm:$0xff]
          %v781 = vld [vmem:[%s778 + $0x10] sm:$0xff]
          %v782 = vld [vmem:[%s778 + $0x18] sm:$0xff]
          %783 = vmatprep.subr.mxu0 0.0
          %784 = vmatpush1.msra.mxu0 0.0
          %785 = vmatprep.subr.mxu0 0.0
          %786 = vmatpush1.msra.mxu0 0.0
          %787 = vmatprep.subr.mxu0 0.0
          %788 = vmatpush1.msra.mxu0 0.0
          %789 = vmatprep.subr.mxu0 0.0
          %790 = vmatpush1.msra.mxu0 0.0
          %791 = vmatprep.subr.mxu0 0.0
          %792 = vmatpush1.msra.mxu0 0.0
          %793 = vmatprep.subr.mxu0 0.0
          %794 = vmatpush1.msra.mxu0 0.0
          %795 = vmatprep.subr.mxu0 0.0
          %796 = vmatpush1.msra.mxu0 0.0
          %797 = vmatprep.subr.mxu0 0.0
          %798 = vmatpush1.msra.mxu0 0.0
          %799 = vmatprep.subr.mxu0 0.0
          %800 = vmatpush1.msra.mxu0 0.0
          %801 = vmatprep.subr.mxu0 0.0
          %802 = vmatpush1.msra.mxu0 0.0
          %803 = vmatprep.subr.mxu0 0.0
          %804 = vmatpush1.msra.mxu0 0.0
          %805 = vmatprep.subr.mxu0 0.0
          %806 = vmatpush1.msra.mxu0 0.0
          %807 = vmatprep.subr.mxu0 0.0
          %808 = vmatpush1.msra.mxu0 %v782
          %809 = vmatprep.subr.mxu0 0.0
          %810 = vmatpush1.msra.mxu0 %v781
          %811 = vmatprep.subr.mxu0 0.0
          %812 = vmatpush1.msra.mxu0 %v780
          %813 = vmatprep.subr.mxu0 0.0
          %814 = vmatpush1.msra.mxu0 %v779
          %815 = vmatprep.subr.mxu0 0.0
          %816 = vmatpush2.msra.mxu0 0.0
          %817 = vmatprep.subr.mxu0 0.0
          %818 = vmatpush2.msra.mxu0 0.0
          %819 = vmatprep.subr.mxu0 0.0
          %820 = vmatpush2.msra.mxu0 0.0
          %821 = vmatprep.subr.mxu0 0.0
          %822 = vmatpush2.msra.mxu0 0.0
          %823 = vmatprep.subr.mxu0 0.0
          %824 = vmatpush2.msra.mxu0 0.0
          %825 = vmatprep.subr.mxu0 0.0
          %826 = vmatpush2.msra.mxu0 0.0
          %827 = vmatprep.subr.mxu0 0.0
          %828 = vmatpush2.msra.mxu0 0.0
          %829 = vmatprep.subr.mxu0 0.0
          %830 = vmatpush2.msra.mxu0 0.0
          %831 = vmatprep.subr.mxu0 0.0
          %832 = vmatpush2.msra.mxu0 0.0
          %833 = vmatprep.subr.mxu0 0.0
          %834 = vmatpush2.msra.mxu0 0.0
          %835 = vmatprep.subr.mxu0 0.0
          %836 = vmatpush2.msra.mxu0 0.0
          %837 = vmatprep.subr.mxu0 0.0
          %838 = vmatpush2.msra.mxu0 0.0
          %839 = vmatprep.subr.mxu0 0.0
          %840 = vmatpush2.msra.mxu0 0.0
          %841 = vmatprep.subr.mxu0 0.0
          %842 = vmatpush2.msra.mxu0 0.0
          %843 = vmatprep.subr.mxu0 0.0
          %844 = vmatpush2.msra.mxu0 0.0
          %845 = vmatprep.subr.mxu0 0.0
          %846 = vmatpush2.msra.mxu0 0.0
          %847 = vmatprep.mubr.f32.mxu0 0.0
          %848 = vmatmul.mubr.f32.gmra.mxu0 %v363
          %v849 = vpop.f32.mrf.mxu0
          %v850 = vadd.f32 0.0, %v849
          %v851 = vpop.f32.mrf.mxu0
          %852 = vmatprep.mubr.f32.mxu0 0.0
          %853 = vmatmul.mubr.f32.gmra.mxu0 %v366
          %v854 = vpop.f32.mrf.mxu0
          %v855 = vadd.f32 0.0, %v854
          %v856 = vpop.f32.mrf.mxu0
          %857 = vdwg.mxu0
          %s858 = scalar_lea.vmem [#allocation2], 80
          %859 = vst.msk [vmem:[%s858] sm:$0xff] %vm443, %v850
          %860 = vst.msk [vmem:[%s858 + $0x8] sm:$0xff] %vm443, %v855
          %s861 = scalar_lea.vmem %s2, 192
          %v862 = vld [vmem:[%s861] sm:$0xff]
          %v863 = vld [vmem:[%s861 + $0x8] sm:$0xff]
          %v864 = vld [vmem:[%s861 + $0x10] sm:$0xff]
          %v865 = vld [vmem:[%s861 + $0x18] sm:$0xff]
          %866 = vmatprep.subr.mxu0 0.0
          %867 = vmatpush1.msra.mxu0 0.0
          %868 = vmatprep.subr.mxu0 0.0
          %869 = vmatpush1.msra.mxu0 0.0
          %870 = vmatprep.subr.mxu0 0.0
          %871 = vmatpush1.msra.mxu0 0.0
          %872 = vmatprep.subr.mxu0 0.0
          %873 = vmatpush1.msra.mxu0 0.0
          %874 = vmatprep.subr.mxu0 0.0
          %875 = vmatpush1.msra.mxu0 0.0
          %876 = vmatprep.subr.mxu0 0.0
          %877 = vmatpush1.msra.mxu0 0.0
          %878 = vmatprep.subr.mxu0 0.0
          %879 = vmatpush1.msra.mxu0 0.0
          %880 = vmatprep.subr.mxu0 0.0
          %881 = vmatpush1.msra.mxu0 0.0
          %882 = vmatprep.subr.mxu0 0.0
          %883 = vmatpush1.msra.mxu0 0.0
          %884 = vmatprep.subr.mxu0 0.0
          %885 = vmatpush1.msra.mxu0 0.0
          %886 = vmatprep.subr.mxu0 0.0
          %887 = vmatpush1.msra.mxu0 0.0
          %888 = vmatprep.subr.mxu0 0.0
          %889 = vmatpush1.msra.mxu0 0.0
          %890 = vmatprep.subr.mxu0 0.0
          %891 = vmatpush1.msra.mxu0 %v865
          %892 = vmatprep.subr.mxu0 0.0
          %893 = vmatpush1.msra.mxu0 %v864
          %894 = vmatprep.subr.mxu0 0.0
          %895 = vmatpush1.msra.mxu0 %v863
          %896 = vmatprep.subr.mxu0 0.0
          %897 = vmatpush1.msra.mxu0 %v862
          %898 = vmatprep.subr.mxu0 0.0
          %899 = vmatpush2.msra.mxu0 0.0
          %900 = vmatprep.subr.mxu0 0.0
          %901 = vmatpush2.msra.mxu0 0.0
          %902 = vmatprep.subr.mxu0 0.0
          %903 = vmatpush2.msra.mxu0 0.0
          %904 = vmatprep.subr.mxu0 0.0
          %905 = vmatpush2.msra.mxu0 0.0
          %906 = vmatprep.subr.mxu0 0.0
          %907 = vmatpush2.msra.mxu0 0.0
          %908 = vmatprep.subr.mxu0 0.0
          %909 = vmatpush2.msra.mxu0 0.0
          %910 = vmatprep.subr.mxu0 0.0
          %911 = vmatpush2.msra.mxu0 0.0
          %912 = vmatprep.subr.mxu0 0.0
          %913 = vmatpush2.msra.mxu0 0.0
          %914 = vmatprep.subr.mxu0 0.0
          %915 = vmatpush2.msra.mxu0 0.0
          %916 = vmatprep.subr.mxu0 0.0
          %917 = vmatpush2.msra.mxu0 0.0
          %918 = vmatprep.subr.mxu0 0.0
          %919 = vmatpush2.msra.mxu0 0.0
          %920 = vmatprep.subr.mxu0 0.0
          %921 = vmatpush2.msra.mxu0 0.0
          %922 = vmatprep.subr.mxu0 0.0
          %923 = vmatpush2.msra.mxu0 0.0
          %924 = vmatprep.subr.mxu0 0.0
          %925 = vmatpush2.msra.mxu0 0.0
          %926 = vmatprep.subr.mxu0 0.0
          %927 = vmatpush2.msra.mxu0 0.0
          %928 = vmatprep.subr.mxu0 0.0
          %929 = vmatpush2.msra.mxu0 0.0
          %930 = vmatprep.mubr.f32.mxu0 0.0
          %931 = vmatmul.mubr.f32.gmra.mxu0 %v363
          %v932 = vpop.f32.mrf.mxu0
          %v933 = vadd.f32 0.0, %v932
          %v934 = vpop.f32.mrf.mxu0
          %935 = vmatprep.mubr.f32.mxu0 0.0
          %936 = vmatmul.mubr.f32.gmra.mxu0 %v366
          %v937 = vpop.f32.mrf.mxu0
          %v938 = vadd.f32 0.0, %v937
          %v939 = vpop.f32.mrf.mxu0
          %940 = vdwg.mxu0
          %s941 = scalar_lea.vmem [#allocation2], 96
          %942 = vst.msk [vmem:[%s941] sm:$0xff] %vm443, %v933
          %943 = vst.msk [vmem:[%s941 + $0x8] sm:$0xff] %vm443, %v938
          %s944 = scalar_lea.vmem %s2, 224
          %v945 = vld [vmem:[%s944] sm:$0xff]
          %v946 = vld [vmem:[%s944 + $0x8] sm:$0xff]
          %v947 = vld [vmem:[%s944 + $0x10] sm:$0xff]
          %v948 = vld [vmem:[%s944 + $0x18] sm:$0xff]
          %949 = vmatprep.subr.mxu0 0.0
          %950 = vmatpush1.msra.mxu0 0.0
          %951 = vmatprep.subr.mxu0 0.0
          %952 = vmatpush1.msra.mxu0 0.0
          %953 = vmatprep.subr.mxu0 0.0
          %954 = vmatpush1.msra.mxu0 0.0
          %955 = vmatprep.subr.mxu0 0.0
          %956 = vmatpush1.msra.mxu0 0.0
          %957 = vmatprep.subr.mxu0 0.0
          %958 = vmatpush1.msra.mxu0 0.0
          %959 = vmatprep.subr.mxu0 0.0
          %960 = vmatpush1.msra.mxu0 0.0
          %961 = vmatprep.subr.mxu0 0.0
          %962 = vmatpush1.msra.mxu0 0.0
          %963 = vmatprep.subr.mxu0 0.0
          %964 = vmatpush1.msra.mxu0 0.0
          %965 = vmatprep.subr.mxu0 0.0
          %966 = vmatpush1.msra.mxu0 0.0
          %967 = vmatprep.subr.mxu0 0.0
          %968 = vmatpush1.msra.mxu0 0.0
          %969 = vmatprep.subr.mxu0 0.0
          %970 = vmatpush1.msra.mxu0 0.0
          %971 = vmatprep.subr.mxu0 0.0
          %972 = vmatpush1.msra.mxu0 0.0
          %973 = vmatprep.subr.mxu0 0.0
          %974 = vmatpush1.msra.mxu0 %v948
          %975 = vmatprep.subr.mxu0 0.0
          %976 = vmatpush1.msra.mxu0 %v947
          %977 = vmatprep.subr.mxu0 0.0
          %978 = vmatpush1.msra.mxu0 %v946
          %979 = vmatprep.subr.mxu0 0.0
          %980 = vmatpush1.msra.mxu0 %v945
          %981 = vmatprep.subr.mxu0 0.0
          %982 = vmatpush2.msra.mxu0 0.0
          %983 = vmatprep.subr.mxu0 0.0
          %984 = vmatpush2.msra.mxu0 0.0
          %985 = vmatprep.subr.mxu0 0.0
          %986 = vmatpush2.msra.mxu0 0.0
          %987 = vmatprep.subr.mxu0 0.0
          %988 = vmatpush2.msra.mxu0 0.0
          %989 = vmatprep.subr.mxu0 0.0
          %990 = vmatpush2.msra.mxu0 0.0
          %991 = vmatprep.subr.mxu0 0.0
          %992 = vmatpush2.msra.mxu0 0.0
          %993 = vmatprep.subr.mxu0 0.0
          %994 = vmatpush2.msra.mxu0 0.0
          %995 = vmatprep.subr.mxu0 0.0
          %996 = vmatpush2.msra.mxu0 0.0
          %997 = vmatprep.subr.mxu0 0.0
          %998 = vmatpush2.msra.mxu0 0.0
          %999 = vmatprep.subr.mxu0 0.0
          %1000 = vmatpush2.msra.mxu0 0.0
          %1001 = vmatprep.subr.mxu0 0.0
          %1002 = vmatpush2.msra.mxu0 0.0
          %1003 = vmatprep.subr.mxu0 0.0
          %1004 = vmatpush2.msra.mxu0 0.0
          %1005 = vmatprep.subr.mxu0 0.0
          %1006 = vmatpush2.msra.mxu0 0.0
          %1007 = vmatprep.subr.mxu0 0.0
          %1008 = vmatpush2.msra.mxu0 0.0
          %1009 = vmatprep.subr.mxu0 0.0
          %1010 = vmatpush2.msra.mxu0 0.0
          %1011 = vmatprep.subr.mxu0 0.0
          %1012 = vmatpush2.msra.mxu0 0.0
          %1013 = vmatprep.mubr.f32.mxu0 0.0
          %1014 = vmatmul.mubr.f32.gmra.mxu0 %v363
          %v1015 = vpop.f32.mrf.mxu0
          %v1016 = vadd.f32 0.0, %v1015
          %v1017 = vpop.f32.mrf.mxu0
          %1018 = vmatprep.mubr.f32.mxu0 0.0
          %1019 = vmatmul.mubr.f32.gmra.mxu0 %v366
          %v1020 = vpop.f32.mrf.mxu0
          %v1021 = vadd.f32 0.0, %v1020
          %v1022 = vpop.f32.mrf.mxu0
          %1023 = vdwg.mxu0
          %s1024 = scalar_lea.vmem [#allocation2], 112
          %1025 = vst.msk [vmem:[%s1024] sm:$0xff] %vm443, %v1016
          %1026 = vst.msk [vmem:[%s1024 + $0x8] sm:$0xff] %vm443, %v1021
        $region52: #{tpu_custom_call.1} parent=47 // pred_fallthru
          _
        %v1027 = vld [vmem:[%s348] sm:$0xff]
        %v1028 = vld [vmem:[%s348 + $0x8] sm:$0xff]
        %v1029 = vld [vmem:[%s3] sm:$0xff]
        %v1030 = vld [vmem:[%s3 + $0x8] sm:$0xff]
        %v1031 = vld [vmem:[%s3 + $0x10] sm:$0xff]
        %v1032 = vld [vmem:[%s3 + $0x18] sm:$0xff]
        %vm1033 = vcmask 261120
        %v1035 = vsel %vm1033, %v1027, 0
        %v1038 = vsel %vm1033, %v1028, 0
        %1040 = vmatprep.subr.mxu0 0.0
        %1041 = vmatpush1.msra.mxu0 0.0
        %1042 = vmatprep.subr.mxu0 0.0
        %1043 = vmatpush1.msra.mxu0 0.0
        %1044 = vmatprep.subr.mxu0 0.0
        %1045 = vmatpush1.msra.mxu0 0.0
        %1046 = vmatprep.subr.mxu0 0.0
        %1047 = vmatpush1.msra.mxu0 0.0
        %1048 = vmatprep.subr.mxu0 0.0
        %1049 = vmatpush1.msra.mxu0 0.0
        %1050 = vmatprep.subr.mxu0 0.0
        %1051 = vmatpush1.msra.mxu0 0.0
        %1052 = vmatprep.subr.mxu0 0.0
        %1053 = vmatpush1.msra.mxu0 0.0
        %1054 = vmatprep.subr.mxu0 0.0
        %1055 = vmatpush1.msra.mxu0 0.0
        %1056 = vmatprep.subr.mxu0 0.0
        %1057 = vmatpush1.msra.mxu0 0.0
        %1058 = vmatprep.subr.mxu0 0.0
        %1059 = vmatpush1.msra.mxu0 0.0
        %1060 = vmatprep.subr.mxu0 0.0
        %1061 = vmatpush1.msra.mxu0 0.0
        %1062 = vmatprep.subr.mxu0 0.0
        %1063 = vmatpush1.msra.mxu0 0.0
        %1064 = vmatprep.subr.mxu0 0.0
        %1065 = vmatpush1.msra.mxu0 %v1032
        %1066 = vmatprep.subr.mxu0 0.0
        %1067 = vmatpush1.msra.mxu0 %v1031
        %1068 = vmatprep.subr.mxu0 0.0
        %1069 = vmatpush1.msra.mxu0 %v1030
        %1070 = vmatprep.subr.mxu0 0.0
        %1071 = vmatpush1.msra.mxu0 %v1029
        %1072 = vmatprep.subr.mxu0 0.0
        %1073 = vmatpush2.msra.mxu0 0.0
        %1074 = vmatprep.subr.mxu0 0.0
        %1075 = vmatpush2.msra.mxu0 0.0
        %1076 = vmatprep.subr.mxu0 0.0
        %1077 = vmatpush2.msra.mxu0 0.0
        %1078 = vmatprep.subr.mxu0 0.0
        %1079 = vmatpush2.msra.mxu0 0.0
        %1080 = vmatprep.subr.mxu0 0.0
        %1081 = vmatpush2.msra.mxu0 0.0
        %1082 = vmatprep.subr.mxu0 0.0
        %1083 = vmatpush2.msra.mxu0 0.0
        %1084 = vmatprep.subr.mxu0 0.0
        %1085 = vmatpush2.msra.mxu0 0.0
        %1086 = vmatprep.subr.mxu0 0.0
        %1087 = vmatpush2.msra.mxu0 0.0
        %1088 = vmatprep.subr.mxu0 0.0
        %1089 = vmatpush2.msra.mxu0 0.0
        %1090 = vmatprep.subr.mxu0 0.0
        %1091 = vmatpush2.msra.mxu0 0.0
        %1092 = vmatprep.subr.mxu0 0.0
        %1093 = vmatpush2.msra.mxu0 0.0
        %1094 = vmatprep.subr.mxu0 0.0
        %1095 = vmatpush2.msra.mxu0 0.0
        %1096 = vmatprep.subr.mxu0 0.0
        %1097 = vmatpush2.msra.mxu0 0.0
        %1098 = vmatprep.subr.mxu0 0.0
        %1099 = vmatpush2.msra.mxu0 0.0
        %1100 = vmatprep.subr.mxu0 0.0
        %1101 = vmatpush2.msra.mxu0 0.0
        %1102 = vmatprep.subr.mxu0 0.0
        %1103 = vmatpush2.msra.mxu0 0.0
        %1104 = vmatprep.mubr.f32.mxu0 0.0
        %1105 = vmatmul.mubr.f32.gmra.mxu0 %v1035
        %v1106 = vpop.f32.mrf.mxu0
        %v1107 = vadd.f32 0.0, %v1106
        %v1108 = vpop.f32.mrf.mxu0
        %1109 = vmatprep.mubr.f32.mxu0 0.0
        %1110 = vmatmul.mubr.f32.gmra.mxu0 %v1038
        %v1111 = vpop.f32.mrf.mxu0
        %v1112 = vadd.f32 0.0, %v1111
        %v1113 = vpop.f32.mrf.mxu0
        %1114 = vdwg.mxu0
        %vm1115 = vcmask 31744
        %1116 = vst.msk [vmem:[#allocation3] sm:$0xff] %vm1115, %v1107
        %1117 = vst.msk [vmem:[#allocation3 + $0x8] sm:$0xff] %vm1115, %v1112
        %v1118 = vld [vmem:[%s4] sm:$0xff]
        %v1119 = vld [vmem:[%s4 + $0x8] sm:$0xff]
        %v1120 = vld [vmem:[%s4 + $0x10] sm:$0xff]
        %v1121 = vld [vmem:[%s4 + $0x18] sm:$0xff]
        %1122 = vmatprep.subr.mxu0 0.0
        %1123 = vmatpush1.msra.mxu0 0.0
        %1124 = vmatprep.subr.mxu0 0.0
        %1125 = vmatpush1.msra.mxu0 0.0
        %1126 = vmatprep.subr.mxu0 0.0
        %1127 = vmatpush1.msra.mxu0 0.0
        %1128 = vmatprep.subr.mxu0 0.0
        %1129 = vmatpush1.msra.mxu0 0.0
        %1130 = vmatprep.subr.mxu0 0.0
        %1131 = vmatpush1.msra.mxu0 0.0
        %1132 = vmatprep.subr.mxu0 0.0
        %1133 = vmatpush1.msra.mxu0 0.0
        %1134 = vmatprep.subr.mxu0 0.0
        %1135 = vmatpush1.msra.mxu0 0.0
        %1136 = vmatprep.subr.mxu0 0.0
        %1137 = vmatpush1.msra.mxu0 0.0
        %1138 = vmatprep.subr.mxu0 0.0
        %1139 = vmatpush1.msra.mxu0 0.0
        %1140 = vmatprep.subr.mxu0 0.0
        %1141 = vmatpush1.msra.mxu0 0.0
        %1142 = vmatprep.subr.mxu0 0.0
        %1143 = vmatpush1.msra.mxu0 0.0
        %1144 = vmatprep.subr.mxu0 0.0
        %1145 = vmatpush1.msra.mxu0 0.0
        %1146 = vmatprep.subr.mxu0 0.0
        %1147 = vmatpush1.msra.mxu0 %v1121
        %1148 = vmatprep.subr.mxu0 0.0
        %1149 = vmatpush1.msra.mxu0 %v1120
        %1150 = vmatprep.subr.mxu0 0.0
        %1151 = vmatpush1.msra.mxu0 %v1119
        %1152 = vmatprep.subr.mxu0 0.0
        %1153 = vmatpush1.msra.mxu0 %v1118
        %1154 = vmatprep.subr.mxu0 0.0
        %1155 = vmatpush2.msra.mxu0 0.0
        %1156 = vmatprep.subr.mxu0 0.0
        %1157 = vmatpush2.msra.mxu0 0.0
        %1158 = vmatprep.subr.mxu0 0.0
        %1159 = vmatpush2.msra.mxu0 0.0
        %1160 = vmatprep.subr.mxu0 0.0
        %1161 = vmatpush2.msra.mxu0 0.0
        %1162 = vmatprep.subr.mxu0 0.0
        %1163 = vmatpush2.msra.mxu0 0.0
        %1164 = vmatprep.subr.mxu0 0.0
        %1165 = vmatpush2.msra.mxu0 0.0
        %1166 = vmatprep.subr.mxu0 0.0
        %1167 = vmatpush2.msra.mxu0 0.0
        %1168 = vmatprep.subr.mxu0 0.0
        %1169 = vmatpush2.msra.mxu0 0.0
        %1170 = vmatprep.subr.mxu0 0.0
        %1171 = vmatpush2.msra.mxu0 0.0
        %1172 = vmatprep.subr.mxu0 0.0
        %1173 = vmatpush2.msra.mxu0 0.0
        %1174 = vmatprep.subr.mxu0 0.0
        %1175 = vmatpush2.msra.mxu0 0.0
        %1176 = vmatprep.subr.mxu0 0.0
        %1177 = vmatpush2.msra.mxu0 0.0
        %1178 = vmatprep.subr.mxu0 0.0
        %1179 = vmatpush2.msra.mxu0 0.0
        %1180 = vmatprep.subr.mxu0 0.0
        %1181 = vmatpush2.msra.mxu0 0.0
        %1182 = vmatprep.subr.mxu0 0.0
        %1183 = vmatpush2.msra.mxu0 0.0
        %1184 = vmatprep.subr.mxu0 0.0
        %1185 = vmatpush2.msra.mxu0 0.0
        %1186 = vmatprep.mubr.f32.mxu0 0.0
        %1187 = vmatmul.mubr.f32.gmra.mxu0 %v1035
        %v1188 = vpop.f32.mrf.mxu0
        %v1189 = vadd.f32 0.0, %v1188
        %v1190 = vpop.f32.mrf.mxu0
        %1191 = vmatprep.mubr.f32.mxu0 0.0
        %1192 = vmatmul.mubr.f32.gmra.mxu0 %v1038
        %v1193 = vpop.f32.mrf.mxu0
        %v1194 = vadd.f32 0.0, %v1193
        %v1195 = vpop.f32.mrf.mxu0
        %1196 = vdwg.mxu0
        %1197 = vst.msk [vmem:[#allocation4] sm:$0xff] %vm1115, %v1189
        %1198 = vst.msk [vmem:[#allocation4 + $0x8] sm:$0xff] %vm1115, %v1194
        %s1199 = scalar_lea.vmem %s3, 32
        %v1200 = vld [vmem:[%s1199] sm:$0xff]
        %v1201 = vld [vmem:[%s1199 + $0x8] sm:$0xff]
        %v1202 = vld [vmem:[%s1199 + $0x10] sm:$0xff]
        %v1203 = vld [vmem:[%s1199 + $0x18] sm:$0xff]
        %1204 = vmatprep.subr.mxu0 0.0
        %1205 = vmatpush1.msra.mxu0 0.0
        %1206 = vmatprep.subr.mxu0 0.0
        %1207 = vmatpush1.msra.mxu0 0.0
        %1208 = vmatprep.subr.mxu0 0.0
        %1209 = vmatpush1.msra.mxu0 0.0
        %1210 = vmatprep.subr.mxu0 0.0
        %1211 = vmatpush1.msra.mxu0 0.0
        %1212 = vmatprep.subr.mxu0 0.0
        %1213 = vmatpush1.msra.mxu0 0.0
        %1214 = vmatprep.subr.mxu0 0.0
        %1215 = vmatpush1.msra.mxu0 0.0
        %1216 = vmatprep.subr.mxu0 0.0
        %1217 = vmatpush1.msra.mxu0 0.0
        %1218 = vmatprep.subr.mxu0 0.0
        %1219 = vmatpush1.msra.mxu0 0.0
        %1220 = vmatprep.subr.mxu0 0.0
        %1221 = vmatpush1.msra.mxu0 0.0
        %1222 = vmatprep.subr.mxu0 0.0
        %1223 = vmatpush1.msra.mxu0 0.0
        %1224 = vmatprep.subr.mxu0 0.0
        %1225 = vmatpush1.msra.mxu0 0.0
        %1226 = vmatprep.subr.mxu0 0.0
        %1227 = vmatpush1.msra.mxu0 0.0
        %1228 = vmatprep.subr.mxu0 0.0
        %1229 = vmatpush1.msra.mxu0 %v1203
        %1230 = vmatprep.subr.mxu0 0.0
        %1231 = vmatpush1.msra.mxu0 %v1202
        %1232 = vmatprep.subr.mxu0 0.0
        %1233 = vmatpush1.msra.mxu0 %v1201
        %1234 = vmatprep.subr.mxu0 0.0
        %1235 = vmatpush1.msra.mxu0 %v1200
        %1236 = vmatprep.subr.mxu0 0.0
        %1237 = vmatpush2.msra.mxu0 0.0
        %1238 = vmatprep.subr.mxu0 0.0
        %1239 = vmatpush2.msra.mxu0 0.0
        %1240 = vmatprep.subr.mxu0 0.0
        %1241 = vmatpush2.msra.mxu0 0.0
        %1242 = vmatprep.subr.mxu0 0.0
        %1243 = vmatpush2.msra.mxu0 0.0
        %1244 = vmatprep.subr.mxu0 0.0
        %1245 = vmatpush2.msra.mxu0 0.0
        %1246 = vmatprep.subr.mxu0 0.0
        %1247 = vmatpush2.msra.mxu0 0.0
        %1248 = vmatprep.subr.mxu0 0.0
        %1249 = vmatpush2.msra.mxu0 0.0
        %1250 = vmatprep.subr.mxu0 0.0
        %1251 = vmatpush2.msra.mxu0 0.0
        %1252 = vmatprep.subr.mxu0 0.0
        %1253 = vmatpush2.msra.mxu0 0.0
        %1254 = vmatprep.subr.mxu0 0.0
        %1255 = vmatpush2.msra.mxu0 0.0
        %1256 = vmatprep.subr.mxu0 0.0
        %1257 = vmatpush2.msra.mxu0 0.0
        %1258 = vmatprep.subr.mxu0 0.0
        %1259 = vmatpush2.msra.mxu0 0.0
        %1260 = vmatprep.subr.mxu0 0.0
        %1261 = vmatpush2.msra.mxu0 0.0
        %1262 = vmatprep.subr.mxu0 0.0
        %1263 = vmatpush2.msra.mxu0 0.0
        %1264 = vmatprep.subr.mxu0 0.0
        %1265 = vmatpush2.msra.mxu0 0.0
        %1266 = vmatprep.subr.mxu0 0.0
        %1267 = vmatpush2.msra.mxu0 0.0
        %1268 = vmatprep.mubr.f32.mxu0 0.0
        %1269 = vmatmul.mubr.f32.gmra.mxu0 %v1035
        %v1270 = vpop.f32.mrf.mxu0
        %v1271 = vadd.f32 0.0, %v1270
        %v1272 = vpop.f32.mrf.mxu0
        %1273 = vmatprep.mubr.f32.mxu0 0.0
        %1274 = vmatmul.mubr.f32.gmra.mxu0 %v1038
        %v1275 = vpop.f32.mrf.mxu0
        %v1276 = vadd.f32 0.0, %v1275
        %v1277 = vpop.f32.mrf.mxu0
        %1278 = vdwg.mxu0
        %s1279 = scalar_lea.vmem [#allocation3], 16
        %1280 = vst.msk [vmem:[%s1279] sm:$0xff] %vm1115, %v1271
        %1281 = vst.msk [vmem:[%s1279 + $0x8] sm:$0xff] %vm1115, %v1276
        %s1282 = scalar_lea.vmem %s4, 32
        %v1283 = vld [vmem:[%s1282] sm:$0xff]
        %v1284 = vld [vmem:[%s1282 + $0x8] sm:$0xff]
        %v1285 = vld [vmem:[%s1282 + $0x10] sm:$0xff]
        %v1286 = vld [vmem:[%s1282 + $0x18] sm:$0xff]
        %1287 = vmatprep.subr.mxu0 0.0
        %1288 = vmatpush1.msra.mxu0 0.0
        %1289 = vmatprep.subr.mxu0 0.0
        %1290 = vmatpush1.msra.mxu0 0.0
        %1291 = vmatprep.subr.mxu0 0.0
        %1292 = vmatpush1.msra.mxu0 0.0
        %1293 = vmatprep.subr.mxu0 0.0
        %1294 = vmatpush1.msra.mxu0 0.0
        %1295 = vmatprep.subr.mxu0 0.0
        %1296 = vmatpush1.msra.mxu0 0.0
        %1297 = vmatprep.subr.mxu0 0.0
        %1298 = vmatpush1.msra.mxu0 0.0
        %1299 = vmatprep.subr.mxu0 0.0
        %1300 = vmatpush1.msra.mxu0 0.0
        %1301 = vmatprep.subr.mxu0 0.0
        %1302 = vmatpush1.msra.mxu0 0.0
        %1303 = vmatprep.subr.mxu0 0.0
        %1304 = vmatpush1.msra.mxu0 0.0
        %1305 = vmatprep.subr.mxu0 0.0
        %1306 = vmatpush1.msra.mxu0 0.0
        %1307 = vmatprep.subr.mxu0 0.0
        %1308 = vmatpush1.msra.mxu0 0.0
        %1309 = vmatprep.subr.mxu0 0.0
        %1310 = vmatpush1.msra.mxu0 0.0
        %1311 = vmatprep.subr.mxu0 0.0
        %1312 = vmatpush1.msra.mxu0 %v1286
        %1313 = vmatprep.subr.mxu0 0.0
        %1314 = vmatpush1.msra.mxu0 %v1285
        %1315 = vmatprep.subr.mxu0 0.0
        %1316 = vmatpush1.msra.mxu0 %v1284
        %1317 = vmatprep.subr.mxu0 0.0
        %1318 = vmatpush1.msra.mxu0 %v1283
        %1319 = vmatprep.subr.mxu0 0.0
        %1320 = vmatpush2.msra.mxu0 0.0
        %1321 = vmatprep.subr.mxu0 0.0
        %1322 = vmatpush2.msra.mxu0 0.0
        %1323 = vmatprep.subr.mxu0 0.0
        %1324 = vmatpush2.msra.mxu0 0.0
        %1325 = vmatprep.subr.mxu0 0.0
        %1326 = vmatpush2.msra.mxu0 0.0
        %1327 = vmatprep.subr.mxu0 0.0
        %1328 = vmatpush2.msra.mxu0 0.0
        %1329 = vmatprep.subr.mxu0 0.0
        %1330 = vmatpush2.msra.mxu0 0.0
        %1331 = vmatprep.subr.mxu0 0.0
        %1332 = vmatpush2.msra.mxu0 0.0
        %1333 = vmatprep.subr.mxu0 0.0
        %1334 = vmatpush2.msra.mxu0 0.0
        %1335 = vmatprep.subr.mxu0 0.0
        %1336 = vmatpush2.msra.mxu0 0.0
        %1337 = vmatprep.subr.mxu0 0.0
        %1338 = vmatpush2.msra.mxu0 0.0
        %1339 = vmatprep.subr.mxu0 0.0
        %1340 = vmatpush2.msra.mxu0 0.0
        %1341 = vmatprep.subr.mxu0 0.0
        %1342 = vmatpush2.msra.mxu0 0.0
        %1343 = vmatprep.subr.mxu0 0.0
        %1344 = vmatpush2.msra.mxu0 0.0
        %1345 = vmatprep.subr.mxu0 0.0
        %1346 = vmatpush2.msra.mxu0 0.0
        %1347 = vmatprep.subr.mxu0 0.0
        %1348 = vmatpush2.msra.mxu0 0.0
        %1349 = vmatprep.subr.mxu0 0.0
        %1350 = vmatpush2.msra.mxu0 0.0
        %1351 = vmatprep.mubr.f32.mxu0 0.0
        %1352 = vmatmul.mubr.f32.gmra.mxu0 %v1035
        %v1353 = vpop.f32.mrf.mxu0
        %v1354 = vadd.f32 0.0, %v1353
        %v1355 = vpop.f32.mrf.mxu0
        %1356 = vmatprep.mubr.f32.mxu0 0.0
        %1357 = vmatmul.mubr.f32.gmra.mxu0 %v1038
        %v1358 = vpop.f32.mrf.mxu0
        %v1359 = vadd.f32 0.0, %v1358
        %v1360 = vpop.f32.mrf.mxu0
        %1361 = vdwg.mxu0
        %s1362 = scalar_lea.vmem [#allocation4], 16
        %1363 = vst.msk [vmem:[%s1362] sm:$0xff] %vm1115, %v1354
        %1364 = vst.msk [vmem:[%s1362 + $0x8] sm:$0xff] %vm1115, %v1359
        %s1365 = scalar_lea.vmem %s3, 64
        %v1366 = vld [vmem:[%s1365] sm:$0xff]
        %v1367 = vld [vmem:[%s1365 + $0x8] sm:$0xff]
        %v1368 = vld [vmem:[%s1365 + $0x10] sm:$0xff]
        %v1369 = vld [vmem:[%s1365 + $0x18] sm:$0xff]
        %1370 = vmatprep.subr.mxu0 0.0
        %1371 = vmatpush1.msra.mxu0 0.0
        %1372 = vmatprep.subr.mxu0 0.0
        %1373 = vmatpush1.msra.mxu0 0.0
        %1374 = vmatprep.subr.mxu0 0.0
        %1375 = vmatpush1.msra.mxu0 0.0
        %1376 = vmatprep.subr.mxu0 0.0
        %1377 = vmatpush1.msra.mxu0 0.0
        %1378 = vmatprep.subr.mxu0 0.0
        %1379 = vmatpush1.msra.mxu0 0.0
        %1380 = vmatprep.subr.mxu0 0.0
        %1381 = vmatpush1.msra.mxu0 0.0
        %1382 = vmatprep.subr.mxu0 0.0
        %1383 = vmatpush1.msra.mxu0 0.0
        %1384 = vmatprep.subr.mxu0 0.0
        %1385 = vmatpush1.msra.mxu0 0.0
        %1386 = vmatprep.subr.mxu0 0.0
        %1387 = vmatpush1.msra.mxu0 0.0
        %1388 = vmatprep.subr.mxu0 0.0
        %1389 = vmatpush1.msra.mxu0 0.0
        %1390 = vmatprep.subr.mxu0 0.0
        %1391 = vmatpush1.msra.mxu0 0.0
        %1392 = vmatprep.subr.mxu0 0.0
        %1393 = vmatpush1.msra.mxu0 0.0
        %1394 = vmatprep.subr.mxu0 0.0
        %1395 = vmatpush1.msra.mxu0 %v1369
        %1396 = vmatprep.subr.mxu0 0.0
        %1397 = vmatpush1.msra.mxu0 %v1368
        %1398 = vmatprep.subr.mxu0 0.0
        %1399 = vmatpush1.msra.mxu0 %v1367
        %1400 = vmatprep.subr.mxu0 0.0
        %1401 = vmatpush1.msra.mxu0 %v1366
        %1402 = vmatprep.subr.mxu0 0.0
        %1403 = vmatpush2.msra.mxu0 0.0
        %1404 = vmatprep.subr.mxu0 0.0
        %1405 = vmatpush2.msra.mxu0 0.0
        %1406 = vmatprep.subr.mxu0 0.0
        %1407 = vmatpush2.msra.mxu0 0.0
        %1408 = vmatprep.subr.mxu0 0.0
        %1409 = vmatpush2.msra.mxu0 0.0
        %1410 = vmatprep.subr.mxu0 0.0
        %1411 = vmatpush2.msra.mxu0 0.0
        %1412 = vmatprep.subr.mxu0 0.0
        %1413 = vmatpush2.msra.mxu0 0.0
        %1414 = vmatprep.subr.mxu0 0.0
        %1415 = vmatpush2.msra.mxu0 0.0
        %1416 = vmatprep.subr.mxu0 0.0
        %1417 = vmatpush2.msra.mxu0 0.0
        %1418 = vmatprep.subr.mxu0 0.0
        %1419 = vmatpush2.msra.mxu0 0.0
        %1420 = vmatprep.subr.mxu0 0.0
        %1421 = vmatpush2.msra.mxu0 0.0
        %1422 = vmatprep.subr.mxu0 0.0
        %1423 = vmatpush2.msra.mxu0 0.0
        %1424 = vmatprep.subr.mxu0 0.0
        %1425 = vmatpush2.msra.mxu0 0.0
        %1426 = vmatprep.subr.mxu0 0.0
        %1427 = vmatpush2.msra.mxu0 0.0
        %1428 = vmatprep.subr.mxu0 0.0
        %1429 = vmatpush2.msra.mxu0 0.0
        %1430 = vmatprep.subr.mxu0 0.0
        %1431 = vmatpush2.msra.mxu0 0.0
        %1432 = vmatprep.subr.mxu0 0.0
        %1433 = vmatpush2.msra.mxu0 0.0
        %1434 = vmatprep.mubr.f32.mxu0 0.0
        %1435 = vmatmul.mubr.f32.gmra.mxu0 %v1035
        %v1436 = vpop.f32.mrf.mxu0
        %v1437 = vadd.f32 0.0, %v1436
        %v1438 = vpop.f32.mrf.mxu0
        %1439 = vmatprep.mubr.f32.mxu0 0.0
        %1440 = vmatmul.mubr.f32.gmra.mxu0 %v1038
        %v1441 = vpop.f32.mrf.mxu0
        %v1442 = vadd.f32 0.0, %v1441
        %v1443 = vpop.f32.mrf.mxu0
        %1444 = vdwg.mxu0
        %s1445 = scalar_lea.vmem [#allocation3], 32
        %1446 = vst.msk [vmem:[%s1445] sm:$0xff] %vm1115, %v1437
        %1447 = vst.msk [vmem:[%s1445 + $0x8] sm:$0xff] %vm1115, %v1442
        %s1448 = scalar_lea.vmem %s4, 64
        %v1449 = vld [vmem:[%s1448] sm:$0xff]
        %v1450 = vld [vmem:[%s1448 + $0x8] sm:$0xff]
        %v1451 = vld [vmem:[%s1448 + $0x10] sm:$0xff]
        %v1452 = vld [vmem:[%s1448 + $0x18] sm:$0xff]
        %1453 = vmatprep.subr.mxu0 0.0
        %1454 = vmatpush1.msra.mxu0 0.0
        %1455 = vmatprep.subr.mxu0 0.0
        %1456 = vmatpush1.msra.mxu0 0.0
        %1457 = vmatprep.subr.mxu0 0.0
        %1458 = vmatpush1.msra.mxu0 0.0
        %1459 = vmatprep.subr.mxu0 0.0
        %1460 = vmatpush1.msra.mxu0 0.0
        %1461 = vmatprep.subr.mxu0 0.0
        %1462 = vmatpush1.msra.mxu0 0.0
        %1463 = vmatprep.subr.mxu0 0.0
        %1464 = vmatpush1.msra.mxu0 0.0
        %1465 = vmatprep.subr.mxu0 0.0
        %1466 = vmatpush1.msra.mxu0 0.0
        %1467 = vmatprep.subr.mxu0 0.0
        %1468 = vmatpush1.msra.mxu0 0.0
        %1469 = vmatprep.subr.mxu0 0.0
        %1470 = vmatpush1.msra.mxu0 0.0
        %1471 = vmatprep.subr.mxu0 0.0
        %1472 = vmatpush1.msra.mxu0 0.0
        %1473 = vmatprep.subr.mxu0 0.0
        %1474 = vmatpush1.msra.mxu0 0.0
        %1475 = vmatprep.subr.mxu0 0.0
        %1476 = vmatpush1.msra.mxu0 0.0
        %1477 = vmatprep.subr.mxu0 0.0
        %1478 = vmatpush1.msra.mxu0 %v1452
        %1479 = vmatprep.subr.mxu0 0.0
        %1480 = vmatpush1.msra.mxu0 %v1451
        %1481 = vmatprep.subr.mxu0 0.0
        %1482 = vmatpush1.msra.mxu0 %v1450
        %1483 = vmatprep.subr.mxu0 0.0
        %1484 = vmatpush1.msra.mxu0 %v1449
        %1485 = vmatprep.subr.mxu0 0.0
        %1486 = vmatpush2.msra.mxu0 0.0
        %1487 = vmatprep.subr.mxu0 0.0
        %1488 = vmatpush2.msra.mxu0 0.0
        %1489 = vmatprep.subr.mxu0 0.0
        %1490 = vmatpush2.msra.mxu0 0.0
        %1491 = vmatprep.subr.mxu0 0.0
        %1492 = vmatpush2.msra.mxu0 0.0
        %1493 = vmatprep.subr.mxu0 0.0
        %1494 = vmatpush2.msra.mxu0 0.0
        %1495 = vmatprep.subr.mxu0 0.0
        %1496 = vmatpush2.msra.mxu0 0.0
        %1497 = vmatprep.subr.mxu0 0.0
        %1498 = vmatpush2.msra.mxu0 0.0
        %1499 = vmatprep.subr.mxu0 0.0
        %1500 = vmatpush2.msra.mxu0 0.0
        %1501 = vmatprep.subr.mxu0 0.0
        %1502 = vmatpush2.msra.mxu0 0.0
        %1503 = vmatprep.subr.mxu0 0.0
        %1504 = vmatpush2.msra.mxu0 0.0
        %1505 = vmatprep.subr.mxu0 0.0
        %1506 = vmatpush2.msra.mxu0 0.0
        %1507 = vmatprep.subr.mxu0 0.0
        %1508 = vmatpush2.msra.mxu0 0.0
        %1509 = vmatprep.subr.mxu0 0.0
        %1510 = vmatpush2.msra.mxu0 0.0
        %1511 = vmatprep.subr.mxu0 0.0
        %1512 = vmatpush2.msra.mxu0 0.0
        %1513 = vmatprep.subr.mxu0 0.0
        %1514 = vmatpush2.msra.mxu0 0.0
        %1515 = vmatprep.subr.mxu0 0.0
        %1516 = vmatpush2.msra.mxu0 0.0
        %1517 = vmatprep.mubr.f32.mxu0 0.0
        %1518 = vmatmul.mubr.f32.gmra.mxu0 %v1035
        %v1519 = vpop.f32.mrf.mxu0
        %v1520 = vadd.f32 0.0, %v1519
        %v1521 = vpop.f32.mrf.mxu0
        %1522 = vmatprep.mubr.f32.mxu0 0.0
        %1523 = vmatmul.mubr.f32.gmra.mxu0 %v1038
        %v1524 = vpop.f32.mrf.mxu0
        %v1525 = vadd.f32 0.0, %v1524
        %v1526 = vpop.f32.mrf.mxu0
        %1527 = vdwg.mxu0
        %s1528 = scalar_lea.vmem [#allocation4], 32
        %1529 = vst.msk [vmem:[%s1528] sm:$0xff] %vm1115, %v1520
        %1530 = vst.msk [vmem:[%s1528 + $0x8] sm:$0xff] %vm1115, %v1525
        %s1531 = scalar_lea.vmem %s3, 96
        %v1532 = vld [vmem:[%s1531] sm:$0xff]
        %v1533 = vld [vmem:[%s1531 + $0x8] sm:$0xff]
        %v1534 = vld [vmem:[%s1531 + $0x10] sm:$0xff]
        %v1535 = vld [vmem:[%s1531 + $0x18] sm:$0xff]
        %1536 = vmatprep.subr.mxu0 0.0
        %1537 = vmatpush1.msra.mxu0 0.0
        %1538 = vmatprep.subr.mxu0 0.0
        %1539 = vmatpush1.msra.mxu0 0.0
        %1540 = vmatprep.subr.mxu0 0.0
        %1541 = vmatpush1.msra.mxu0 0.0
        %1542 = vmatprep.subr.mxu0 0.0
        %1543 = vmatpush1.msra.mxu0 0.0
        %1544 = vmatprep.subr.mxu0 0.0
        %1545 = vmatpush1.msra.mxu0 0.0
        %1546 = vmatprep.subr.mxu0 0.0
        %1547 = vmatpush1.msra.mxu0 0.0
        %1548 = vmatprep.subr.mxu0 0.0
        %1549 = vmatpush1.msra.mxu0 0.0
        %1550 = vmatprep.subr.mxu0 0.0
        %1551 = vmatpush1.msra.mxu0 0.0
        %1552 = vmatprep.subr.mxu0 0.0
        %1553 = vmatpush1.msra.mxu0 0.0
        %1554 = vmatprep.subr.mxu0 0.0
        %1555 = vmatpush1.msra.mxu0 0.0
        %1556 = vmatprep.subr.mxu0 0.0
        %1557 = vmatpush1.msra.mxu0 0.0
        %1558 = vmatprep.subr.mxu0 0.0
        %1559 = vmatpush1.msra.mxu0 0.0
        %1560 = vmatprep.subr.mxu0 0.0
        %1561 = vmatpush1.msra.mxu0 %v1535
        %1562 = vmatprep.subr.mxu0 0.0
        %1563 = vmatpush1.msra.mxu0 %v1534
        %1564 = vmatprep.subr.mxu0 0.0
        %1565 = vmatpush1.msra.mxu0 %v1533
        %1566 = vmatprep.subr.mxu0 0.0
        %1567 = vmatpush1.msra.mxu0 %v1532
        %1568 = vmatprep.subr.mxu0 0.0
        %1569 = vmatpush2.msra.mxu0 0.0
        %1570 = vmatprep.subr.mxu0 0.0
        %1571 = vmatpush2.msra.mxu0 0.0
        %1572 = vmatprep.subr.mxu0 0.0
        %1573 = vmatpush2.msra.mxu0 0.0
        %1574 = vmatprep.subr.mxu0 0.0
        %1575 = vmatpush2.msra.mxu0 0.0
        %1576 = vmatprep.subr.mxu0 0.0
        %1577 = vmatpush2.msra.mxu0 0.0
        %1578 = vmatprep.subr.mxu0 0.0
        %1579 = vmatpush2.msra.mxu0 0.0
        %1580 = vmatprep.subr.mxu0 0.0
        %1581 = vmatpush2.msra.mxu0 0.0
        %1582 = vmatprep.subr.mxu0 0.0
        %1583 = vmatpush2.msra.mxu0 0.0
        %1584 = vmatprep.subr.mxu0 0.0
        %1585 = vmatpush2.msra.mxu0 0.0
        %1586 = vmatprep.subr.mxu0 0.0
        %1587 = vmatpush2.msra.mxu0 0.0
        %1588 = vmatprep.subr.mxu0 0.0
        %1589 = vmatpush2.msra.mxu0 0.0
        %1590 = vmatprep.subr.mxu0 0.0
        %1591 = vmatpush2.msra.mxu0 0.0
        %1592 = vmatprep.subr.mxu0 0.0
        %1593 = vmatpush2.msra.mxu0 0.0
        %1594 = vmatprep.subr.mxu0 0.0
        %1595 = vmatpush2.msra.mxu0 0.0
        %1596 = vmatprep.subr.mxu0 0.0
        %1597 = vmatpush2.msra.mxu0 0.0
        %1598 = vmatprep.subr.mxu0 0.0
        %1599 = vmatpush2.msra.mxu0 0.0
        %1600 = vmatprep.mubr.f32.mxu0 0.0
        %1601 = vmatmul.mubr.f32.gmra.mxu0 %v1035
        %v1602 = vpop.f32.mrf.mxu0
        %v1603 = vadd.f32 0.0, %v1602
        %v1604 = vpop.f32.mrf.mxu0
        %1605 = vmatprep.mubr.f32.mxu0 0.0
        %1606 = vmatmul.mubr.f32.gmra.mxu0 %v1038
        %v1607 = vpop.f32.mrf.mxu0
        %v1608 = vadd.f32 0.0, %v1607
        %v1609 = vpop.f32.mrf.mxu0
        %1610 = vdwg.mxu0
        %s1611 = scalar_lea.vmem [#allocation3], 48
        %1612 = vst.msk [vmem:[%s1611] sm:$0xff] %vm1115, %v1603
        %1613 = vst.msk [vmem:[%s1611 + $0x8] sm:$0xff] %vm1115, %v1608
        %s1614 = scalar_lea.vmem %s4, 96
        %v1615 = vld [vmem:[%s1614] sm:$0xff]
        %v1616 = vld [vmem:[%s1614 + $0x8] sm:$0xff]
        %v1617 = vld [vmem:[%s1614 + $0x10] sm:$0xff]
        %v1618 = vld [vmem:[%s1614 + $0x18] sm:$0xff]
        %1619 = vmatprep.subr.mxu0 0.0
        %1620 = vmatpush1.msra.mxu0 0.0
        %1621 = vmatprep.subr.mxu0 0.0
        %1622 = vmatpush1.msra.mxu0 0.0
        %1623 = vmatprep.subr.mxu0 0.0
        %1624 = vmatpush1.msra.mxu0 0.0
        %1625 = vmatprep.subr.mxu0 0.0
        %1626 = vmatpush1.msra.mxu0 0.0
        %1627 = vmatprep.subr.mxu0 0.0
        %1628 = vmatpush1.msra.mxu0 0.0
        %1629 = vmatprep.subr.mxu0 0.0
        %1630 = vmatpush1.msra.mxu0 0.0
        %1631 = vmatprep.subr.mxu0 0.0
        %1632 = vmatpush1.msra.mxu0 0.0
        %1633 = vmatprep.subr.mxu0 0.0
        %1634 = vmatpush1.msra.mxu0 0.0
        %1635 = vmatprep.subr.mxu0 0.0
        %1636 = vmatpush1.msra.mxu0 0.0
        %1637 = vmatprep.subr.mxu0 0.0
        %1638 = vmatpush1.msra.mxu0 0.0
        %1639 = vmatprep.subr.mxu0 0.0
        %1640 = vmatpush1.msra.mxu0 0.0
        %1641 = vmatprep.subr.mxu0 0.0
        %1642 = vmatpush1.msra.mxu0 0.0
        %1643 = vmatprep.subr.mxu0 0.0
        %1644 = vmatpush1.msra.mxu0 %v1618
        %1645 = vmatprep.subr.mxu0 0.0
        %1646 = vmatpush1.msra.mxu0 %v1617
        %1647 = vmatprep.subr.mxu0 0.0
        %1648 = vmatpush1.msra.mxu0 %v1616
        %1649 = vmatprep.subr.mxu0 0.0
        %1650 = vmatpush1.msra.mxu0 %v1615
        %1651 = vmatprep.subr.mxu0 0.0
        %1652 = vmatpush2.msra.mxu0 0.0
        %1653 = vmatprep.subr.mxu0 0.0
        %1654 = vmatpush2.msra.mxu0 0.0
        %1655 = vmatprep.subr.mxu0 0.0
        %1656 = vmatpush2.msra.mxu0 0.0
        %1657 = vmatprep.subr.mxu0 0.0
        %1658 = vmatpush2.msra.mxu0 0.0
        %1659 = vmatprep.subr.mxu0 0.0
        %1660 = vmatpush2.msra.mxu0 0.0
        %1661 = vmatprep.subr.mxu0 0.0
        %1662 = vmatpush2.msra.mxu0 0.0
        %1663 = vmatprep.subr.mxu0 0.0
        %1664 = vmatpush2.msra.mxu0 0.0
        %1665 = vmatprep.subr.mxu0 0.0
        %1666 = vmatpush2.msra.mxu0 0.0
        %1667 = vmatprep.subr.mxu0 0.0
        %1668 = vmatpush2.msra.mxu0 0.0
        %1669 = vmatprep.subr.mxu0 0.0
        %1670 = vmatpush2.msra.mxu0 0.0
        %1671 = vmatprep.subr.mxu0 0.0
        %1672 = vmatpush2.msra.mxu0 0.0
        %1673 = vmatprep.subr.mxu0 0.0
        %1674 = vmatpush2.msra.mxu0 0.0
        %1675 = vmatprep.subr.mxu0 0.0
        %1676 = vmatpush2.msra.mxu0 0.0
        %1677 = vmatprep.subr.mxu0 0.0
        %1678 = vmatpush2.msra.mxu0 0.0
        %1679 = vmatprep.subr.mxu0 0.0
        %1680 = vmatpush2.msra.mxu0 0.0
        %1681 = vmatprep.subr.mxu0 0.0
        %1682 = vmatpush2.msra.mxu0 0.0
        %1683 = vmatprep.mubr.f32.mxu0 0.0
        %1684 = vmatmul.mubr.f32.gmra.mxu0 %v1035
        %v1685 = vpop.f32.mrf.mxu0
        %v1686 = vadd.f32 0.0, %v1685
        %v1687 = vpop.f32.mrf.mxu0
        %1688 = vmatprep.mubr.f32.mxu0 0.0
        %1689 = vmatmul.mubr.f32.gmra.mxu0 %v1038
        %v1690 = vpop.f32.mrf.mxu0
        %v1691 = vadd.f32 0.0, %v1690
        %v1692 = vpop.f32.mrf.mxu0
        %1693 = vdwg.mxu0
        %s1694 = scalar_lea.vmem [#allocation4], 48
        %1695 = vst.msk [vmem:[%s1694] sm:$0xff] %vm1115, %v1686
        %1696 = vst.msk [vmem:[%s1694 + $0x8] sm:$0xff] %vm1115, %v1691
        %s1697 = scalar_lea.vmem %s3, 128
        %v1698 = vld [vmem:[%s1697] sm:$0xff]
        %v1699 = vld [vmem:[%s1697 + $0x8] sm:$0xff]
        %v1700 = vld [vmem:[%s1697 + $0x10] sm:$0xff]
        %v1701 = vld [vmem:[%s1697 + $0x18] sm:$0xff]
        %1702 = vmatprep.subr.mxu0 0.0
        %1703 = vmatpush1.msra.mxu0 0.0
        %1704 = vmatprep.subr.mxu0 0.0
        %1705 = vmatpush1.msra.mxu0 0.0
        %1706 = vmatprep.subr.mxu0 0.0
        %1707 = vmatpush1.msra.mxu0 0.0
        %1708 = vmatprep.subr.mxu0 0.0
        %1709 = vmatpush1.msra.mxu0 0.0
        %1710 = vmatprep.subr.mxu0 0.0
        %1711 = vmatpush1.msra.mxu0 0.0
        %1712 = vmatprep.subr.mxu0 0.0
        %1713 = vmatpush1.msra.mxu0 0.0
        %1714 = vmatprep.subr.mxu0 0.0
        %1715 = vmatpush1.msra.mxu0 0.0
        %1716 = vmatprep.subr.mxu0 0.0
        %1717 = vmatpush1.msra.mxu0 0.0
        %1718 = vmatprep.subr.mxu0 0.0
        %1719 = vmatpush1.msra.mxu0 0.0
        %1720 = vmatprep.subr.mxu0 0.0
        %1721 = vmatpush1.msra.mxu0 0.0
        %1722 = vmatprep.subr.mxu0 0.0
        %1723 = vmatpush1.msra.mxu0 0.0
        %1724 = vmatprep.subr.mxu0 0.0
        %1725 = vmatpush1.msra.mxu0 0.0
        %1726 = vmatprep.subr.mxu0 0.0
        %1727 = vmatpush1.msra.mxu0 %v1701
        %1728 = vmatprep.subr.mxu0 0.0
        %1729 = vmatpush1.msra.mxu0 %v1700
        %1730 = vmatprep.subr.mxu0 0.0
        %1731 = vmatpush1.msra.mxu0 %v1699
        %1732 = vmatprep.subr.mxu0 0.0
        %1733 = vmatpush1.msra.mxu0 %v1698
        %1734 = vmatprep.subr.mxu0 0.0
        %1735 = vmatpush2.msra.mxu0 0.0
        %1736 = vmatprep.subr.mxu0 0.0
        %1737 = vmatpush2.msra.mxu0 0.0
        %1738 = vmatprep.subr.mxu0 0.0
        %1739 = vmatpush2.msra.mxu0 0.0
        %1740 = vmatprep.subr.mxu0 0.0
        %1741 = vmatpush2.msra.mxu0 0.0
        %1742 = vmatprep.subr.mxu0 0.0
        %1743 = vmatpush2.msra.mxu0 0.0
        %1744 = vmatprep.subr.mxu0 0.0
        %1745 = vmatpush2.msra.mxu0 0.0
        %1746 = vmatprep.subr.mxu0 0.0
        %1747 = vmatpush2.msra.mxu0 0.0
        %1748 = vmatprep.subr.mxu0 0.0
        %1749 = vmatpush2.msra.mxu0 0.0
        %1750 = vmatprep.subr.mxu0 0.0
        %1751 = vmatpush2.msra.mxu0 0.0
        %1752 = vmatprep.subr.mxu0 0.0
        %1753 = vmatpush2.msra.mxu0 0.0
        %1754 = vmatprep.subr.mxu0 0.0
        %1755 = vmatpush2.msra.mxu0 0.0
        %1756 = vmatprep.subr.mxu0 0.0
        %1757 = vmatpush2.msra.mxu0 0.0
        %1758 = vmatprep.subr.mxu0 0.0
        %1759 = vmatpush2.msra.mxu0 0.0
        %1760 = vmatprep.subr.mxu0 0.0
        %1761 = vmatpush2.msra.mxu0 0.0
        %1762 = vmatprep.subr.mxu0 0.0
        %1763 = vmatpush2.msra.mxu0 0.0
        %1764 = vmatprep.subr.mxu0 0.0
        %1765 = vmatpush2.msra.mxu0 0.0
        %1766 = vmatprep.mubr.f32.mxu0 0.0
        %1767 = vmatmul.mubr.f32.gmra.mxu0 %v1035
        %v1768 = vpop.f32.mrf.mxu0
        %v1769 = vadd.f32 0.0, %v1768
        %v1770 = vpop.f32.mrf.mxu0
        %1771 = vmatprep.mubr.f32.mxu0 0.0
        %1772 = vmatmul.mubr.f32.gmra.mxu0 %v1038
        %v1773 = vpop.f32.mrf.mxu0
        %v1774 = vadd.f32 0.0, %v1773
        %v1775 = vpop.f32.mrf.mxu0
        %1776 = vdwg.mxu0
        %s1777 = scalar_lea.vmem [#allocation3], 64
        %1778 = vst.msk [vmem:[%s1777] sm:$0xff] %vm1115, %v1769
        %1779 = vst.msk [vmem:[%s1777 + $0x8] sm:$0xff] %vm1115, %v1774
        %s1780 = scalar_lea.vmem %s4, 128
        %v1781 = vld [vmem:[%s1780] sm:$0xff]
        %v1782 = vld [vmem:[%s1780 + $0x8] sm:$0xff]
        %v1783 = vld [vmem:[%s1780 + $0x10] sm:$0xff]
        %v1784 = vld [vmem:[%s1780 + $0x18] sm:$0xff]
        %1785 = vmatprep.subr.mxu0 0.0
        %1786 = vmatpush1.msra.mxu0 0.0
        %1787 = vmatprep.subr.mxu0 0.0
        %1788 = vmatpush1.msra.mxu0 0.0
        %1789 = vmatprep.subr.mxu0 0.0
        %1790 = vmatpush1.msra.mxu0 0.0
        %1791 = vmatprep.subr.mxu0 0.0
        %1792 = vmatpush1.msra.mxu0 0.0
        %1793 = vmatprep.subr.mxu0 0.0
        %1794 = vmatpush1.msra.mxu0 0.0
        %1795 = vmatprep.subr.mxu0 0.0
        %1796 = vmatpush1.msra.mxu0 0.0
        %1797 = vmatprep.subr.mxu0 0.0
        %1798 = vmatpush1.msra.mxu0 0.0
        %1799 = vmatprep.subr.mxu0 0.0
        %1800 = vmatpush1.msra.mxu0 0.0
        %1801 = vmatprep.subr.mxu0 0.0
        %1802 = vmatpush1.msra.mxu0 0.0
        %1803 = vmatprep.subr.mxu0 0.0
        %1804 = vmatpush1.msra.mxu0 0.0
        %1805 = vmatprep.subr.mxu0 0.0
        %1806 = vmatpush1.msra.mxu0 0.0
        %1807 = vmatprep.subr.mxu0 0.0
        %1808 = vmatpush1.msra.mxu0 0.0
        %1809 = vmatprep.subr.mxu0 0.0
        %1810 = vmatpush1.msra.mxu0 %v1784
        %1811 = vmatprep.subr.mxu0 0.0
        %1812 = vmatpush1.msra.mxu0 %v1783
        %1813 = vmatprep.subr.mxu0 0.0
        %1814 = vmatpush1.msra.mxu0 %v1782
        %1815 = vmatprep.subr.mxu0 0.0
        %1816 = vmatpush1.msra.mxu0 %v1781
        %1817 = vmatprep.subr.mxu0 0.0
        %1818 = vmatpush2.msra.mxu0 0.0
        %1819 = vmatprep.subr.mxu0 0.0
        %1820 = vmatpush2.msra.mxu0 0.0
        %1821 = vmatprep.subr.mxu0 0.0
        %1822 = vmatpush2.msra.mxu0 0.0
        %1823 = vmatprep.subr.mxu0 0.0
        %1824 = vmatpush2.msra.mxu0 0.0
        %1825 = vmatprep.subr.mxu0 0.0
        %1826 = vmatpush2.msra.mxu0 0.0
        %1827 = vmatprep.subr.mxu0 0.0
        %1828 = vmatpush2.msra.mxu0 0.0
        %1829 = vmatprep.subr.mxu0 0.0
        %1830 = vmatpush2.msra.mxu0 0.0
        %1831 = vmatprep.subr.mxu0 0.0
        %1832 = vmatpush2.msra.mxu0 0.0
        %1833 = vmatprep.subr.mxu0 0.0
        %1834 = vmatpush2.msra.mxu0 0.0
        %1835 = vmatprep.subr.mxu0 0.0
        %1836 = vmatpush2.msra.mxu0 0.0
        %1837 = vmatprep.subr.mxu0 0.0
        %1838 = vmatpush2.msra.mxu0 0.0
        %1839 = vmatprep.subr.mxu0 0.0
        %1840 = vmatpush2.msra.mxu0 0.0
        %1841 = vmatprep.subr.mxu0 0.0
        %1842 = vmatpush2.msra.mxu0 0.0
        %1843 = vmatprep.subr.mxu0 0.0
        %1844 = vmatpush2.msra.mxu0 0.0
        %1845 = vmatprep.subr.mxu0 0.0
        %1846 = vmatpush2.msra.mxu0 0.0
        %1847 = vmatprep.subr.mxu0 0.0
        %1848 = vmatpush2.msra.mxu0 0.0
        %1849 = vmatprep.mubr.f32.mxu0 0.0
        %1850 = vmatmul.mubr.f32.gmra.mxu0 %v1035
        %v1851 = vpop.f32.mrf.mxu0
        %v1852 = vadd.f32 0.0, %v1851
        %v1853 = vpop.f32.mrf.mxu0
        %1854 = vmatprep.mubr.f32.mxu0 0.0
        %1855 = vmatmul.mubr.f32.gmra.mxu0 %v1038
        %v1856 = vpop.f32.mrf.mxu0
        %v1857 = vadd.f32 0.0, %v1856
        %v1858 = vpop.f32.mrf.mxu0
        %1859 = vdwg.mxu0
        %s1860 = scalar_lea.vmem [#allocation4], 64
        %1861 = vst.msk [vmem:[%s1860] sm:$0xff] %vm1115, %v1852
        %1862 = vst.msk [vmem:[%s1860 + $0x8] sm:$0xff] %vm1115, %v1857
        %s1863 = scalar_lea.vmem %s3, 160
        %v1864 = vld [vmem:[%s1863] sm:$0xff]
        %v1865 = vld [vmem:[%s1863 + $0x8] sm:$0xff]
        %v1866 = vld [vmem:[%s1863 + $0x10] sm:$0xff]
        %v1867 = vld [vmem:[%s1863 + $0x18] sm:$0xff]
        %1868 = vmatprep.subr.mxu0 0.0
        %1869 = vmatpush1.msra.mxu0 0.0
        %1870 = vmatprep.subr.mxu0 0.0
        %1871 = vmatpush1.msra.mxu0 0.0
        %1872 = vmatprep.subr.mxu0 0.0
        %1873 = vmatpush1.msra.mxu0 0.0
        %1874 = vmatprep.subr.mxu0 0.0
        %1875 = vmatpush1.msra.mxu0 0.0
        %1876 = vmatprep.subr.mxu0 0.0
        %1877 = vmatpush1.msra.mxu0 0.0
        %1878 = vmatprep.subr.mxu0 0.0
        %1879 = vmatpush1.msra.mxu0 0.0
        %1880 = vmatprep.subr.mxu0 0.0
        %1881 = vmatpush1.msra.mxu0 0.0
        %1882 = vmatprep.subr.mxu0 0.0
        %1883 = vmatpush1.msra.mxu0 0.0
        %1884 = vmatprep.subr.mxu0 0.0
        %1885 = vmatpush1.msra.mxu0 0.0
        %1886 = vmatprep.subr.mxu0 0.0
        %1887 = vmatpush1.msra.mxu0 0.0
        %1888 = vmatprep.subr.mxu0 0.0
        %1889 = vmatpush1.msra.mxu0 0.0
        %1890 = vmatprep.subr.mxu0 0.0
        %1891 = vmatpush1.msra.mxu0 0.0
        %1892 = vmatprep.subr.mxu0 0.0
        %1893 = vmatpush1.msra.mxu0 %v1867
        %1894 = vmatprep.subr.mxu0 0.0
        %1895 = vmatpush1.msra.mxu0 %v1866
        %1896 = vmatprep.subr.mxu0 0.0
        %1897 = vmatpush1.msra.mxu0 %v1865
        %1898 = vmatprep.subr.mxu0 0.0
        %1899 = vmatpush1.msra.mxu0 %v1864
        %1900 = vmatprep.subr.mxu0 0.0
        %1901 = vmatpush2.msra.mxu0 0.0
        %1902 = vmatprep.subr.mxu0 0.0
        %1903 = vmatpush2.msra.mxu0 0.0
        %1904 = vmatprep.subr.mxu0 0.0
        %1905 = vmatpush2.msra.mxu0 0.0
        %1906 = vmatprep.subr.mxu0 0.0
        %1907 = vmatpush2.msra.mxu0 0.0
        %1908 = vmatprep.subr.mxu0 0.0
        %1909 = vmatpush2.msra.mxu0 0.0
        %1910 = vmatprep.subr.mxu0 0.0
        %1911 = vmatpush2.msra.mxu0 0.0
        %1912 = vmatprep.subr.mxu0 0.0
        %1913 = vmatpush2.msra.mxu0 0.0
        %1914 = vmatprep.subr.mxu0 0.0
        %1915 = vmatpush2.msra.mxu0 0.0
        %1916 = vmatprep.subr.mxu0 0.0
        %1917 = vmatpush2.msra.mxu0 0.0
        %1918 = vmatprep.subr.mxu0 0.0
        %1919 = vmatpush2.msra.mxu0 0.0
        %1920 = vmatprep.subr.mxu0 0.0
        %1921 = vmatpush2.msra.mxu0 0.0
        %1922 = vmatprep.subr.mxu0 0.0
        %1923 = vmatpush2.msra.mxu0 0.0
        %1924 = vmatprep.subr.mxu0 0.0
        %1925 = vmatpush2.msra.mxu0 0.0
        %1926 = vmatprep.subr.mxu0 0.0
        %1927 = vmatpush2.msra.mxu0 0.0
        %1928 = vmatprep.subr.mxu0 0.0
        %1929 = vmatpush2.msra.mxu0 0.0
        %1930 = vmatprep.subr.mxu0 0.0
        %1931 = vmatpush2.msra.mxu0 0.0
        %1932 = vmatprep.mubr.f32.mxu0 0.0
        %1933 = vmatmul.mubr.f32.gmra.mxu0 %v1035
        %v1934 = vpop.f32.mrf.mxu0
        %v1935 = vadd.f32 0.0, %v1934
        %v1936 = vpop.f32.mrf.mxu0
        %1937 = vmatprep.mubr.f32.mxu0 0.0
        %1938 = vmatmul.mubr.f32.gmra.mxu0 %v1038
        %v1939 = vpop.f32.mrf.mxu0
        %v1940 = vadd.f32 0.0, %v1939
        %v1941 = vpop.f32.mrf.mxu0
        %1942 = vdwg.mxu0
        %s1943 = scalar_lea.vmem [#allocation3], 80
        %1944 = vst.msk [vmem:[%s1943] sm:$0xff] %vm1115, %v1935
        %1945 = vst.msk [vmem:[%s1943 + $0x8] sm:$0xff] %vm1115, %v1940
        %s1946 = scalar_lea.vmem %s4, 160
        %v1947 = vld [vmem:[%s1946] sm:$0xff]
        %v1948 = vld [vmem:[%s1946 + $0x8] sm:$0xff]
        %v1949 = vld [vmem:[%s1946 + $0x10] sm:$0xff]
        %v1950 = vld [vmem:[%s1946 + $0x18] sm:$0xff]
        %1951 = vmatprep.subr.mxu0 0.0
        %1952 = vmatpush1.msra.mxu0 0.0
        %1953 = vmatprep.subr.mxu0 0.0
        %1954 = vmatpush1.msra.mxu0 0.0
        %1955 = vmatprep.subr.mxu0 0.0
        %1956 = vmatpush1.msra.mxu0 0.0
        %1957 = vmatprep.subr.mxu0 0.0
        %1958 = vmatpush1.msra.mxu0 0.0
        %1959 = vmatprep.subr.mxu0 0.0
        %1960 = vmatpush1.msra.mxu0 0.0
        %1961 = vmatprep.subr.mxu0 0.0
        %1962 = vmatpush1.msra.mxu0 0.0
        %1963 = vmatprep.subr.mxu0 0.0
        %1964 = vmatpush1.msra.mxu0 0.0
        %1965 = vmatprep.subr.mxu0 0.0
        %1966 = vmatpush1.msra.mxu0 0.0
        %1967 = vmatprep.subr.mxu0 0.0
        %1968 = vmatpush1.msra.mxu0 0.0
        %1969 = vmatprep.subr.mxu0 0.0
        %1970 = vmatpush1.msra.mxu0 0.0
        %1971 = vmatprep.subr.mxu0 0.0
        %1972 = vmatpush1.msra.mxu0 0.0
        %1973 = vmatprep.subr.mxu0 0.0
        %1974 = vmatpush1.msra.mxu0 0.0
        %1975 = vmatprep.subr.mxu0 0.0
        %1976 = vmatpush1.msra.mxu0 %v1950
        %1977 = vmatprep.subr.mxu0 0.0
        %1978 = vmatpush1.msra.mxu0 %v1949
        %1979 = vmatprep.subr.mxu0 0.0
        %1980 = vmatpush1.msra.mxu0 %v1948
        %1981 = vmatprep.subr.mxu0 0.0
        %1982 = vmatpush1.msra.mxu0 %v1947
        %1983 = vmatprep.subr.mxu0 0.0
        %1984 = vmatpush2.msra.mxu0 0.0
        %1985 = vmatprep.subr.mxu0 0.0
        %1986 = vmatpush2.msra.mxu0 0.0
        %1987 = vmatprep.subr.mxu0 0.0
        %1988 = vmatpush2.msra.mxu0 0.0
        %1989 = vmatprep.subr.mxu0 0.0
        %1990 = vmatpush2.msra.mxu0 0.0
        %1991 = vmatprep.subr.mxu0 0.0
        %1992 = vmatpush2.msra.mxu0 0.0
        %1993 = vmatprep.subr.mxu0 0.0
        %1994 = vmatpush2.msra.mxu0 0.0
        %1995 = vmatprep.subr.mxu0 0.0
        %1996 = vmatpush2.msra.mxu0 0.0
        %1997 = vmatprep.subr.mxu0 0.0
        %1998 = vmatpush2.msra.mxu0 0.0
        %1999 = vmatprep.subr.mxu0 0.0
        %2000 = vmatpush2.msra.mxu0 0.0
        %2001 = vmatprep.subr.mxu0 0.0
        %2002 = vmatpush2.msra.mxu0 0.0
        %2003 = vmatprep.subr.mxu0 0.0
        %2004 = vmatpush2.msra.mxu0 0.0
        %2005 = vmatprep.subr.mxu0 0.0
        %2006 = vmatpush2.msra.mxu0 0.0
        %2007 = vmatprep.subr.mxu0 0.0
        %2008 = vmatpush2.msra.mxu0 0.0
        %2009 = vmatprep.subr.mxu0 0.0
        %2010 = vmatpush2.msra.mxu0 0.0
        %2011 = vmatprep.subr.mxu0 0.0
        %2012 = vmatpush2.msra.mxu0 0.0
        %2013 = vmatprep.subr.mxu0 0.0
        %2014 = vmatpush2.msra.mxu0 0.0
        %2015 = vmatprep.mubr.f32.mxu0 0.0
        %2016 = vmatmul.mubr.f32.gmra.mxu0 %v1035
        %v2017 = vpop.f32.mrf.mxu0
        %v2018 = vadd.f32 0.0, %v2017
        %v2019 = vpop.f32.mrf.mxu0
        %2020 = vmatprep.mubr.f32.mxu0 0.0
        %2021 = vmatmul.mubr.f32.gmra.mxu0 %v1038
        %v2022 = vpop.f32.mrf.mxu0
        %v2023 = vadd.f32 0.0, %v2022
        %v2024 = vpop.f32.mrf.mxu0
        %2025 = vdwg.mxu0
        %s2026 = scalar_lea.vmem [#allocation4], 80
        %2027 = vst.msk [vmem:[%s2026] sm:$0xff] %vm1115, %v2018
        %2028 = vst.msk [vmem:[%s2026 + $0x8] sm:$0xff] %vm1115, %v2023
        %s2029 = scalar_lea.vmem %s3, 192
        %v2030 = vld [vmem:[%s2029] sm:$0xff]
        %v2031 = vld [vmem:[%s2029 + $0x8] sm:$0xff]
        %v2032 = vld [vmem:[%s2029 + $0x10] sm:$0xff]
        %v2033 = vld [vmem:[%s2029 + $0x18] sm:$0xff]
        %2034 = vmatprep.subr.mxu0 0.0
        %2035 = vmatpush1.msra.mxu0 0.0
        %2036 = vmatprep.subr.mxu0 0.0
        %2037 = vmatpush1.msra.mxu0 0.0
        %2038 = vmatprep.subr.mxu0 0.0
        %2039 = vmatpush1.msra.mxu0 0.0
        %2040 = vmatprep.subr.mxu0 0.0
        %2041 = vmatpush1.msra.mxu0 0.0
        %2042 = vmatprep.subr.mxu0 0.0
        %2043 = vmatpush1.msra.mxu0 0.0
        %2044 = vmatprep.subr.mxu0 0.0
        %2045 = vmatpush1.msra.mxu0 0.0
        %2046 = vmatprep.subr.mxu0 0.0
        %2047 = vmatpush1.msra.mxu0 0.0
        %2048 = vmatprep.subr.mxu0 0.0
        %2049 = vmatpush1.msra.mxu0 0.0
        %2050 = vmatprep.subr.mxu0 0.0
        %2051 = vmatpush1.msra.mxu0 0.0
        %2052 = vmatprep.subr.mxu0 0.0
        %2053 = vmatpush1.msra.mxu0 0.0
        %2054 = vmatprep.subr.mxu0 0.0
        %2055 = vmatpush1.msra.mxu0 0.0
        %2056 = vmatprep.subr.mxu0 0.0
        %2057 = vmatpush1.msra.mxu0 0.0
        %2058 = vmatprep.subr.mxu0 0.0
        %2059 = vmatpush1.msra.mxu0 %v2033
        %2060 = vmatprep.subr.mxu0 0.0
        %2061 = vmatpush1.msra.mxu0 %v2032
        %2062 = vmatprep.subr.mxu0 0.0
        %2063 = vmatpush1.msra.mxu0 %v2031
        %2064 = vmatprep.subr.mxu0 0.0
        %2065 = vmatpush1.msra.mxu0 %v2030
        %2066 = vmatprep.subr.mxu0 0.0
        %2067 = vmatpush2.msra.mxu0 0.0
        %2068 = vmatprep.subr.mxu0 0.0
        %2069 = vmatpush2.msra.mxu0 0.0
        %2070 = vmatprep.subr.mxu0 0.0
        %2071 = vmatpush2.msra.mxu0 0.0
        %2072 = vmatprep.subr.mxu0 0.0
        %2073 = vmatpush2.msra.mxu0 0.0
        %2074 = vmatprep.subr.mxu0 0.0
        %2075 = vmatpush2.msra.mxu0 0.0
        %2076 = vmatprep.subr.mxu0 0.0
        %2077 = vmatpush2.msra.mxu0 0.0
        %2078 = vmatprep.subr.mxu0 0.0
        %2079 = vmatpush2.msra.mxu0 0.0
        %2080 = vmatprep.subr.mxu0 0.0
        %2081 = vmatpush2.msra.mxu0 0.0
        %2082 = vmatprep.subr.mxu0 0.0
        %2083 = vmatpush2.msra.mxu0 0.0
        %2084 = vmatprep.subr.mxu0 0.0
        %2085 = vmatpush2.msra.mxu0 0.0
        %2086 = vmatprep.subr.mxu0 0.0
        %2087 = vmatpush2.msra.mxu0 0.0
        %2088 = vmatprep.subr.mxu0 0.0
        %2089 = vmatpush2.msra.mxu0 0.0
        %2090 = vmatprep.subr.mxu0 0.0
        %2091 = vmatpush2.msra.mxu0 0.0
        %2092 = vmatprep.subr.mxu0 0.0
        %2093 = vmatpush2.msra.mxu0 0.0
        %2094 = vmatprep.subr.mxu0 0.0
        %2095 = vmatpush2.msra.mxu0 0.0
        %2096 = vmatprep.subr.mxu0 0.0
        %2097 = vmatpush2.msra.mxu0 0.0
        %2098 = vmatprep.mubr.f32.mxu0 0.0
        %2099 = vmatmul.mubr.f32.gmra.mxu0 %v1035
        %v2100 = vpop.f32.mrf.mxu0
        %v2101 = vadd.f32 0.0, %v2100
        %v2102 = vpop.f32.mrf.mxu0
        %2103 = vmatprep.mubr.f32.mxu0 0.0
        %2104 = vmatmul.mubr.f32.gmra.mxu0 %v1038
        %v2105 = vpop.f32.mrf.mxu0
        %v2106 = vadd.f32 0.0, %v2105
        %v2107 = vpop.f32.mrf.mxu0
        %2108 = vdwg.mxu0
        %s2109 = scalar_lea.vmem [#allocation3], 96
        %2110 = vst.msk [vmem:[%s2109] sm:$0xff] %vm1115, %v2101
        %2111 = vst.msk [vmem:[%s2109 + $0x8] sm:$0xff] %vm1115, %v2106
        %s2112 = scalar_lea.vmem %s4, 192
        %v2113 = vld [vmem:[%s2112] sm:$0xff]
        %v2114 = vld [vmem:[%s2112 + $0x8] sm:$0xff]
        %v2115 = vld [vmem:[%s2112 + $0x10] sm:$0xff]
        %v2116 = vld [vmem:[%s2112 + $0x18] sm:$0xff]
        %2117 = vmatprep.subr.mxu0 0.0
        %2118 = vmatpush1.msra.mxu0 0.0
        %2119 = vmatprep.subr.mxu0 0.0
        %2120 = vmatpush1.msra.mxu0 0.0
        %2121 = vmatprep.subr.mxu0 0.0
        %2122 = vmatpush1.msra.mxu0 0.0
        %2123 = vmatprep.subr.mxu0 0.0
        %2124 = vmatpush1.msra.mxu0 0.0
        %2125 = vmatprep.subr.mxu0 0.0
        %2126 = vmatpush1.msra.mxu0 0.0
        %2127 = vmatprep.subr.mxu0 0.0
        %2128 = vmatpush1.msra.mxu0 0.0
        %2129 = vmatprep.subr.mxu0 0.0
        %2130 = vmatpush1.msra.mxu0 0.0
        %2131 = vmatprep.subr.mxu0 0.0
        %2132 = vmatpush1.msra.mxu0 0.0
        %2133 = vmatprep.subr.mxu0 0.0
        %2134 = vmatpush1.msra.mxu0 0.0
        %2135 = vmatprep.subr.mxu0 0.0
        %2136 = vmatpush1.msra.mxu0 0.0
        %2137 = vmatprep.subr.mxu0 0.0
        %2138 = vmatpush1.msra.mxu0 0.0
        %2139 = vmatprep.subr.mxu0 0.0
        %2140 = vmatpush1.msra.mxu0 0.0
        %2141 = vmatprep.subr.mxu0 0.0
        %2142 = vmatpush1.msra.mxu0 %v2116
        %2143 = vmatprep.subr.mxu0 0.0
        %2144 = vmatpush1.msra.mxu0 %v2115
        %2145 = vmatprep.subr.mxu0 0.0
        %2146 = vmatpush1.msra.mxu0 %v2114
        %2147 = vmatprep.subr.mxu0 0.0
        %2148 = vmatpush1.msra.mxu0 %v2113
        %2149 = vmatprep.subr.mxu0 0.0
        %2150 = vmatpush2.msra.mxu0 0.0
        %2151 = vmatprep.subr.mxu0 0.0
        %2152 = vmatpush2.msra.mxu0 0.0
        %2153 = vmatprep.subr.mxu0 0.0
        %2154 = vmatpush2.msra.mxu0 0.0
        %2155 = vmatprep.subr.mxu0 0.0
        %2156 = vmatpush2.msra.mxu0 0.0
        %2157 = vmatprep.subr.mxu0 0.0
        %2158 = vmatpush2.msra.mxu0 0.0
        %2159 = vmatprep.subr.mxu0 0.0
        %2160 = vmatpush2.msra.mxu0 0.0
        %2161 = vmatprep.subr.mxu0 0.0
        %2162 = vmatpush2.msra.mxu0 0.0
        %2163 = vmatprep.subr.mxu0 0.0
        %2164 = vmatpush2.msra.mxu0 0.0
        %2165 = vmatprep.subr.mxu0 0.0
        %2166 = vmatpush2.msra.mxu0 0.0
        %2167 = vmatprep.subr.mxu0 0.0
        %2168 = vmatpush2.msra.mxu0 0.0
        %2169 = vmatprep.subr.mxu0 0.0
        %2170 = vmatpush2.msra.mxu0 0.0
        %2171 = vmatprep.subr.mxu0 0.0
        %2172 = vmatpush2.msra.mxu0 0.0
        %2173 = vmatprep.subr.mxu0 0.0
        %2174 = vmatpush2.msra.mxu0 0.0
        %2175 = vmatprep.subr.mxu0 0.0
        %2176 = vmatpush2.msra.mxu0 0.0
        %2177 = vmatprep.subr.mxu0 0.0
        %2178 = vmatpush2.msra.mxu0 0.0
        %2179 = vmatprep.subr.mxu0 0.0
        %2180 = vmatpush2.msra.mxu0 0.0
        %2181 = vmatprep.mubr.f32.mxu0 0.0
        %2182 = vmatmul.mubr.f32.gmra.mxu0 %v1035
        %v2183 = vpop.f32.mrf.mxu0
        %v2184 = vadd.f32 0.0, %v2183
        %v2185 = vpop.f32.mrf.mxu0
        %2186 = vmatprep.mubr.f32.mxu0 0.0
        %2187 = vmatmul.mubr.f32.gmra.mxu0 %v1038
        %v2188 = vpop.f32.mrf.mxu0
        %v2189 = vadd.f32 0.0, %v2188
        %v2190 = vpop.f32.mrf.mxu0
        %2191 = vdwg.mxu0
        %s2192 = scalar_lea.vmem [#allocation4], 96
        %2193 = vst.msk [vmem:[%s2192] sm:$0xff] %vm1115, %v2184
        %2194 = vst.msk [vmem:[%s2192 + $0x8] sm:$0xff] %vm1115, %v2189
        %s2195 = scalar_lea.vmem %s3, 224
        %v2196 = vld [vmem:[%s2195] sm:$0xff]
        %v2197 = vld [vmem:[%s2195 + $0x8] sm:$0xff]
        %v2198 = vld [vmem:[%s2195 + $0x10] sm:$0xff]
        %v2199 = vld [vmem:[%s2195 + $0x18] sm:$0xff]
        %2200 = vmatprep.subr.mxu0 0.0
        %2201 = vmatpush1.msra.mxu0 0.0
        %2202 = vmatprep.subr.mxu0 0.0
        %2203 = vmatpush1.msra.mxu0 0.0
        %2204 = vmatprep.subr.mxu0 0.0
        %2205 = vmatpush1.msra.mxu0 0.0
        %2206 = vmatprep.subr.mxu0 0.0
        %2207 = vmatpush1.msra.mxu0 0.0
        %2208 = vmatprep.subr.mxu0 0.0
        %2209 = vmatpush1.msra.mxu0 0.0
        %2210 = vmatprep.subr.mxu0 0.0
        %2211 = vmatpush1.msra.mxu0 0.0
        %2212 = vmatprep.subr.mxu0 0.0
        %2213 = vmatpush1.msra.mxu0 0.0
        %2214 = vmatprep.subr.mxu0 0.0
        %2215 = vmatpush1.msra.mxu0 0.0
        %2216 = vmatprep.subr.mxu0 0.0
        %2217 = vmatpush1.msra.mxu0 0.0
        %2218 = vmatprep.subr.mxu0 0.0
        %2219 = vmatpush1.msra.mxu0 0.0
        %2220 = vmatprep.subr.mxu0 0.0
        %2221 = vmatpush1.msra.mxu0 0.0
        %2222 = vmatprep.subr.mxu0 0.0
        %2223 = vmatpush1.msra.mxu0 0.0
        %2224 = vmatprep.subr.mxu0 0.0
        %2225 = vmatpush1.msra.mxu0 %v2199
        %2226 = vmatprep.subr.mxu0 0.0
        %2227 = vmatpush1.msra.mxu0 %v2198
        %2228 = vmatprep.subr.mxu0 0.0
        %2229 = vmatpush1.msra.mxu0 %v2197
        %2230 = vmatprep.subr.mxu0 0.0
        %2231 = vmatpush1.msra.mxu0 %v2196
        %2232 = vmatprep.subr.mxu0 0.0
        %2233 = vmatpush2.msra.mxu0 0.0
        %2234 = vmatprep.subr.mxu0 0.0
        %2235 = vmatpush2.msra.mxu0 0.0
        %2236 = vmatprep.subr.mxu0 0.0
        %2237 = vmatpush2.msra.mxu0 0.0
        %2238 = vmatprep.subr.mxu0 0.0
        %2239 = vmatpush2.msra.mxu0 0.0
        %2240 = vmatprep.subr.mxu0 0.0
        %2241 = vmatpush2.msra.mxu0 0.0
        %2242 = vmatprep.subr.mxu0 0.0
        %2243 = vmatpush2.msra.mxu0 0.0
        %2244 = vmatprep.subr.mxu0 0.0
        %2245 = vmatpush2.msra.mxu0 0.0
        %2246 = vmatprep.subr.mxu0 0.0
        %2247 = vmatpush2.msra.mxu0 0.0
        %2248 = vmatprep.subr.mxu0 0.0
        %2249 = vmatpush2.msra.mxu0 0.0
        %2250 = vmatprep.subr.mxu0 0.0
        %2251 = vmatpush2.msra.mxu0 0.0
        %2252 = vmatprep.subr.mxu0 0.0
        %2253 = vmatpush2.msra.mxu0 0.0
        %2254 = vmatprep.subr.mxu0 0.0
        %2255 = vmatpush2.msra.mxu0 0.0
        %2256 = vmatprep.subr.mxu0 0.0
        %2257 = vmatpush2.msra.mxu0 0.0
        %2258 = vmatprep.subr.mxu0 0.0
        %2259 = vmatpush2.msra.mxu0 0.0
        %2260 = vmatprep.subr.mxu0 0.0
        %2261 = vmatpush2.msra.mxu0 0.0
        %2262 = vmatprep.subr.mxu0 0.0
        %2263 = vmatpush2.msra.mxu0 0.0
        %2264 = vmatprep.mubr.f32.mxu0 0.0
        %2265 = vmatmul.mubr.f32.gmra.mxu0 %v1035
        %v2266 = vpop.f32.mrf.mxu0
        %v2267 = vadd.f32 0.0, %v2266
        %v2268 = vpop.f32.mrf.mxu0
        %2269 = vmatprep.mubr.f32.mxu0 0.0
        %2270 = vmatmul.mubr.f32.gmra.mxu0 %v1038
        %v2271 = vpop.f32.mrf.mxu0
        %v2272 = vadd.f32 0.0, %v2271
        %v2273 = vpop.f32.mrf.mxu0
        %2274 = vdwg.mxu0
        %s2275 = scalar_lea.vmem [#allocation3], 112
        %2276 = vst.msk [vmem:[%s2275] sm:$0xff] %vm1115, %v2267
        %2277 = vst.msk [vmem:[%s2275 + $0x8] sm:$0xff] %vm1115, %v2272
        %s2278 = scalar_lea.vmem %s4, 224
        %v2279 = vld [vmem:[%s2278] sm:$0xff]
        %v2280 = vld [vmem:[%s2278 + $0x8] sm:$0xff]
        %v2281 = vld [vmem:[%s2278 + $0x10] sm:$0xff]
        %v2282 = vld [vmem:[%s2278 + $0x18] sm:$0xff]
        %2283 = vmatprep.subr.mxu0 0.0
        %2284 = vmatpush1.msra.mxu0 0.0
        %2285 = vmatprep.subr.mxu0 0.0
        %2286 = vmatpush1.msra.mxu0 0.0
        %2287 = vmatprep.subr.mxu0 0.0
        %2288 = vmatpush1.msra.mxu0 0.0
        %2289 = vmatprep.subr.mxu0 0.0
        %2290 = vmatpush1.msra.mxu0 0.0
        %2291 = vmatprep.subr.mxu0 0.0
        %2292 = vmatpush1.msra.mxu0 0.0
        %2293 = vmatprep.subr.mxu0 0.0
        %2294 = vmatpush1.msra.mxu0 0.0
        %2295 = vmatprep.subr.mxu0 0.0
        %2296 = vmatpush1.msra.mxu0 0.0
        %2297 = vmatprep.subr.mxu0 0.0
        %2298 = vmatpush1.msra.mxu0 0.0
        %2299 = vmatprep.subr.mxu0 0.0
        %2300 = vmatpush1.msra.mxu0 0.0
        %2301 = vmatprep.subr.mxu0 0.0
        %2302 = vmatpush1.msra.mxu0 0.0
        %2303 = vmatprep.subr.mxu0 0.0
        %2304 = vmatpush1.msra.mxu0 0.0
        %2305 = vmatprep.subr.mxu0 0.0
        %2306 = vmatpush1.msra.mxu0 0.0
        %2307 = vmatprep.subr.mxu0 0.0
        %2308 = vmatpush1.msra.mxu0 %v2282
        %2309 = vmatprep.subr.mxu0 0.0
        %2310 = vmatpush1.msra.mxu0 %v2281
        %2311 = vmatprep.subr.mxu0 0.0
        %2312 = vmatpush1.msra.mxu0 %v2280
        %2313 = vmatprep.subr.mxu0 0.0
        %2314 = vmatpush1.msra.mxu0 %v2279
        %2315 = vmatprep.subr.mxu0 0.0
        %2316 = vmatpush2.msra.mxu0 0.0
        %2317 = vmatprep.subr.mxu0 0.0
        %2318 = vmatpush2.msra.mxu0 0.0
        %2319 = vmatprep.subr.mxu0 0.0
        %2320 = vmatpush2.msra.mxu0 0.0
        %2321 = vmatprep.subr.mxu0 0.0
        %2322 = vmatpush2.msra.mxu0 0.0
        %2323 = vmatprep.subr.mxu0 0.0
        %2324 = vmatpush2.msra.mxu0 0.0
        %2325 = vmatprep.subr.mxu0 0.0
        %2326 = vmatpush2.msra.mxu0 0.0
        %2327 = vmatprep.subr.mxu0 0.0
        %2328 = vmatpush2.msra.mxu0 0.0
        %2329 = vmatprep.subr.mxu0 0.0
        %2330 = vmatpush2.msra.mxu0 0.0
        %2331 = vmatprep.subr.mxu0 0.0
        %2332 = vmatpush2.msra.mxu0 0.0
        %2333 = vmatprep.subr.mxu0 0.0
        %2334 = vmatpush2.msra.mxu0 0.0
        %2335 = vmatprep.subr.mxu0 0.0
        %2336 = vmatpush2.msra.mxu0 0.0
        %2337 = vmatprep.subr.mxu0 0.0
        %2338 = vmatpush2.msra.mxu0 0.0
        %2339 = vmatprep.subr.mxu0 0.0
        %2340 = vmatpush2.msra.mxu0 0.0
        %2341 = vmatprep.subr.mxu0 0.0
        %2342 = vmatpush2.msra.mxu0 0.0
        %2343 = vmatprep.subr.mxu0 0.0
        %2344 = vmatpush2.msra.mxu0 0.0
        %2345 = vmatprep.subr.mxu0 0.0
        %2346 = vmatpush2.msra.mxu0 0.0
        %2347 = vmatprep.mubr.f32.mxu0 0.0
        %2348 = vmatmul.mubr.f32.gmra.mxu0 %v1035
        %v2349 = vpop.f32.mrf.mxu0
        %v2350 = vadd.f32 0.0, %v2349
        %v2351 = vpop.f32.mrf.mxu0
        %2352 = vmatprep.mubr.f32.mxu0 0.0
        %2353 = vmatmul.mubr.f32.gmra.mxu0 %v1038
        %v2354 = vpop.f32.mrf.mxu0
        %v2355 = vadd.f32 0.0, %v2354
        %v2356 = vpop.f32.mrf.mxu0
        %2357 = vdwg.mxu0
        %s2358 = scalar_lea.vmem [#allocation4], 112
        %2359 = vst.msk [vmem:[%s2358] sm:$0xff] %vm1115, %v2350
        %2360 = vst.msk [vmem:[%s2358 + $0x8] sm:$0xff] %vm1115, %v2355
        %v2361 = vld [vmem:[#allocation2] sm:$0xff]
        %v2362 = vld [vmem:[#allocation2 + $0x8] sm:$0xff]
        %v2363 = vld [vmem:[#allocation2 + $0x10] sm:$0xff]
        %v2364 = vld [vmem:[#allocation2 + $0x18] sm:$0xff]
        %v2365 = vld [vmem:[#allocation2 + $0x20] sm:$0xff]
        %v2366 = vld [vmem:[#allocation2 + $0x28] sm:$0xff]
        %v2367 = vld [vmem:[#allocation2 + $0x30] sm:$0xff]
        %v2368 = vld [vmem:[#allocation2 + $0x38] sm:$0xff]
        %v2369 = vld [vmem:[#allocation2 + $0x40] sm:$0xff]
        %v2370 = vld [vmem:[#allocation2 + $0x48] sm:$0xff]
        %v2371 = vld [vmem:[#allocation2 + $0x50] sm:$0xff]
        %v2372 = vld [vmem:[#allocation2 + $0x58] sm:$0xff]
        %v2373 = vld [vmem:[#allocation2 + $0x60] sm:$0xff]
        %v2374 = vld [vmem:[#allocation2 + $0x68] sm:$0xff]
        %v2375 = vld [vmem:[#allocation2 + $0x70] sm:$0xff]
        %v2376 = vld [vmem:[#allocation2 + $0x78] sm:$0xff]
        %v2377 = vld [vmem:[#allocation3] sm:$0xff]
        %v2378 = vld [vmem:[#allocation3 + $0x8] sm:$0xff]
        %v2379 = vld [vmem:[#allocation3 + $0x10] sm:$0xff]
        %v2380 = vld [vmem:[#allocation3 + $0x18] sm:$0xff]
        %v2381 = vld [vmem:[#allocation3 + $0x20] sm:$0xff]
        %v2382 = vld [vmem:[#allocation3 + $0x28] sm:$0xff]
        %v2383 = vld [vmem:[#allocation3 + $0x30] sm:$0xff]
        %v2384 = vld [vmem:[#allocation3 + $0x38] sm:$0xff]
        %v2385 = vld [vmem:[#allocation3 + $0x40] sm:$0xff]
        %v2386 = vld [vmem:[#allocation3 + $0x48] sm:$0xff]
        %v2387 = vld [vmem:[#allocation3 + $0x50] sm:$0xff]
        %v2388 = vld [vmem:[#allocation3 + $0x58] sm:$0xff]
        %v2389 = vld [vmem:[#allocation3 + $0x60] sm:$0xff]
        %v2390 = vld [vmem:[#allocation3 + $0x68] sm:$0xff]
        %v2391 = vld [vmem:[#allocation3 + $0x70] sm:$0xff]
        %v2392 = vld [vmem:[#allocation3 + $0x78] sm:$0xff]
        %v2393 = vld [vmem:[#allocation4] sm:$0xff]
        %v2394 = vld [vmem:[#allocation4 + $0x8] sm:$0xff]
        %v2395 = vld [vmem:[#allocation4 + $0x10] sm:$0xff]
        %v2396 = vld [vmem:[#allocation4 + $0x18] sm:$0xff]
        %v2397 = vld [vmem:[#allocation4 + $0x20] sm:$0xff]
        %v2398 = vld [vmem:[#allocation4 + $0x28] sm:$0xff]
        %v2399 = vld [vmem:[#allocation4 + $0x30] sm:$0xff]
        %v2400 = vld [vmem:[#allocation4 + $0x38] sm:$0xff]
        %v2401 = vld [vmem:[#allocation4 + $0x40] sm:$0xff]
        %v2402 = vld [vmem:[#allocation4 + $0x48] sm:$0xff]
        %v2403 = vld [vmem:[#allocation4 + $0x50] sm:$0xff]
        %v2404 = vld [vmem:[#allocation4 + $0x58] sm:$0xff]
        %v2405 = vld [vmem:[#allocation4 + $0x60] sm:$0xff]
        %v2406 = vld [vmem:[#allocation4 + $0x68] sm:$0xff]
        %v2407 = vld [vmem:[#allocation4 + $0x70] sm:$0xff]
        %v2408 = vld [vmem:[#allocation4 + $0x78] sm:$0xff]
        %v2410 = vsel %vm1115, %v2361, 0
        %v2413 = vsel %vm1115, %v2362, 0
        %v2416 = vsel %vm1115, %v2377, 0
        %v2419 = vsel %vm1115, %v2378, 0
        %2421 = vmatprep.subr.mxu0 0.0
        %2422 = vmatpush1.xpose.msra.mxu0 0.0
        %2423 = vmatprep.subr.mxu0 0.0
        %2424 = vmatpush1.xpose.msra.mxu0 0.0
        %2425 = vmatprep.subr.mxu0 0.0
        %2426 = vmatpush1.xpose.msra.mxu0 0.0
        %2427 = vmatprep.subr.mxu0 0.0
        %2428 = vmatpush1.xpose.msra.mxu0 0.0
        %2429 = vmatprep.subr.mxu0 0.0
        %2430 = vmatpush1.xpose.msra.mxu0 0.0
        %2431 = vmatprep.subr.mxu0 0.0
        %2432 = vmatpush1.xpose.msra.mxu0 0.0
        %2433 = vmatprep.subr.mxu0 0.0
        %2434 = vmatpush1.xpose.msra.mxu0 0.0
        %2435 = vmatprep.subr.mxu0 0.0
        %2436 = vmatpush1.xpose.msra.mxu0 0.0
        %2437 = vmatprep.subr.mxu0 0.0
        %2438 = vmatpush1.xpose.msra.mxu0 0.0
        %2439 = vmatprep.subr.mxu0 0.0
        %2440 = vmatpush1.xpose.msra.mxu0 0.0
        %2441 = vmatprep.subr.mxu0 0.0
        %2442 = vmatpush1.xpose.msra.mxu0 0.0
        %2443 = vmatprep.subr.mxu0 0.0
        %2444 = vmatpush1.xpose.msra.mxu0 0.0
        %2445 = vmatprep.subr.mxu0 0.0
        %2446 = vmatpush1.xpose.msra.mxu0 0.0
        %2447 = vmatprep.subr.mxu0 0.0
        %2448 = vmatpush1.xpose.msra.mxu0 0.0
        %2449 = vmatprep.subr.mxu0 0.0
        %2450 = vmatpush1.xpose.msra.mxu0 %v2419
        %2451 = vmatprep.subr.mxu0 0.0
        %2452 = vmatpush1.xpose.msra.mxu0 %v2416
        %2453 = vmatprep.subr.mxu0 0.0
        %2454 = vmatpush2.xpose.msra.mxu0 0.0
        %2455 = vmatprep.subr.mxu0 0.0
        %2456 = vmatpush2.xpose.msra.mxu0 0.0
        %2457 = vmatprep.subr.mxu0 0.0
        %2458 = vmatpush2.xpose.msra.mxu0 0.0
        %2459 = vmatprep.subr.mxu0 0.0
        %2460 = vmatpush2.xpose.msra.mxu0 0.0
        %2461 = vmatprep.subr.mxu0 0.0
        %2462 = vmatpush2.xpose.msra.mxu0 0.0
        %2463 = vmatprep.subr.mxu0 0.0
        %2464 = vmatpush2.xpose.msra.mxu0 0.0
        %2465 = vmatprep.subr.mxu0 0.0
        %2466 = vmatpush2.xpose.msra.mxu0 0.0
        %2467 = vmatprep.subr.mxu0 0.0
        %2468 = vmatpush2.xpose.msra.mxu0 0.0
        %2469 = vmatprep.subr.mxu0 0.0
        %2470 = vmatpush2.xpose.msra.mxu0 0.0
        %2471 = vmatprep.subr.mxu0 0.0
        %2472 = vmatpush2.xpose.msra.mxu0 0.0
        %2473 = vmatprep.subr.mxu0 0.0
        %2474 = vmatpush2.xpose.msra.mxu0 0.0
        %2475 = vmatprep.subr.mxu0 0.0
        %2476 = vmatpush2.xpose.msra.mxu0 0.0
        %2477 = vmatprep.subr.mxu0 0.0
        %2478 = vmatpush2.xpose.msra.mxu0 0.0
        %2479 = vmatprep.subr.mxu0 0.0
        %2480 = vmatpush2.xpose.msra.mxu0 0.0
        %2481 = vmatprep.subr.mxu0 0.0
        %2482 = vmatpush2.xpose.msra.mxu0 0.0
        %2483 = vmatprep.subr.mxu0 0.0
        %2484 = vmatpush2.xpose.msra.mxu0 0.0
        %2485 = vmatprep.mubr.f32.mxu0 0.0
        %2486 = vmatmul.mubr.f32.gmra.mxu0 %v2410
        %v2487 = vpop.f32.mrf.mxu0
        %v2488 = vadd.f32 0.0, %v2487
        %v2489 = vpop.f32.mrf.mxu0
        %2490 = vmatprep.mubr.f32.mxu0 0.0
        %2491 = vmatmul.mubr.f32.gmra.mxu0 %v2413
        %v2492 = vpop.f32.mrf.mxu0
        %v2493 = vadd.f32 0.0, %v2492
        %v2494 = vpop.f32.mrf.mxu0
        %2495 = vdwg.mxu0
        %v2497 = vsel %vm1115, %v2363, 0
        %v2500 = vsel %vm1115, %v2364, 0
        %v2503 = vsel %vm1115, %v2379, 0
        %v2506 = vsel %vm1115, %v2380, 0
        %2508 = vmatprep.subr.mxu0 0.0
        %2509 = vmatpush1.xpose.msra.mxu0 0.0
        %2510 = vmatprep.subr.mxu0 0.0
        %2511 = vmatpush1.xpose.msra.mxu0 0.0
        %2512 = vmatprep.subr.mxu0 0.0
        %2513 = vmatpush1.xpose.msra.mxu0 0.0
        %2514 = vmatprep.subr.mxu0 0.0
        %2515 = vmatpush1.xpose.msra.mxu0 0.0
        %2516 = vmatprep.subr.mxu0 0.0
        %2517 = vmatpush1.xpose.msra.mxu0 0.0
        %2518 = vmatprep.subr.mxu0 0.0
        %2519 = vmatpush1.xpose.msra.mxu0 0.0
        %2520 = vmatprep.subr.mxu0 0.0
        %2521 = vmatpush1.xpose.msra.mxu0 0.0
        %2522 = vmatprep.subr.mxu0 0.0
        %2523 = vmatpush1.xpose.msra.mxu0 0.0
        %2524 = vmatprep.subr.mxu0 0.0
        %2525 = vmatpush1.xpose.msra.mxu0 0.0
        %2526 = vmatprep.subr.mxu0 0.0
        %2527 = vmatpush1.xpose.msra.mxu0 0.0
        %2528 = vmatprep.subr.mxu0 0.0
        %2529 = vmatpush1.xpose.msra.mxu0 0.0
        %2530 = vmatprep.subr.mxu0 0.0
        %2531 = vmatpush1.xpose.msra.mxu0 0.0
        %2532 = vmatprep.subr.mxu0 0.0
        %2533 = vmatpush1.xpose.msra.mxu0 0.0
        %2534 = vmatprep.subr.mxu0 0.0
        %2535 = vmatpush1.xpose.msra.mxu0 0.0
        %2536 = vmatprep.subr.mxu0 0.0
        %2537 = vmatpush1.xpose.msra.mxu0 %v2506
        %2538 = vmatprep.subr.mxu0 0.0
        %2539 = vmatpush1.xpose.msra.mxu0 %v2503
        %2540 = vmatprep.subr.mxu0 0.0
        %2541 = vmatpush2.xpose.msra.mxu0 0.0
        %2542 = vmatprep.subr.mxu0 0.0
        %2543 = vmatpush2.xpose.msra.mxu0 0.0
        %2544 = vmatprep.subr.mxu0 0.0
        %2545 = vmatpush2.xpose.msra.mxu0 0.0
        %2546 = vmatprep.subr.mxu0 0.0
        %2547 = vmatpush2.xpose.msra.mxu0 0.0
        %2548 = vmatprep.subr.mxu0 0.0
        %2549 = vmatpush2.xpose.msra.mxu0 0.0
        %2550 = vmatprep.subr.mxu0 0.0
        %2551 = vmatpush2.xpose.msra.mxu0 0.0
        %2552 = vmatprep.subr.mxu0 0.0
        %2553 = vmatpush2.xpose.msra.mxu0 0.0
        %2554 = vmatprep.subr.mxu0 0.0
        %2555 = vmatpush2.xpose.msra.mxu0 0.0
        %2556 = vmatprep.subr.mxu0 0.0
        %2557 = vmatpush2.xpose.msra.mxu0 0.0
        %2558 = vmatprep.subr.mxu0 0.0
        %2559 = vmatpush2.xpose.msra.mxu0 0.0
        %2560 = vmatprep.subr.mxu0 0.0
        %2561 = vmatpush2.xpose.msra.mxu0 0.0
        %2562 = vmatprep.subr.mxu0 0.0
        %2563 = vmatpush2.xpose.msra.mxu0 0.0
        %2564 = vmatprep.subr.mxu0 0.0
        %2565 = vmatpush2.xpose.msra.mxu0 0.0
        %2566 = vmatprep.subr.mxu0 0.0
        %2567 = vmatpush2.xpose.msra.mxu0 0.0
        %2568 = vmatprep.subr.mxu0 0.0
        %2569 = vmatpush2.xpose.msra.mxu0 0.0
        %2570 = vmatprep.subr.mxu0 0.0
        %2571 = vmatpush2.xpose.msra.mxu0 0.0
        %2572 = vmatprep.mubr.f32.mxu0 0.0
        %2573 = vmatmul.mubr.f32.gmra.mxu0 %v2497
        %v2574 = vpop.f32.mrf.mxu0
        %v2575 = vadd.f32 0.0, %v2574
        %v2576 = vpop.f32.mrf.mxu0
        %2577 = vmatprep.mubr.f32.mxu0 0.0
        %2578 = vmatmul.mubr.f32.gmra.mxu0 %v2500
        %v2579 = vpop.f32.mrf.mxu0
        %v2580 = vadd.f32 0.0, %v2579
        %v2581 = vpop.f32.mrf.mxu0
        %2582 = vdwg.mxu0
        %v2584 = vsel %vm1115, %v2365, 0
        %v2587 = vsel %vm1115, %v2366, 0
        %v2590 = vsel %vm1115, %v2381, 0
        %v2593 = vsel %vm1115, %v2382, 0
        %2595 = vmatprep.subr.mxu0 0.0
        %2596 = vmatpush1.xpose.msra.mxu0 0.0
        %2597 = vmatprep.subr.mxu0 0.0
        %2598 = vmatpush1.xpose.msra.mxu0 0.0
        %2599 = vmatprep.subr.mxu0 0.0
        %2600 = vmatpush1.xpose.msra.mxu0 0.0
        %2601 = vmatprep.subr.mxu0 0.0
        %2602 = vmatpush1.xpose.msra.mxu0 0.0
        %2603 = vmatprep.subr.mxu0 0.0
        %2604 = vmatpush1.xpose.msra.mxu0 0.0
        %2605 = vmatprep.subr.mxu0 0.0
        %2606 = vmatpush1.xpose.msra.mxu0 0.0
        %2607 = vmatprep.subr.mxu0 0.0
        %2608 = vmatpush1.xpose.msra.mxu0 0.0
        %2609 = vmatprep.subr.mxu0 0.0
        %2610 = vmatpush1.xpose.msra.mxu0 0.0
        %2611 = vmatprep.subr.mxu0 0.0
        %2612 = vmatpush1.xpose.msra.mxu0 0.0
        %2613 = vmatprep.subr.mxu0 0.0
        %2614 = vmatpush1.xpose.msra.mxu0 0.0
        %2615 = vmatprep.subr.mxu0 0.0
        %2616 = vmatpush1.xpose.msra.mxu0 0.0
        %2617 = vmatprep.subr.mxu0 0.0
        %2618 = vmatpush1.xpose.msra.mxu0 0.0
        %2619 = vmatprep.subr.mxu0 0.0
        %2620 = vmatpush1.xpose.msra.mxu0 0.0
        %2621 = vmatprep.subr.mxu0 0.0
        %2622 = vmatpush1.xpose.msra.mxu0 0.0
        %2623 = vmatprep.subr.mxu0 0.0
        %2624 = vmatpush1.xpose.msra.mxu0 %v2593
        %2625 = vmatprep.subr.mxu0 0.0
        %2626 = vmatpush1.xpose.msra.mxu0 %v2590
        %2627 = vmatprep.subr.mxu0 0.0
        %2628 = vmatpush2.xpose.msra.mxu0 0.0
        %2629 = vmatprep.subr.mxu0 0.0
        %2630 = vmatpush2.xpose.msra.mxu0 0.0
        %2631 = vmatprep.subr.mxu0 0.0
        %2632 = vmatpush2.xpose.msra.mxu0 0.0
        %2633 = vmatprep.subr.mxu0 0.0
        %2634 = vmatpush2.xpose.msra.mxu0 0.0
        %2635 = vmatprep.subr.mxu0 0.0
        %2636 = vmatpush2.xpose.msra.mxu0 0.0
        %2637 = vmatprep.subr.mxu0 0.0
        %2638 = vmatpush2.xpose.msra.mxu0 0.0
        %2639 = vmatprep.subr.mxu0 0.0
        %2640 = vmatpush2.xpose.msra.mxu0 0.0
        %2641 = vmatprep.subr.mxu0 0.0
        %2642 = vmatpush2.xpose.msra.mxu0 0.0
        %2643 = vmatprep.subr.mxu0 0.0
        %2644 = vmatpush2.xpose.msra.mxu0 0.0
        %2645 = vmatprep.subr.mxu0 0.0
        %2646 = vmatpush2.xpose.msra.mxu0 0.0
        %2647 = vmatprep.subr.mxu0 0.0
        %2648 = vmatpush2.xpose.msra.mxu0 0.0
        %2649 = vmatprep.subr.mxu0 0.0
        %2650 = vmatpush2.xpose.msra.mxu0 0.0
        %2651 = vmatprep.subr.mxu0 0.0
        %2652 = vmatpush2.xpose.msra.mxu0 0.0
        %2653 = vmatprep.subr.mxu0 0.0
        %2654 = vmatpush2.xpose.msra.mxu0 0.0
        %2655 = vmatprep.subr.mxu0 0.0
        %2656 = vmatpush2.xpose.msra.mxu0 0.0
        %2657 = vmatprep.subr.mxu0 0.0
        %2658 = vmatpush2.xpose.msra.mxu0 0.0
        %2659 = vmatprep.mubr.f32.mxu0 0.0
        %2660 = vmatmul.mubr.f32.gmra.mxu0 %v2584
        %v2661 = vpop.f32.mrf.mxu0
        %v2662 = vadd.f32 0.0, %v2661
        %v2663 = vpop.f32.mrf.mxu0
        %2664 = vmatprep.mubr.f32.mxu0 0.0
        %2665 = vmatmul.mubr.f32.gmra.mxu0 %v2587
        %v2666 = vpop.f32.mrf.mxu0
        %v2667 = vadd.f32 0.0, %v2666
        %v2668 = vpop.f32.mrf.mxu0
        %2669 = vdwg.mxu0
        %v2671 = vsel %vm1115, %v2367, 0
        %v2674 = vsel %vm1115, %v2368, 0
        %v2677 = vsel %vm1115, %v2383, 0
        %v2680 = vsel %vm1115, %v2384, 0
        %2682 = vmatprep.subr.mxu0 0.0
        %2683 = vmatpush1.xpose.msra.mxu0 0.0
        %2684 = vmatprep.subr.mxu0 0.0
        %2685 = vmatpush1.xpose.msra.mxu0 0.0
        %2686 = vmatprep.subr.mxu0 0.0
        %2687 = vmatpush1.xpose.msra.mxu0 0.0
        %2688 = vmatprep.subr.mxu0 0.0
        %2689 = vmatpush1.xpose.msra.mxu0 0.0
        %2690 = vmatprep.subr.mxu0 0.0
        %2691 = vmatpush1.xpose.msra.mxu0 0.0
        %2692 = vmatprep.subr.mxu0 0.0
        %2693 = vmatpush1.xpose.msra.mxu0 0.0
        %2694 = vmatprep.subr.mxu0 0.0
        %2695 = vmatpush1.xpose.msra.mxu0 0.0
        %2696 = vmatprep.subr.mxu0 0.0
        %2697 = vmatpush1.xpose.msra.mxu0 0.0
        %2698 = vmatprep.subr.mxu0 0.0
        %2699 = vmatpush1.xpose.msra.mxu0 0.0
        %2700 = vmatprep.subr.mxu0 0.0
        %2701 = vmatpush1.xpose.msra.mxu0 0.0
        %2702 = vmatprep.subr.mxu0 0.0
        %2703 = vmatpush1.xpose.msra.mxu0 0.0
        %2704 = vmatprep.subr.mxu0 0.0
        %2705 = vmatpush1.xpose.msra.mxu0 0.0
        %2706 = vmatprep.subr.mxu0 0.0
        %2707 = vmatpush1.xpose.msra.mxu0 0.0
        %2708 = vmatprep.subr.mxu0 0.0
        %2709 = vmatpush1.xpose.msra.mxu0 0.0
        %2710 = vmatprep.subr.mxu0 0.0
        %2711 = vmatpush1.xpose.msra.mxu0 %v2680
        %2712 = vmatprep.subr.mxu0 0.0
        %2713 = vmatpush1.xpose.msra.mxu0 %v2677
        %2714 = vmatprep.subr.mxu0 0.0
        %2715 = vmatpush2.xpose.msra.mxu0 0.0
        %2716 = vmatprep.subr.mxu0 0.0
        %2717 = vmatpush2.xpose.msra.mxu0 0.0
        %2718 = vmatprep.subr.mxu0 0.0
        %2719 = vmatpush2.xpose.msra.mxu0 0.0
        %2720 = vmatprep.subr.mxu0 0.0
        %2721 = vmatpush2.xpose.msra.mxu0 0.0
        %2722 = vmatprep.subr.mxu0 0.0
        %2723 = vmatpush2.xpose.msra.mxu0 0.0
        %2724 = vmatprep.subr.mxu0 0.0
        %2725 = vmatpush2.xpose.msra.mxu0 0.0
        %2726 = vmatprep.subr.mxu0 0.0
        %2727 = vmatpush2.xpose.msra.mxu0 0.0
        %2728 = vmatprep.subr.mxu0 0.0
        %2729 = vmatpush2.xpose.msra.mxu0 0.0
        %2730 = vmatprep.subr.mxu0 0.0
        %2731 = vmatpush2.xpose.msra.mxu0 0.0
        %2732 = vmatprep.subr.mxu0 0.0
        %2733 = vmatpush2.xpose.msra.mxu0 0.0
        %2734 = vmatprep.subr.mxu0 0.0
        %2735 = vmatpush2.xpose.msra.mxu0 0.0
        %2736 = vmatprep.subr.mxu0 0.0
        %2737 = vmatpush2.xpose.msra.mxu0 0.0
        %2738 = vmatprep.subr.mxu0 0.0
        %2739 = vmatpush2.xpose.msra.mxu0 0.0
        %2740 = vmatprep.subr.mxu0 0.0
        %2741 = vmatpush2.xpose.msra.mxu0 0.0
        %2742 = vmatprep.subr.mxu0 0.0
        %2743 = vmatpush2.xpose.msra.mxu0 0.0
        %2744 = vmatprep.subr.mxu0 0.0
        %2745 = vmatpush2.xpose.msra.mxu0 0.0
        %2746 = vmatprep.mubr.f32.mxu0 0.0
        %2747 = vmatmul.mubr.f32.gmra.mxu0 %v2671
        %v2748 = vpop.f32.mrf.mxu0
        %v2749 = vadd.f32 0.0, %v2748
        %v2750 = vpop.f32.mrf.mxu0
        %2751 = vmatprep.mubr.f32.mxu0 0.0
        %2752 = vmatmul.mubr.f32.gmra.mxu0 %v2674
        %v2753 = vpop.f32.mrf.mxu0
        %v2754 = vadd.f32 0.0, %v2753
        %v2755 = vpop.f32.mrf.mxu0
        %2756 = vdwg.mxu0
        %v2758 = vsel %vm1115, %v2369, 0
        %v2761 = vsel %vm1115, %v2370, 0
        %v2764 = vsel %vm1115, %v2385, 0
        %v2767 = vsel %vm1115, %v2386, 0
        %2769 = vmatprep.subr.mxu0 0.0
        %2770 = vmatpush1.xpose.msra.mxu0 0.0
        %2771 = vmatprep.subr.mxu0 0.0
        %2772 = vmatpush1.xpose.msra.mxu0 0.0
        %2773 = vmatprep.subr.mxu0 0.0
        %2774 = vmatpush1.xpose.msra.mxu0 0.0
        %2775 = vmatprep.subr.mxu0 0.0
        %2776 = vmatpush1.xpose.msra.mxu0 0.0
        %2777 = vmatprep.subr.mxu0 0.0
        %2778 = vmatpush1.xpose.msra.mxu0 0.0
        %2779 = vmatprep.subr.mxu0 0.0
        %2780 = vmatpush1.xpose.msra.mxu0 0.0
        %2781 = vmatprep.subr.mxu0 0.0
        %2782 = vmatpush1.xpose.msra.mxu0 0.0
        %2783 = vmatprep.subr.mxu0 0.0
        %2784 = vmatpush1.xpose.msra.mxu0 0.0
        %2785 = vmatprep.subr.mxu0 0.0
        %2786 = vmatpush1.xpose.msra.mxu0 0.0
        %2787 = vmatprep.subr.mxu0 0.0
        %2788 = vmatpush1.xpose.msra.mxu0 0.0
        %2789 = vmatprep.subr.mxu0 0.0
        %2790 = vmatpush1.xpose.msra.mxu0 0.0
        %2791 = vmatprep.subr.mxu0 0.0
        %2792 = vmatpush1.xpose.msra.mxu0 0.0
        %2793 = vmatprep.subr.mxu0 0.0
        %2794 = vmatpush1.xpose.msra.mxu0 0.0
        %2795 = vmatprep.subr.mxu0 0.0
        %2796 = vmatpush1.xpose.msra.mxu0 0.0
        %2797 = vmatprep.subr.mxu0 0.0
        %2798 = vmatpush1.xpose.msra.mxu0 %v2767
        %2799 = vmatprep.subr.mxu0 0.0
        %2800 = vmatpush1.xpose.msra.mxu0 %v2764
        %2801 = vmatprep.subr.mxu0 0.0
        %2802 = vmatpush2.xpose.msra.mxu0 0.0
        %2803 = vmatprep.subr.mxu0 0.0
        %2804 = vmatpush2.xpose.msra.mxu0 0.0
        %2805 = vmatprep.subr.mxu0 0.0
        %2806 = vmatpush2.xpose.msra.mxu0 0.0
        %2807 = vmatprep.subr.mxu0 0.0
        %2808 = vmatpush2.xpose.msra.mxu0 0.0
        %2809 = vmatprep.subr.mxu0 0.0
        %2810 = vmatpush2.xpose.msra.mxu0 0.0
        %2811 = vmatprep.subr.mxu0 0.0
        %2812 = vmatpush2.xpose.msra.mxu0 0.0
        %2813 = vmatprep.subr.mxu0 0.0
        %2814 = vmatpush2.xpose.msra.mxu0 0.0
        %2815 = vmatprep.subr.mxu0 0.0
        %2816 = vmatpush2.xpose.msra.mxu0 0.0
        %2817 = vmatprep.subr.mxu0 0.0
        %2818 = vmatpush2.xpose.msra.mxu0 0.0
        %2819 = vmatprep.subr.mxu0 0.0
        %2820 = vmatpush2.xpose.msra.mxu0 0.0
        %2821 = vmatprep.subr.mxu0 0.0
        %2822 = vmatpush2.xpose.msra.mxu0 0.0
        %2823 = vmatprep.subr.mxu0 0.0
        %2824 = vmatpush2.xpose.msra.mxu0 0.0
        %2825 = vmatprep.subr.mxu0 0.0
        %2826 = vmatpush2.xpose.msra.mxu0 0.0
        %2827 = vmatprep.subr.mxu0 0.0
        %2828 = vmatpush2.xpose.msra.mxu0 0.0
        %2829 = vmatprep.subr.mxu0 0.0
        %2830 = vmatpush2.xpose.msra.mxu0 0.0
        %2831 = vmatprep.subr.mxu0 0.0
        %2832 = vmatpush2.xpose.msra.mxu0 0.0
        %2833 = vmatprep.mubr.f32.mxu0 0.0
        %2834 = vmatmul.mubr.f32.gmra.mxu0 %v2758
        %v2835 = vpop.f32.mrf.mxu0
        %v2836 = vadd.f32 0.0, %v2835
        %v2837 = vpop.f32.mrf.mxu0
        %2838 = vmatprep.mubr.f32.mxu0 0.0
        %2839 = vmatmul.mubr.f32.gmra.mxu0 %v2761
        %v2840 = vpop.f32.mrf.mxu0
        %v2841 = vadd.f32 0.0, %v2840
        %v2842 = vpop.f32.mrf.mxu0
        %2843 = vdwg.mxu0
        %v2845 = vsel %vm1115, %v2371, 0
        %v2848 = vsel %vm1115, %v2372, 0
        %v2851 = vsel %vm1115, %v2387, 0
        %v2854 = vsel %vm1115, %v2388, 0
        %2856 = vmatprep.subr.mxu0 0.0
        %2857 = vmatpush1.xpose.msra.mxu0 0.0
        %2858 = vmatprep.subr.mxu0 0.0
        %2859 = vmatpush1.xpose.msra.mxu0 0.0
        %2860 = vmatprep.subr.mxu0 0.0
        %2861 = vmatpush1.xpose.msra.mxu0 0.0
        %2862 = vmatprep.subr.mxu0 0.0
        %2863 = vmatpush1.xpose.msra.mxu0 0.0
        %2864 = vmatprep.subr.mxu0 0.0
        %2865 = vmatpush1.xpose.msra.mxu0 0.0
        %2866 = vmatprep.subr.mxu0 0.0
        %2867 = vmatpush1.xpose.msra.mxu0 0.0
        %2868 = vmatprep.subr.mxu0 0.0
        %2869 = vmatpush1.xpose.msra.mxu0 0.0
        %2870 = vmatprep.subr.mxu0 0.0
        %2871 = vmatpush1.xpose.msra.mxu0 0.0
        %2872 = vmatprep.subr.mxu0 0.0
        %2873 = vmatpush1.xpose.msra.mxu0 0.0
        %2874 = vmatprep.subr.mxu0 0.0
        %2875 = vmatpush1.xpose.msra.mxu0 0.0
        %2876 = vmatprep.subr.mxu0 0.0
        %2877 = vmatpush1.xpose.msra.mxu0 0.0
        %2878 = vmatprep.subr.mxu0 0.0
        %2879 = vmatpush1.xpose.msra.mxu0 0.0
        %2880 = vmatprep.subr.mxu0 0.0
        %2881 = vmatpush1.xpose.msra.mxu0 0.0
        %2882 = vmatprep.subr.mxu0 0.0
        %2883 = vmatpush1.xpose.msra.mxu0 0.0
        %2884 = vmatprep.subr.mxu0 0.0
        %2885 = vmatpush1.xpose.msra.mxu0 %v2854
        %2886 = vmatprep.subr.mxu0 0.0
        %2887 = vmatpush1.xpose.msra.mxu0 %v2851
        %2888 = vmatprep.subr.mxu0 0.0
        %2889 = vmatpush2.xpose.msra.mxu0 0.0
        %2890 = vmatprep.subr.mxu0 0.0
        %2891 = vmatpush2.xpose.msra.mxu0 0.0
        %2892 = vmatprep.subr.mxu0 0.0
        %2893 = vmatpush2.xpose.msra.mxu0 0.0
        %2894 = vmatprep.subr.mxu0 0.0
        %2895 = vmatpush2.xpose.msra.mxu0 0.0
        %2896 = vmatprep.subr.mxu0 0.0
        %2897 = vmatpush2.xpose.msra.mxu0 0.0
        %2898 = vmatprep.subr.mxu0 0.0
        %2899 = vmatpush2.xpose.msra.mxu0 0.0
        %2900 = vmatprep.subr.mxu0 0.0
        %2901 = vmatpush2.xpose.msra.mxu0 0.0
        %2902 = vmatprep.subr.mxu0 0.0
        %2903 = vmatpush2.xpose.msra.mxu0 0.0
        %2904 = vmatprep.subr.mxu0 0.0
        %2905 = vmatpush2.xpose.msra.mxu0 0.0
        %2906 = vmatprep.subr.mxu0 0.0
        %2907 = vmatpush2.xpose.msra.mxu0 0.0
        %2908 = vmatprep.subr.mxu0 0.0
        %2909 = vmatpush2.xpose.msra.mxu0 0.0
        %2910 = vmatprep.subr.mxu0 0.0
        %2911 = vmatpush2.xpose.msra.mxu0 0.0
        %2912 = vmatprep.subr.mxu0 0.0
        %2913 = vmatpush2.xpose.msra.mxu0 0.0
        %2914 = vmatprep.subr.mxu0 0.0
        %2915 = vmatpush2.xpose.msra.mxu0 0.0
        %2916 = vmatprep.subr.mxu0 0.0
        %2917 = vmatpush2.xpose.msra.mxu0 0.0
        %2918 = vmatprep.subr.mxu0 0.0
        %2919 = vmatpush2.xpose.msra.mxu0 0.0
        %2920 = vmatprep.mubr.f32.mxu0 0.0
        %2921 = vmatmul.mubr.f32.gmra.mxu0 %v2845
        %v2922 = vpop.f32.mrf.mxu0
        %v2923 = vadd.f32 0.0, %v2922
        %v2924 = vpop.f32.mrf.mxu0
        %2925 = vmatprep.mubr.f32.mxu0 0.0
        %2926 = vmatmul.mubr.f32.gmra.mxu0 %v2848
        %v2927 = vpop.f32.mrf.mxu0
        %v2928 = vadd.f32 0.0, %v2927
        %v2929 = vpop.f32.mrf.mxu0
        %2930 = vdwg.mxu0
        %v2932 = vsel %vm1115, %v2373, 0
        %v2935 = vsel %vm1115, %v2374, 0
        %v2938 = vsel %vm1115, %v2389, 0
        %v2941 = vsel %vm1115, %v2390, 0
        %2943 = vmatprep.subr.mxu0 0.0
        %2944 = vmatpush1.xpose.msra.mxu0 0.0
        %2945 = vmatprep.subr.mxu0 0.0
        %2946 = vmatpush1.xpose.msra.mxu0 0.0
        %2947 = vmatprep.subr.mxu0 0.0
        %2948 = vmatpush1.xpose.msra.mxu0 0.0
        %2949 = vmatprep.subr.mxu0 0.0
        %2950 = vmatpush1.xpose.msra.mxu0 0.0
        %2951 = vmatprep.subr.mxu0 0.0
        %2952 = vmatpush1.xpose.msra.mxu0 0.0
        %2953 = vmatprep.subr.mxu0 0.0
        %2954 = vmatpush1.xpose.msra.mxu0 0.0
        %2955 = vmatprep.subr.mxu0 0.0
        %2956 = vmatpush1.xpose.msra.mxu0 0.0
        %2957 = vmatprep.subr.mxu0 0.0
        %2958 = vmatpush1.xpose.msra.mxu0 0.0
        %2959 = vmatprep.subr.mxu0 0.0
        %2960 = vmatpush1.xpose.msra.mxu0 0.0
        %2961 = vmatprep.subr.mxu0 0.0
        %2962 = vmatpush1.xpose.msra.mxu0 0.0
        %2963 = vmatprep.subr.mxu0 0.0
        %2964 = vmatpush1.xpose.msra.mxu0 0.0
        %2965 = vmatprep.subr.mxu0 0.0
        %2966 = vmatpush1.xpose.msra.mxu0 0.0
        %2967 = vmatprep.subr.mxu0 0.0
        %2968 = vmatpush1.xpose.msra.mxu0 0.0
        %2969 = vmatprep.subr.mxu0 0.0
        %2970 = vmatpush1.xpose.msra.mxu0 0.0
        %2971 = vmatprep.subr.mxu0 0.0
        %2972 = vmatpush1.xpose.msra.mxu0 %v2941
        %2973 = vmatprep.subr.mxu0 0.0
        %2974 = vmatpush1.xpose.msra.mxu0 %v2938
        %2975 = vmatprep.subr.mxu0 0.0
        %2976 = vmatpush2.xpose.msra.mxu0 0.0
        %2977 = vmatprep.subr.mxu0 0.0
        %2978 = vmatpush2.xpose.msra.mxu0 0.0
        %2979 = vmatprep.subr.mxu0 0.0
        %2980 = vmatpush2.xpose.msra.mxu0 0.0
        %2981 = vmatprep.subr.mxu0 0.0
        %2982 = vmatpush2.xpose.msra.mxu0 0.0
        %2983 = vmatprep.subr.mxu0 0.0
        %2984 = vmatpush2.xpose.msra.mxu0 0.0
        %2985 = vmatprep.subr.mxu0 0.0
        %2986 = vmatpush2.xpose.msra.mxu0 0.0
        %2987 = vmatprep.subr.mxu0 0.0
        %2988 = vmatpush2.xpose.msra.mxu0 0.0
        %2989 = vmatprep.subr.mxu0 0.0
        %2990 = vmatpush2.xpose.msra.mxu0 0.0
        %2991 = vmatprep.subr.mxu0 0.0
        %2992 = vmatpush2.xpose.msra.mxu0 0.0
        %2993 = vmatprep.subr.mxu0 0.0
        %2994 = vmatpush2.xpose.msra.mxu0 0.0
        %2995 = vmatprep.subr.mxu0 0.0
        %2996 = vmatpush2.xpose.msra.mxu0 0.0
        %2997 = vmatprep.subr.mxu0 0.0
        %2998 = vmatpush2.xpose.msra.mxu0 0.0
        %2999 = vmatprep.subr.mxu0 0.0
        %3000 = vmatpush2.xpose.msra.mxu0 0.0
        %3001 = vmatprep.subr.mxu0 0.0
        %3002 = vmatpush2.xpose.msra.mxu0 0.0
        %3003 = vmatprep.subr.mxu0 0.0
        %3004 = vmatpush2.xpose.msra.mxu0 0.0
        %3005 = vmatprep.subr.mxu0 0.0
        %3006 = vmatpush2.xpose.msra.mxu0 0.0
        %3007 = vmatprep.mubr.f32.mxu0 0.0
        %3008 = vmatmul.mubr.f32.gmra.mxu0 %v2932
        %v3009 = vpop.f32.mrf.mxu0
        %v3010 = vadd.f32 0.0, %v3009
        %v3011 = vpop.f32.mrf.mxu0
        %3012 = vmatprep.mubr.f32.mxu0 0.0
        %3013 = vmatmul.mubr.f32.gmra.mxu0 %v2935
        %v3014 = vpop.f32.mrf.mxu0
        %v3015 = vadd.f32 0.0, %v3014
        %v3016 = vpop.f32.mrf.mxu0
        %3017 = vdwg.mxu0
        %v3019 = vsel %vm1115, %v2375, 0
        %v3022 = vsel %vm1115, %v2376, 0
        %v3025 = vsel %vm1115, %v2391, 0
        %v3028 = vsel %vm1115, %v2392, 0
        %3030 = vmatprep.subr.mxu0 0.0
        %3031 = vmatpush1.xpose.msra.mxu0 0.0
        %3032 = vmatprep.subr.mxu0 0.0
        %3033 = vmatpush1.xpose.msra.mxu0 0.0
        %3034 = vmatprep.subr.mxu0 0.0
        %3035 = vmatpush1.xpose.msra.mxu0 0.0
        %3036 = vmatprep.subr.mxu0 0.0
        %3037 = vmatpush1.xpose.msra.mxu0 0.0
        %3038 = vmatprep.subr.mxu0 0.0
        %3039 = vmatpush1.xpose.msra.mxu0 0.0
        %3040 = vmatprep.subr.mxu0 0.0
        %3041 = vmatpush1.xpose.msra.mxu0 0.0
        %3042 = vmatprep.subr.mxu0 0.0
        %3043 = vmatpush1.xpose.msra.mxu0 0.0
        %3044 = vmatprep.subr.mxu0 0.0
        %3045 = vmatpush1.xpose.msra.mxu0 0.0
        %3046 = vmatprep.subr.mxu0 0.0
        %3047 = vmatpush1.xpose.msra.mxu0 0.0
        %3048 = vmatprep.subr.mxu0 0.0
        %3049 = vmatpush1.xpose.msra.mxu0 0.0
        %3050 = vmatprep.subr.mxu0 0.0
        %3051 = vmatpush1.xpose.msra.mxu0 0.0
        %3052 = vmatprep.subr.mxu0 0.0
        %3053 = vmatpush1.xpose.msra.mxu0 0.0
        %3054 = vmatprep.subr.mxu0 0.0
        %3055 = vmatpush1.xpose.msra.mxu0 0.0
        %3056 = vmatprep.subr.mxu0 0.0
        %3057 = vmatpush1.xpose.msra.mxu0 0.0
        %3058 = vmatprep.subr.mxu0 0.0
        %3059 = vmatpush1.xpose.msra.mxu0 %v3028
        %3060 = vmatprep.subr.mxu0 0.0
        %3061 = vmatpush1.xpose.msra.mxu0 %v3025
        %3062 = vmatprep.subr.mxu0 0.0
        %3063 = vmatpush2.xpose.msra.mxu0 0.0
        %3064 = vmatprep.subr.mxu0 0.0
        %3065 = vmatpush2.xpose.msra.mxu0 0.0
        %3066 = vmatprep.subr.mxu0 0.0
        %3067 = vmatpush2.xpose.msra.mxu0 0.0
        %3068 = vmatprep.subr.mxu0 0.0
        %3069 = vmatpush2.xpose.msra.mxu0 0.0
        %3070 = vmatprep.subr.mxu0 0.0
        %3071 = vmatpush2.xpose.msra.mxu0 0.0
        %3072 = vmatprep.subr.mxu0 0.0
        %3073 = vmatpush2.xpose.msra.mxu0 0.0
        %3074 = vmatprep.subr.mxu0 0.0
        %3075 = vmatpush2.xpose.msra.mxu0 0.0
        %3076 = vmatprep.subr.mxu0 0.0
        %3077 = vmatpush2.xpose.msra.mxu0 0.0
        %3078 = vmatprep.subr.mxu0 0.0
        %3079 = vmatpush2.xpose.msra.mxu0 0.0
        %3080 = vmatprep.subr.mxu0 0.0
        %3081 = vmatpush2.xpose.msra.mxu0 0.0
        %3082 = vmatprep.subr.mxu0 0.0
        %3083 = vmatpush2.xpose.msra.mxu0 0.0
        %3084 = vmatprep.subr.mxu0 0.0
        %3085 = vmatpush2.xpose.msra.mxu0 0.0
        %3086 = vmatprep.subr.mxu0 0.0
        %3087 = vmatpush2.xpose.msra.mxu0 0.0
        %3088 = vmatprep.subr.mxu0 0.0
        %3089 = vmatpush2.xpose.msra.mxu0 0.0
        %3090 = vmatprep.subr.mxu0 0.0
        %3091 = vmatpush2.xpose.msra.mxu0 0.0
        %3092 = vmatprep.subr.mxu0 0.0
        %3093 = vmatpush2.xpose.msra.mxu0 0.0
        %3094 = vmatprep.mubr.f32.mxu0 0.0
        %3095 = vmatmul.mubr.f32.gmra.mxu0 %v3019
        %v3096 = vpop.f32.mrf.mxu0
        %v3097 = vadd.f32 0.0, %v3096
        %v3098 = vpop.f32.mrf.mxu0
        %3099 = vmatprep.mubr.f32.mxu0 0.0
        %3100 = vmatmul.mubr.f32.gmra.mxu0 %v3022
        %v3101 = vpop.f32.mrf.mxu0
        %v3102 = vadd.f32 0.0, %v3101
        %v3103 = vpop.f32.mrf.mxu0
        %3104 = vdwg.mxu0
        %s3105 = smul.u32 %s28, 16
        %v3106 = vlaneseq
        %v3107 = vand.u32 %v3106, 127
        %v3108 = vstv %s3105
        %v3109 = vadd.s32 %v3108, %v3107
        %vm3110 = vcmp.lt.s32.totalorder %v3109, 9
        %v3111 = vsel %vm3110, 1, 0
        %vm3112 = vcmp.eq.s32.totalorder %v3111, 1
        %v3113 = vsel %vm3112, %v2488, -1e+30
        %v3114 = vsel %vm3112, %v2493, -1e+30
        %v3115 = vsel %vm3112, %v2575, -1e+30
        %v3116 = vsel %vm3112, %v2580, -1e+30
        %v3117 = vsel %vm3112, %v2662, -1e+30
        %v3118 = vsel %vm3112, %v2667, -1e+30
        %v3119 = vsel %vm3112, %v2749, -1e+30
        %v3120 = vsel %vm3112, %v2754, -1e+30
        %v3121 = vsel %vm3112, %v2836, -1e+30
        %v3122 = vsel %vm3112, %v2841, -1e+30
        %v3123 = vsel %vm3112, %v2923, -1e+30
        %v3124 = vsel %vm3112, %v2928, -1e+30
        %v3125 = vsel %vm3112, %v3010, -1e+30
        %v3126 = vsel %vm3112, %v3015, -1e+30
        %v3127 = vsel %vm3112, %v3097, -1e+30
        %v3128 = vsel %vm3112, %v3102, -1e+30
        %vm3129 = vcmask 130048
        %v3130 = vsel %vm3129, %v3113, -inf
        %3131 = vmax.xlane.f32.xlu0 %v3130
        %v3132 = vpop.xlane.xlu0 %3131
        %v3133 = vsel %vm3129, %v3114, -inf
        %3134 = vmax.xlane.f32.xlu0 %v3133
        %v3135 = vpop.xlane.xlu0 %3134
        %v3136 = vsel %vm3129, %v3115, -inf
        %3137 = vmax.xlane.f32.xlu0 %v3136
        %v3138 = vpop.xlane.xlu0 %3137
        %v3139 = vsel %vm3129, %v3116, -inf
        %3140 = vmax.xlane.f32.xlu0 %v3139
        %v3141 = vpop.xlane.xlu0 %3140
        %v3142 = vsel %vm3129, %v3117, -inf
        %3143 = vmax.xlane.f32.xlu0 %v3142
        %v3144 = vpop.xlane.xlu0 %3143
        %v3145 = vsel %vm3129, %v3118, -inf
        %3146 = vmax.xlane.f32.xlu0 %v3145
        %v3147 = vpop.xlane.xlu0 %3146
        %v3148 = vsel %vm3129, %v3119, -inf
        %3149 = vmax.xlane.f32.xlu0 %v3148
        %v3150 = vpop.xlane.xlu0 %3149
        %v3151 = vsel %vm3129, %v3120, -inf
        %3152 = vmax.xlane.f32.xlu0 %v3151
        %v3153 = vpop.xlane.xlu0 %3152
        %v3154 = vsel %vm3129, %v3121, -inf
        %3155 = vmax.xlane.f32.xlu0 %v3154
        %v3156 = vpop.xlane.xlu0 %3155
        %v3157 = vsel %vm3129, %v3122, -inf
        %3158 = vmax.xlane.f32.xlu0 %v3157
        %v3159 = vpop.xlane.xlu0 %3158
        %v3160 = vsel %vm3129, %v3123, -inf
        %3161 = vmax.xlane.f32.xlu0 %v3160
        %v3162 = vpop.xlane.xlu0 %3161
        %v3163 = vsel %vm3129, %v3124, -inf
        %3164 = vmax.xlane.f32.xlu0 %v3163
        %v3165 = vpop.xlane.xlu0 %3164
        %v3166 = vsel %vm3129, %v3125, -inf
        %3167 = vmax.xlane.f32.xlu0 %v3166
        %v3168 = vpop.xlane.xlu0 %3167
        %v3169 = vsel %vm3129, %v3126, -inf
        %3170 = vmax.xlane.f32.xlu0 %v3169
        %v3171 = vpop.xlane.xlu0 %3170
        %v3172 = vsel %vm3129, %v3127, -inf
        %3173 = vmax.xlane.f32.xlu0 %v3172
        %v3174 = vpop.xlane.xlu0 %3173
        %v3175 = vsel %vm3129, %v3128, -inf
        %3176 = vmax.xlane.f32.xlu0 %v3175
        %v3177 = vpop.xlane.xlu0 %3176
        %v3178 = vsub.f32 %v3113, %v3132
        %v3179 = vsub.f32 %v3114, %v3135
        %v3180 = vsub.f32 %v3115, %v3138
        %v3181 = vsub.f32 %v3116, %v3141
        %v3182 = vsub.f32 %v3117, %v3144
        %v3183 = vsub.f32 %v3118, %v3147
        %v3184 = vsub.f32 %v3119, %v3150
        %v3185 = vsub.f32 %v3120, %v3153
        %v3186 = vsub.f32 %v3121, %v3156
        %v3187 = vsub.f32 %v3122, %v3159
        %v3188 = vsub.f32 %v3123, %v3162
        %v3189 = vsub.f32 %v3124, %v3165
        %v3190 = vsub.f32 %v3125, %v3168
        %v3191 = vsub.f32 %v3126, %v3171
        %v3192 = vsub.f32 %v3127, %v3174
        %v3193 = vsub.f32 %v3128, %v3177
        %v3194 = vmul.f32 %v3178, 1.442695
        %v3195 = vpow.pop %v3194
        %v3196 = vmul.f32 %v3179, 1.442695
        %v3197 = vpow.pop %v3196
        %v3198 = vmul.f32 %v3180, 1.442695
        %v3199 = vpow.pop %v3198
        %v3200 = vmul.f32 %v3181, 1.442695
        %v3201 = vpow.pop %v3200
        %v3202 = vmul.f32 %v3182, 1.442695
        %v3203 = vpow.pop %v3202
        %v3204 = vmul.f32 %v3183, 1.442695
        %v3205 = vpow.pop %v3204
        %v3206 = vmul.f32 %v3184, 1.442695
        %v3207 = vpow.pop %v3206
        %v3208 = vmul.f32 %v3185, 1.442695
        %v3209 = vpow.pop %v3208
        %v3210 = vmul.f32 %v3186, 1.442695
        %v3211 = vpow.pop %v3210
        %v3212 = vmul.f32 %v3187, 1.442695
        %v3213 = vpow.pop %v3212
        %v3214 = vmul.f32 %v3188, 1.442695
        %v3215 = vpow.pop %v3214
        %v3216 = vmul.f32 %v3189, 1.442695
        %v3217 = vpow.pop %v3216
        %v3218 = vmul.f32 %v3190, 1.442695
        %v3219 = vpow.pop %v3218
        %v3220 = vmul.f32 %v3191, 1.442695
        %v3221 = vpow.pop %v3220
        %v3222 = vmul.f32 %v3192, 1.442695
        %v3223 = vpow.pop %v3222
        %v3224 = vmul.f32 %v3193, 1.442695
        %v3225 = vpow.pop %v3224
        %v3226 = vsel %vm3129, %v3195, 0.0
        %3227 = vadd.xlane.f32.xlu0 %v3226
        %v3228 = vpop.xlane.xlu0 %3227
        %v3229 = vsel %vm3129, %v3197, 0.0
        %3230 = vadd.xlane.f32.xlu0 %v3229
        %v3231 = vpop.xlane.xlu0 %3230
        %v3232 = vsel %vm3129, %v3199, 0.0
        %3233 = vadd.xlane.f32.xlu0 %v3232
        %v3234 = vpop.xlane.xlu0 %3233
        %v3235 = vsel %vm3129, %v3201, 0.0
        %3236 = vadd.xlane.f32.xlu0 %v3235
        %v3237 = vpop.xlane.xlu0 %3236
        %v3238 = vsel %vm3129, %v3203, 0.0
        %3239 = vadd.xlane.f32.xlu0 %v3238
        %v3240 = vpop.xlane.xlu0 %3239
        %v3241 = vsel %vm3129, %v3205, 0.0
        %3242 = vadd.xlane.f32.xlu0 %v3241
        %v3243 = vpop.xlane.xlu0 %3242
        %v3244 = vsel %vm3129, %v3207, 0.0
        %3245 = vadd.xlane.f32.xlu0 %v3244
        %v3246 = vpop.xlane.xlu0 %3245
        %v3247 = vsel %vm3129, %v3209, 0.0
        %3248 = vadd.xlane.f32.xlu0 %v3247
        %v3249 = vpop.xlane.xlu0 %3248
        %v3250 = vsel %vm3129, %v3211, 0.0
        %3251 = vadd.xlane.f32.xlu0 %v3250
        %v3252 = vpop.xlane.xlu0 %3251
        %v3253 = vsel %vm3129, %v3213, 0.0
        %3254 = vadd.xlane.f32.xlu0 %v3253
        %v3255 = vpop.xlane.xlu0 %3254
        %v3256 = vsel %vm3129, %v3215, 0.0
        %3257 = vadd.xlane.f32.xlu0 %v3256
        %v3258 = vpop.xlane.xlu0 %3257
        %v3259 = vsel %vm3129, %v3217, 0.0
        %3260 = vadd.xlane.f32.xlu0 %v3259
        %v3261 = vpop.xlane.xlu0 %3260
        %v3262 = vsel %vm3129, %v3219, 0.0
        %3263 = vadd.xlane.f32.xlu0 %v3262
        %v3264 = vpop.xlane.xlu0 %3263
        %v3265 = vsel %vm3129, %v3221, 0.0
        %3266 = vadd.xlane.f32.xlu0 %v3265
        %v3267 = vpop.xlane.xlu0 %3266
        %v3268 = vsel %vm3129, %v3223, 0.0
        %3269 = vadd.xlane.f32.xlu0 %v3268
        %v3270 = vpop.xlane.xlu0 %3269
        %v3271 = vsel %vm3129, %v3225, 0.0
        %3272 = vadd.xlane.f32.xlu0 %v3271
        %v3273 = vpop.xlane.xlu0 %3272
        %v3275 = vsel %vm3129, %v3195, 0
        %v3278 = vsel %vm3129, %v3197, 0
        %3280 = vmatprep.subr.mxu0 0.0
        %3281 = vmatpush1.msra.mxu0 0.0
        %3282 = vmatprep.subr.mxu0 0.0
        %3283 = vmatpush1.msra.mxu0 0.0
        %3284 = vmatprep.subr.mxu0 0.0
        %3285 = vmatpush1.msra.mxu0 0.0
        %3286 = vmatprep.subr.mxu0 0.0
        %3287 = vmatpush1.msra.mxu0 0.0
        %3288 = vmatprep.subr.mxu0 0.0
        %3289 = vmatpush1.msra.mxu0 0.0
        %3290 = vmatprep.subr.mxu0 0.0
        %3291 = vmatpush1.msra.mxu0 0.0
        %3292 = vmatprep.subr.mxu0 0.0
        %3293 = vmatpush1.msra.mxu0 0.0
        %3294 = vmatprep.subr.mxu0 0.0
        %3295 = vmatpush1.msra.mxu0 0.0
        %3296 = vmatprep.subr.mxu0 0.0
        %3297 = vmatpush1.msra.mxu0 0.0
        %3298 = vmatprep.subr.mxu0 0.0
        %3299 = vmatpush1.msra.mxu0 0.0
        %3300 = vmatprep.subr.mxu0 0.0
        %3301 = vmatpush1.msra.mxu0 0.0
        %3302 = vmatprep.subr.mxu0 0.0
        %3303 = vmatpush1.msra.mxu0 0.0
        %3304 = vmatprep.subr.mxu0 0.0
        %3305 = vmatpush1.msra.mxu0 0.0
        %3306 = vmatprep.subr.mxu0 0.0
        %3307 = vmatpush1.msra.mxu0 0.0
        %3308 = vmatprep.subr.mxu0 0.0
        %3309 = vmatpush1.msra.mxu0 %v2394
        %3310 = vmatprep.subr.mxu0 0.0
        %3311 = vmatpush1.msra.mxu0 %v2393
        %3312 = vmatprep.subr.mxu0 0.0
        %3313 = vmatpush2.msra.mxu0 0.0
        %3314 = vmatprep.subr.mxu0 0.0
        %3315 = vmatpush2.msra.mxu0 0.0
        %3316 = vmatprep.subr.mxu0 0.0
        %3317 = vmatpush2.msra.mxu0 0.0
        %3318 = vmatprep.subr.mxu0 0.0
        %3319 = vmatpush2.msra.mxu0 0.0
        %3320 = vmatprep.subr.mxu0 0.0
        %3321 = vmatpush2.msra.mxu0 0.0
        %3322 = vmatprep.subr.mxu0 0.0
        %3323 = vmatpush2.msra.mxu0 0.0
        %3324 = vmatprep.subr.mxu0 0.0
        %3325 = vmatpush2.msra.mxu0 0.0
        %3326 = vmatprep.subr.mxu0 0.0
        %3327 = vmatpush2.msra.mxu0 0.0
        %3328 = vmatprep.subr.mxu0 0.0
        %3329 = vmatpush2.msra.mxu0 0.0
        %3330 = vmatprep.subr.mxu0 0.0
        %3331 = vmatpush2.msra.mxu0 0.0
        %3332 = vmatprep.subr.mxu0 0.0
        %3333 = vmatpush2.msra.mxu0 0.0
        %3334 = vmatprep.subr.mxu0 0.0
        %3335 = vmatpush2.msra.mxu0 0.0
        %3336 = vmatprep.subr.mxu0 0.0
        %3337 = vmatpush2.msra.mxu0 0.0
        %3338 = vmatprep.subr.mxu0 0.0
        %3339 = vmatpush2.msra.mxu0 0.0
        %3340 = vmatprep.subr.mxu0 0.0
        %3341 = vmatpush2.msra.mxu0 0.0
        %3342 = vmatprep.subr.mxu0 0.0
        %3343 = vmatpush2.msra.mxu0 0.0
        %3344 = vmatprep.mubr.f32.mxu0 0.0
        %3345 = vmatmul.mubr.f32.gmra.mxu0 %v3275
        %v3346 = vpop.f32.mrf.mxu0
        %v3347 = vadd.f32 0.0, %v3346
        %v3348 = vpop.f32.mrf.mxu0
        %3349 = vmatprep.mubr.f32.mxu0 0.0
        %3350 = vmatmul.mubr.f32.gmra.mxu0 %v3278
        %v3351 = vpop.f32.mrf.mxu0
        %v3352 = vadd.f32 0.0, %v3351
        %v3353 = vpop.f32.mrf.mxu0
        %3354 = vdwg.mxu0
        %v3356 = vsel %vm3129, %v3199, 0
        %v3359 = vsel %vm3129, %v3201, 0
        %3361 = vmatprep.subr.mxu0 0.0
        %3362 = vmatpush1.msra.mxu0 0.0
        %3363 = vmatprep.subr.mxu0 0.0
        %3364 = vmatpush1.msra.mxu0 0.0
        %3365 = vmatprep.subr.mxu0 0.0
        %3366 = vmatpush1.msra.mxu0 0.0
        %3367 = vmatprep.subr.mxu0 0.0
        %3368 = vmatpush1.msra.mxu0 0.0
        %3369 = vmatprep.subr.mxu0 0.0
        %3370 = vmatpush1.msra.mxu0 0.0
        %3371 = vmatprep.subr.mxu0 0.0
        %3372 = vmatpush1.msra.mxu0 0.0
        %3373 = vmatprep.subr.mxu0 0.0
        %3374 = vmatpush1.msra.mxu0 0.0
        %3375 = vmatprep.subr.mxu0 0.0
        %3376 = vmatpush1.msra.mxu0 0.0
        %3377 = vmatprep.subr.mxu0 0.0
        %3378 = vmatpush1.msra.mxu0 0.0
        %3379 = vmatprep.subr.mxu0 0.0
        %3380 = vmatpush1.msra.mxu0 0.0
        %3381 = vmatprep.subr.mxu0 0.0
        %3382 = vmatpush1.msra.mxu0 0.0
        %3383 = vmatprep.subr.mxu0 0.0
        %3384 = vmatpush1.msra.mxu0 0.0
        %3385 = vmatprep.subr.mxu0 0.0
        %3386 = vmatpush1.msra.mxu0 0.0
        %3387 = vmatprep.subr.mxu0 0.0
        %3388 = vmatpush1.msra.mxu0 0.0
        %3389 = vmatprep.subr.mxu0 0.0
        %3390 = vmatpush1.msra.mxu0 %v2396
        %3391 = vmatprep.subr.mxu0 0.0
        %3392 = vmatpush1.msra.mxu0 %v2395
        %3393 = vmatprep.subr.mxu0 0.0
        %3394 = vmatpush2.msra.mxu0 0.0
        %3395 = vmatprep.subr.mxu0 0.0
        %3396 = vmatpush2.msra.mxu0 0.0
        %3397 = vmatprep.subr.mxu0 0.0
        %3398 = vmatpush2.msra.mxu0 0.0
        %3399 = vmatprep.subr.mxu0 0.0
        %3400 = vmatpush2.msra.mxu0 0.0
        %3401 = vmatprep.subr.mxu0 0.0
        %3402 = vmatpush2.msra.mxu0 0.0
        %3403 = vmatprep.subr.mxu0 0.0
        %3404 = vmatpush2.msra.mxu0 0.0
        %3405 = vmatprep.subr.mxu0 0.0
        %3406 = vmatpush2.msra.mxu0 0.0
        %3407 = vmatprep.subr.mxu0 0.0
        %3408 = vmatpush2.msra.mxu0 0.0
        %3409 = vmatprep.subr.mxu0 0.0
        %3410 = vmatpush2.msra.mxu0 0.0
        %3411 = vmatprep.subr.mxu0 0.0
        %3412 = vmatpush2.msra.mxu0 0.0
        %3413 = vmatprep.subr.mxu0 0.0
        %3414 = vmatpush2.msra.mxu0 0.0
        %3415 = vmatprep.subr.mxu0 0.0
        %3416 = vmatpush2.msra.mxu0 0.0
        %3417 = vmatprep.subr.mxu0 0.0
        %3418 = vmatpush2.msra.mxu0 0.0
        %3419 = vmatprep.subr.mxu0 0.0
        %3420 = vmatpush2.msra.mxu0 0.0
        %3421 = vmatprep.subr.mxu0 0.0
        %3422 = vmatpush2.msra.mxu0 0.0
        %3423 = vmatprep.subr.mxu0 0.0
        %3424 = vmatpush2.msra.mxu0 0.0
        %3425 = vmatprep.mubr.f32.mxu0 0.0
        %3426 = vmatmul.mubr.f32.gmra.mxu0 %v3356
        %v3427 = vpop.f32.mrf.mxu0
        %v3428 = vadd.f32 0.0, %v3427
        %v3429 = vpop.f32.mrf.mxu0
        %3430 = vmatprep.mubr.f32.mxu0 0.0
        %3431 = vmatmul.mubr.f32.gmra.mxu0 %v3359
        %v3432 = vpop.f32.mrf.mxu0
        %v3433 = vadd.f32 0.0, %v3432
        %v3434 = vpop.f32.mrf.mxu0
        %3435 = vdwg.mxu0
        %v3437 = vsel %vm3129, %v3203, 0
        %v3440 = vsel %vm3129, %v3205, 0
        %3442 = vmatprep.subr.mxu0 0.0
        %3443 = vmatpush1.msra.mxu0 0.0
        %3444 = vmatprep.subr.mxu0 0.0
        %3445 = vmatpush1.msra.mxu0 0.0
        %3446 = vmatprep.subr.mxu0 0.0
        %3447 = vmatpush1.msra.mxu0 0.0
        %3448 = vmatprep.subr.mxu0 0.0
        %3449 = vmatpush1.msra.mxu0 0.0
        %3450 = vmatprep.subr.mxu0 0.0
        %3451 = vmatpush1.msra.mxu0 0.0
        %3452 = vmatprep.subr.mxu0 0.0
        %3453 = vmatpush1.msra.mxu0 0.0
        %3454 = vmatprep.subr.mxu0 0.0
        %3455 = vmatpush1.msra.mxu0 0.0
        %3456 = vmatprep.subr.mxu0 0.0
        %3457 = vmatpush1.msra.mxu0 0.0
        %3458 = vmatprep.subr.mxu0 0.0
        %3459 = vmatpush1.msra.mxu0 0.0
        %3460 = vmatprep.subr.mxu0 0.0
        %3461 = vmatpush1.msra.mxu0 0.0
        %3462 = vmatprep.subr.mxu0 0.0
        %3463 = vmatpush1.msra.mxu0 0.0
        %3464 = vmatprep.subr.mxu0 0.0
        %3465 = vmatpush1.msra.mxu0 0.0
        %3466 = vmatprep.subr.mxu0 0.0
        %3467 = vmatpush1.msra.mxu0 0.0
        %3468 = vmatprep.subr.mxu0 0.0
        %3469 = vmatpush1.msra.mxu0 0.0
        %3470 = vmatprep.subr.mxu0 0.0
        %3471 = vmatpush1.msra.mxu0 %v2398
        %3472 = vmatprep.subr.mxu0 0.0
        %3473 = vmatpush1.msra.mxu0 %v2397
        %3474 = vmatprep.subr.mxu0 0.0
        %3475 = vmatpush2.msra.mxu0 0.0
        %3476 = vmatprep.subr.mxu0 0.0
        %3477 = vmatpush2.msra.mxu0 0.0
        %3478 = vmatprep.subr.mxu0 0.0
        %3479 = vmatpush2.msra.mxu0 0.0
        %3480 = vmatprep.subr.mxu0 0.0
        %3481 = vmatpush2.msra.mxu0 0.0
        %3482 = vmatprep.subr.mxu0 0.0
        %3483 = vmatpush2.msra.mxu0 0.0
        %3484 = vmatprep.subr.mxu0 0.0
        %3485 = vmatpush2.msra.mxu0 0.0
        %3486 = vmatprep.subr.mxu0 0.0
        %3487 = vmatpush2.msra.mxu0 0.0
        %3488 = vmatprep.subr.mxu0 0.0
        %3489 = vmatpush2.msra.mxu0 0.0
        %3490 = vmatprep.subr.mxu0 0.0
        %3491 = vmatpush2.msra.mxu0 0.0
        %3492 = vmatprep.subr.mxu0 0.0
        %3493 = vmatpush2.msra.mxu0 0.0
        %3494 = vmatprep.subr.mxu0 0.0
        %3495 = vmatpush2.msra.mxu0 0.0
        %3496 = vmatprep.subr.mxu0 0.0
        %3497 = vmatpush2.msra.mxu0 0.0
        %3498 = vmatprep.subr.mxu0 0.0
        %3499 = vmatpush2.msra.mxu0 0.0
        %3500 = vmatprep.subr.mxu0 0.0
        %3501 = vmatpush2.msra.mxu0 0.0
        %3502 = vmatprep.subr.mxu0 0.0
        %3503 = vmatpush2.msra.mxu0 0.0
        %3504 = vmatprep.subr.mxu0 0.0
        %3505 = vmatpush2.msra.mxu0 0.0
        %3506 = vmatprep.mubr.f32.mxu0 0.0
        %3507 = vmatmul.mubr.f32.gmra.mxu0 %v3437
        %v3508 = vpop.f32.mrf.mxu0
        %v3509 = vadd.f32 0.0, %v3508
        %v3510 = vpop.f32.mrf.mxu0
        %3511 = vmatprep.mubr.f32.mxu0 0.0
        %3512 = vmatmul.mubr.f32.gmra.mxu0 %v3440
        %v3513 = vpop.f32.mrf.mxu0
        %v3514 = vadd.f32 0.0, %v3513
        %v3515 = vpop.f32.mrf.mxu0
        %3516 = vdwg.mxu0
        %v3518 = vsel %vm3129, %v3207, 0
        %v3521 = vsel %vm3129, %v3209, 0
        %3523 = vmatprep.subr.mxu0 0.0
        %3524 = vmatpush1.msra.mxu0 0.0
        %3525 = vmatprep.subr.mxu0 0.0
        %3526 = vmatpush1.msra.mxu0 0.0
        %3527 = vmatprep.subr.mxu0 0.0
        %3528 = vmatpush1.msra.mxu0 0.0
        %3529 = vmatprep.subr.mxu0 0.0
        %3530 = vmatpush1.msra.mxu0 0.0
        %3531 = vmatprep.subr.mxu0 0.0
        %3532 = vmatpush1.msra.mxu0 0.0
        %3533 = vmatprep.subr.mxu0 0.0
        %3534 = vmatpush1.msra.mxu0 0.0
        %3535 = vmatprep.subr.mxu0 0.0
        %3536 = vmatpush1.msra.mxu0 0.0
        %3537 = vmatprep.subr.mxu0 0.0
        %3538 = vmatpush1.msra.mxu0 0.0
        %3539 = vmatprep.subr.mxu0 0.0
        %3540 = vmatpush1.msra.mxu0 0.0
        %3541 = vmatprep.subr.mxu0 0.0
        %3542 = vmatpush1.msra.mxu0 0.0
        %3543 = vmatprep.subr.mxu0 0.0
        %3544 = vmatpush1.msra.mxu0 0.0
        %3545 = vmatprep.subr.mxu0 0.0
        %3546 = vmatpush1.msra.mxu0 0.0
        %3547 = vmatprep.subr.mxu0 0.0
        %3548 = vmatpush1.msra.mxu0 0.0
        %3549 = vmatprep.subr.mxu0 0.0
        %3550 = vmatpush1.msra.mxu0 0.0
        %3551 = vmatprep.subr.mxu0 0.0
        %3552 = vmatpush1.msra.mxu0 %v2400
        %3553 = vmatprep.subr.mxu0 0.0
        %3554 = vmatpush1.msra.mxu0 %v2399
        %3555 = vmatprep.subr.mxu0 0.0
        %3556 = vmatpush2.msra.mxu0 0.0
        %3557 = vmatprep.subr.mxu0 0.0
        %3558 = vmatpush2.msra.mxu0 0.0
        %3559 = vmatprep.subr.mxu0 0.0
        %3560 = vmatpush2.msra.mxu0 0.0
        %3561 = vmatprep.subr.mxu0 0.0
        %3562 = vmatpush2.msra.mxu0 0.0
        %3563 = vmatprep.subr.mxu0 0.0
        %3564 = vmatpush2.msra.mxu0 0.0
        %3565 = vmatprep.subr.mxu0 0.0
        %3566 = vmatpush2.msra.mxu0 0.0
        %3567 = vmatprep.subr.mxu0 0.0
        %3568 = vmatpush2.msra.mxu0 0.0
        %3569 = vmatprep.subr.mxu0 0.0
        %3570 = vmatpush2.msra.mxu0 0.0
        %3571 = vmatprep.subr.mxu0 0.0
        %3572 = vmatpush2.msra.mxu0 0.0
        %3573 = vmatprep.subr.mxu0 0.0
        %3574 = vmatpush2.msra.mxu0 0.0
        %3575 = vmatprep.subr.mxu0 0.0
        %3576 = vmatpush2.msra.mxu0 0.0
        %3577 = vmatprep.subr.mxu0 0.0
        %3578 = vmatpush2.msra.mxu0 0.0
        %3579 = vmatprep.subr.mxu0 0.0
        %3580 = vmatpush2.msra.mxu0 0.0
        %3581 = vmatprep.subr.mxu0 0.0
        %3582 = vmatpush2.msra.mxu0 0.0
        %3583 = vmatprep.subr.mxu0 0.0
        %3584 = vmatpush2.msra.mxu0 0.0
        %3585 = vmatprep.subr.mxu0 0.0
        %3586 = vmatpush2.msra.mxu0 0.0
        %3587 = vmatprep.mubr.f32.mxu0 0.0
        %3588 = vmatmul.mubr.f32.gmra.mxu0 %v3518
        %v3589 = vpop.f32.mrf.mxu0
        %v3590 = vadd.f32 0.0, %v3589
        %v3591 = vpop.f32.mrf.mxu0
        %3592 = vmatprep.mubr.f32.mxu0 0.0
        %3593 = vmatmul.mubr.f32.gmra.mxu0 %v3521
        %v3594 = vpop.f32.mrf.mxu0
        %v3595 = vadd.f32 0.0, %v3594
        %v3596 = vpop.f32.mrf.mxu0
        %3597 = vdwg.mxu0
        %v3599 = vsel %vm3129, %v3211, 0
        %v3602 = vsel %vm3129, %v3213, 0
        %3604 = vmatprep.subr.mxu0 0.0
        %3605 = vmatpush1.msra.mxu0 0.0
        %3606 = vmatprep.subr.mxu0 0.0
        %3607 = vmatpush1.msra.mxu0 0.0
        %3608 = vmatprep.subr.mxu0 0.0
        %3609 = vmatpush1.msra.mxu0 0.0
        %3610 = vmatprep.subr.mxu0 0.0
        %3611 = vmatpush1.msra.mxu0 0.0
        %3612 = vmatprep.subr.mxu0 0.0
        %3613 = vmatpush1.msra.mxu0 0.0
        %3614 = vmatprep.subr.mxu0 0.0
        %3615 = vmatpush1.msra.mxu0 0.0
        %3616 = vmatprep.subr.mxu0 0.0
        %3617 = vmatpush1.msra.mxu0 0.0
        %3618 = vmatprep.subr.mxu0 0.0
        %3619 = vmatpush1.msra.mxu0 0.0
        %3620 = vmatprep.subr.mxu0 0.0
        %3621 = vmatpush1.msra.mxu0 0.0
        %3622 = vmatprep.subr.mxu0 0.0
        %3623 = vmatpush1.msra.mxu0 0.0
        %3624 = vmatprep.subr.mxu0 0.0
        %3625 = vmatpush1.msra.mxu0 0.0
        %3626 = vmatprep.subr.mxu0 0.0
        %3627 = vmatpush1.msra.mxu0 0.0
        %3628 = vmatprep.subr.mxu0 0.0
        %3629 = vmatpush1.msra.mxu0 0.0
        %3630 = vmatprep.subr.mxu0 0.0
        %3631 = vmatpush1.msra.mxu0 0.0
        %3632 = vmatprep.subr.mxu0 0.0
        %3633 = vmatpush1.msra.mxu0 %v2402
        %3634 = vmatprep.subr.mxu0 0.0
        %3635 = vmatpush1.msra.mxu0 %v2401
        %3636 = vmatprep.subr.mxu0 0.0
        %3637 = vmatpush2.msra.mxu0 0.0
        %3638 = vmatprep.subr.mxu0 0.0
        %3639 = vmatpush2.msra.mxu0 0.0
        %3640 = vmatprep.subr.mxu0 0.0
        %3641 = vmatpush2.msra.mxu0 0.0
        %3642 = vmatprep.subr.mxu0 0.0
        %3643 = vmatpush2.msra.mxu0 0.0
        %3644 = vmatprep.subr.mxu0 0.0
        %3645 = vmatpush2.msra.mxu0 0.0
        %3646 = vmatprep.subr.mxu0 0.0
        %3647 = vmatpush2.msra.mxu0 0.0
        %3648 = vmatprep.subr.mxu0 0.0
        %3649 = vmatpush2.msra.mxu0 0.0
        %3650 = vmatprep.subr.mxu0 0.0
        %3651 = vmatpush2.msra.mxu0 0.0
        %3652 = vmatprep.subr.mxu0 0.0
        %3653 = vmatpush2.msra.mxu0 0.0
        %3654 = vmatprep.subr.mxu0 0.0
        %3655 = vmatpush2.msra.mxu0 0.0
        %3656 = vmatprep.subr.mxu0 0.0
        %3657 = vmatpush2.msra.mxu0 0.0
        %3658 = vmatprep.subr.mxu0 0.0
        %3659 = vmatpush2.msra.mxu0 0.0
        %3660 = vmatprep.subr.mxu0 0.0
        %3661 = vmatpush2.msra.mxu0 0.0
        %3662 = vmatprep.subr.mxu0 0.0
        %3663 = vmatpush2.msra.mxu0 0.0
        %3664 = vmatprep.subr.mxu0 0.0
        %3665 = vmatpush2.msra.mxu0 0.0
        %3666 = vmatprep.subr.mxu0 0.0
        %3667 = vmatpush2.msra.mxu0 0.0
        %3668 = vmatprep.mubr.f32.mxu0 0.0
        %3669 = vmatmul.mubr.f32.gmra.mxu0 %v3599
        %v3670 = vpop.f32.mrf.mxu0
        %v3671 = vadd.f32 0.0, %v3670
        %v3672 = vpop.f32.mrf.mxu0
        %3673 = vmatprep.mubr.f32.mxu0 0.0
        %3674 = vmatmul.mubr.f32.gmra.mxu0 %v3602
        %v3675 = vpop.f32.mrf.mxu0
        %v3676 = vadd.f32 0.0, %v3675
        %v3677 = vpop.f32.mrf.mxu0
        %3678 = vdwg.mxu0
        %v3680 = vsel %vm3129, %v3215, 0
        %v3683 = vsel %vm3129, %v3217, 0
        %3685 = vmatprep.subr.mxu0 0.0
        %3686 = vmatpush1.msra.mxu0 0.0
        %3687 = vmatprep.subr.mxu0 0.0
        %3688 = vmatpush1.msra.mxu0 0.0
        %3689 = vmatprep.subr.mxu0 0.0
        %3690 = vmatpush1.msra.mxu0 0.0
        %3691 = vmatprep.subr.mxu0 0.0
        %3692 = vmatpush1.msra.mxu0 0.0
        %3693 = vmatprep.subr.mxu0 0.0
        %3694 = vmatpush1.msra.mxu0 0.0
        %3695 = vmatprep.subr.mxu0 0.0
        %3696 = vmatpush1.msra.mxu0 0.0
        %3697 = vmatprep.subr.mxu0 0.0
        %3698 = vmatpush1.msra.mxu0 0.0
        %3699 = vmatprep.subr.mxu0 0.0
        %3700 = vmatpush1.msra.mxu0 0.0
        %3701 = vmatprep.subr.mxu0 0.0
        %3702 = vmatpush1.msra.mxu0 0.0
        %3703 = vmatprep.subr.mxu0 0.0
        %3704 = vmatpush1.msra.mxu0 0.0
        %3705 = vmatprep.subr.mxu0 0.0
        %3706 = vmatpush1.msra.mxu0 0.0
        %3707 = vmatprep.subr.mxu0 0.0
        %3708 = vmatpush1.msra.mxu0 0.0
        %3709 = vmatprep.subr.mxu0 0.0
        %3710 = vmatpush1.msra.mxu0 0.0
        %3711 = vmatprep.subr.mxu0 0.0
        %3712 = vmatpush1.msra.mxu0 0.0
        %3713 = vmatprep.subr.mxu0 0.0
        %3714 = vmatpush1.msra.mxu0 %v2404
        %3715 = vmatprep.subr.mxu0 0.0
        %3716 = vmatpush1.msra.mxu0 %v2403
        %3717 = vmatprep.subr.mxu0 0.0
        %3718 = vmatpush2.msra.mxu0 0.0
        %3719 = vmatprep.subr.mxu0 0.0
        %3720 = vmatpush2.msra.mxu0 0.0
        %3721 = vmatprep.subr.mxu0 0.0
        %3722 = vmatpush2.msra.mxu0 0.0
        %3723 = vmatprep.subr.mxu0 0.0
        %3724 = vmatpush2.msra.mxu0 0.0
        %3725 = vmatprep.subr.mxu0 0.0
        %3726 = vmatpush2.msra.mxu0 0.0
        %3727 = vmatprep.subr.mxu0 0.0
        %3728 = vmatpush2.msra.mxu0 0.0
        %3729 = vmatprep.subr.mxu0 0.0
        %3730 = vmatpush2.msra.mxu0 0.0
        %3731 = vmatprep.subr.mxu0 0.0
        %3732 = vmatpush2.msra.mxu0 0.0
        %3733 = vmatprep.subr.mxu0 0.0
        %3734 = vmatpush2.msra.mxu0 0.0
        %3735 = vmatprep.subr.mxu0 0.0
        %3736 = vmatpush2.msra.mxu0 0.0
        %3737 = vmatprep.subr.mxu0 0.0
        %3738 = vmatpush2.msra.mxu0 0.0
        %3739 = vmatprep.subr.mxu0 0.0
        %3740 = vmatpush2.msra.mxu0 0.0
        %3741 = vmatprep.subr.mxu0 0.0
        %3742 = vmatpush2.msra.mxu0 0.0
        %3743 = vmatprep.subr.mxu0 0.0
        %3744 = vmatpush2.msra.mxu0 0.0
        %3745 = vmatprep.subr.mxu0 0.0
        %3746 = vmatpush2.msra.mxu0 0.0
        %3747 = vmatprep.subr.mxu0 0.0
        %3748 = vmatpush2.msra.mxu0 0.0
        %3749 = vmatprep.mubr.f32.mxu0 0.0
        %3750 = vmatmul.mubr.f32.gmra.mxu0 %v3680
        %v3751 = vpop.f32.mrf.mxu0
        %v3752 = vadd.f32 0.0, %v3751
        %v3753 = vpop.f32.mrf.mxu0
        %3754 = vmatprep.mubr.f32.mxu0 0.0
        %3755 = vmatmul.mubr.f32.gmra.mxu0 %v3683
        %v3756 = vpop.f32.mrf.mxu0
        %v3757 = vadd.f32 0.0, %v3756
        %v3758 = vpop.f32.mrf.mxu0
        %3759 = vdwg.mxu0
        %v3761 = vsel %vm3129, %v3219, 0
        %v3764 = vsel %vm3129, %v3221, 0
        %3766 = vmatprep.subr.mxu0 0.0
        %3767 = vmatpush1.msra.mxu0 0.0
        %3768 = vmatprep.subr.mxu0 0.0
        %3769 = vmatpush1.msra.mxu0 0.0
        %3770 = vmatprep.subr.mxu0 0.0
        %3771 = vmatpush1.msra.mxu0 0.0
        %3772 = vmatprep.subr.mxu0 0.0
        %3773 = vmatpush1.msra.mxu0 0.0
        %3774 = vmatprep.subr.mxu0 0.0
        %3775 = vmatpush1.msra.mxu0 0.0
        %3776 = vmatprep.subr.mxu0 0.0
        %3777 = vmatpush1.msra.mxu0 0.0
        %3778 = vmatprep.subr.mxu0 0.0
        %3779 = vmatpush1.msra.mxu0 0.0
        %3780 = vmatprep.subr.mxu0 0.0
        %3781 = vmatpush1.msra.mxu0 0.0
        %3782 = vmatprep.subr.mxu0 0.0
        %3783 = vmatpush1.msra.mxu0 0.0
        %3784 = vmatprep.subr.mxu0 0.0
        %3785 = vmatpush1.msra.mxu0 0.0
        %3786 = vmatprep.subr.mxu0 0.0
        %3787 = vmatpush1.msra.mxu0 0.0
        %3788 = vmatprep.subr.mxu0 0.0
        %3789 = vmatpush1.msra.mxu0 0.0
        %3790 = vmatprep.subr.mxu0 0.0
        %3791 = vmatpush1.msra.mxu0 0.0
        %3792 = vmatprep.subr.mxu0 0.0
        %3793 = vmatpush1.msra.mxu0 0.0
        %3794 = vmatprep.subr.mxu0 0.0
        %3795 = vmatpush1.msra.mxu0 %v2406
        %3796 = vmatprep.subr.mxu0 0.0
        %3797 = vmatpush1.msra.mxu0 %v2405
        %3798 = vmatprep.subr.mxu0 0.0
        %3799 = vmatpush2.msra.mxu0 0.0
        %3800 = vmatprep.subr.mxu0 0.0
        %3801 = vmatpush2.msra.mxu0 0.0
        %3802 = vmatprep.subr.mxu0 0.0
        %3803 = vmatpush2.msra.mxu0 0.0
        %3804 = vmatprep.subr.mxu0 0.0
        %3805 = vmatpush2.msra.mxu0 0.0
        %3806 = vmatprep.subr.mxu0 0.0
        %3807 = vmatpush2.msra.mxu0 0.0
        %3808 = vmatprep.subr.mxu0 0.0
        %3809 = vmatpush2.msra.mxu0 0.0
        %3810 = vmatprep.subr.mxu0 0.0
        %3811 = vmatpush2.msra.mxu0 0.0
        %3812 = vmatprep.subr.mxu0 0.0
        %3813 = vmatpush2.msra.mxu0 0.0
        %3814 = vmatprep.subr.mxu0 0.0
        %3815 = vmatpush2.msra.mxu0 0.0
        %3816 = vmatprep.subr.mxu0 0.0
        %3817 = vmatpush2.msra.mxu0 0.0
        %3818 = vmatprep.subr.mxu0 0.0
        %3819 = vmatpush2.msra.mxu0 0.0
        %3820 = vmatprep.subr.mxu0 0.0
        %3821 = vmatpush2.msra.mxu0 0.0
        %3822 = vmatprep.subr.mxu0 0.0
        %3823 = vmatpush2.msra.mxu0 0.0
        %3824 = vmatprep.subr.mxu0 0.0
        %3825 = vmatpush2.msra.mxu0 0.0
        %3826 = vmatprep.subr.mxu0 0.0
        %3827 = vmatpush2.msra.mxu0 0.0
        %3828 = vmatprep.subr.mxu0 0.0
        %3829 = vmatpush2.msra.mxu0 0.0
        %3830 = vmatprep.mubr.f32.mxu0 0.0
        %3831 = vmatmul.mubr.f32.gmra.mxu0 %v3761
        %v3832 = vpop.f32.mrf.mxu0
        %v3833 = vadd.f32 0.0, %v3832
        %v3834 = vpop.f32.mrf.mxu0
        %3835 = vmatprep.mubr.f32.mxu0 0.0
        %3836 = vmatmul.mubr.f32.gmra.mxu0 %v3764
        %v3837 = vpop.f32.mrf.mxu0
        %v3838 = vadd.f32 0.0, %v3837
        %v3839 = vpop.f32.mrf.mxu0
        %3840 = vdwg.mxu0
        %v3842 = vsel %vm3129, %v3223, 0
        %v3845 = vsel %vm3129, %v3225, 0
        %3847 = vmatprep.subr.mxu0 0.0
        %3848 = vmatpush1.msra.mxu0 0.0
        %3849 = vmatprep.subr.mxu0 0.0
        %3850 = vmatpush1.msra.mxu0 0.0
        %3851 = vmatprep.subr.mxu0 0.0
        %3852 = vmatpush1.msra.mxu0 0.0
        %3853 = vmatprep.subr.mxu0 0.0
        %3854 = vmatpush1.msra.mxu0 0.0
        %3855 = vmatprep.subr.mxu0 0.0
        %3856 = vmatpush1.msra.mxu0 0.0
        %3857 = vmatprep.subr.mxu0 0.0
        %3858 = vmatpush1.msra.mxu0 0.0
        %3859 = vmatprep.subr.mxu0 0.0
        %3860 = vmatpush1.msra.mxu0 0.0
        %3861 = vmatprep.subr.mxu0 0.0
        %3862 = vmatpush1.msra.mxu0 0.0
        %3863 = vmatprep.subr.mxu0 0.0
        %3864 = vmatpush1.msra.mxu0 0.0
        %3865 = vmatprep.subr.mxu0 0.0
        %3866 = vmatpush1.msra.mxu0 0.0
        %3867 = vmatprep.subr.mxu0 0.0
        %3868 = vmatpush1.msra.mxu0 0.0
        %3869 = vmatprep.subr.mxu0 0.0
        %3870 = vmatpush1.msra.mxu0 0.0
        %3871 = vmatprep.subr.mxu0 0.0
        %3872 = vmatpush1.msra.mxu0 0.0
        %3873 = vmatprep.subr.mxu0 0.0
        %3874 = vmatpush1.msra.mxu0 0.0
        %3875 = vmatprep.subr.mxu0 0.0
        %3876 = vmatpush1.msra.mxu0 %v2408
        %3877 = vmatprep.subr.mxu0 0.0
        %3878 = vmatpush1.msra.mxu0 %v2407
        %3879 = vmatprep.subr.mxu0 0.0
        %3880 = vmatpush2.msra.mxu0 0.0
        %3881 = vmatprep.subr.mxu0 0.0
        %3882 = vmatpush2.msra.mxu0 0.0
        %3883 = vmatprep.subr.mxu0 0.0
        %3884 = vmatpush2.msra.mxu0 0.0
        %3885 = vmatprep.subr.mxu0 0.0
        %3886 = vmatpush2.msra.mxu0 0.0
        %3887 = vmatprep.subr.mxu0 0.0
        %3888 = vmatpush2.msra.mxu0 0.0
        %3889 = vmatprep.subr.mxu0 0.0
        %3890 = vmatpush2.msra.mxu0 0.0
        %3891 = vmatprep.subr.mxu0 0.0
        %3892 = vmatpush2.msra.mxu0 0.0
        %3893 = vmatprep.subr.mxu0 0.0
        %3894 = vmatpush2.msra.mxu0 0.0
        %3895 = vmatprep.subr.mxu0 0.0
        %3896 = vmatpush2.msra.mxu0 0.0
        %3897 = vmatprep.subr.mxu0 0.0
        %3898 = vmatpush2.msra.mxu0 0.0
        %3899 = vmatprep.subr.mxu0 0.0
        %3900 = vmatpush2.msra.mxu0 0.0
        %3901 = vmatprep.subr.mxu0 0.0
        %3902 = vmatpush2.msra.mxu0 0.0
        %3903 = vmatprep.subr.mxu0 0.0
        %3904 = vmatpush2.msra.mxu0 0.0
        %3905 = vmatprep.subr.mxu0 0.0
        %3906 = vmatpush2.msra.mxu0 0.0
        %3907 = vmatprep.subr.mxu0 0.0
        %3908 = vmatpush2.msra.mxu0 0.0
        %3909 = vmatprep.subr.mxu0 0.0
        %3910 = vmatpush2.msra.mxu0 0.0
        %3911 = vmatprep.mubr.f32.mxu0 0.0
        %3912 = vmatmul.mubr.f32.gmra.mxu0 %v3842
        %v3913 = vpop.f32.mrf.mxu0
        %v3914 = vadd.f32 0.0, %v3913
        %v3915 = vpop.f32.mrf.mxu0
        %3916 = vmatprep.mubr.f32.mxu0 0.0
        %3917 = vmatmul.mubr.f32.gmra.mxu0 %v3845
        %v3918 = vpop.f32.mrf.mxu0
        %v3919 = vadd.f32 0.0, %v3918
        %v3920 = vpop.f32.mrf.mxu0
        %3921 = vdwg.mxu0
        %v3922 = vrcp.pop %v3228
        %v3923 = vmul.f32 %v3347, %v3922
        %v3924 = vrcp.pop %v3231
        %v3925 = vmul.f32 %v3352, %v3924
        %v3926 = vrcp.pop %v3234
        %v3927 = vmul.f32 %v3428, %v3926
        %v3928 = vrcp.pop %v3237
        %v3929 = vmul.f32 %v3433, %v3928
        %v3930 = vrcp.pop %v3240
        %v3931 = vmul.f32 %v3509, %v3930
        %v3932 = vrcp.pop %v3243
        %v3933 = vmul.f32 %v3514, %v3932
        %v3934 = vrcp.pop %v3246
        %v3935 = vmul.f32 %v3590, %v3934
        %v3936 = vrcp.pop %v3249
        %v3937 = vmul.f32 %v3595, %v3936
        %v3938 = vrcp.pop %v3252
        %v3939 = vmul.f32 %v3671, %v3938
        %v3940 = vrcp.pop %v3255
        %v3941 = vmul.f32 %v3676, %v3940
        %v3942 = vrcp.pop %v3258
        %v3943 = vmul.f32 %v3752, %v3942
        %v3944 = vrcp.pop %v3261
        %v3945 = vmul.f32 %v3757, %v3944
        %v3946 = vrcp.pop %v3264
        %v3947 = vmul.f32 %v3833, %v3946
        %v3948 = vrcp.pop %v3267
        %v3949 = vmul.f32 %v3838, %v3948
        %v3950 = vrcp.pop %v3270
        %v3951 = vmul.f32 %v3914, %v3950
        %v3952 = vrcp.pop %v3273
        %v3953 = vmul.f32 %v3919, %v3952
        %v3954 = vld [vmem:[%s5] sm:$0xf]
        %v3955 = vld [vmem:[%s5 + $0x4] sm:$0xf]
        %v3956 = vld [vmem:[%s5 + $0x8] sm:$0xf]
        %v3957 = vld [vmem:[%s5 + $0xc] sm:$0xf]
        %v3958 = vld [vmem:[%s5 + $0x10] sm:$0xf]
        %v3959 = vld [vmem:[%s5 + $0x14] sm:$0xf]
        %v3960 = vld [vmem:[%s5 + $0x18] sm:$0xf]
        %v3961 = vld [vmem:[%s5 + $0x1c] sm:$0xf]
        %v3963 = vsel %vm1115, %v3923, 0
        %v3966 = vsel %vm1115, %v3925, 0
        %vm3968 = vcmask 1043456
        %v3970 = vsel %vm3968, %v3954, 0
        %3972 = vmatprep.subr.mxu0 0.0
        %3973 = vmatpush1.msra.mxu0 0.0
        %3974 = vmatprep.subr.mxu0 0.0
        %3975 = vmatpush1.msra.mxu0 0.0
        %3976 = vmatprep.subr.mxu0 0.0
        %3977 = vmatpush1.msra.mxu0 0.0
        %3978 = vmatprep.subr.mxu0 0.0
        %3979 = vmatpush1.msra.mxu0 0.0
        %3980 = vmatprep.subr.mxu0 0.0
        %3981 = vmatpush1.msra.mxu0 0.0
        %3982 = vmatprep.subr.mxu0 0.0
        %3983 = vmatpush1.msra.mxu0 0.0
        %3984 = vmatprep.subr.mxu0 0.0
        %3985 = vmatpush1.msra.mxu0 0.0
        %3986 = vmatprep.subr.mxu0 0.0
        %3987 = vmatpush1.msra.mxu0 0.0
        %3988 = vmatprep.subr.mxu0 0.0
        %3989 = vmatpush1.msra.mxu0 0.0
        %3990 = vmatprep.subr.mxu0 0.0
        %3991 = vmatpush1.msra.mxu0 0.0
        %3992 = vmatprep.subr.mxu0 0.0
        %3993 = vmatpush1.msra.mxu0 0.0
        %3994 = vmatprep.subr.mxu0 0.0
        %3995 = vmatpush1.msra.mxu0 0.0
        %3996 = vmatprep.subr.mxu0 0.0
        %3997 = vmatpush1.msra.mxu0 0.0
        %3998 = vmatprep.subr.mxu0 0.0
        %3999 = vmatpush1.msra.mxu0 0.0
        %4000 = vmatprep.subr.mxu0 0.0
        %4001 = vmatpush1.msra.mxu0 0.0
        %4002 = vmatprep.subr.mxu0 0.0
        %4003 = vmatpush1.msra.mxu0 %v3970
        %4004 = vmatprep.subr.mxu0 0.0
        %4005 = vmatpush2.msra.mxu0 0.0
        %4006 = vmatprep.subr.mxu0 0.0
        %4007 = vmatpush2.msra.mxu0 0.0
        %4008 = vmatprep.subr.mxu0 0.0
        %4009 = vmatpush2.msra.mxu0 0.0
        %4010 = vmatprep.subr.mxu0 0.0
        %4011 = vmatpush2.msra.mxu0 0.0
        %4012 = vmatprep.subr.mxu0 0.0
        %4013 = vmatpush2.msra.mxu0 0.0
        %4014 = vmatprep.subr.mxu0 0.0
        %4015 = vmatpush2.msra.mxu0 0.0
        %4016 = vmatprep.subr.mxu0 0.0
        %4017 = vmatpush2.msra.mxu0 0.0
        %4018 = vmatprep.subr.mxu0 0.0
        %4019 = vmatpush2.msra.mxu0 0.0
        %4020 = vmatprep.subr.mxu0 0.0
        %4021 = vmatpush2.msra.mxu0 0.0
        %4022 = vmatprep.subr.mxu0 0.0
        %4023 = vmatpush2.msra.mxu0 0.0
        %4024 = vmatprep.subr.mxu0 0.0
        %4025 = vmatpush2.msra.mxu0 0.0
        %4026 = vmatprep.subr.mxu0 0.0
        %4027 = vmatpush2.msra.mxu0 0.0
        %4028 = vmatprep.subr.mxu0 0.0
        %4029 = vmatpush2.msra.mxu0 0.0
        %4030 = vmatprep.subr.mxu0 0.0
        %4031 = vmatpush2.msra.mxu0 0.0
        %4032 = vmatprep.subr.mxu0 0.0
        %4033 = vmatpush2.msra.mxu0 0.0
        %4034 = vmatprep.subr.mxu0 0.0
        %4035 = vmatpush2.msra.mxu0 0.0
        %4036 = vmatprep.mubr.f32.mxu0 0.0
        %4037 = vmatmul.mubr.f32.gmra.mxu0 %v3963
        %v4038 = vpop.f32.mrf.mxu0
        %v4039 = vadd.f32 0.0, %v4038
        %v4040 = vpop.f32.mrf.mxu0
        %4041 = vmatprep.mubr.f32.mxu0 0.0
        %4042 = vmatmul.mubr.f32.gmra.mxu0 %v3966
        %v4043 = vpop.f32.mrf.mxu0
        %v4044 = vadd.f32 0.0, %v4043
        %v4045 = vpop.f32.mrf.mxu0
        %4046 = vdwg.mxu0
        %v4048 = vsel %vm1115, %v3927, 0
        %v4051 = vsel %vm1115, %v3929, 0
        %v4054 = vsel %vm3968, %v3955, 0
        %4056 = vmatprep.subr.mxu0 0.0
        %4057 = vmatpush1.msra.mxu0 0.0
        %4058 = vmatprep.subr.mxu0 0.0
        %4059 = vmatpush1.msra.mxu0 0.0
        %4060 = vmatprep.subr.mxu0 0.0
        %4061 = vmatpush1.msra.mxu0 0.0
        %4062 = vmatprep.subr.mxu0 0.0
        %4063 = vmatpush1.msra.mxu0 0.0
        %4064 = vmatprep.subr.mxu0 0.0
        %4065 = vmatpush1.msra.mxu0 0.0
        %4066 = vmatprep.subr.mxu0 0.0
        %4067 = vmatpush1.msra.mxu0 0.0
        %4068 = vmatprep.subr.mxu0 0.0
        %4069 = vmatpush1.msra.mxu0 0.0
        %4070 = vmatprep.subr.mxu0 0.0
        %4071 = vmatpush1.msra.mxu0 0.0
        %4072 = vmatprep.subr.mxu0 0.0
        %4073 = vmatpush1.msra.mxu0 0.0
        %4074 = vmatprep.subr.mxu0 0.0
        %4075 = vmatpush1.msra.mxu0 0.0
        %4076 = vmatprep.subr.mxu0 0.0
        %4077 = vmatpush1.msra.mxu0 0.0
        %4078 = vmatprep.subr.mxu0 0.0
        %4079 = vmatpush1.msra.mxu0 0.0
        %4080 = vmatprep.subr.mxu0 0.0
        %4081 = vmatpush1.msra.mxu0 0.0
        %4082 = vmatprep.subr.mxu0 0.0
        %4083 = vmatpush1.msra.mxu0 0.0
        %4084 = vmatprep.subr.mxu0 0.0
        %4085 = vmatpush1.msra.mxu0 0.0
        %4086 = vmatprep.subr.mxu0 0.0
        %4087 = vmatpush1.msra.mxu0 %v4054
        %4088 = vmatprep.subr.mxu0 0.0
        %4089 = vmatpush2.msra.mxu0 0.0
        %4090 = vmatprep.subr.mxu0 0.0
        %4091 = vmatpush2.msra.mxu0 0.0
        %4092 = vmatprep.subr.mxu0 0.0
        %4093 = vmatpush2.msra.mxu0 0.0
        %4094 = vmatprep.subr.mxu0 0.0
        %4095 = vmatpush2.msra.mxu0 0.0
        %4096 = vmatprep.subr.mxu0 0.0
        %4097 = vmatpush2.msra.mxu0 0.0
        %4098 = vmatprep.subr.mxu0 0.0
        %4099 = vmatpush2.msra.mxu0 0.0
        %4100 = vmatprep.subr.mxu0 0.0
        %4101 = vmatpush2.msra.mxu0 0.0
        %4102 = vmatprep.subr.mxu0 0.0
        %4103 = vmatpush2.msra.mxu0 0.0
        %4104 = vmatprep.subr.mxu0 0.0
        %4105 = vmatpush2.msra.mxu0 0.0
        %4106 = vmatprep.subr.mxu0 0.0
        %4107 = vmatpush2.msra.mxu0 0.0
        %4108 = vmatprep.subr.mxu0 0.0
        %4109 = vmatpush2.msra.mxu0 0.0
        %4110 = vmatprep.subr.mxu0 0.0
        %4111 = vmatpush2.msra.mxu0 0.0
        %4112 = vmatprep.subr.mxu0 0.0
        %4113 = vmatpush2.msra.mxu0 0.0
        %4114 = vmatprep.subr.mxu0 0.0
        %4115 = vmatpush2.msra.mxu0 0.0
        %4116 = vmatprep.subr.mxu0 0.0
        %4117 = vmatpush2.msra.mxu0 0.0
        %4118 = vmatprep.subr.mxu0 0.0
        %4119 = vmatpush2.msra.mxu0 0.0
        %4120 = vmatprep.mubr.f32.mxu0 0.0
        %4121 = vmatmul.mubr.f32.gmra.mxu0 %v4048
        %v4122 = vpop.f32.mrf.mxu0
        %v4123 = vadd.f32 0.0, %v4122
        %v4124 = vpop.f32.mrf.mxu0
        %4125 = vmatprep.mubr.f32.mxu0 0.0
        %4126 = vmatmul.mubr.f32.gmra.mxu0 %v4051
        %v4127 = vpop.f32.mrf.mxu0
        %v4128 = vadd.f32 0.0, %v4127
        %v4129 = vpop.f32.mrf.mxu0
        %4130 = vdwg.mxu0
        %v4132 = vsel %vm1115, %v3931, 0
        %v4135 = vsel %vm1115, %v3933, 0
        %v4138 = vsel %vm3968, %v3956, 0
        %4140 = vmatprep.subr.mxu0 0.0
        %4141 = vmatpush1.msra.mxu0 0.0
        %4142 = vmatprep.subr.mxu0 0.0
        %4143 = vmatpush1.msra.mxu0 0.0
        %4144 = vmatprep.subr.mxu0 0.0
        %4145 = vmatpush1.msra.mxu0 0.0
        %4146 = vmatprep.subr.mxu0 0.0
        %4147 = vmatpush1.msra.mxu0 0.0
        %4148 = vmatprep.subr.mxu0 0.0
        %4149 = vmatpush1.msra.mxu0 0.0
        %4150 = vmatprep.subr.mxu0 0.0
        %4151 = vmatpush1.msra.mxu0 0.0
        %4152 = vmatprep.subr.mxu0 0.0
        %4153 = vmatpush1.msra.mxu0 0.0
        %4154 = vmatprep.subr.mxu0 0.0
        %4155 = vmatpush1.msra.mxu0 0.0
        %4156 = vmatprep.subr.mxu0 0.0
        %4157 = vmatpush1.msra.mxu0 0.0
        %4158 = vmatprep.subr.mxu0 0.0
        %4159 = vmatpush1.msra.mxu0 0.0
        %4160 = vmatprep.subr.mxu0 0.0
        %4161 = vmatpush1.msra.mxu0 0.0
        %4162 = vmatprep.subr.mxu0 0.0
        %4163 = vmatpush1.msra.mxu0 0.0
        %4164 = vmatprep.subr.mxu0 0.0
        %4165 = vmatpush1.msra.mxu0 0.0
        %4166 = vmatprep.subr.mxu0 0.0
        %4167 = vmatpush1.msra.mxu0 0.0
        %4168 = vmatprep.subr.mxu0 0.0
        %4169 = vmatpush1.msra.mxu0 0.0
        %4170 = vmatprep.subr.mxu0 0.0
        %4171 = vmatpush1.msra.mxu0 %v4138
        %4172 = vmatprep.subr.mxu0 0.0
        %4173 = vmatpush2.msra.mxu0 0.0
        %4174 = vmatprep.subr.mxu0 0.0
        %4175 = vmatpush2.msra.mxu0 0.0
        %4176 = vmatprep.subr.mxu0 0.0
        %4177 = vmatpush2.msra.mxu0 0.0
        %4178 = vmatprep.subr.mxu0 0.0
        %4179 = vmatpush2.msra.mxu0 0.0
        %4180 = vmatprep.subr.mxu0 0.0
        %4181 = vmatpush2.msra.mxu0 0.0
        %4182 = vmatprep.subr.mxu0 0.0
        %4183 = vmatpush2.msra.mxu0 0.0
        %4184 = vmatprep.subr.mxu0 0.0
        %4185 = vmatpush2.msra.mxu0 0.0
        %4186 = vmatprep.subr.mxu0 0.0
        %4187 = vmatpush2.msra.mxu0 0.0
        %4188 = vmatprep.subr.mxu0 0.0
        %4189 = vmatpush2.msra.mxu0 0.0
        %4190 = vmatprep.subr.mxu0 0.0
        %4191 = vmatpush2.msra.mxu0 0.0
        %4192 = vmatprep.subr.mxu0 0.0
        %4193 = vmatpush2.msra.mxu0 0.0
        %4194 = vmatprep.subr.mxu0 0.0
        %4195 = vmatpush2.msra.mxu0 0.0
        %4196 = vmatprep.subr.mxu0 0.0
        %4197 = vmatpush2.msra.mxu0 0.0
        %4198 = vmatprep.subr.mxu0 0.0
        %4199 = vmatpush2.msra.mxu0 0.0
        %4200 = vmatprep.subr.mxu0 0.0
        %4201 = vmatpush2.msra.mxu0 0.0
        %4202 = vmatprep.subr.mxu0 0.0
        %4203 = vmatpush2.msra.mxu0 0.0
        %4204 = vmatprep.mubr.f32.mxu0 0.0
        %4205 = vmatmul.mubr.f32.gmra.mxu0 %v4132
        %v4206 = vpop.f32.mrf.mxu0
        %v4207 = vadd.f32 0.0, %v4206
        %v4208 = vpop.f32.mrf.mxu0
        %4209 = vmatprep.mubr.f32.mxu0 0.0
        %4210 = vmatmul.mubr.f32.gmra.mxu0 %v4135
        %v4211 = vpop.f32.mrf.mxu0
        %v4212 = vadd.f32 0.0, %v4211
        %v4213 = vpop.f32.mrf.mxu0
        %4214 = vdwg.mxu0
        %v4216 = vsel %vm1115, %v3935, 0
        %v4219 = vsel %vm1115, %v3937, 0
        %v4222 = vsel %vm3968, %v3957, 0
        %4224 = vmatprep.subr.mxu0 0.0
        %4225 = vmatpush1.msra.mxu0 0.0
        %4226 = vmatprep.subr.mxu0 0.0
        %4227 = vmatpush1.msra.mxu0 0.0
        %4228 = vmatprep.subr.mxu0 0.0
        %4229 = vmatpush1.msra.mxu0 0.0
        %4230 = vmatprep.subr.mxu0 0.0
        %4231 = vmatpush1.msra.mxu0 0.0
        %4232 = vmatprep.subr.mxu0 0.0
        %4233 = vmatpush1.msra.mxu0 0.0
        %4234 = vmatprep.subr.mxu0 0.0
        %4235 = vmatpush1.msra.mxu0 0.0
        %4236 = vmatprep.subr.mxu0 0.0
        %4237 = vmatpush1.msra.mxu0 0.0
        %4238 = vmatprep.subr.mxu0 0.0
        %4239 = vmatpush1.msra.mxu0 0.0
        %4240 = vmatprep.subr.mxu0 0.0
        %4241 = vmatpush1.msra.mxu0 0.0
        %4242 = vmatprep.subr.mxu0 0.0
        %4243 = vmatpush1.msra.mxu0 0.0
        %4244 = vmatprep.subr.mxu0 0.0
        %4245 = vmatpush1.msra.mxu0 0.0
        %4246 = vmatprep.subr.mxu0 0.0
        %4247 = vmatpush1.msra.mxu0 0.0
        %4248 = vmatprep.subr.mxu0 0.0
        %4249 = vmatpush1.msra.mxu0 0.0
        %4250 = vmatprep.subr.mxu0 0.0
        %4251 = vmatpush1.msra.mxu0 0.0
        %4252 = vmatprep.subr.mxu0 0.0
        %4253 = vmatpush1.msra.mxu0 0.0
        %4254 = vmatprep.subr.mxu0 0.0
        %4255 = vmatpush1.msra.mxu0 %v4222
        %4256 = vmatprep.subr.mxu0 0.0
        %4257 = vmatpush2.msra.mxu0 0.0
        %4258 = vmatprep.subr.mxu0 0.0
        %4259 = vmatpush2.msra.mxu0 0.0
        %4260 = vmatprep.subr.mxu0 0.0
        %4261 = vmatpush2.msra.mxu0 0.0
        %4262 = vmatprep.subr.mxu0 0.0
        %4263 = vmatpush2.msra.mxu0 0.0
        %4264 = vmatprep.subr.mxu0 0.0
        %4265 = vmatpush2.msra.mxu0 0.0
        %4266 = vmatprep.subr.mxu0 0.0
        %4267 = vmatpush2.msra.mxu0 0.0
        %4268 = vmatprep.subr.mxu0 0.0
        %4269 = vmatpush2.msra.mxu0 0.0
        %4270 = vmatprep.subr.mxu0 0.0
        %4271 = vmatpush2.msra.mxu0 0.0
        %4272 = vmatprep.subr.mxu0 0.0
        %4273 = vmatpush2.msra.mxu0 0.0
        %4274 = vmatprep.subr.mxu0 0.0
        %4275 = vmatpush2.msra.mxu0 0.0
        %4276 = vmatprep.subr.mxu0 0.0
        %4277 = vmatpush2.msra.mxu0 0.0
        %4278 = vmatprep.subr.mxu0 0.0
        %4279 = vmatpush2.msra.mxu0 0.0
        %4280 = vmatprep.subr.mxu0 0.0
        %4281 = vmatpush2.msra.mxu0 0.0
        %4282 = vmatprep.subr.mxu0 0.0
        %4283 = vmatpush2.msra.mxu0 0.0
        %4284 = vmatprep.subr.mxu0 0.0
        %4285 = vmatpush2.msra.mxu0 0.0
        %4286 = vmatprep.subr.mxu0 0.0
        %4287 = vmatpush2.msra.mxu0 0.0
        %4288 = vmatprep.mubr.f32.mxu0 0.0
        %4289 = vmatmul.mubr.f32.gmra.mxu0 %v4216
        %v4290 = vpop.f32.mrf.mxu0
        %v4291 = vadd.f32 0.0, %v4290
        %v4292 = vpop.f32.mrf.mxu0
        %4293 = vmatprep.mubr.f32.mxu0 0.0
        %4294 = vmatmul.mubr.f32.gmra.mxu0 %v4219
        %v4295 = vpop.f32.mrf.mxu0
        %v4296 = vadd.f32 0.0, %v4295
        %v4297 = vpop.f32.mrf.mxu0
        %4298 = vdwg.mxu0
        %v4300 = vsel %vm1115, %v3939, 0
        %v4303 = vsel %vm1115, %v3941, 0
        %v4306 = vsel %vm3968, %v3958, 0
        %4308 = vmatprep.subr.mxu0 0.0
        %4309 = vmatpush1.msra.mxu0 0.0
        %4310 = vmatprep.subr.mxu0 0.0
        %4311 = vmatpush1.msra.mxu0 0.0
        %4312 = vmatprep.subr.mxu0 0.0
        %4313 = vmatpush1.msra.mxu0 0.0
        %4314 = vmatprep.subr.mxu0 0.0
        %4315 = vmatpush1.msra.mxu0 0.0
        %4316 = vmatprep.subr.mxu0 0.0
        %4317 = vmatpush1.msra.mxu0 0.0
        %4318 = vmatprep.subr.mxu0 0.0
        %4319 = vmatpush1.msra.mxu0 0.0
        %4320 = vmatprep.subr.mxu0 0.0
        %4321 = vmatpush1.msra.mxu0 0.0
        %4322 = vmatprep.subr.mxu0 0.0
        %4323 = vmatpush1.msra.mxu0 0.0
        %4324 = vmatprep.subr.mxu0 0.0
        %4325 = vmatpush1.msra.mxu0 0.0
        %4326 = vmatprep.subr.mxu0 0.0
        %4327 = vmatpush1.msra.mxu0 0.0
        %4328 = vmatprep.subr.mxu0 0.0
        %4329 = vmatpush1.msra.mxu0 0.0
        %4330 = vmatprep.subr.mxu0 0.0
        %4331 = vmatpush1.msra.mxu0 0.0
        %4332 = vmatprep.subr.mxu0 0.0
        %4333 = vmatpush1.msra.mxu0 0.0
        %4334 = vmatprep.subr.mxu0 0.0
        %4335 = vmatpush1.msra.mxu0 0.0
        %4336 = vmatprep.subr.mxu0 0.0
        %4337 = vmatpush1.msra.mxu0 0.0
        %4338 = vmatprep.subr.mxu0 0.0
        %4339 = vmatpush1.msra.mxu0 %v4306
        %4340 = vmatprep.subr.mxu0 0.0
        %4341 = vmatpush2.msra.mxu0 0.0
        %4342 = vmatprep.subr.mxu0 0.0
        %4343 = vmatpush2.msra.mxu0 0.0
        %4344 = vmatprep.subr.mxu0 0.0
        %4345 = vmatpush2.msra.mxu0 0.0
        %4346 = vmatprep.subr.mxu0 0.0
        %4347 = vmatpush2.msra.mxu0 0.0
        %4348 = vmatprep.subr.mxu0 0.0
        %4349 = vmatpush2.msra.mxu0 0.0
        %4350 = vmatprep.subr.mxu0 0.0
        %4351 = vmatpush2.msra.mxu0 0.0
        %4352 = vmatprep.subr.mxu0 0.0
        %4353 = vmatpush2.msra.mxu0 0.0
        %4354 = vmatprep.subr.mxu0 0.0
        %4355 = vmatpush2.msra.mxu0 0.0
        %4356 = vmatprep.subr.mxu0 0.0
        %4357 = vmatpush2.msra.mxu0 0.0
        %4358 = vmatprep.subr.mxu0 0.0
        %4359 = vmatpush2.msra.mxu0 0.0
        %4360 = vmatprep.subr.mxu0 0.0
        %4361 = vmatpush2.msra.mxu0 0.0
        %4362 = vmatprep.subr.mxu0 0.0
        %4363 = vmatpush2.msra.mxu0 0.0
        %4364 = vmatprep.subr.mxu0 0.0
        %4365 = vmatpush2.msra.mxu0 0.0
        %4366 = vmatprep.subr.mxu0 0.0
        %4367 = vmatpush2.msra.mxu0 0.0
        %4368 = vmatprep.subr.mxu0 0.0
        %4369 = vmatpush2.msra.mxu0 0.0
        %4370 = vmatprep.subr.mxu0 0.0
        %4371 = vmatpush2.msra.mxu0 0.0
        %4372 = vmatprep.mubr.f32.mxu0 0.0
        %4373 = vmatmul.mubr.f32.gmra.mxu0 %v4300
        %v4374 = vpop.f32.mrf.mxu0
        %v4375 = vadd.f32 0.0, %v4374
        %v4376 = vpop.f32.mrf.mxu0
        %4377 = vmatprep.mubr.f32.mxu0 0.0
        %4378 = vmatmul.mubr.f32.gmra.mxu0 %v4303
        %v4379 = vpop.f32.mrf.mxu0
        %v4380 = vadd.f32 0.0, %v4379
        %v4381 = vpop.f32.mrf.mxu0
        %4382 = vdwg.mxu0
        %v4384 = vsel %vm1115, %v3943, 0
        %v4387 = vsel %vm1115, %v3945, 0
        %v4390 = vsel %vm3968, %v3959, 0
        %4392 = vmatprep.subr.mxu0 0.0
        %4393 = vmatpush1.msra.mxu0 0.0
        %4394 = vmatprep.subr.mxu0 0.0
        %4395 = vmatpush1.msra.mxu0 0.0
        %4396 = vmatprep.subr.mxu0 0.0
        %4397 = vmatpush1.msra.mxu0 0.0
        %4398 = vmatprep.subr.mxu0 0.0
        %4399 = vmatpush1.msra.mxu0 0.0
        %4400 = vmatprep.subr.mxu0 0.0
        %4401 = vmatpush1.msra.mxu0 0.0
        %4402 = vmatprep.subr.mxu0 0.0
        %4403 = vmatpush1.msra.mxu0 0.0
        %4404 = vmatprep.subr.mxu0 0.0
        %4405 = vmatpush1.msra.mxu0 0.0
        %4406 = vmatprep.subr.mxu0 0.0
        %4407 = vmatpush1.msra.mxu0 0.0
        %4408 = vmatprep.subr.mxu0 0.0
        %4409 = vmatpush1.msra.mxu0 0.0
        %4410 = vmatprep.subr.mxu0 0.0
        %4411 = vmatpush1.msra.mxu0 0.0
        %4412 = vmatprep.subr.mxu0 0.0
        %4413 = vmatpush1.msra.mxu0 0.0
        %4414 = vmatprep.subr.mxu0 0.0
        %4415 = vmatpush1.msra.mxu0 0.0
        %4416 = vmatprep.subr.mxu0 0.0
        %4417 = vmatpush1.msra.mxu0 0.0
        %4418 = vmatprep.subr.mxu0 0.0
        %4419 = vmatpush1.msra.mxu0 0.0
        %4420 = vmatprep.subr.mxu0 0.0
        %4421 = vmatpush1.msra.mxu0 0.0
        %4422 = vmatprep.subr.mxu0 0.0
        %4423 = vmatpush1.msra.mxu0 %v4390
        %4424 = vmatprep.subr.mxu0 0.0
        %4425 = vmatpush2.msra.mxu0 0.0
        %4426 = vmatprep.subr.mxu0 0.0
        %4427 = vmatpush2.msra.mxu0 0.0
        %4428 = vmatprep.subr.mxu0 0.0
        %4429 = vmatpush2.msra.mxu0 0.0
        %4430 = vmatprep.subr.mxu0 0.0
        %4431 = vmatpush2.msra.mxu0 0.0
        %4432 = vmatprep.subr.mxu0 0.0
        %4433 = vmatpush2.msra.mxu0 0.0
        %4434 = vmatprep.subr.mxu0 0.0
        %4435 = vmatpush2.msra.mxu0 0.0
        %4436 = vmatprep.subr.mxu0 0.0
        %4437 = vmatpush2.msra.mxu0 0.0
        %4438 = vmatprep.subr.mxu0 0.0
        %4439 = vmatpush2.msra.mxu0 0.0
        %4440 = vmatprep.subr.mxu0 0.0
        %4441 = vmatpush2.msra.mxu0 0.0
        %4442 = vmatprep.subr.mxu0 0.0
        %4443 = vmatpush2.msra.mxu0 0.0
        %4444 = vmatprep.subr.mxu0 0.0
        %4445 = vmatpush2.msra.mxu0 0.0
        %4446 = vmatprep.subr.mxu0 0.0
        %4447 = vmatpush2.msra.mxu0 0.0
        %4448 = vmatprep.subr.mxu0 0.0
        %4449 = vmatpush2.msra.mxu0 0.0
        %4450 = vmatprep.subr.mxu0 0.0
        %4451 = vmatpush2.msra.mxu0 0.0
        %4452 = vmatprep.subr.mxu0 0.0
        %4453 = vmatpush2.msra.mxu0 0.0
        %4454 = vmatprep.subr.mxu0 0.0
        %4455 = vmatpush2.msra.mxu0 0.0
        %4456 = vmatprep.mubr.f32.mxu0 0.0
        %4457 = vmatmul.mubr.f32.gmra.mxu0 %v4384
        %v4458 = vpop.f32.mrf.mxu0
        %v4459 = vadd.f32 0.0, %v4458
        %v4460 = vpop.f32.mrf.mxu0
        %4461 = vmatprep.mubr.f32.mxu0 0.0
        %4462 = vmatmul.mubr.f32.gmra.mxu0 %v4387
        %v4463 = vpop.f32.mrf.mxu0
        %v4464 = vadd.f32 0.0, %v4463
        %v4465 = vpop.f32.mrf.mxu0
        %4466 = vdwg.mxu0
        %v4468 = vsel %vm1115, %v3947, 0
        %v4471 = vsel %vm1115, %v3949, 0
        %v4474 = vsel %vm3968, %v3960, 0
        %4476 = vmatprep.subr.mxu0 0.0
        %4477 = vmatpush1.msra.mxu0 0.0
        %4478 = vmatprep.subr.mxu0 0.0
        %4479 = vmatpush1.msra.mxu0 0.0
        %4480 = vmatprep.subr.mxu0 0.0
        %4481 = vmatpush1.msra.mxu0 0.0
        %4482 = vmatprep.subr.mxu0 0.0
        %4483 = vmatpush1.msra.mxu0 0.0
        %4484 = vmatprep.subr.mxu0 0.0
        %4485 = vmatpush1.msra.mxu0 0.0
        %4486 = vmatprep.subr.mxu0 0.0
        %4487 = vmatpush1.msra.mxu0 0.0
        %4488 = vmatprep.subr.mxu0 0.0
        %4489 = vmatpush1.msra.mxu0 0.0
        %4490 = vmatprep.subr.mxu0 0.0
        %4491 = vmatpush1.msra.mxu0 0.0
        %4492 = vmatprep.subr.mxu0 0.0
        %4493 = vmatpush1.msra.mxu0 0.0
        %4494 = vmatprep.subr.mxu0 0.0
        %4495 = vmatpush1.msra.mxu0 0.0
        %4496 = vmatprep.subr.mxu0 0.0
        %4497 = vmatpush1.msra.mxu0 0.0
        %4498 = vmatprep.subr.mxu0 0.0
        %4499 = vmatpush1.msra.mxu0 0.0
        %4500 = vmatprep.subr.mxu0 0.0
        %4501 = vmatpush1.msra.mxu0 0.0
        %4502 = vmatprep.subr.mxu0 0.0
        %4503 = vmatpush1.msra.mxu0 0.0
        %4504 = vmatprep.subr.mxu0 0.0
        %4505 = vmatpush1.msra.mxu0 0.0
        %4506 = vmatprep.subr.mxu0 0.0
        %4507 = vmatpush1.msra.mxu0 %v4474
        %4508 = vmatprep.subr.mxu0 0.0
        %4509 = vmatpush2.msra.mxu0 0.0
        %4510 = vmatprep.subr.mxu0 0.0
        %4511 = vmatpush2.msra.mxu0 0.0
        %4512 = vmatprep.subr.mxu0 0.0
        %4513 = vmatpush2.msra.mxu0 0.0
        %4514 = vmatprep.subr.mxu0 0.0
        %4515 = vmatpush2.msra.mxu0 0.0
        %4516 = vmatprep.subr.mxu0 0.0
        %4517 = vmatpush2.msra.mxu0 0.0
        %4518 = vmatprep.subr.mxu0 0.0
        %4519 = vmatpush2.msra.mxu0 0.0
        %4520 = vmatprep.subr.mxu0 0.0
        %4521 = vmatpush2.msra.mxu0 0.0
        %4522 = vmatprep.subr.mxu0 0.0
        %4523 = vmatpush2.msra.mxu0 0.0
        %4524 = vmatprep.subr.mxu0 0.0
        %4525 = vmatpush2.msra.mxu0 0.0
        %4526 = vmatprep.subr.mxu0 0.0
        %4527 = vmatpush2.msra.mxu0 0.0
        %4528 = vmatprep.subr.mxu0 0.0
        %4529 = vmatpush2.msra.mxu0 0.0
        %4530 = vmatprep.subr.mxu0 0.0
        %4531 = vmatpush2.msra.mxu0 0.0
        %4532 = vmatprep.subr.mxu0 0.0
        %4533 = vmatpush2.msra.mxu0 0.0
        %4534 = vmatprep.subr.mxu0 0.0
        %4535 = vmatpush2.msra.mxu0 0.0
        %4536 = vmatprep.subr.mxu0 0.0
        %4537 = vmatpush2.msra.mxu0 0.0
        %4538 = vmatprep.subr.mxu0 0.0
        %4539 = vmatpush2.msra.mxu0 0.0
        %4540 = vmatprep.mubr.f32.mxu0 0.0
        %4541 = vmatmul.mubr.f32.gmra.mxu0 %v4468
        %v4542 = vpop.f32.mrf.mxu0
        %v4543 = vadd.f32 0.0, %v4542
        %v4544 = vpop.f32.mrf.mxu0
        %4545 = vmatprep.mubr.f32.mxu0 0.0
        %4546 = vmatmul.mubr.f32.gmra.mxu0 %v4471
        %v4547 = vpop.f32.mrf.mxu0
        %v4548 = vadd.f32 0.0, %v4547
        %v4549 = vpop.f32.mrf.mxu0
        %4550 = vdwg.mxu0
        %v4552 = vsel %vm1115, %v3951, 0
        %v4555 = vsel %vm1115, %v3953, 0
        %v4558 = vsel %vm3968, %v3961, 0
        %4560 = vmatprep.subr.mxu0 0.0
        %4561 = vmatpush1.msra.mxu0 0.0
        %4562 = vmatprep.subr.mxu0 0.0
        %4563 = vmatpush1.msra.mxu0 0.0
        %4564 = vmatprep.subr.mxu0 0.0
        %4565 = vmatpush1.msra.mxu0 0.0
        %4566 = vmatprep.subr.mxu0 0.0
        %4567 = vmatpush1.msra.mxu0 0.0
        %4568 = vmatprep.subr.mxu0 0.0
        %4569 = vmatpush1.msra.mxu0 0.0
        %4570 = vmatprep.subr.mxu0 0.0
        %4571 = vmatpush1.msra.mxu0 0.0
        %4572 = vmatprep.subr.mxu0 0.0
        %4573 = vmatpush1.msra.mxu0 0.0
        %4574 = vmatprep.subr.mxu0 0.0
        %4575 = vmatpush1.msra.mxu0 0.0
        %4576 = vmatprep.subr.mxu0 0.0
        %4577 = vmatpush1.msra.mxu0 0.0
        %4578 = vmatprep.subr.mxu0 0.0
        %4579 = vmatpush1.msra.mxu0 0.0
        %4580 = vmatprep.subr.mxu0 0.0
        %4581 = vmatpush1.msra.mxu0 0.0
        %4582 = vmatprep.subr.mxu0 0.0
        %4583 = vmatpush1.msra.mxu0 0.0
        %4584 = vmatprep.subr.mxu0 0.0
        %4585 = vmatpush1.msra.mxu0 0.0
        %4586 = vmatprep.subr.mxu0 0.0
        %4587 = vmatpush1.msra.mxu0 0.0
        %4588 = vmatprep.subr.mxu0 0.0
        %4589 = vmatpush1.msra.mxu0 0.0
        %4590 = vmatprep.subr.mxu0 0.0
        %4591 = vmatpush1.msra.mxu0 %v4558
        %4592 = vmatprep.subr.mxu0 0.0
        %4593 = vmatpush2.msra.mxu0 0.0
        %4594 = vmatprep.subr.mxu0 0.0
        %4595 = vmatpush2.msra.mxu0 0.0
        %4596 = vmatprep.subr.mxu0 0.0
        %4597 = vmatpush2.msra.mxu0 0.0
        %4598 = vmatprep.subr.mxu0 0.0
        %4599 = vmatpush2.msra.mxu0 0.0
        %4600 = vmatprep.subr.mxu0 0.0
        %4601 = vmatpush2.msra.mxu0 0.0
        %4602 = vmatprep.subr.mxu0 0.0
        %4603 = vmatpush2.msra.mxu0 0.0
        %4604 = vmatprep.subr.mxu0 0.0
        %4605 = vmatpush2.msra.mxu0 0.0
        %4606 = vmatprep.subr.mxu0 0.0
        %4607 = vmatpush2.msra.mxu0 0.0
        %4608 = vmatprep.subr.mxu0 0.0
        %4609 = vmatpush2.msra.mxu0 0.0
        %4610 = vmatprep.subr.mxu0 0.0
        %4611 = vmatpush2.msra.mxu0 0.0
        %4612 = vmatprep.subr.mxu0 0.0
        %4613 = vmatpush2.msra.mxu0 0.0
        %4614 = vmatprep.subr.mxu0 0.0
        %4615 = vmatpush2.msra.mxu0 0.0
        %4616 = vmatprep.subr.mxu0 0.0
        %4617 = vmatpush2.msra.mxu0 0.0
        %4618 = vmatprep.subr.mxu0 0.0
        %4619 = vmatpush2.msra.mxu0 0.0
        %4620 = vmatprep.subr.mxu0 0.0
        %4621 = vmatpush2.msra.mxu0 0.0
        %4622 = vmatprep.subr.mxu0 0.0
        %4623 = vmatpush2.msra.mxu0 0.0
        %4624 = vmatprep.mubr.f32.mxu0 0.0
        %4625 = vmatmul.mubr.f32.gmra.mxu0 %v4552
        %v4626 = vpop.f32.mrf.mxu0
        %v4627 = vadd.f32 0.0, %v4626
        %v4628 = vpop.f32.mrf.mxu0
        %4629 = vmatprep.mubr.f32.mxu0 0.0
        %4630 = vmatmul.mubr.f32.gmra.mxu0 %v4555
        %v4631 = vpop.f32.mrf.mxu0
        %v4632 = vadd.f32 0.0, %v4631
        %v4633 = vpop.f32.mrf.mxu0
        %4634 = vdwg.mxu0
        %v4635 = vsel %vm1033, %v4039, 0.0
        %v4636 = vsel %vm1033, %v4123, 0.0
        %v4637 = vadd.f32 %v4635, %v4636
        %v4638 = vsel %vm1033, %v4207, 0.0
        %v4639 = vadd.f32 %v4637, %v4638
        %v4640 = vsel %vm1033, %v4291, 0.0
        %v4641 = vadd.f32 %v4639, %v4640
        %v4642 = vsel %vm1033, %v4375, 0.0
        %v4643 = vadd.f32 %v4641, %v4642
        %v4644 = vsel %vm1033, %v4459, 0.0
        %v4645 = vadd.f32 %v4643, %v4644
        %v4646 = vsel %vm1033, %v4543, 0.0
        %v4647 = vadd.f32 %v4645, %v4646
        %v4648 = vsel %vm1033, %v4627, 0.0
        %v4649 = vadd.f32 %v4647, %v4648
        %v4650 = vsel %vm1033, %v4044, 0.0
        %v4651 = vsel %vm1033, %v4128, 0.0
        %v4652 = vadd.f32 %v4650, %v4651
        %v4653 = vsel %vm1033, %v4212, 0.0
        %v4654 = vadd.f32 %v4652, %v4653
        %v4655 = vsel %vm1033, %v4296, 0.0
        %v4656 = vadd.f32 %v4654, %v4655
        %v4657 = vsel %vm1033, %v4380, 0.0
        %v4658 = vadd.f32 %v4656, %v4657
        %v4659 = vsel %vm1033, %v4464, 0.0
        %v4660 = vadd.f32 %v4658, %v4659
        %v4661 = vsel %vm1033, %v4548, 0.0
        %v4662 = vadd.f32 %v4660, %v4661
        %v4663 = vsel %vm1033, %v4632, 0.0
        %v4664 = vadd.f32 %v4662, %v4663
        %v4665 = vld [vmem:[%s6] sm:$0x1]
        %v4667 = vlaneseq
        %v4668 = vshrl.u32 %v4667, 7
        %v4669 = vsub.s32 0, %v4668
        %v4670 = vrot.slane %v4665, %v4669
        %v4672 = vadd.f32 %v4649, %v4670
        %v4673 = vadd.f32 %v4664, %v4670
        %4674 = vst.msk [vmem:[%s329] sm:$0xff] %vm1033, %v4672
        %4675 = vst.msk [vmem:[%s329 + $0x8] sm:$0xff] %vm1033, %v4673
        %s4676 = sand.u32 %s211, 1
        %s4677 = scalar_lea.sflag [#allocation9], %s4676
        %s4678 = sand.u32 %s211, 1
        %s4679 = smul.addr %s4678, 16
        %s4680 = scalar_lea.vmem [#allocation8], %s4679
        // Predicated region
        $region53: #{tpu_custom_call.1} parent=47 // pred_check
          %p4681 = pneg %p221
        $region54: #{tpu_custom_call.1} parent=47 // pred_check_branch
          %4683 = sbr.rel (%p4681) target = $region56
        $region55: #{tpu_custom_call.1} parent=47 // pred_region
          %s4684 = smul.u32 2, %s27
          %s4686 = ssub.s32 256, 256
          %4687 = vsyncadd %s4677, %s4686
          %s4688 = smul.addr %s26, 2
          %s4689 = sadd.s32 %s4684, %s4688
          %s4690 = smul.addr %s4689, 128
          %s4691 = scalar_lea.hbm %s7, %s4690
          %s4692 = sshll.u32 %s4680, 4
          %s4693 = int_to_ptr.vmem [resolvable:$true] %s4692
          %4698 = dma.vmem_to_hbm [thread:$0]  %s4693, 256, %s4691, %s4677, 128, 128, 8
        $region56: #{tpu_custom_call.1} parent=47 // pred_fallthru
          _
      $region48: #{tpu_custom_call.1} parent=5 // pred_fallthru
        _
      %p4699 = scmp.le.s32.totalorder 2, %s16
      // Predicated region
      $region57: #{tpu_custom_call.1} parent=5 // pred_check
        %p4700 = pneg %p4699
      $region58: #{tpu_custom_call.1} parent=5 // pred_check_branch
        %4702 = sbr.rel (%p4700) target = $region60
      $region59: #{tpu_custom_call.1} parent=5 // pred_region
        %s4703 = ssub.s32 %s16, 2
        // Predicated region
        $region61: #{tpu_custom_call.1} parent=59 // pred_check
          %p4704 = pneg %p227
        $region62: #{tpu_custom_call.1} parent=59 // pred_check_branch
          %4706 = sbr.rel (%p4704) target = $region64
        $region63: #{tpu_custom_call.1} parent=59 // pred_region
          %s4707 = sand.u32 %s212, 1
          %s4708 = scalar_lea.sflag [#allocation9], %s4707
          %s4709 = sand.u32 %s212, 1
          %s4710 = smul.addr %s4709, 16
          %s4711 = scalar_lea.vmem [#allocation8], %s4710
          %4712 = dma.done %s4708, 256
        $region64: #{tpu_custom_call.1} parent=59 // pred_fallthru
          _
      $region60: #{tpu_custom_call.1} parent=5 // pred_fallthru
        _
    $region6: #{tpu_custom_call.1} parent=1 // loop_footer
      %s20 = sadd.s32 1, %s16
    $region7: #{tpu_custom_call.1} parent=1 // loop_footer_branch
      %15 = sbr.rel target = $region3
    $region8: #{tpu_custom_call.1} parent=1 // loop_exit
      _
    %4713 = vsyncpa [#allocation9], 1
    %s4714 = scalar_lea.sflag [#allocation9], 1
    %4715 = vsyncpa %s4714, 1

</llo_original>
